<compile_context>
chip_gen: v7x
topology: tpu7x:2x2x1
jax: 0.10.0
libtpu: 0.0.40
codegen_flags: <defaults>
</compile_context>

<pallas_src>
import functools

import jax
import jax.numpy as jnp
from jax import lax
from jax.experimental import pallas as pl
from jax.experimental.pallas import tpu as pltpu

# 48 MiB scoped VMEM: larger than the 32 MiB default (helps v5e/v6e) while
# still safe on v7x's 64 MiB-per-TensorCore VMEM.
_VMEM_LIMIT = 48 * 1024 * 1024


def _cparams(n_par):
    return pltpu.CompilerParams(dimension_semantics=("parallel",) * n_par,
                                vmem_limit_bytes=_VMEM_LIMIT)


def _round_up(x, m):
    return ((x + m - 1) // m) * m


def _pick_rows_tile(m):
    """Row-tile choice: big tiles for the HBM roofline, >=2 blocks so the
    'parallel' grid axis can shard across both v7x TensorCores."""
    mp = _round_up(max(m, 1), 8)
    if mp >= 2048:
        tm = 1024
    elif mp >= 16:
        tm = _round_up(mp // 2, 8)
    else:
        tm = mp
    mp = _round_up(mp, tm)
    return mp, tm


def _pad_rows(x2d, mp):
    m = x2d.shape[0]
    return x2d if m == mp else jnp.pad(x2d, ((0, mp - m), (0, 0)))


def _bcast_spec(shape):
    nd = len(shape)

    def idx(*_):
        return (0,) * nd

    return pl.BlockSpec(shape, idx)


# ----------------------- fused affine/ReLU + GEMM kernel --------------------

def _fused_matmul_kernel(x_ref, si_ref, bi_ref, w_ref, so_ref, bo_ref, o_ref,
                         *, relu_in, relu_out):
    h = x_ref[...].astype(jnp.float32) * si_ref[...] + bi_ref[...]
    if relu_in:
        h = jnp.maximum(h, 0.0)
    y = jnp.dot(h.astype(jnp.bfloat16), w_ref[...],
                preferred_element_type=jnp.float32)
    y = y * so_ref[...] + bo_ref[...]
    if relu_out:
        y = jnp.maximum(y, 0.0)
    o_ref[...] = y.astype(o_ref.dtype)


def fused_matmul(x2d, w2d, *, in_scale=None, in_bias=None,
                 out_scale=None, out_bias=None,
                 relu_in=False, relu_out=False, out_dtype=jnp.bfloat16):
    """(BN-affine, ReLU) -> GEMM -> (BN-affine, ReLU), one pallas_call."""
    M, K = x2d.shape
    Kw, N = w2d.shape
    assert K == Kw
    si = (jnp.ones((1, K), jnp.float32) if in_scale is None
          else in_scale.reshape(1, K).astype(jnp.float32))
    bi = (jnp.zeros((1, K), jnp.float32) if in_bias is None
          else in_bias.reshape(1, K).astype(jnp.float32))
    so = (jnp.ones((1, N), jnp.float32) if out_scale is None
          else out_scale.reshape(1, N).astype(jnp.float32))
    bo = (jnp.zeros((1, N), jnp.float32) if out_bias is None
          else out_bias.reshape(1, N).astype(jnp.float32))
    mp, tm = _pick_rows_tile(M)
    xb = _pad_rows(x2d.astype(jnp.bfloat16), mp)
    wb = w2d.astype(jnp.bfloat16)
    out = pl.pallas_call(
        functools.partial(_fused_matmul_kernel,
                          relu_in=relu_in, relu_out=relu_out),
        out_shape=jax.ShapeDtypeStruct((mp, N), out_dtype),
        grid=(mp // tm,),
        in_specs=[pl.BlockSpec((tm, K), lambda i: (i, 0)),
                  pl.BlockSpec((1, K), lambda i: (0, 0)),
                  pl.BlockSpec((1, K), lambda i: (0, 0)),
                  pl.BlockSpec((K, N), lambda i: (0, 0)),   # weight resident
                  pl.BlockSpec((1, N), lambda i: (0, 0)),
                  pl.BlockSpec((1, N), lambda i: (0, 0))],
        out_specs=pl.BlockSpec((tm, N), lambda i: (i, 0)),
        compiler_params=_cparams(1),
    )(xb, si, bi, wb, so, bo)
    return out[:M] if mp != M else out


# ------------------ 3x3 conv on a pre-activated slab (implicit GEMM) --------

def _conv3x3_kernel(x_ref, w_ref, o_ref, xpad_ref, *, H, W, P):
    # x_ref: (1, HW, Cb) already norm2+ReLU-activated bottleneck output (bf16).
    # xpad_ref: VMEM scratch (2P+HW, Cb); zero rows top/bottom give vertical
    # padding for free, so only the 6 dj!=0 taps need a column mask.
    HW = H * W
    Cb = x_ref.shape[-1]
    zeros_pad = jnp.zeros((P, Cb), xpad_ref.dtype)
    xpad_ref[0:P, :] = zeros_pad
    xpad_ref[P + HW:, :] = zeros_pad
    xpad_ref[P:P + HW, :] = x_ref[0]

    cols = lax.broadcasted_iota(jnp.int32, (HW, 1), 0) % W
    left_ok = cols >= 1          # tap column w-1 exists
    right_ok = cols <= W - 2     # tap column w+1 exists

    taps = []
    for t in range(9):
        di, dj = t // 3 - 1, t % 3 - 1
        off = P + di * W + dj
        tap = xpad_ref[off:off + HW, :]
        if dj == -1:
            tap = jnp.where(left_ok, tap, jnp.zeros_like(tap))
        elif dj == 1:
            tap = jnp.where(right_ok, tap, jnp.zeros_like(tap))
        taps.append(tap)
    patches = jnp.concatenate(taps, axis=-1)               # (HW, 9*Cb)
    o_ref[0] = jnp.dot(patches, w_ref[...],
                       preferred_element_type=jnp.float32).astype(o_ref.dtype)


def conv3x3(bott2d, N, H, W, w_oihw, out_dtype=jnp.bfloat16):
    """3x3/s1/p1 conv on an already-activated (N*HW, Cb) slab.

    One long-K dot per image (K = 9*Cb) instead of 9 tiny dots; no HBM pad or
    im2col materialization (row padding lives in a VMEM scratch)."""
    Cb = bott2d.shape[1]
    Co = w_oihw.shape[0]
    HW = H * W
    P = _round_up(W + 1, 8)      # >= W+1 keeps every tap slice in bounds
    x3 = bott2d.reshape(N, HW, Cb).astype(jnp.bfloat16)
    w9 = jnp.transpose(w_oihw, (2, 3, 1, 0)).reshape(9 * Cb, Co)
    w9 = w9.astype(jnp.bfloat16)
    out = pl.pallas_call(
        functools.partial(_conv3x3_kernel, H=H, W=W, P=P),
        out_shape=jax.ShapeDtypeStruct((N, HW, Co), out_dtype),
        grid=(N,),
        in_specs=[pl.BlockSpec((1, HW, Cb), lambda n: (n, 0, 0)),
                  pl.BlockSpec((9 * Cb, Co), lambda n: (0, 0))],
        out_specs=pl.BlockSpec((1, HW, Co), lambda n: (n, 0, 0)),
        scratch_shapes=[pltpu.VMEM((2 * P + HW, Cb), jnp.bfloat16)],
        compiler_params=_cparams(1),
    )(x3, w9)
    return out.reshape(N * HW, Co)


# ----------------------------- stem max pooling -----------------------------

def _maxpool_kernel(xa_ref, xb_ref, s_ref, o_ref):
    # xa: padded rows 2ho, 2ho+1; xb: padded rows 2ho+2, 2ho+3 (last ignored).
    r0 = xa_ref[0, 0].astype(jnp.float32)
    r1 = xa_ref[0, 1].astype(jnp.float32)
    r2 = xb_ref[0, 0].astype(jnp.float32)
    m = jnp.maximum(jnp.maximum(r0, r1), r2).astype(jnp.bfloat16)   # (Wp, C)
    # horizontal 3-wide / stride-2 window via three 0/1 selection matmuls (MXU)
    o = jnp.dot(s_ref[0], m, preferred_element_type=jnp.float32)
    o = jnp.maximum(o, jnp.dot(s_ref[1], m, preferred_element_type=jnp.float32))
    o = jnp.maximum(o, jnp.dot(s_ref[2], m, preferred_element_type=jnp.float32))
    o_ref[0, 0] = o.astype(o_ref.dtype)


def max_pool_3x3_s2_p1(x_nhwc):
    """MaxPool2d(3, 2, 1) fully in-kernel (no HBM tap materialization).

    Zero padding is exact here because inputs are post-ReLU (>= 0); not safe
    to reuse on signed inputs without -inf padding."""
    N, H, W, C = x_nhwc.shape
    Ho = (H + 2 - 3) // 2 + 1
    Wo = (W + 2 - 3) // 2 + 1
    Wp = W + 2
    xp = jnp.pad(x_nhwc, ((0, 0), (1, 1), (1, 1), (0, 0)))
    sel = jnp.stack([jnp.arange(Wp)[None, :] == (2 * jnp.arange(Wo)[:, None] + t)
                     for t in range(3)]).astype(jnp.bfloat16)        # (3,Wo,Wp)
    out = pl.pallas_call(
        _maxpool_kernel,
        out_shape=jax.ShapeDtypeStruct((N, Ho, Wo, C), x_nhwc.dtype),
        grid=(N, Ho),
        in_specs=[pl.BlockSpec((1, 2, Wp, C), lambda n, r: (n, r, 0, 0)),
                  pl.BlockSpec((1, 2, Wp, C), lambda n, r: (n, r + 1, 0, 0)),
                  pl.BlockSpec((3, Wo, Wp), lambda n, r: (0, 0, 0))],
        out_specs=pl.BlockSpec((1, 1, Wo, C), lambda n, r: (n, r, 0, 0)),
        compiler_params=_cparams(2),
    )(xp, xp, sel)
    return out


# ------------------- transition: BN+ReLU+conv1x1+avgpool --------------------

def _transition_kernel(x_ref, s_ref, b_ref, pw_ref, w_ref, o_ref):
    # x_ref: (2, W, C) = two consecutive image rows; avgpool commutes with the
    # 1x1 conv, so pool first (row-pair sum + 0.25-weighted column-pair matmul).
    a = jnp.maximum(x_ref[...].astype(jnp.float32) * s_ref[...] + b_ref[...],
                    0.0)                                       # norm + ReLU
    hsum = a[0] + a[1]                                         # (W, C)
    pooled = jnp.dot(pw_ref[...], hsum.astype(jnp.bfloat16),
                     preferred_element_type=jnp.float32)       # (Wo, C)
    o_ref[0] = jnp.dot(pooled.astype(jnp.bfloat16), w_ref[...],
                       preferred_element_type=jnp.float32).astype(o_ref.dtype)


def transition(x_nhwc, scale, bias, w_oi11, out_dtype=jnp.bfloat16):
    N, H, W, C = x_nhwc.shape
    Ho, Wo = H // 2, W // 2
    Co = w_oi11.shape[0]
    x3 = x_nhwc.reshape(N * H, W, C).astype(jnp.bfloat16)
    w2 = w_oi11.reshape(Co, C).T.astype(jnp.bfloat16)
    s = scale.reshape(1, 1, C).astype(jnp.float32)
    b = bias.reshape(1, 1, C).astype(jnp.float32)
    pw = ((jnp.arange(Wo)[:, None] == jnp.arange(W)[None, :] // 2)
          .astype(jnp.float32) * 0.25).astype(jnp.bfloat16)     # (Wo, W)
    out = pl.pallas_call(
        _transition_kernel,
        out_shape=jax.ShapeDtypeStruct((N * Ho, Wo, Co), out_dtype),
        grid=(N * Ho,),
        in_specs=[pl.BlockSpec((2, W, C), lambda r: (r, 0, 0)),
                  pl.BlockSpec((1, 1, C), lambda r: (0, 0, 0)),
                  pl.BlockSpec((1, 1, C), lambda r: (0, 0, 0)),
                  pl.BlockSpec((Wo, W), lambda r: (0, 0)),
                  pl.BlockSpec((C, Co), lambda r: (0, 0))],
        out_specs=pl.BlockSpec((1, Wo, Co), lambda r: (r, 0, 0)),
        compiler_params=_cparams(1),
    )(x3, s, b, pw, w2)
    return out.reshape(N, Ho, Wo, Co)


# ------------- head: norm5+ReLU+GAP+fc0+ReLU+bn0+fc1 in one kernel ----------

def _head_kernel(x_ref, s5_ref, b5_ref, w0_ref, b0_ref, sb_ref, bb_ref,
                 w1_ref, b1_ref, o_ref, *, inv_hw):
    a = jnp.maximum(x_ref[...].astype(jnp.float32) * s5_ref[...] + b5_ref[...],
                    0.0)                                        # norm5 + ReLU
    g = jnp.sum(a, axis=1) * inv_hw                             # GAP (XLU)
    h = jnp.dot(g.astype(jnp.bfloat16), w0_ref[...],
                preferred_element_type=jnp.float32) + b0_ref[...]       # fc0
    h = jnp.maximum(h, 0.0)                                     # ReLU
    h = h * sb_ref[...] + bb_ref[...]                           # bn0 (eval)
    y = jnp.dot(h.astype(jnp.bfloat16), w1_ref[...],
                preferred_element_type=jnp.float32) + b1_ref[...]       # fc1
    o_ref[...] = y


def classifier_head(feats2d, N, HW, s5, b5, w0, fb0, sb, bb, w1, fb1):
    M, C = feats2d.shape
    assert M == N * HW
    H0 = w0.shape[0]
    NC = w1.shape[0]
    args = (feats2d.reshape(N, HW, C).astype(jnp.bfloat16),
            s5.reshape(1, 1, C).astype(jnp.float32),
            b5.reshape(1, 1, C).astype(jnp.float32),
            w0.T.astype(jnp.bfloat16),
            fb0.reshape(1, H0).astype(jnp.float32),
            sb.reshape(1, H0).astype(jnp.float32),
            bb.reshape(1, H0).astype(jnp.float32),
            w1.T.astype(jnp.bfloat16),
            fb1.reshape(1, NC).astype(jnp.float32))
    in_specs = [_bcast_spec(a.shape) for a in args]
    return pl.pallas_call(
        functools.partial(_head_kernel, inv_hw=1.0 / float(HW)),
        out_shape=jax.ShapeDtypeStruct((N, NC), jnp.float32),
        grid=(1,),
        in_specs=in_specs,
        out_specs=pl.BlockSpec((N, NC), lambda i: (0, 0)),
        compiler_params=pltpu.CompilerParams(
            dimension_semantics=("arbitrary",), vmem_limit_bytes=_VMEM_LIMIT),
    )(*args)


# ------------------------------- JAX glue -----------------------------------

def im2col(x_nhwc, kh, kw, stride, pad):
    N, H, W, C = x_nhwc.shape
    Ho = (H + 2 * pad - kh) // stride + 1
    Wo = (W + 2 * pad - kw) // stride + 1
    xp = jnp.pad(x_nhwc, ((0, 0), (pad, pad), (pad, pad), (0, 0)))
    cols = [xp[:, i:i + stride * Ho:stride, j:j + stride * Wo:stride, :]
            for i in range(kh) for j in range(kw)]
    patches = jnp.concatenate(cols, axis=-1)                 # (N,Ho,Wo,kh*kw*C)
    return patches.reshape(N * Ho * Wo, kh * kw * C), (N, Ho, Wo)


def conv0_bn_relu(x_nhwc, w_oihw, scale, bias):
    # 7x7/s2 stem conv as im2col + GEMM with norm0+ReLU fused on the output.
    # TODO(synk): stem im2col stays HBM-materialized (one-time, 3-ch input);
    # the per-layer 3x3 convs use the implicit-GEMM kernel.
    O, Ci, kh, kw = w_oihw.shape
    x2d, (N, Ho, Wo) = im2col(x_nhwc.astype(jnp.bfloat16), kh, kw, 2, 3)
    w2d = jnp.transpose(w_oihw, (2, 3, 1, 0)).reshape(kh * kw * Ci, O)
    y = fused_matmul(x2d, w2d, out_scale=scale, out_bias=bias, relu_out=True)
    return y.reshape(N, Ho, Wo, O)


def bn_params(c):
    return dict(gamma=jnp.ones((c,), jnp.float32),
                beta=jnp.zeros((c,), jnp.float32),
                mean=jnp.zeros((c,), jnp.float32),
                var=jnp.ones((c,), jnp.float32),
                eps=1e-5)


def bn_scale_bias(bn):
    scale = bn["gamma"] / jnp.sqrt(bn["var"] + bn["eps"])
    return scale, bn["beta"] - bn["mean"] * scale


def make_params(key, num_in=3, num_init=16, growth=8, block_config=(2, 2),
                bn_size=2, num_classes=1):
    keys = list(jax.random.split(key, 64))
    kid = iter(range(64))

    def xavier(cout, cin, kh, kw):
        fan_in, fan_out = cin * kh * kw, cout * kh * kw
        lim = (6.0 / (fan_in + fan_out)) ** 0.5
        return jax.random.uniform(keys[next(kid)], (cout, cin, kh, kw),
                                  jnp.float32, -lim, lim)

    def linear(cout, cin):
        lim = 1.0 / (cin ** 0.5)
        w = jax.random.uniform(keys[next(kid)], (cout, cin),
                               jnp.float32, -lim, lim)
        return w, jnp.zeros((cout,), jnp.float32)   # bias init'd to 0 (module)

    p = {"conv0_w": xavier(num_init, num_in, 7, 7), "norm0": bn_params(num_init)}
    num_features = num_init
    blocks, transitions = [], []
    for bi, num_layers in enumerate(block_config):
        layers = []
        for li in range(num_layers):
            cin = num_features + li * growth
            layers.append(dict(
                norm1=bn_params(cin),
                conv1_w=xavier(bn_size * growth, cin, 1, 1),
                norm2=bn_params(bn_size * growth),
                conv2_w=xavier(growth, bn_size * growth, 3, 3),
            ))
        blocks.append(layers)
        num_features += num_layers * growth
        if bi != len(block_config) - 1:
            transitions.append(dict(
                norm=bn_params(num_features),
                conv_w=xavier(num_features // 2, num_features, 1, 1),
            ))
            num_features //= 2
    p["blocks"] = blocks
    p["transitions"] = transitions
    p["norm5"] = bn_params(num_features)
    p["fc0_w"], p["fc0_b"] = linear(512, num_features)
    p["bn0"] = bn_params(512)
    p["fc1_w"], p["fc1_b"] = linear(num_classes, 512)
    return p


# -------------------------------- forward -----------------------------------

def densenet_forward(params, x_nchw, mode="eval"):
    # `mode` only bumps a step counter in the PyTorch module; no compute effect.
    x = jnp.transpose(x_nchw, (0, 2, 3, 1))                    # NCHW -> NHWC

    # stem: conv0 + norm0 + ReLU (fused GEMM), then maxpool(3,2,1)
    s0, b0 = bn_scale_bias(params["norm0"])
    x = conv0_bn_relu(x, params["conv0_w"], s0, b0)
    x = max_pool_3x3_s2_p1(x)
    N, H, W, _ = x.shape
    feats = x.reshape(N * H * W, x.shape[-1])                  # bf16 slab

    n_blocks = len(params["blocks"])
    for bi, layers in enumerate(params["blocks"]):
        for layer in layers:
            Cin = feats.shape[1]
            s1, b1 = bn_scale_bias(layer["norm1"])
            s2, b2 = bn_scale_bias(layer["norm2"])
            w1 = layer["conv1_w"].reshape(layer["conv1_w"].shape[0], Cin).T
            # norm1 -> ReLU -> conv1(1x1) -> norm2 -> ReLU: one fused GEMM
            # (norm2+ReLU folded into the GEMM's output affine, so the 3x3
            #  kernel never re-applies them per tap).
            bott = fused_matmul(feats, w1, in_scale=s1, in_bias=b1,
                                relu_in=True, out_scale=s2, out_bias=b2,
                                relu_out=True)
            # conv2 (3x3): implicit-GEMM kernel, K stacked to 9*Cb, no im2col.
            new = conv3x3(bott, N, H, W, layer["conv2_w"])
            # TODO(synk): in-place concat via input_output_aliases is blocked
            # by the 128-lane BlockSpec constraint at growth=8; keep XLA concat.
            feats = jnp.concatenate([feats, new], axis=-1)
        if bi != n_blocks - 1:
            t = params["transitions"][bi]
            st, bt = bn_scale_bias(t["norm"])
            x = transition(feats.reshape(N, H, W, -1), st, bt, t["conv_w"])
            N, H, W, _ = x.shape
            feats = x.reshape(N * H * W, x.shape[-1])

    # head: norm5 -> ReLU -> GAP -> (dropout p=0) -> fc0 -> ReLU -> bn0 -> fc1
    # last_activation=None -> identity
    s5, b5 = bn_scale_bias(params["norm5"])
    sb, bb = bn_scale_bias(params["bn0"])
    out = classifier_head(feats, N, H * W, s5, b5,
                          params["fc0_w"], params["fc0_b"], sb, bb,
                          params["fc1_w"], params["fc1_b"])
    return out


if __name__ == "__main__":
    key = jax.random.PRNGKey(0)
    pkey, xkey = jax.random.split(key)
    params = make_params(pkey, num_in=3, num_init=16, growth=8,
                         block_config=(2, 2), bn_size=2, num_classes=1)
    x = jax.random.normal(xkey, (2, 3, 32, 32), dtype=jnp.float32)
    fwd = jax.jit(functools.partial(densenet_forward, mode="eval"))
    out = fwd(params, x)
    jax.block_until_ready(out)
    assert out.shape == (2, 1) and out.dtype == jnp.float32
    print("KERNEL_OK")
</pallas_src>

<mosaic_0001>
module attributes {stable_mosaic.version = 11 : i64} {
  func.func @_fused_matmul_kernel(%arg0: i32, %arg1: memref<256x147xbf16, #tpu.memory_space<vmem>>, %arg2: memref<1x147xf32, #tpu.memory_space<vmem>>, %arg3: memref<1x147xf32, #tpu.memory_space<vmem>>, %arg4: memref<147x16xbf16, #tpu.memory_space<vmem>>, %arg5: memref<1x16xf32, #tpu.memory_space<vmem>>, %arg6: memref<1x16xf32, #tpu.memory_space<vmem>>, %arg7: memref<256x16xbf16, #tpu.memory_space<vmem>>) attributes {dimension_semantics = [#tpu.dimension_semantics<parallel>], iteration_bounds = array<i64: 2>, scalar_prefetch = 0 : i64, scratch_operands = 0 : i64, tpu.core_type = #tpu.core_type<tc>, window_params = [{transform_indices = @transform_0, window_bounds = array<i64: 256, 147>}, {pipeline_mode = #tpu.pipeline_mode<synchronous>, transform_indices = @transform_1, window_bounds = array<i64: 1, 147>}, {pipeline_mode = #tpu.pipeline_mode<synchronous>, transform_indices = @transform_2, window_bounds = array<i64: 1, 147>}, {pipeline_mode = #tpu.pipeline_mode<synchronous>, transform_indices = @transform_3, window_bounds = array<i64: 147, 16>}, {pipeline_mode = #tpu.pipeline_mode<synchronous>, transform_indices = @transform_4, window_bounds = array<i64: 1, 16>}, {pipeline_mode = #tpu.pipeline_mode<synchronous>, transform_indices = @transform_5, window_bounds = array<i64: 1, 16>}, {transform_indices = @transform_6, window_bounds = array<i64: 256, 16>}]} {
    %c0 = arith.constant 0 : index
    %c0_0 = arith.constant 0 : index
    %0 = vector.load %arg1[%c0, %c0_0] : memref<256x147xbf16, #tpu.memory_space<vmem>>, vector<256x147xbf16>
    %1 = arith.extf %0 : vector<256x147xbf16> to vector<256x147xf32>
    %c0_1 = arith.constant 0 : index
    %c0_2 = arith.constant 0 : index
    %2 = vector.load %arg2[%c0_1, %c0_2] : memref<1x147xf32, #tpu.memory_space<vmem>>, vector<1x147xf32>
    %3 = vector.broadcast %2 : vector<1x147xf32> to vector<256x147xf32>
    %4 = arith.mulf %1, %3 : vector<256x147xf32>
    %c0_3 = arith.constant 0 : index
    %c0_4 = arith.constant 0 : index
    %5 = vector.load %arg3[%c0_3, %c0_4] : memref<1x147xf32, #tpu.memory_space<vmem>>, vector<1x147xf32>
    %6 = vector.broadcast %5 : vector<1x147xf32> to vector<256x147xf32>
    %7 = arith.addf %4, %6 : vector<256x147xf32>
    %8 = arith.truncf %7 : vector<256x147xf32> to vector<256x147xbf16>
    %c0_5 = arith.constant 0 : index
    %c0_6 = arith.constant 0 : index
    %9 = vector.load %arg4[%c0_5, %c0_6] : memref<147x16xbf16, #tpu.memory_space<vmem>>, vector<147x16xbf16>
    %cst = arith.constant dense<0.000000e+00> : vector<256x16xf32>
    %10 = tpu.matmul %8, %9, %cst {dimension_numbers = #tpu.dot_dimension_numbers<[1], [0], [0], [1], [0, 0, 1, 1], [], []>} : vector<256x147xbf16>, vector<147x16xbf16>, vector<256x16xf32> -> vector<256x16xf32>
    %c0_7 = arith.constant 0 : index
    %c0_8 = arith.constant 0 : index
    %11 = vector.load %arg5[%c0_7, %c0_8] : memref<1x16xf32, #tpu.memory_space<vmem>>, vector<1x16xf32>
    %12 = vector.broadcast %11 : vector<1x16xf32> to vector<256x16xf32>
    %13 = arith.mulf %10, %12 : vector<256x16xf32>
    %c0_9 = arith.constant 0 : index
    %c0_10 = arith.constant 0 : index
    %14 = vector.load %arg6[%c0_9, %c0_10] : memref<1x16xf32, #tpu.memory_space<vmem>>, vector<1x16xf32>
    %15 = vector.broadcast %14 : vector<1x16xf32> to vector<256x16xf32>
    %16 = arith.addf %13, %15 : vector<256x16xf32>
    %cst_11 = arith.constant 0.000000e+00 : f32
    %17 = vector.broadcast %cst_11 : f32 to vector<256x16xf32>
    %18 = arith.maximumf %16, %17 : vector<256x16xf32>
    %19 = arith.truncf %18 : vector<256x16xf32> to vector<256x16xbf16>
    %c0_12 = arith.constant 0 : index
    %c0_13 = arith.constant 0 : index
    %20 = vector.load %arg7[%c0_12, %c0_13] : memref<256x16xbf16, #tpu.memory_space<vmem>>, vector<256x16xbf16>
    tpu.vector_store %arg7[%c0_12, %c0_13], %19 {strides = array<i32>} : memref<256x16xbf16, #tpu.memory_space<vmem>>, vector<256x16xbf16>,
    return
  }
  func.func @transform_0(%arg0: i32) -> (i32, i32) {
    %c0_i32 = arith.constant 0 : i32
    %c0_i32_0 = arith.constant 0 : i32
    return %arg0, %c0_i32 : i32, i32
  }
  func.func @transform_1(%arg0: i32) -> (i32, i32) {
    %c0_i32 = arith.constant 0 : i32
    %c0_i32_0 = arith.constant 0 : i32
    %c0_i32_1 = arith.constant 0 : i32
    return %c0_i32, %c0_i32_0 : i32, i32
  }
  func.func @transform_2(%arg0: i32) -> (i32, i32) {
    %c0_i32 = arith.constant 0 : i32
    %c0_i32_0 = arith.constant 0 : i32
    %c0_i32_1 = arith.constant 0 : i32
    return %c0_i32, %c0_i32_0 : i32, i32
  }
  func.func @transform_3(%arg0: i32) -> (i32, i32) {
    %c0_i32 = arith.constant 0 : i32
    %c0_i32_0 = arith.constant 0 : i32
    %c0_i32_1 = arith.constant 0 : i32
    return %c0_i32, %c0_i32_0 : i32, i32
  }
  func.func @transform_4(%arg0: i32) -> (i32, i32) {
    %c0_i32 = arith.constant 0 : i32
    %c0_i32_0 = arith.constant 0 : i32
    %c0_i32_1 = arith.constant 0 : i32
    return %c0_i32, %c0_i32_0 : i32, i32
  }
  func.func @transform_5(%arg0: i32) -> (i32, i32) {
    %c0_i32 = arith.constant 0 : i32
    %c0_i32_0 = arith.constant 0 : i32
    %c0_i32_1 = arith.constant 0 : i32
    return %c0_i32, %c0_i32_0 : i32, i32
  }
  func.func @transform_6(%arg0: i32) -> (i32, i32) {
    %c0_i32 = arith.constant 0 : i32
    %c0_i32_0 = arith.constant 0 : i32
    return %arg0, %c0_i32 : i32, i32
  }
}

module attributes {stable_mosaic.version = 11 : i64} {
  func.func @_maxpool_kernel(%arg0: i32, %arg1: i32, %arg2: memref<1x2x18x16xbf16, #tpu.memory_space<vmem>>, %arg3: memref<1x2x18x16xbf16, #tpu.memory_space<vmem>>, %arg4: memref<3x8x18xbf16, #tpu.memory_space<vmem>>, %arg5: memref<1x1x8x16xbf16, #tpu.memory_space<vmem>>) attributes {dimension_semantics = [#tpu.dimension_semantics<parallel>, #tpu.dimension_semantics<parallel>], iteration_bounds = array<i64: 2, 8>, scalar_prefetch = 0 : i64, scratch_operands = 0 : i64, tpu.core_type = #tpu.core_type<tc>, window_params = [{transform_indices = @transform_0, window_bounds = array<i64: 1, 2, 18, 16>}, {transform_indices = @transform_1, window_bounds = array<i64: 1, 2, 18, 16>}, {pipeline_mode = #tpu.pipeline_mode<synchronous>, transform_indices = @transform_2, window_bounds = array<i64: 3, 8, 18>}, {transform_indices = @transform_3, window_bounds = array<i64: 1, 1, 8, 16>}]} {
    %c0 = arith.constant 0 : index
    %c0_0 = arith.constant 0 : index
    %c0_1 = arith.constant 0 : index
    %c0_2 = arith.constant 0 : index
    %0 = vector.load %arg2[%c0, %c0_0, %c0_1, %c0_2] : memref<1x2x18x16xbf16, #tpu.memory_space<vmem>>, vector<1x1x18x16xbf16>
    %1 = vector.shape_cast %0 : vector<1x1x18x16xbf16> to vector<18x16xbf16>
    %2 = arith.extf %1 : vector<18x16xbf16> to vector<18x16xf32>
    %c0_3 = arith.constant 0 : index
    %c1 = arith.constant 1 : index
    %c0_4 = arith.constant 0 : index
    %c0_5 = arith.constant 0 : index
    %3 = vector.load %arg2[%c0_3, %c1, %c0_4, %c0_5] : memref<1x2x18x16xbf16, #tpu.memory_space<vmem>>, vector<1x1x18x16xbf16>
    %4 = vector.shape_cast %3 : vector<1x1x18x16xbf16> to vector<18x16xbf16>
    %5 = arith.extf %4 : vector<18x16xbf16> to vector<18x16xf32>
    %c0_6 = arith.constant 0 : index
    %c0_7 = arith.constant 0 : index
    %c0_8 = arith.constant 0 : index
    %c0_9 = arith.constant 0 : index
    %6 = vector.load %arg3[%c0_6, %c0_7, %c0_8, %c0_9] : memref<1x2x18x16xbf16, #tpu.memory_space<vmem>>, vector<1x1x18x16xbf16>
    %7 = vector.shape_cast %6 : vector<1x1x18x16xbf16> to vector<18x16xbf16>
    %8 = arith.extf %7 : vector<18x16xbf16> to vector<18x16xf32>
    %9 = arith.maximumf %2, %5 : vector<18x16xf32>
    %10 = arith.maximumf %9, %8 : vector<18x16xf32>
    %11 = arith.truncf %10 : vector<18x16xf32> to vector<18x16xbf16>
    %c0_10 = arith.constant 0 : index
    %c0_11 = arith.constant 0 : index
    %c0_12 = arith.constant 0 : index
    %12 = vector.load %arg4[%c0_10, %c0_11, %c0_12] : memref<3x8x18xbf16, #tpu.memory_space<vmem>>, vector<1x8x18xbf16>
    %13 = vector.shape_cast %12 : vector<1x8x18xbf16> to vector<8x18xbf16>
    %cst = arith.constant dense<0.000000e+00> : vector<8x16xf32>
    %14 = tpu.matmul %13, %11, %cst {dimension_numbers = #tpu.dot_dimension_numbers<[1], [0], [0], [1], [0, 0, 1, 1], [], []>} : vector<8x18xbf16>, vector<18x16xbf16>, vector<8x16xf32> -> vector<8x16xf32>
    %c1_13 = arith.constant 1 : index
    %c0_14 = arith.constant 0 : index
    %c0_15 = arith.constant 0 : index
    %15 = vector.load %arg4[%c1_13, %c0_14, %c0_15] : memref<3x8x18xbf16, #tpu.memory_space<vmem>>, vector<1x8x18xbf16>
    %16 = vector.shape_cast %15 : vector<1x8x18xbf16> to vector<8x18xbf16>
    %cst_16 = arith.constant dense<0.000000e+00> : vector<8x16xf32>
    %17 = tpu.matmul %16, %11, %cst_16 {dimension_numbers = #tpu.dot_dimension_numbers<[1], [0], [0], [1], [0, 0, 1, 1], [], []>} : vector<8x18xbf16>, vector<18x16xbf16>, vector<8x16xf32> -> vector<8x16xf32>
    %18 = arith.maximumf %14, %17 : vector<8x16xf32>
    %c2 = arith.constant 2 : index
    %c0_17 = arith.constant 0 : index
    %c0_18 = arith.constant 0 : index
    %19 = vector.load %arg4[%c2, %c0_17, %c0_18] : memref<3x8x18xbf16, #tpu.memory_space<vmem>>, vector<1x8x18xbf16>
    %20 = vector.shape_cast %19 : vector<1x8x18xbf16> to vector<8x18xbf16>
    %cst_19 = arith.constant dense<0.000000e+00> : vector<8x16xf32>
    %21 = tpu.matmul %20, %11, %cst_19 {dimension_numbers = #tpu.dot_dimension_numbers<[1], [0], [0], [1], [0, 0, 1, 1], [], []>} : vector<8x18xbf16>, vector<18x16xbf16>, vector<8x16xf32> -> vector<8x16xf32>
    %22 = arith.maximumf %18, %21 : vector<8x16xf32>
    %23 = arith.truncf %22 : vector<8x16xf32> to vector<8x16xbf16>
    %c0_20 = arith.constant 0 : index
    %c0_21 = arith.constant 0 : index
    %c0_22 = arith.constant 0 : index
    %c0_23 = arith.constant 0 : index
    %24 = vector.load %arg5[%c0_20, %c0_21, %c0_22, %c0_23] : memref<1x1x8x16xbf16, #tpu.memory_space<vmem>>, vector<1x1x8x16xbf16>
    %25 = vector.shape_cast %24 : vector<1x1x8x16xbf16> to vector<8x16xbf16>
    %26 = vector.shape_cast %23 : vector<8x16xbf16> to vector<1x1x8x16xbf16>
    tpu.vector_store %arg5[%c0_20, %c0_21, %c0_22, %c0_23], %26 {strides = array<i32>} : memref<1x1x8x16xbf16, #tpu.memory_space<vmem>>, vector<1x1x8x16xbf16>,
    return
  }
  func.func @transform_0(%arg0: i32, %arg1: i32) -> (i32, i32, i32, i32) {
    %c0_i32 = arith.constant 0 : i32
    %c0_i32_0 = arith.constant 0 : i32
    %c0_i32_1 = arith.constant 0 : i32
    return %arg0, %arg1, %c0_i32, %c0_i32_0 : i32, i32, i32, i32
  }
  func.func @transform_1(%arg0: i32, %arg1: i32) -> (i32, i32, i32, i32) {
    %c1_i32 = arith.constant 1 : i32
    %0 = arith.addi %arg1, %c1_i32 : i32
    %c0_i32 = arith.constant 0 : i32
    %c0_i32_0 = arith.constant 0 : i32
    %c0_i32_1 = arith.constant 0 : i32
    return %arg0, %0, %c0_i32, %c0_i32_0 : i32, i32, i32, i32
  }
  func.func @transform_2(%arg0: i32, %arg1: i32) -> (i32, i32, i32) {
    %c0_i32 = arith.constant 0 : i32
    %c0_i32_0 = arith.constant 0 : i32
    %c0_i32_1 = arith.constant 0 : i32
    %c0_i32_2 = arith.constant 0 : i32
    return %c0_i32, %c0_i32_0, %c0_i32_1 : i32, i32, i32
  }
  func.func @transform_3(%arg0: i32, %arg1: i32) -> (i32, i32, i32, i32) {
    %c0_i32 = arith.constant 0 : i32
    %c0_i32_0 = arith.constant 0 : i32
    %c0_i32_1 = arith.constant 0 : i32
    return %arg0, %arg1, %c0_i32, %c0_i32_0 : i32, i32, i32, i32
  }
}

module attributes {stable_mosaic.version = 11 : i64} {
  func.func @_fused_matmul_kernel(%arg0: i32, %arg1: memref<64x16xbf16, #tpu.memory_space<vmem>>, %arg2: memref<1x16xf32, #tpu.memory_space<vmem>>, %arg3: memref<1x16xf32, #tpu.memory_space<vmem>>, %arg4: memref<16x16xbf16, #tpu.memory_space<vmem>>, %arg5: memref<1x16xf32, #tpu.memory_space<vmem>>, %arg6: memref<1x16xf32, #tpu.memory_space<vmem>>, %arg7: memref<64x16xbf16, #tpu.memory_space<vmem>>) attributes {dimension_semantics = [#tpu.dimension_semantics<parallel>], iteration_bounds = array<i64: 2>, scalar_prefetch = 0 : i64, scratch_operands = 0 : i64, tpu.core_type = #tpu.core_type<tc>, window_params = [{transform_indices = @transform_0, window_bounds = array<i64: 64, 16>}, {pipeline_mode = #tpu.pipeline_mode<synchronous>, transform_indices = @transform_1, window_bounds = array<i64: 1, 16>}, {pipeline_mode = #tpu.pipeline_mode<synchronous>, transform_indices = @transform_2, window_bounds = array<i64: 1, 16>}, {pipeline_mode = #tpu.pipeline_mode<synchronous>, transform_indices = @transform_3, window_bounds = array<i64: 16, 16>}, {pipeline_mode = #tpu.pipeline_mode<synchronous>, transform_indices = @transform_4, window_bounds = array<i64: 1, 16>}, {pipeline_mode = #tpu.pipeline_mode<synchronous>, transform_indices = @transform_5, window_bounds = array<i64: 1, 16>}, {transform_indices = @transform_6, window_bounds = array<i64: 64, 16>}]} {
    %c0 = arith.constant 0 : index
    %c0_0 = arith.constant 0 : index
    %0 = vector.load %arg1[%c0, %c0_0] : memref<64x16xbf16, #tpu.memory_space<vmem>>, vector<64x16xbf16>
    %1 = arith.extf %0 : vector<64x16xbf16> to vector<64x16xf32>
    %c0_1 = arith.constant 0 : index
    %c0_2 = arith.constant 0 : index
    %2 = vector.load %arg2[%c0_1, %c0_2] : memref<1x16xf32, #tpu.memory_space<vmem>>, vector<1x16xf32>
    %3 = vector.broadcast %2 : vector<1x16xf32> to vector<64x16xf32>
    %4 = arith.mulf %1, %3 : vector<64x16xf32>
    %c0_3 = arith.constant 0 : index
    %c0_4 = arith.constant 0 : index
    %5 = vector.load %arg3[%c0_3, %c0_4] : memref<1x16xf32, #tpu.memory_space<vmem>>, vector<1x16xf32>
    %6 = vector.broadcast %5 : vector<1x16xf32> to vector<64x16xf32>
    %7 = arith.addf %4, %6 : vector<64x16xf32>
    %cst = arith.constant 0.000000e+00 : f32
    %8 = vector.broadcast %cst : f32 to vector<64x16xf32>
    %9 = arith.maximumf %7, %8 : vector<64x16xf32>
    %10 = arith.truncf %9 : vector<64x16xf32> to vector<64x16xbf16>
    %c0_5 = arith.constant 0 : index
    %c0_6 = arith.constant 0 : index
    %11 = vector.load %arg4[%c0_5, %c0_6] : memref<16x16xbf16, #tpu.memory_space<vmem>>, vector<16x16xbf16>
    %cst_7 = arith.constant dense<0.000000e+00> : vector<64x16xf32>
    %12 = tpu.matmul %10, %11, %cst_7 {dimension_numbers = #tpu.dot_dimension_numbers<[1], [0], [0], [1], [0, 0, 1, 1], [], []>} : vector<64x16xbf16>, vector<16x16xbf16>, vector<64x16xf32> -> vector<64x16xf32>
    %c0_8 = arith.constant 0 : index
    %c0_9 = arith.constant 0 : index
    %13 = vector.load %arg5[%c0_8, %c0_9] : memref<1x16xf32, #tpu.memory_space<vmem>>, vector<1x16xf32>
    %14 = vector.broadcast %13 : vector<1x16xf32> to vector<64x16xf32>
    %15 = arith.mulf %12, %14 : vector<64x16xf32>
    %c0_10 = arith.constant 0 : index
    %c0_11 = arith.constant 0 : index
    %16 = vector.load %arg6[%c0_10, %c0_11] : memref<1x16xf32, #tpu.memory_space<vmem>>, vector<1x16xf32>
    %17 = vector.broadcast %16 : vector<1x16xf32> to vector<64x16xf32>
    %18 = arith.addf %15, %17 : vector<64x16xf32>
    %cst_12 = arith.constant 0.000000e+00 : f32
    %19 = vector.broadcast %cst_12 : f32 to vector<64x16xf32>
    %20 = arith.maximumf %18, %19 : vector<64x16xf32>
    %21 = arith.truncf %20 : vector<64x16xf32> to vector<64x16xbf16>
    %c0_13 = arith.constant 0 : index
    %c0_14 = arith.constant 0 : index
    %22 = vector.load %arg7[%c0_13, %c0_14] : memref<64x16xbf16, #tpu.memory_space<vmem>>, vector<64x16xbf16>
    tpu.vector_store %arg7[%c0_13, %c0_14], %21 {strides = array<i32>} : memref<64x16xbf16, #tpu.memory_space<vmem>>, vector<64x16xbf16>,
    return
  }
  func.func @transform_0(%arg0: i32) -> (i32, i32) {
    %c0_i32 = arith.constant 0 : i32
    %c0_i32_0 = arith.constant 0 : i32
    return %arg0, %c0_i32 : i32, i32
  }
  func.func @transform_1(%arg0: i32) -> (i32, i32) {
    %c0_i32 = arith.constant 0 : i32
    %c0_i32_0 = arith.constant 0 : i32
    %c0_i32_1 = arith.constant 0 : i32
    return %c0_i32, %c0_i32_0 : i32, i32
  }
  func.func @transform_2(%arg0: i32) -> (i32, i32) {
    %c0_i32 = arith.constant 0 : i32
    %c0_i32_0 = arith.constant 0 : i32
    %c0_i32_1 = arith.constant 0 : i32
    return %c0_i32, %c0_i32_0 : i32, i32
  }
  func.func @transform_3(%arg0: i32) -> (i32, i32) {
    %c0_i32 = arith.constant 0 : i32
    %c0_i32_0 = arith.constant 0 : i32
    %c0_i32_1 = arith.constant 0 : i32
    return %c0_i32, %c0_i32_0 : i32, i32
  }
  func.func @transform_4(%arg0: i32) -> (i32, i32) {
    %c0_i32 = arith.constant 0 : i32
    %c0_i32_0 = arith.constant 0 : i32
    %c0_i32_1 = arith.constant 0 : i32
    return %c0_i32, %c0_i32_0 : i32, i32
  }
  func.func @transform_5(%arg0: i32) -> (i32, i32) {
    %c0_i32 = arith.constant 0 : i32
    %c0_i32_0 = arith.constant 0 : i32
    %c0_i32_1 = arith.constant 0 : i32
    return %c0_i32, %c0_i32_0 : i32, i32
  }
  func.func @transform_6(%arg0: i32) -> (i32, i32) {
    %c0_i32 = arith.constant 0 : i32
    %c0_i32_0 = arith.constant 0 : i32
    return %arg0, %c0_i32 : i32, i32
  }
}

module attributes {stable_mosaic.version = 11 : i64} {
  func.func @_conv3x3_kernel(%arg0: i32, %arg1: memref<1x64x16xbf16, #tpu.memory_space<vmem>>, %arg2: memref<144x8xbf16, #tpu.memory_space<vmem>>, %arg3: memref<1x64x8xbf16, #tpu.memory_space<vmem>>, %arg4: memref<96x16xbf16, #tpu.memory_space<vmem>>) attributes {dimension_semantics = [#tpu.dimension_semantics<parallel>], iteration_bounds = array<i64: 2>, scalar_prefetch = 0 : i64, scratch_operands = 1 : i64, tpu.core_type = #tpu.core_type<tc>, window_params = [{transform_indices = @transform_0, window_bounds = array<i64: 1, 64, 16>}, {pipeline_mode = #tpu.pipeline_mode<synchronous>, transform_indices = @transform_1, window_bounds = array<i64: 144, 8>}, {transform_indices = @transform_2, window_bounds = array<i64: 1, 64, 8>}]} {
    %cst = arith.constant 0.000000e+00 : bf16
    %0 = vector.broadcast %cst : bf16 to vector<16x16xbf16>
    %c0 = arith.constant 0 : index
    %c0_0 = arith.constant 0 : index
    %1 = vector.load %arg4[%c0, %c0_0] : memref<96x16xbf16, #tpu.memory_space<vmem>>, vector<16x16xbf16>
    tpu.vector_store %arg4[%c0, %c0_0], %0 {strides = array<i32>} : memref<96x16xbf16, #tpu.memory_space<vmem>>, vector<16x16xbf16>,
    %c80 = arith.constant 80 : index
    %c0_1 = arith.constant 0 : index
    %2 = vector.load %arg4[%c80, %c0_1] : memref<96x16xbf16, #tpu.memory_space<vmem>>, vector<16x16xbf16>
    tpu.vector_store %arg4[%c80, %c0_1], %0 {strides = array<i32>} : memref<96x16xbf16, #tpu.memory_space<vmem>>, vector<16x16xbf16>,
    %c0_2 = arith.constant 0 : index
    %c0_3 = arith.constant 0 : index
    %c0_4 = arith.constant 0 : index
    %3 = vector.load %arg1[%c0_2, %c0_3, %c0_4] : memref<1x64x16xbf16, #tpu.memory_space<vmem>>, vector<1x64x16xbf16>
    %4 = vector.shape_cast %3 : vector<1x64x16xbf16> to vector<64x16xbf16>
    %c16 = arith.constant 16 : index
    %c0_5 = arith.constant 0 : index
    %5 = vector.load %arg4[%c16, %c0_5] : memref<96x16xbf16, #tpu.memory_space<vmem>>, vector<64x16xbf16>
    tpu.vector_store %arg4[%c16, %c0_5], %4 {strides = array<i32>} : memref<96x16xbf16, #tpu.memory_space<vmem>>, vector<64x16xbf16>,
    %6 = tpu.iota {dimensions = array<i32: 0>} : vector<64x1xi32>
    %c8_i32 = arith.constant 8 : i32
    %c0_i32 = arith.constant 0 : i32
    %7 = arith.cmpi eq, %c8_i32, %c0_i32 : i32
    %c1_i32 = arith.constant 1 : i32
    %8 = arith.select %7, %c1_i32, %c8_i32 : i32
    %9 = vector.broadcast %8 : i32 to vector<64x1xi32>
    %10 = arith.remsi %6, %9 : vector<64x1xi32>
    %c0_i32_6 = arith.constant 0 : i32
    %11 = vector.broadcast %c0_i32_6 : i32 to vector<64x1xi32>
    %12 = arith.cmpi ne, %10, %11 : vector<64x1xi32>
    %c0_i32_7 = arith.constant 0 : i32
    %13 = vector.broadcast %c0_i32_7 : i32 to vector<64x1xi32>
    %14 = arith.cmpi slt, %10, %13 : vector<64x1xi32>
    %c0_i32_8 = arith.constant 0 : i32
    %15 = arith.cmpi slt, %8, %c0_i32_8 : i32
    %16 = vector.broadcast %15 : i1 to vector<64x1xi1>
    %17 = vector.broadcast %16 : vector<64x1xi1> to vector<64x1xi1>
    %18 = arith.xori %14, %17 : vector<64x1xi1>
    %19 = arith.andi %18, %12 : vector<64x1xi1>
    %20 = vector.broadcast %8 : i32 to vector<64x1xi32>
    %21 = arith.addi %10, %20 : vector<64x1xi32>
    %22 = arith.select %19, %21, %10 : vector<64x1xi1>, vector<64x1xi32>
    %c1_i32_9 = arith.constant 1 : i32
    %23 = vector.broadcast %c1_i32_9 : i32 to vector<64x1xi32>
    %24 = arith.cmpi sge, %22, %23 : vector<64x1xi32>
    %c6_i32 = arith.constant 6 : i32
    %25 = vector.broadcast %c6_i32 : i32 to vector<64x1xi32>
    %26 = arith.cmpi sle, %22, %25 : vector<64x1xi32>
    %c7 = arith.constant 7 : index
    %c0_10 = arith.constant 0 : index
    %27 = vector.load %arg4[%c7, %c0_10] : memref<96x16xbf16, #tpu.memory_space<vmem>>, vector<64x16xbf16>
    %cst_11 = arith.constant 0.000000e+00 : bf16
    %28 = vector.broadcast %cst_11 : bf16 to vector<64x16xbf16>
    %29 = vector.shape_cast %24 : vector<64x1xi1> to vector<64x1xi1>
    %30 = vector.broadcast %29 : vector<64x1xi1> to vector<64x16xi1>
    %31 = arith.select %30, %27, %28 : vector<64x16xi1>, vector<64x16xbf16>
    %c8 = arith.constant 8 : index
    %c0_12 = arith.constant 0 : index
    %32 = vector.load %arg4[%c8, %c0_12] : memref<96x16xbf16, #tpu.memory_space<vmem>>, vector<64x16xbf16>
    %c9 = arith.constant 9 : index
    %c0_13 = arith.constant 0 : index
    %33 = vector.load %arg4[%c9, %c0_13] : memref<96x16xbf16, #tpu.memory_space<vmem>>, vector<64x16xbf16>
    %cst_14 = arith.constant 0.000000e+00 : bf16
    %34 = vector.broadcast %cst_14 : bf16 to vector<64x16xbf16>
    %35 = vector.shape_cast %26 : vector<64x1xi1> to vector<64x1xi1>
    %36 = vector.broadcast %35 : vector<64x1xi1> to vector<64x16xi1>
    %37 = arith.select %36, %33, %34 : vector<64x16xi1>, vector<64x16xbf16>
    %c15 = arith.constant 15 : index
    %c0_15 = arith.constant 0 : index
    %38 = vector.load %arg4[%c15, %c0_15] : memref<96x16xbf16, #tpu.memory_space<vmem>>, vector<64x16xbf16>
    %cst_16 = arith.constant 0.000000e+00 : bf16
    %39 = vector.broadcast %cst_16 : bf16 to vector<64x16xbf16>
    %40 = vector.shape_cast %24 : vector<64x1xi1> to vector<64x1xi1>
    %41 = vector.broadcast %40 : vector<64x1xi1> to vector<64x16xi1>
    %42 = arith.select %41, %38, %39 : vector<64x16xi1>, vector<64x16xbf16>
    %c16_17 = arith.constant 16 : index
    %c0_18 = arith.constant 0 : index
    %43 = vector.load %arg4[%c16_17, %c0_18] : memref<96x16xbf16, #tpu.memory_space<vmem>>, vector<64x16xbf16>
    %c17 = arith.constant 17 : index
    %c0_19 = arith.constant 0 : index
    %44 = vector.load %arg4[%c17, %c0_19] : memref<96x16xbf16, #tpu.memory_space<vmem>>, vector<64x16xbf16>
    %cst_20 = arith.constant 0.000000e+00 : bf16
    %45 = vector.broadcast %cst_20 : bf16 to vector<64x16xbf16>
    %46 = vector.shape_cast %26 : vector<64x1xi1> to vector<64x1xi1>
    %47 = vector.broadcast %46 : vector<64x1xi1> to vector<64x16xi1>
    %48 = arith.select %47, %44, %45 : vector<64x16xi1>, vector<64x16xbf16>
    %c23 = arith.constant 23 : index
    %c0_21 = arith.constant 0 : index
    %49 = vector.load %arg4[%c23, %c0_21] : memref<96x16xbf16, #tpu.memory_space<vmem>>, vector<64x16xbf16>
    %cst_22 = arith.constant 0.000000e+00 : bf16
    %50 = vector.broadcast %cst_22 : bf16 to vector<64x16xbf16>
    %51 = vector.shape_cast %24 : vector<64x1xi1> to vector<64x1xi1>
    %52 = vector.broadcast %51 : vector<64x1xi1> to vector<64x16xi1>
    %53 = arith.select %52, %49, %50 : vector<64x16xi1>, vector<64x16xbf16>
    %c24 = arith.constant 24 : index
    %c0_23 = arith.constant 0 : index
    %54 = vector.load %arg4[%c24, %c0_23] : memref<96x16xbf16, #tpu.memory_space<vmem>>, vector<64x16xbf16>
    %c25 = arith.constant 25 : index
    %c0_24 = arith.constant 0 : index
    %55 = vector.load %arg4[%c25, %c0_24] : memref<96x16xbf16, #tpu.memory_space<vmem>>, vector<64x16xbf16>
    %cst_25 = arith.constant 0.000000e+00 : bf16
    %56 = vector.broadcast %cst_25 : bf16 to vector<64x16xbf16>
    %57 = vector.shape_cast %26 : vector<64x1xi1> to vector<64x1xi1>
    %58 = vector.broadcast %57 : vector<64x1xi1> to vector<64x16xi1>
    %59 = arith.select %58, %55, %56 : vector<64x16xi1>, vector<64x16xbf16>
    %60 = tpu.concatenate %31, %32, %37, %42, %43, %48, %53, %54, %59 in 1 : vector<64x16xbf16>, vector<64x16xbf16>, vector<64x16xbf16>, vector<64x16xbf16>, vector<64x16xbf16>, vector<64x16xbf16>, vector<64x16xbf16>, vector<64x16xbf16>, vector<64x16xbf16> -> vector<64x144xbf16>
    %c0_26 = arith.constant 0 : index
    %c0_27 = arith.constant 0 : index
    %61 = vector.load %arg2[%c0_26, %c0_27] : memref<144x8xbf16, #tpu.memory_space<vmem>>, vector<144x8xbf16>
    %cst_28 = arith.constant dense<0.000000e+00> : vector<64x8xf32>
    %62 = tpu.matmul %60, %61, %cst_28 {dimension_numbers = #tpu.dot_dimension_numbers<[1], [0], [0], [1], [0, 0, 1, 1], [], []>} : vector<64x144xbf16>, vector<144x8xbf16>, vector<64x8xf32> -> vector<64x8xf32>
    %63 = arith.truncf %62 : vector<64x8xf32> to vector<64x8xbf16>
    %c0_29 = arith.constant 0 : index
    %c0_30 = arith.constant 0 : index
    %c0_31 = arith.constant 0 : index
    %64 = vector.load %arg3[%c0_29, %c0_30, %c0_31] : memref<1x64x8xbf16, #tpu.memory_space<vmem>>, vector<1x64x8xbf16>
    %65 = vector.shape_cast %64 : vector<1x64x8xbf16> to vector<64x8xbf16>
    %66 = vector.shape_cast %63 : vector<64x8xbf16> to vector<1x64x8xbf16>
    tpu.vector_store %arg3[%c0_29, %c0_30, %c0_31], %66 {strides = array<i32>} : memref<1x64x8xbf16, #tpu.memory_space<vmem>>, vector<1x64x8xbf16>,
    return
  }
  func.func @transform_0(%arg0: i32) -> (i32, i32, i32) {
    %c0_i32 = arith.constant 0 : i32
    %c0_i32_0 = arith.constant 0 : i32
    %c0_i32_1 = arith.constant 0 : i32
    return %arg0, %c0_i32, %c0_i32_0 : i32, i32, i32
  }
  func.func @transform_1(%arg0: i32) -> (i32, i32) {
    %c0_i32 = arith.constant 0 : i32
    %c0_i32_0 = arith.constant 0 : i32
    %c0_i32_1 = arith.constant 0 : i32
    return %c0_i32, %c0_i32_0 : i32, i32
  }
  func.func @transform_2(%arg0: i32) -> (i32, i32, i32) {
    %c0_i32 = arith.constant 0 : i32
    %c0_i32_0 = arith.constant 0 : i32
    %c0_i32_1 = arith.constant 0 : i32
    return %arg0, %c0_i32, %c0_i32_0 : i32, i32, i32
  }
}

module attributes {stable_mosaic.version = 11 : i64} {
  func.func @_fused_matmul_kernel(%arg0: i32, %arg1: memref<64x24xbf16, #tpu.memory_space<vmem>>, %arg2: memref<1x24xf32, #tpu.memory_space<vmem>>, %arg3: memref<1x24xf32, #tpu.memory_space<vmem>>, %arg4: memref<24x16xbf16, #tpu.memory_space<vmem>>, %arg5: memref<1x16xf32, #tpu.memory_space<vmem>>, %arg6: memref<1x16xf32, #tpu.memory_space<vmem>>, %arg7: memref<64x16xbf16, #tpu.memory_space<vmem>>) attributes {dimension_semantics = [#tpu.dimension_semantics<parallel>], iteration_bounds = array<i64: 2>, scalar_prefetch = 0 : i64, scratch_operands = 0 : i64, tpu.core_type = #tpu.core_type<tc>, window_params = [{transform_indices = @transform_0, window_bounds = array<i64: 64, 24>}, {pipeline_mode = #tpu.pipeline_mode<synchronous>, transform_indices = @transform_1, window_bounds = array<i64: 1, 24>}, {pipeline_mode = #tpu.pipeline_mode<synchronous>, transform_indices = @transform_2, window_bounds = array<i64: 1, 24>}, {pipeline_mode = #tpu.pipeline_mode<synchronous>, transform_indices = @transform_3, window_bounds = array<i64: 24, 16>}, {pipeline_mode = #tpu.pipeline_mode<synchronous>, transform_indices = @transform_4, window_bounds = array<i64: 1, 16>}, {pipeline_mode = #tpu.pipeline_mode<synchronous>, transform_indices = @transform_5, window_bounds = array<i64: 1, 16>}, {transform_indices = @transform_6, window_bounds = array<i64: 64, 16>}]} {
    %c0 = arith.constant 0 : index
    %c0_0 = arith.constant 0 : index
    %0 = vector.load %arg1[%c0, %c0_0] : memref<64x24xbf16, #tpu.memory_space<vmem>>, vector<64x24xbf16>
    %1 = arith.extf %0 : vector<64x24xbf16> to vector<64x24xf32>
    %c0_1 = arith.constant 0 : index
    %c0_2 = arith.constant 0 : index
    %2 = vector.load %arg2[%c0_1, %c0_2] : memref<1x24xf32, #tpu.memory_space<vmem>>, vector<1x24xf32>
    %3 = vector.broadcast %2 : vector<1x24xf32> to vector<64x24xf32>
    %4 = arith.mulf %1, %3 : vector<64x24xf32>
    %c0_3 = arith.constant 0 : index
    %c0_4 = arith.constant 0 : index
    %5 = vector.load %arg3[%c0_3, %c0_4] : memref<1x24xf32, #tpu.memory_space<vmem>>, vector<1x24xf32>
    %6 = vector.broadcast %5 : vector<1x24xf32> to vector<64x24xf32>
    %7 = arith.addf %4, %6 : vector<64x24xf32>
    %cst = arith.constant 0.000000e+00 : f32
    %8 = vector.broadcast %cst : f32 to vector<64x24xf32>
    %9 = arith.maximumf %7, %8 : vector<64x24xf32>
    %10 = arith.truncf %9 : vector<64x24xf32> to vector<64x24xbf16>
    %c0_5 = arith.constant 0 : index
    %c0_6 = arith.constant 0 : index
    %11 = vector.load %arg4[%c0_5, %c0_6] : memref<24x16xbf16, #tpu.memory_space<vmem>>, vector<24x16xbf16>
    %cst_7 = arith.constant dense<0.000000e+00> : vector<64x16xf32>
    %12 = tpu.matmul %10, %11, %cst_7 {dimension_numbers = #tpu.dot_dimension_numbers<[1], [0], [0], [1], [0, 0, 1, 1], [], []>} : vector<64x24xbf16>, vector<24x16xbf16>, vector<64x16xf32> -> vector<64x16xf32>
    %c0_8 = arith.constant 0 : index
    %c0_9 = arith.constant 0 : index
    %13 = vector.load %arg5[%c0_8, %c0_9] : memref<1x16xf32, #tpu.memory_space<vmem>>, vector<1x16xf32>
    %14 = vector.broadcast %13 : vector<1x16xf32> to vector<64x16xf32>
    %15 = arith.mulf %12, %14 : vector<64x16xf32>
    %c0_10 = arith.constant 0 : index
    %c0_11 = arith.constant 0 : index
    %16 = vector.load %arg6[%c0_10, %c0_11] : memref<1x16xf32, #tpu.memory_space<vmem>>, vector<1x16xf32>
    %17 = vector.broadcast %16 : vector<1x16xf32> to vector<64x16xf32>
    %18 = arith.addf %15, %17 : vector<64x16xf32>
    %cst_12 = arith.constant 0.000000e+00 : f32
    %19 = vector.broadcast %cst_12 : f32 to vector<64x16xf32>
    %20 = arith.maximumf %18, %19 : vector<64x16xf32>
    %21 = arith.truncf %20 : vector<64x16xf32> to vector<64x16xbf16>
    %c0_13 = arith.constant 0 : index
    %c0_14 = arith.constant 0 : index
    %22 = vector.load %arg7[%c0_13, %c0_14] : memref<64x16xbf16, #tpu.memory_space<vmem>>, vector<64x16xbf16>
    tpu.vector_store %arg7[%c0_13, %c0_14], %21 {strides = array<i32>} : memref<64x16xbf16, #tpu.memory_space<vmem>>, vector<64x16xbf16>,
    return
  }
  func.func @transform_0(%arg0: i32) -> (i32, i32) {
    %c0_i32 = arith.constant 0 : i32
    %c0_i32_0 = arith.constant 0 : i32
    return %arg0, %c0_i32 : i32, i32
  }
  func.func @transform_1(%arg0: i32) -> (i32, i32) {
    %c0_i32 = arith.constant 0 : i32
    %c0_i32_0 = arith.constant 0 : i32
    %c0_i32_1 = arith.constant 0 : i32
    return %c0_i32, %c0_i32_0 : i32, i32
  }
  func.func @transform_2(%arg0: i32) -> (i32, i32) {
    %c0_i32 = arith.constant 0 : i32
    %c0_i32_0 = arith.constant 0 : i32
    %c0_i32_1 = arith.constant 0 : i32
    return %c0_i32, %c0_i32_0 : i32, i32
  }
  func.func @transform_3(%arg0: i32) -> (i32, i32) {
    %c0_i32 = arith.constant 0 : i32
    %c0_i32_0 = arith.constant 0 : i32
    %c0_i32_1 = arith.constant 0 : i32
    return %c0_i32, %c0_i32_0 : i32, i32
  }
  func.func @transform_4(%arg0: i32) -> (i32, i32) {
    %c0_i32 = arith.constant 0 : i32
    %c0_i32_0 = arith.constant 0 : i32
    %c0_i32_1 = arith.constant 0 : i32
    return %c0_i32, %c0_i32_0 : i32, i32
  }
  func.func @transform_5(%arg0: i32) -> (i32, i32) {
    %c0_i32 = arith.constant 0 : i32
    %c0_i32_0 = arith.constant 0 : i32
    %c0_i32_1 = arith.constant 0 : i32
    return %c0_i32, %c0_i32_0 : i32, i32
  }
  func.func @transform_6(%arg0: i32) -> (i32, i32) {
    %c0_i32 = arith.constant 0 : i32
    %c0_i32_0 = arith.constant 0 : i32
    return %arg0, %c0_i32 : i32, i32
  }
}

module attributes {stable_mosaic.version = 11 : i64} {
  func.func @_transition_kernel(%arg0: i32, %arg1: memref<2x8x32xbf16, #tpu.memory_space<vmem>>, %arg2: memref<1x1x32xf32, #tpu.memory_space<vmem>>, %arg3: memref<1x1x32xf32, #tpu.memory_space<vmem>>, %arg4: memref<4x8xbf16, #tpu.memory_space<vmem>>, %arg5: memref<32x16xbf16, #tpu.memory_space<vmem>>, %arg6: memref<1x4x16xbf16, #tpu.memory_space<vmem>>) attributes {dimension_semantics = [#tpu.dimension_semantics<parallel>], iteration_bounds = array<i64: 8>, scalar_prefetch = 0 : i64, scratch_operands = 0 : i64, tpu.core_type = #tpu.core_type<tc>, window_params = [{transform_indices = @transform_0, window_bounds = array<i64: 2, 8, 32>}, {pipeline_mode = #tpu.pipeline_mode<synchronous>, transform_indices = @transform_1, window_bounds = array<i64: 1, 1, 32>}, {pipeline_mode = #tpu.pipeline_mode<synchronous>, transform_indices = @transform_2, window_bounds = array<i64: 1, 1, 32>}, {pipeline_mode = #tpu.pipeline_mode<synchronous>, transform_indices = @transform_3, window_bounds = array<i64: 4, 8>}, {pipeline_mode = #tpu.pipeline_mode<synchronous>, transform_indices = @transform_4, window_bounds = array<i64: 32, 16>}, {transform_indices = @transform_5, window_bounds = array<i64: 1, 4, 16>}]} {
    %c0 = arith.constant 0 : index
    %c0_0 = arith.constant 0 : index
    %c0_1 = arith.constant 0 : index
    %0 = vector.load %arg1[%c0, %c0_0, %c0_1] : memref<2x8x32xbf16, #tpu.memory_space<vmem>>, vector<2x8x32xbf16>
    %1 = arith.extf %0 : vector<2x8x32xbf16> to vector<2x8x32xf32>
    %c0_2 = arith.constant 0 : index
    %c0_3 = arith.constant 0 : index
    %c0_4 = arith.constant 0 : index
    %2 = vector.load %arg2[%c0_2, %c0_3, %c0_4] : memref<1x1x32xf32, #tpu.memory_space<vmem>>, vector<1x1x32xf32>
    %3 = vector.broadcast %2 : vector<1x1x32xf32> to vector<2x8x32xf32>
    %4 = arith.mulf %1, %3 : vector<2x8x32xf32>
    %c0_5 = arith.constant 0 : index
    %c0_6 = arith.constant 0 : index
    %c0_7 = arith.constant 0 : index
    %5 = vector.load %arg3[%c0_5, %c0_6, %c0_7] : memref<1x1x32xf32, #tpu.memory_space<vmem>>, vector<1x1x32xf32>
    %6 = vector.broadcast %5 : vector<1x1x32xf32> to vector<2x8x32xf32>
    %7 = arith.addf %4, %6 : vector<2x8x32xf32>
    %cst = arith.constant 0.000000e+00 : f32
    %8 = vector.broadcast %cst : f32 to vector<2x8x32xf32>
    %9 = arith.maximumf %7, %8 : vector<2x8x32xf32>
    %10 = vector.extract_strided_slice %9 {offsets = [0, 0, 0], sizes = [1, 8, 32], strides = [1, 1, 1]} : vector<2x8x32xf32> to vector<1x8x32xf32>
    %11 = vector.shape_cast %10 : vector<1x8x32xf32> to vector<8x32xf32>
    %12 = vector.extract_strided_slice %9 {offsets = [1, 0, 0], sizes = [1, 8, 32], strides = [1, 1, 1]} : vector<2x8x32xf32> to vector<1x8x32xf32>
    %13 = vector.shape_cast %12 : vector<1x8x32xf32> to vector<8x32xf32>
    %14 = arith.addf %11, %13 : vector<8x32xf32>
    %c0_8 = arith.constant 0 : index
    %c0_9 = arith.constant 0 : index
    %15 = vector.load %arg4[%c0_8, %c0_9] : memref<4x8xbf16, #tpu.memory_space<vmem>>, vector<4x8xbf16>
    %16 = arith.truncf %14 : vector<8x32xf32> to vector<8x32xbf16>
    %cst_10 = arith.constant dense<0.000000e+00> : vector<4x32xf32>
    %17 = tpu.matmul %15, %16, %cst_10 {dimension_numbers = #tpu.dot_dimension_numbers<[1], [0], [0], [1], [0, 0, 1, 1], [], []>} : vector<4x8xbf16>, vector<8x32xbf16>, vector<4x32xf32> -> vector<4x32xf32>
    %18 = arith.truncf %17 : vector<4x32xf32> to vector<4x32xbf16>
    %c0_11 = arith.constant 0 : index
    %c0_12 = arith.constant 0 : index
    %19 = vector.load %arg5[%c0_11, %c0_12] : memref<32x16xbf16, #tpu.memory_space<vmem>>, vector<32x16xbf16>
    %cst_13 = arith.constant dense<0.000000e+00> : vector<4x16xf32>
    %20 = tpu.matmul %18, %19, %cst_13 {dimension_numbers = #tpu.dot_dimension_numbers<[1], [0], [0], [1], [0, 0, 1, 1], [], []>} : vector<4x32xbf16>, vector<32x16xbf16>, vector<4x16xf32> -> vector<4x16xf32>
    %21 = arith.truncf %20 : vector<4x16xf32> to vector<4x16xbf16>
    %c0_14 = arith.constant 0 : index
    %c0_15 = arith.constant 0 : index
    %c0_16 = arith.constant 0 : index
    %22 = vector.load %arg6[%c0_14, %c0_15, %c0_16] : memref<1x4x16xbf16, #tpu.memory_space<vmem>>, vector<1x4x16xbf16>
    %23 = vector.shape_cast %22 : vector<1x4x16xbf16> to vector<4x16xbf16>
    %24 = vector.shape_cast %21 : vector<4x16xbf16> to vector<1x4x16xbf16>
    tpu.vector_store %arg6[%c0_14, %c0_15, %c0_16], %24 {strides = array<i32>} : memref<1x4x16xbf16, #tpu.memory_space<vmem>>, vector<1x4x16xbf16>,
    return
  }
  func.func @transform_0(%arg0: i32) -> (i32, i32, i32) {
    %c0_i32 = arith.constant 0 : i32
    %c0_i32_0 = arith.constant 0 : i32
    %c0_i32_1 = arith.constant 0 : i32
    return %arg0, %c0_i32, %c0_i32_0 : i32, i32, i32
  }
  func.func @transform_1(%arg0: i32) -> (i32, i32, i32) {
    %c0_i32 = arith.constant 0 : i32
    %c0_i32_0 = arith.constant 0 : i32
    %c0_i32_1 = arith.constant 0 : i32
    %c0_i32_2 = arith.constant 0 : i32
    return %c0_i32, %c0_i32_0, %c0_i32_1 : i32, i32, i32
  }
  func.func @transform_2(%arg0: i32) -> (i32, i32, i32) {
    %c0_i32 = arith.constant 0 : i32
    %c0_i32_0 = arith.constant 0 : i32
    %c0_i32_1 = arith.constant 0 : i32
    %c0_i32_2 = arith.constant 0 : i32
    return %c0_i32, %c0_i32_0, %c0_i32_1 : i32, i32, i32
  }
  func.func @transform_3(%arg0: i32) -> (i32, i32) {
    %c0_i32 = arith.constant 0 : i32
    %c0_i32_0 = arith.constant 0 : i32
    %c0_i32_1 = arith.constant 0 : i32
    return %c0_i32, %c0_i32_0 : i32, i32
  }
  func.func @transform_4(%arg0: i32) -> (i32, i32) {
    %c0_i32 = arith.constant 0 : i32
    %c0_i32_0 = arith.constant 0 : i32
    %c0_i32_1 = arith.constant 0 : i32
    return %c0_i32, %c0_i32_0 : i32, i32
  }
  func.func @transform_5(%arg0: i32) -> (i32, i32, i32) {
    %c0_i32 = arith.constant 0 : i32
    %c0_i32_0 = arith.constant 0 : i32
    %c0_i32_1 = arith.constant 0 : i32
    return %arg0, %c0_i32, %c0_i32_0 : i32, i32, i32
  }
}

module attributes {stable_mosaic.version = 11 : i64} {
  func.func @_fused_matmul_kernel(%arg0: i32, %arg1: memref<16x16xbf16, #tpu.memory_space<vmem>>, %arg2: memref<1x16xf32, #tpu.memory_space<vmem>>, %arg3: memref<1x16xf32, #tpu.memory_space<vmem>>, %arg4: memref<16x16xbf16, #tpu.memory_space<vmem>>, %arg5: memref<1x16xf32, #tpu.memory_space<vmem>>, %arg6: memref<1x16xf32, #tpu.memory_space<vmem>>, %arg7: memref<16x16xbf16, #tpu.memory_space<vmem>>) attributes {dimension_semantics = [#tpu.dimension_semantics<parallel>], iteration_bounds = array<i64: 2>, scalar_prefetch = 0 : i64, scratch_operands = 0 : i64, tpu.core_type = #tpu.core_type<tc>, window_params = [{transform_indices = @transform_0, window_bounds = array<i64: 16, 16>}, {pipeline_mode = #tpu.pipeline_mode<synchronous>, transform_indices = @transform_1, window_bounds = array<i64: 1, 16>}, {pipeline_mode = #tpu.pipeline_mode<synchronous>, transform_indices = @transform_2, window_bounds = array<i64: 1, 16>}, {pipeline_mode = #tpu.pipeline_mode<synchronous>, transform_indices = @transform_3, window_bounds = array<i64: 16, 16>}, {pipeline_mode = #tpu.pipeline_mode<synchronous>, transform_indices = @transform_4, window_bounds = array<i64: 1, 16>}, {pipeline_mode = #tpu.pipeline_mode<synchronous>, transform_indices = @transform_5, window_bounds = array<i64: 1, 16>}, {transform_indices = @transform_6, window_bounds = array<i64: 16, 16>}]} {
    %c0 = arith.constant 0 : index
    %c0_0 = arith.constant 0 : index
    %0 = vector.load %arg1[%c0, %c0_0] : memref<16x16xbf16, #tpu.memory_space<vmem>>, vector<16x16xbf16>
    %1 = arith.extf %0 : vector<16x16xbf16> to vector<16x16xf32>
    %c0_1 = arith.constant 0 : index
    %c0_2 = arith.constant 0 : index
    %2 = vector.load %arg2[%c0_1, %c0_2] : memref<1x16xf32, #tpu.memory_space<vmem>>, vector<1x16xf32>
    %3 = vector.broadcast %2 : vector<1x16xf32> to vector<16x16xf32>
    %4 = arith.mulf %1, %3 : vector<16x16xf32>
    %c0_3 = arith.constant 0 : index
    %c0_4 = arith.constant 0 : index
    %5 = vector.load %arg3[%c0_3, %c0_4] : memref<1x16xf32, #tpu.memory_space<vmem>>, vector<1x16xf32>
    %6 = vector.broadcast %5 : vector<1x16xf32> to vector<16x16xf32>
    %7 = arith.addf %4, %6 : vector<16x16xf32>
    %cst = arith.constant 0.000000e+00 : f32
    %8 = vector.broadcast %cst : f32 to vector<16x16xf32>
    %9 = arith.maximumf %7, %8 : vector<16x16xf32>
    %10 = arith.truncf %9 : vector<16x16xf32> to vector<16x16xbf16>
    %c0_5 = arith.constant 0 : index
    %c0_6 = arith.constant 0 : index
    %11 = vector.load %arg4[%c0_5, %c0_6] : memref<16x16xbf16, #tpu.memory_space<vmem>>, vector<16x16xbf16>
    %cst_7 = arith.constant dense<0.000000e+00> : vector<16x16xf32>
    %12 = tpu.matmul %10, %11, %cst_7 {dimension_numbers = #tpu.dot_dimension_numbers<[1], [0], [0], [1], [0, 0, 1, 1], [], []>} : vector<16x16xbf16>, vector<16x16xbf16>, vector<16x16xf32> -> vector<16x16xf32>
    %c0_8 = arith.constant 0 : index
    %c0_9 = arith.constant 0 : index
    %13 = vector.load %arg5[%c0_8, %c0_9] : memref<1x16xf32, #tpu.memory_space<vmem>>, vector<1x16xf32>
    %14 = vector.broadcast %13 : vector<1x16xf32> to vector<16x16xf32>
    %15 = arith.mulf %12, %14 : vector<16x16xf32>
    %c0_10 = arith.constant 0 : index
    %c0_11 = arith.constant 0 : index
    %16 = vector.load %arg6[%c0_10, %c0_11] : memref<1x16xf32, #tpu.memory_space<vmem>>, vector<1x16xf32>
    %17 = vector.broadcast %16 : vector<1x16xf32> to vector<16x16xf32>
    %18 = arith.addf %15, %17 : vector<16x16xf32>
    %cst_12 = arith.constant 0.000000e+00 : f32
    %19 = vector.broadcast %cst_12 : f32 to vector<16x16xf32>
    %20 = arith.maximumf %18, %19 : vector<16x16xf32>
    %21 = arith.truncf %20 : vector<16x16xf32> to vector<16x16xbf16>
    %c0_13 = arith.constant 0 : index
    %c0_14 = arith.constant 0 : index
    %22 = vector.load %arg7[%c0_13, %c0_14] : memref<16x16xbf16, #tpu.memory_space<vmem>>, vector<16x16xbf16>
    tpu.vector_store %arg7[%c0_13, %c0_14], %21 {strides = array<i32>} : memref<16x16xbf16, #tpu.memory_space<vmem>>, vector<16x16xbf16>,
    return
  }
  func.func @transform_0(%arg0: i32) -> (i32, i32) {
    %c0_i32 = arith.constant 0 : i32
    %c0_i32_0 = arith.constant 0 : i32
    return %arg0, %c0_i32 : i32, i32
  }
  func.func @transform_1(%arg0: i32) -> (i32, i32) {
    %c0_i32 = arith.constant 0 : i32
    %c0_i32_0 = arith.constant 0 : i32
    %c0_i32_1 = arith.constant 0 : i32
    return %c0_i32, %c0_i32_0 : i32, i32
  }
  func.func @transform_2(%arg0: i32) -> (i32, i32) {
    %c0_i32 = arith.constant 0 : i32
    %c0_i32_0 = arith.constant 0 : i32
    %c0_i32_1 = arith.constant 0 : i32
    return %c0_i32, %c0_i32_0 : i32, i32
  }
  func.func @transform_3(%arg0: i32) -> (i32, i32) {
    %c0_i32 = arith.constant 0 : i32
    %c0_i32_0 = arith.constant 0 : i32
    %c0_i32_1 = arith.constant 0 : i32
    return %c0_i32, %c0_i32_0 : i32, i32
  }
  func.func @transform_4(%arg0: i32) -> (i32, i32) {
    %c0_i32 = arith.constant 0 : i32
    %c0_i32_0 = arith.constant 0 : i32
    %c0_i32_1 = arith.constant 0 : i32
    return %c0_i32, %c0_i32_0 : i32, i32
  }
  func.func @transform_5(%arg0: i32) -> (i32, i32) {
    %c0_i32 = arith.constant 0 : i32
    %c0_i32_0 = arith.constant 0 : i32
    %c0_i32_1 = arith.constant 0 : i32
    return %c0_i32, %c0_i32_0 : i32, i32
  }
  func.func @transform_6(%arg0: i32) -> (i32, i32) {
    %c0_i32 = arith.constant 0 : i32
    %c0_i32_0 = arith.constant 0 : i32
    return %arg0, %c0_i32 : i32, i32
  }
}

module attributes {stable_mosaic.version = 11 : i64} {
  func.func @_conv3x3_kernel(%arg0: i32, %arg1: memref<1x16x16xbf16, #tpu.memory_space<vmem>>, %arg2: memref<144x8xbf16, #tpu.memory_space<vmem>>, %arg3: memref<1x16x8xbf16, #tpu.memory_space<vmem>>, %arg4: memref<32x16xbf16, #tpu.memory_space<vmem>>) attributes {dimension_semantics = [#tpu.dimension_semantics<parallel>], iteration_bounds = array<i64: 2>, scalar_prefetch = 0 : i64, scratch_operands = 1 : i64, tpu.core_type = #tpu.core_type<tc>, window_params = [{transform_indices = @transform_0, window_bounds = array<i64: 1, 16, 16>}, {pipeline_mode = #tpu.pipeline_mode<synchronous>, transform_indices = @transform_1, window_bounds = array<i64: 144, 8>}, {transform_indices = @transform_2, window_bounds = array<i64: 1, 16, 8>}]} {
    %cst = arith.constant 0.000000e+00 : bf16
    %0 = vector.broadcast %cst : bf16 to vector<8x16xbf16>
    %c0 = arith.constant 0 : index
    %c0_0 = arith.constant 0 : index
    %1 = vector.load %arg4[%c0, %c0_0] : memref<32x16xbf16, #tpu.memory_space<vmem>>, vector<8x16xbf16>
    tpu.vector_store %arg4[%c0, %c0_0], %0 {strides = array<i32>} : memref<32x16xbf16, #tpu.memory_space<vmem>>, vector<8x16xbf16>,
    %c24 = arith.constant 24 : index
    %c0_1 = arith.constant 0 : index
    %2 = vector.load %arg4[%c24, %c0_1] : memref<32x16xbf16, #tpu.memory_space<vmem>>, vector<8x16xbf16>
    tpu.vector_store %arg4[%c24, %c0_1], %0 {strides = array<i32>} : memref<32x16xbf16, #tpu.memory_space<vmem>>, vector<8x16xbf16>,
    %c0_2 = arith.constant 0 : index
    %c0_3 = arith.constant 0 : index
    %c0_4 = arith.constant 0 : index
    %3 = vector.load %arg1[%c0_2, %c0_3, %c0_4] : memref<1x16x16xbf16, #tpu.memory_space<vmem>>, vector<1x16x16xbf16>
    %4 = vector.shape_cast %3 : vector<1x16x16xbf16> to vector<16x16xbf16>
    %c8 = arith.constant 8 : index
    %c0_5 = arith.constant 0 : index
    %5 = vector.load %arg4[%c8, %c0_5] : memref<32x16xbf16, #tpu.memory_space<vmem>>, vector<16x16xbf16>
    tpu.vector_store %arg4[%c8, %c0_5], %4 {strides = array<i32>} : memref<32x16xbf16, #tpu.memory_space<vmem>>, vector<16x16xbf16>,
    %6 = tpu.iota {dimensions = array<i32: 0>} : vector<16x1xi32>
    %c4_i32 = arith.constant 4 : i32
    %c0_i32 = arith.constant 0 : i32
    %7 = arith.cmpi eq, %c4_i32, %c0_i32 : i32
    %c1_i32 = arith.constant 1 : i32
    %8 = arith.select %7, %c1_i32, %c4_i32 : i32
    %9 = vector.broadcast %8 : i32 to vector<16x1xi32>
    %10 = arith.remsi %6, %9 : vector<16x1xi32>
    %c0_i32_6 = arith.constant 0 : i32
    %11 = vector.broadcast %c0_i32_6 : i32 to vector<16x1xi32>
    %12 = arith.cmpi ne, %10, %11 : vector<16x1xi32>
    %c0_i32_7 = arith.constant 0 : i32
    %13 = vector.broadcast %c0_i32_7 : i32 to vector<16x1xi32>
    %14 = arith.cmpi slt, %10, %13 : vector<16x1xi32>
    %c0_i32_8 = arith.constant 0 : i32
    %15 = arith.cmpi slt, %8, %c0_i32_8 : i32
    %16 = vector.broadcast %15 : i1 to vector<16x1xi1>
    %17 = vector.broadcast %16 : vector<16x1xi1> to vector<16x1xi1>
    %18 = arith.xori %14, %17 : vector<16x1xi1>
    %19 = arith.andi %18, %12 : vector<16x1xi1>
    %20 = vector.broadcast %8 : i32 to vector<16x1xi32>
    %21 = arith.addi %10, %20 : vector<16x1xi32>
    %22 = arith.select %19, %21, %10 : vector<16x1xi1>, vector<16x1xi32>
    %c1_i32_9 = arith.constant 1 : i32
    %23 = vector.broadcast %c1_i32_9 : i32 to vector<16x1xi32>
    %24 = arith.cmpi sge, %22, %23 : vector<16x1xi32>
    %c2_i32 = arith.constant 2 : i32
    %25 = vector.broadcast %c2_i32 : i32 to vector<16x1xi32>
    %26 = arith.cmpi sle, %22, %25 : vector<16x1xi32>
    %c3 = arith.constant 3 : index
    %c0_10 = arith.constant 0 : index
    %27 = vector.load %arg4[%c3, %c0_10] : memref<32x16xbf16, #tpu.memory_space<vmem>>, vector<16x16xbf16>
    %cst_11 = arith.constant 0.000000e+00 : bf16
    %28 = vector.broadcast %cst_11 : bf16 to vector<16x16xbf16>
    %29 = vector.shape_cast %24 : vector<16x1xi1> to vector<16x1xi1>
    %30 = vector.broadcast %29 : vector<16x1xi1> to vector<16x16xi1>
    %31 = arith.select %30, %27, %28 : vector<16x16xi1>, vector<16x16xbf16>
    %c4 = arith.constant 4 : index
    %c0_12 = arith.constant 0 : index
    %32 = vector.load %arg4[%c4, %c0_12] : memref<32x16xbf16, #tpu.memory_space<vmem>>, vector<16x16xbf16>
    %c5 = arith.constant 5 : index
    %c0_13 = arith.constant 0 : index
    %33 = vector.load %arg4[%c5, %c0_13] : memref<32x16xbf16, #tpu.memory_space<vmem>>, vector<16x16xbf16>
    %cst_14 = arith.constant 0.000000e+00 : bf16
    %34 = vector.broadcast %cst_14 : bf16 to vector<16x16xbf16>
    %35 = vector.shape_cast %26 : vector<16x1xi1> to vector<16x1xi1>
    %36 = vector.broadcast %35 : vector<16x1xi1> to vector<16x16xi1>
    %37 = arith.select %36, %33, %34 : vector<16x16xi1>, vector<16x16xbf16>
    %c7 = arith.constant 7 : index
    %c0_15 = arith.constant 0 : index
    %38 = vector.load %arg4[%c7, %c0_15] : memref<32x16xbf16, #tpu.memory_space<vmem>>, vector<16x16xbf16>
    %cst_16 = arith.constant 0.000000e+00 : bf16
    %39 = vector.broadcast %cst_16 : bf16 to vector<16x16xbf16>
    %40 = vector.shape_cast %24 : vector<16x1xi1> to vector<16x1xi1>
    %41 = vector.broadcast %40 : vector<16x1xi1> to vector<16x16xi1>
    %42 = arith.select %41, %38, %39 : vector<16x16xi1>, vector<16x16xbf16>
    %c8_17 = arith.constant 8 : index
    %c0_18 = arith.constant 0 : index
    %43 = vector.load %arg4[%c8_17, %c0_18] : memref<32x16xbf16, #tpu.memory_space<vmem>>, vector<16x16xbf16>
    %c9 = arith.constant 9 : index
    %c0_19 = arith.constant 0 : index
    %44 = vector.load %arg4[%c9, %c0_19] : memref<32x16xbf16, #tpu.memory_space<vmem>>, vector<16x16xbf16>
    %cst_20 = arith.constant 0.000000e+00 : bf16
    %45 = vector.broadcast %cst_20 : bf16 to vector<16x16xbf16>
    %46 = vector.shape_cast %26 : vector<16x1xi1> to vector<16x1xi1>
    %47 = vector.broadcast %46 : vector<16x1xi1> to vector<16x16xi1>
    %48 = arith.select %47, %44, %45 : vector<16x16xi1>, vector<16x16xbf16>
    %c11 = arith.constant 11 : index
    %c0_21 = arith.constant 0 : index
    %49 = vector.load %arg4[%c11, %c0_21] : memref<32x16xbf16, #tpu.memory_space<vmem>>, vector<16x16xbf16>
    %cst_22 = arith.constant 0.000000e+00 : bf16
    %50 = vector.broadcast %cst_22 : bf16 to vector<16x16xbf16>
    %51 = vector.shape_cast %24 : vector<16x1xi1> to vector<16x1xi1>
    %52 = vector.broadcast %51 : vector<16x1xi1> to vector<16x16xi1>
    %53 = arith.select %52, %49, %50 : vector<16x16xi1>, vector<16x16xbf16>
    %c12 = arith.constant 12 : index
    %c0_23 = arith.constant 0 : index
    %54 = vector.load %arg4[%c12, %c0_23] : memref<32x16xbf16, #tpu.memory_space<vmem>>, vector<16x16xbf16>
    %c13 = arith.constant 13 : index
    %c0_24 = arith.constant 0 : index
    %55 = vector.load %arg4[%c13, %c0_24] : memref<32x16xbf16, #tpu.memory_space<vmem>>, vector<16x16xbf16>
    %cst_25 = arith.constant 0.000000e+00 : bf16
    %56 = vector.broadcast %cst_25 : bf16 to vector<16x16xbf16>
    %57 = vector.shape_cast %26 : vector<16x1xi1> to vector<16x1xi1>
    %58 = vector.broadcast %57 : vector<16x1xi1> to vector<16x16xi1>
    %59 = arith.select %58, %55, %56 : vector<16x16xi1>, vector<16x16xbf16>
    %60 = tpu.concatenate %31, %32, %37, %42, %43, %48, %53, %54, %59 in 1 : vector<16x16xbf16>, vector<16x16xbf16>, vector<16x16xbf16>, vector<16x16xbf16>, vector<16x16xbf16>, vector<16x16xbf16>, vector<16x16xbf16>, vector<16x16xbf16>, vector<16x16xbf16> -> vector<16x144xbf16>
    %c0_26 = arith.constant 0 : index
    %c0_27 = arith.constant 0 : index
    %61 = vector.load %arg2[%c0_26, %c0_27] : memref<144x8xbf16, #tpu.memory_space<vmem>>, vector<144x8xbf16>
    %cst_28 = arith.constant dense<0.000000e+00> : vector<16x8xf32>
    %62 = tpu.matmul %60, %61, %cst_28 {dimension_numbers = #tpu.dot_dimension_numbers<[1], [0], [0], [1], [0, 0, 1, 1], [], []>} : vector<16x144xbf16>, vector<144x8xbf16>, vector<16x8xf32> -> vector<16x8xf32>
    %63 = arith.truncf %62 : vector<16x8xf32> to vector<16x8xbf16>
    %c0_29 = arith.constant 0 : index
    %c0_30 = arith.constant 0 : index
    %c0_31 = arith.constant 0 : index
    %64 = vector.load %arg3[%c0_29, %c0_30, %c0_31] : memref<1x16x8xbf16, #tpu.memory_space<vmem>>, vector<1x16x8xbf16>
    %65 = vector.shape_cast %64 : vector<1x16x8xbf16> to vector<16x8xbf16>
    %66 = vector.shape_cast %63 : vector<16x8xbf16> to vector<1x16x8xbf16>
    tpu.vector_store %arg3[%c0_29, %c0_30, %c0_31], %66 {strides = array<i32>} : memref<1x16x8xbf16, #tpu.memory_space<vmem>>, vector<1x16x8xbf16>,
    return
  }
  func.func @transform_0(%arg0: i32) -> (i32, i32, i32) {
    %c0_i32 = arith.constant 0 : i32
    %c0_i32_0 = arith.constant 0 : i32
    %c0_i32_1 = arith.constant 0 : i32
    return %arg0, %c0_i32, %c0_i32_0 : i32, i32, i32
  }
  func.func @transform_1(%arg0: i32) -> (i32, i32) {
    %c0_i32 = arith.constant 0 : i32
    %c0_i32_0 = arith.constant 0 : i32
    %c0_i32_1 = arith.constant 0 : i32
    return %c0_i32, %c0_i32_0 : i32, i32
  }
  func.func @transform_2(%arg0: i32) -> (i32, i32, i32) {
    %c0_i32 = arith.constant 0 : i32
    %c0_i32_0 = arith.constant 0 : i32
    %c0_i32_1 = arith.constant 0 : i32
    return %arg0, %c0_i32, %c0_i32_0 : i32, i32, i32
  }
}

module attributes {stable_mosaic.version = 11 : i64} {
  func.func @_fused_matmul_kernel(%arg0: i32, %arg1: memref<16x24xbf16, #tpu.memory_space<vmem>>, %arg2: memref<1x24xf32, #tpu.memory_space<vmem>>, %arg3: memref<1x24xf32, #tpu.memory_space<vmem>>, %arg4: memref<24x16xbf16, #tpu.memory_space<vmem>>, %arg5: memref<1x16xf32, #tpu.memory_space<vmem>>, %arg6: memref<1x16xf32, #tpu.memory_space<vmem>>, %arg7: memref<16x16xbf16, #tpu.memory_space<vmem>>) attributes {dimension_semantics = [#tpu.dimension_semantics<parallel>], iteration_bounds = array<i64: 2>, scalar_prefetch = 0 : i64, scratch_operands = 0 : i64, tpu.core_type = #tpu.core_type<tc>, window_params = [{transform_indices = @transform_0, window_bounds = array<i64: 16, 24>}, {pipeline_mode = #tpu.pipeline_mode<synchronous>, transform_indices = @transform_1, window_bounds = array<i64: 1, 24>}, {pipeline_mode = #tpu.pipeline_mode<synchronous>, transform_indices = @transform_2, window_bounds = array<i64: 1, 24>}, {pipeline_mode = #tpu.pipeline_mode<synchronous>, transform_indices = @transform_3, window_bounds = array<i64: 24, 16>}, {pipeline_mode = #tpu.pipeline_mode<synchronous>, transform_indices = @transform_4, window_bounds = array<i64: 1, 16>}, {pipeline_mode = #tpu.pipeline_mode<synchronous>, transform_indices = @transform_5, window_bounds = array<i64: 1, 16>}, {transform_indices = @transform_6, window_bounds = array<i64: 16, 16>}]} {
    %c0 = arith.constant 0 : index
    %c0_0 = arith.constant 0 : index
    %0 = vector.load %arg1[%c0, %c0_0] : memref<16x24xbf16, #tpu.memory_space<vmem>>, vector<16x24xbf16>
    %1 = arith.extf %0 : vector<16x24xbf16> to vector<16x24xf32>
    %c0_1 = arith.constant 0 : index
    %c0_2 = arith.constant 0 : index
    %2 = vector.load %arg2[%c0_1, %c0_2] : memref<1x24xf32, #tpu.memory_space<vmem>>, vector<1x24xf32>
    %3 = vector.broadcast %2 : vector<1x24xf32> to vector<16x24xf32>
    %4 = arith.mulf %1, %3 : vector<16x24xf32>
    %c0_3 = arith.constant 0 : index
    %c0_4 = arith.constant 0 : index
    %5 = vector.load %arg3[%c0_3, %c0_4] : memref<1x24xf32, #tpu.memory_space<vmem>>, vector<1x24xf32>
    %6 = vector.broadcast %5 : vector<1x24xf32> to vector<16x24xf32>
    %7 = arith.addf %4, %6 : vector<16x24xf32>
    %cst = arith.constant 0.000000e+00 : f32
    %8 = vector.broadcast %cst : f32 to vector<16x24xf32>
    %9 = arith.maximumf %7, %8 : vector<16x24xf32>
    %10 = arith.truncf %9 : vector<16x24xf32> to vector<16x24xbf16>
    %c0_5 = arith.constant 0 : index
    %c0_6 = arith.constant 0 : index
    %11 = vector.load %arg4[%c0_5, %c0_6] : memref<24x16xbf16, #tpu.memory_space<vmem>>, vector<24x16xbf16>
    %cst_7 = arith.constant dense<0.000000e+00> : vector<16x16xf32>
    %12 = tpu.matmul %10, %11, %cst_7 {dimension_numbers = #tpu.dot_dimension_numbers<[1], [0], [0], [1], [0, 0, 1, 1], [], []>} : vector<16x24xbf16>, vector<24x16xbf16>, vector<16x16xf32> -> vector<16x16xf32>
    %c0_8 = arith.constant 0 : index
    %c0_9 = arith.constant 0 : index
    %13 = vector.load %arg5[%c0_8, %c0_9] : memref<1x16xf32, #tpu.memory_space<vmem>>, vector<1x16xf32>
    %14 = vector.broadcast %13 : vector<1x16xf32> to vector<16x16xf32>
    %15 = arith.mulf %12, %14 : vector<16x16xf32>
    %c0_10 = arith.constant 0 : index
    %c0_11 = arith.constant 0 : index
    %16 = vector.load %arg6[%c0_10, %c0_11] : memref<1x16xf32, #tpu.memory_space<vmem>>, vector<1x16xf32>
    %17 = vector.broadcast %16 : vector<1x16xf32> to vector<16x16xf32>
    %18 = arith.addf %15, %17 : vector<16x16xf32>
    %cst_12 = arith.constant 0.000000e+00 : f32
    %19 = vector.broadcast %cst_12 : f32 to vector<16x16xf32>
    %20 = arith.maximumf %18, %19 : vector<16x16xf32>
    %21 = arith.truncf %20 : vector<16x16xf32> to vector<16x16xbf16>
    %c0_13 = arith.constant 0 : index
    %c0_14 = arith.constant 0 : index
    %22 = vector.load %arg7[%c0_13, %c0_14] : memref<16x16xbf16, #tpu.memory_space<vmem>>, vector<16x16xbf16>
    tpu.vector_store %arg7[%c0_13, %c0_14], %21 {strides = array<i32>} : memref<16x16xbf16, #tpu.memory_space<vmem>>, vector<16x16xbf16>,
    return
  }
  func.func @transform_0(%arg0: i32) -> (i32, i32) {
    %c0_i32 = arith.constant 0 : i32
    %c0_i32_0 = arith.constant 0 : i32
    return %arg0, %c0_i32 : i32, i32
  }
  func.func @transform_1(%arg0: i32) -> (i32, i32) {
    %c0_i32 = arith.constant 0 : i32
    %c0_i32_0 = arith.constant 0 : i32
    %c0_i32_1 = arith.constant 0 : i32
    return %c0_i32, %c0_i32_0 : i32, i32
  }
  func.func @transform_2(%arg0: i32) -> (i32, i32) {
    %c0_i32 = arith.constant 0 : i32
    %c0_i32_0 = arith.constant 0 : i32
    %c0_i32_1 = arith.constant 0 : i32
    return %c0_i32, %c0_i32_0 : i32, i32
  }
  func.func @transform_3(%arg0: i32) -> (i32, i32) {
    %c0_i32 = arith.constant 0 : i32
    %c0_i32_0 = arith.constant 0 : i32
    %c0_i32_1 = arith.constant 0 : i32
    return %c0_i32, %c0_i32_0 : i32, i32
  }
  func.func @transform_4(%arg0: i32) -> (i32, i32) {
    %c0_i32 = arith.constant 0 : i32
    %c0_i32_0 = arith.constant 0 : i32
    %c0_i32_1 = arith.constant 0 : i32
    return %c0_i32, %c0_i32_0 : i32, i32
  }
  func.func @transform_5(%arg0: i32) -> (i32, i32) {
    %c0_i32 = arith.constant 0 : i32
    %c0_i32_0 = arith.constant 0 : i32
    %c0_i32_1 = arith.constant 0 : i32
    return %c0_i32, %c0_i32_0 : i32, i32
  }
  func.func @transform_6(%arg0: i32) -> (i32, i32) {
    %c0_i32 = arith.constant 0 : i32
    %c0_i32_0 = arith.constant 0 : i32
    return %arg0, %c0_i32 : i32, i32
  }
}

module attributes {stable_mosaic.version = 11 : i64} {
  func.func @_head_kernel(%arg0: i32, %arg1: memref<2x16x32xbf16, #tpu.memory_space<vmem>>, %arg2: memref<1x1x32xf32, #tpu.memory_space<vmem>>, %arg3: memref<1x1x32xf32, #tpu.memory_space<vmem>>, %arg4: memref<32x512xbf16, #tpu.memory_space<vmem>>, %arg5: memref<1x512xf32, #tpu.memory_space<vmem>>, %arg6: memref<1x512xf32, #tpu.memory_space<vmem>>, %arg7: memref<1x512xf32, #tpu.memory_space<vmem>>, %arg8: memref<512x1xbf16, #tpu.memory_space<vmem>>, %arg9: memref<1x1xf32, #tpu.memory_space<vmem>>, %arg10: memref<2x1xf32, #tpu.memory_space<vmem>>) attributes {dimension_semantics = [#tpu.dimension_semantics<arbitrary>], iteration_bounds = array<i64: 1>, scalar_prefetch = 0 : i64, scratch_operands = 0 : i64, tpu.core_type = #tpu.core_type<tc>, window_params = [{pipeline_mode = #tpu.pipeline_mode<synchronous>, transform_indices = @transform_0, window_bounds = array<i64: 2, 16, 32>}, {pipeline_mode = #tpu.pipeline_mode<synchronous>, transform_indices = @transform_1, window_bounds = array<i64: 1, 1, 32>}, {pipeline_mode = #tpu.pipeline_mode<synchronous>, transform_indices = @transform_2, window_bounds = array<i64: 1, 1, 32>}, {pipeline_mode = #tpu.pipeline_mode<synchronous>, transform_indices = @transform_3, window_bounds = array<i64: 32, 512>}, {pipeline_mode = #tpu.pipeline_mode<synchronous>, transform_indices = @transform_4, window_bounds = array<i64: 1, 512>}, {pipeline_mode = #tpu.pipeline_mode<synchronous>, transform_indices = @transform_5, window_bounds = array<i64: 1, 512>}, {pipeline_mode = #tpu.pipeline_mode<synchronous>, transform_indices = @transform_6, window_bounds = array<i64: 1, 512>}, {pipeline_mode = #tpu.pipeline_mode<synchronous>, transform_indices = @transform_7, window_bounds = array<i64: 512, 1>}, {pipeline_mode = #tpu.pipeline_mode<synchronous>, transform_indices = @transform_8, window_bounds = array<i64: 1, 1>}, {pipeline_mode = #tpu.pipeline_mode<synchronous>, transform_indices = @transform_9, window_bounds = array<i64: 2, 1>}]} {
    %c0 = arith.constant 0 : index
    %c0_0 = arith.constant 0 : index
    %c0_1 = arith.constant 0 : index
    %0 = vector.load %arg1[%c0, %c0_0, %c0_1] : memref<2x16x32xbf16, #tpu.memory_space<vmem>>, vector<2x16x32xbf16>
    %1 = arith.extf %0 : vector<2x16x32xbf16> to vector<2x16x32xf32>
    %c0_2 = arith.constant 0 : index
    %c0_3 = arith.constant 0 : index
    %c0_4 = arith.constant 0 : index
    %2 = vector.load %arg2[%c0_2, %c0_3, %c0_4] : memref<1x1x32xf32, #tpu.memory_space<vmem>>, vector<1x1x32xf32>
    %3 = vector.broadcast %2 : vector<1x1x32xf32> to vector<2x16x32xf32>
    %4 = arith.mulf %1, %3 : vector<2x16x32xf32>
    %c0_5 = arith.constant 0 : index
    %c0_6 = arith.constant 0 : index
    %c0_7 = arith.constant 0 : index
    %5 = vector.load %arg3[%c0_5, %c0_6, %c0_7] : memref<1x1x32xf32, #tpu.memory_space<vmem>>, vector<1x1x32xf32>
    %6 = vector.broadcast %5 : vector<1x1x32xf32> to vector<2x16x32xf32>
    %7 = arith.addf %4, %6 : vector<2x16x32xf32>
    %cst = arith.constant 0.000000e+00 : f32
    %8 = vector.broadcast %cst : f32 to vector<2x16x32xf32>
    %9 = arith.maximumf %7, %8 : vector<2x16x32xf32>
    %cst_8 = arith.constant dense<0.000000e+00> : vector<2x32xf32>
    %10 = vector.multi_reduction <add>, %9, %cst_8 [1] : vector<2x16x32xf32> to vector<2x32xf32>
    %cst_9 = arith.constant 6.250000e-02 : f32
    %11 = vector.broadcast %cst_9 : f32 to vector<2x32xf32>
    %12 = arith.mulf %10, %11 : vector<2x32xf32>
    %13 = arith.truncf %12 : vector<2x32xf32> to vector<2x32xbf16>
    %c0_10 = arith.constant 0 : index
    %c0_11 = arith.constant 0 : index
    %14 = vector.load %arg4[%c0_10, %c0_11] : memref<32x512xbf16, #tpu.memory_space<vmem>>, vector<32x512xbf16>
    %cst_12 = arith.constant dense<0.000000e+00> : vector<2x512xf32>
    %15 = tpu.matmul %13, %14, %cst_12 {dimension_numbers = #tpu.dot_dimension_numbers<[1], [0], [0], [1], [0, 0, 1, 1], [], []>} : vector<2x32xbf16>, vector<32x512xbf16>, vector<2x512xf32> -> vector<2x512xf32>
    %c0_13 = arith.constant 0 : index
    %c0_14 = arith.constant 0 : index
    %16 = vector.load %arg5[%c0_13, %c0_14] : memref<1x512xf32, #tpu.memory_space<vmem>>, vector<1x512xf32>
    %17 = vector.broadcast %16 : vector<1x512xf32> to vector<2x512xf32>
    %18 = arith.addf %15, %17 : vector<2x512xf32>
    %cst_15 = arith.constant 0.000000e+00 : f32
    %19 = vector.broadcast %cst_15 : f32 to vector<2x512xf32>
    %20 = arith.maximumf %18, %19 : vector<2x512xf32>
    %c0_16 = arith.constant 0 : index
    %c0_17 = arith.constant 0 : index
    %21 = vector.load %arg6[%c0_16, %c0_17] : memref<1x512xf32, #tpu.memory_space<vmem>>, vector<1x512xf32>
    %22 = vector.broadcast %21 : vector<1x512xf32> to vector<2x512xf32>
    %23 = arith.mulf %20, %22 : vector<2x512xf32>
    %c0_18 = arith.constant 0 : index
    %c0_19 = arith.constant 0 : index
    %24 = vector.load %arg7[%c0_18, %c0_19] : memref<1x512xf32, #tpu.memory_space<vmem>>, vector<1x512xf32>
    %25 = vector.broadcast %24 : vector<1x512xf32> to vector<2x512xf32>
    %26 = arith.addf %23, %25 : vector<2x512xf32>
    %27 = arith.truncf %26 : vector<2x512xf32> to vector<2x512xbf16>
    %c0_20 = arith.constant 0 : index
    %c0_21 = arith.constant 0 : index
    %28 = vector.load %arg8[%c0_20, %c0_21] : memref<512x1xbf16, #tpu.memory_space<vmem>>, vector<512x1xbf16>
    %cst_22 = arith.constant dense<0.000000e+00> : vector<2x1xf32>
    %29 = tpu.matmul %27, %28, %cst_22 {dimension_numbers = #tpu.dot_dimension_numbers<[1], [0], [0], [1], [0, 0, 1, 1], [], []>} : vector<2x512xbf16>, vector<512x1xbf16>, vector<2x1xf32> -> vector<2x1xf32>
    %c0_23 = arith.constant 0 : index
    %c0_24 = arith.constant 0 : index
    %30 = vector.load %arg9[%c0_23, %c0_24] : memref<1x1xf32, #tpu.memory_space<vmem>>, vector<1x1xf32>
    %31 = vector.broadcast %30 : vector<1x1xf32> to vector<2x1xf32>
    %32 = arith.addf %29, %31 : vector<2x1xf32>
    %c0_25 = arith.constant 0 : index
    %c0_26 = arith.constant 0 : index
    %33 = vector.load %arg10[%c0_25, %c0_26] : memref<2x1xf32, #tpu.memory_space<vmem>>, vector<2x1xf32>
    tpu.vector_store %arg10[%c0_25, %c0_26], %32 {strides = array<i32>} : memref<2x1xf32, #tpu.memory_space<vmem>>, vector<2x1xf32>,
    return
  }
  func.func @transform_0(%arg0: i32) -> (i32, i32, i32) {
    %c0_i32 = arith.constant 0 : i32
    %c0_i32_0 = arith.constant 0 : i32
    %c0_i32_1 = arith.constant 0 : i32
    %c0_i32_2 = arith.constant 0 : i32
    return %c0_i32, %c0_i32_0, %c0_i32_1 : i32, i32, i32
  }
  func.func @transform_1(%arg0: i32) -> (i32, i32, i32) {
    %c0_i32 = arith.constant 0 : i32
    %c0_i32_0 = arith.constant 0 : i32
    %c0_i32_1 = arith.constant 0 : i32
    %c0_i32_2 = arith.constant 0 : i32
    return %c0_i32, %c0_i32_0, %c0_i32_1 : i32, i32, i32
  }
  func.func @transform_2(%arg0: i32) -> (i32, i32, i32) {
    %c0_i32 = arith.constant 0 : i32
    %c0_i32_0 = arith.constant 0 : i32
    %c0_i32_1 = arith.constant 0 : i32
    %c0_i32_2 = arith.constant 0 : i32
    return %c0_i32, %c0_i32_0, %c0_i32_1 : i32, i32, i32
  }
  func.func @transform_3(%arg0: i32) -> (i32, i32) {
    %c0_i32 = arith.constant 0 : i32
    %c0_i32_0 = arith.constant 0 : i32
    %c0_i32_1 = arith.constant 0 : i32
    return %c0_i32, %c0_i32_0 : i32, i32
  }
  func.func @transform_4(%arg0: i32) -> (i32, i32) {
    %c0_i32 = arith.constant 0 : i32
    %c0_i32_0 = arith.constant 0 : i32
    %c0_i32_1 = arith.constant 0 : i32
    return %c0_i32, %c0_i32_0 : i32, i32
  }
  func.func @transform_5(%arg0: i32) -> (i32, i32) {
    %c0_i32 = arith.constant 0 : i32
    %c0_i32_0 = arith.constant 0 : i32
    %c0_i32_1 = arith.constant 0 : i32
    return %c0_i32, %c0_i32_0 : i32, i32
  }
  func.func @transform_6(%arg0: i32) -> (i32, i32) {
    %c0_i32 = arith.constant 0 : i32
    %c0_i32_0 = arith.constant 0 : i32
    %c0_i32_1 = arith.constant 0 : i32
    return %c0_i32, %c0_i32_0 : i32, i32
  }
  func.func @transform_7(%arg0: i32) -> (i32, i32) {
    %c0_i32 = arith.constant 0 : i32
    %c0_i32_0 = arith.constant 0 : i32
    %c0_i32_1 = arith.constant 0 : i32
    return %c0_i32, %c0_i32_0 : i32, i32
  }
  func.func @transform_8(%arg0: i32) -> (i32, i32) {
    %c0_i32 = arith.constant 0 : i32
    %c0_i32_0 = arith.constant 0 : i32
    %c0_i32_1 = arith.constant 0 : i32
    return %c0_i32, %c0_i32_0 : i32, i32
  }
  func.func @transform_9(%arg0: i32) -> (i32, i32) {
    %c0_i32 = arith.constant 0 : i32
    %c0_i32_0 = arith.constant 0 : i32
    %c0_i32_1 = arith.constant 0 : i32
    return %c0_i32, %c0_i32_0 : i32, i32
  }
}

</mosaic_0001>

<llo_original>
// kernel: densenet_forward.13
$region0: #{densenet_forward.13}
  #allocation0 [shape = 'u32[]', space=smem, size = 0x4, offset = 0x4, fixed_abs, tag = 'smem constant byte address 0x4 - core index']
  #allocation1 [shape = 'u32[144,128]{1,0:T(1,128)}', space=vmem, size = 0x12000, scoped, tag = 'internal scratch']
  %s0 = inlined_call_operand.vmem [shape: bf16[2,18,18,16], index: 0, kind: input, shape index: {}, may-alias: {0,1}]
  %s1 = inlined_call_operand.vmem [shape: bf16[2,18,18,16], index: 1, kind: input, shape index: {}, may-alias: {0,1}]
  %s2 = inlined_call_operand.vmem [shape: bf16[3,8,18], index: 2, kind: input, shape index: {}]
  %s3 = inlined_call_operand.vmem [shape: bf16[2,8,8,16], index: 3, kind: output, shape index: {}]
  %s4 = sld [smem:[#allocation0]]
  $region45: #{densenet_forward.13} parent=0
    _
  %s6 = ssub.s32 1, %s4
  %s7 = scalar_select 0, %s6, %s4
  loop: start=0, step=1, limit=18
  $region2: #{densenet_forward.13} parent=0 // loop_pre_header
    _
  $region3: #{densenet_forward.13} parent=0 // loop_header
    %s9 = sphi 0, %s13
    %p10 = scmp.ge.s32.totalorder %s9, 18
    %s16 = sphi 0, %s28
    %s17 = sphi 0, %s24
    %s18 = sphi 0, %s16
    %s19 = sphi 0, %s17
    %s20 = sphi 0, %s18
    %s21 = sphi 0, %s19
    %s33 = sphi 0, %s35
    %s36 = sphi 0, %s33
    %s37 = sphi 0, %s36
    %s53 = sphi 0, %s37
    %s63 = sphi 0, %s65
    %s66 = sphi 0, %s63
    %s67 = sphi 0, %s66
    %s83 = sphi 0, %s67
    %s87 = sphi 0, %s87
    %s89 = sphi 0, %s87
    %s90 = sphi 0, %s89
    %s104 = sphi 0, %s90
    %s112 = sphi 0, %s114
    %s115 = sphi 0, %s112
    %s116 = sphi 0, %s115
    %s132 = sphi 0, %s116
  $region4: #{densenet_forward.13} parent=0 // loop_header_branch
    %12 = sbr.rel (%p10) target = $region8
  $region5: #{densenet_forward.13} parent=0 // loop_body
    %s14 = ssub.s32 %s9, 1
    %s15 = ssub.s32 %s9, 2
    %s22 = sadd.s32 1, %s17
    %p23 = scmp.ge.s32.totalorder %s22, 8
    %s24 = scalar_select %p23, 0, %s22
    %s25 = sadd.s32 1, %s16
    %s26 = scalar_select %p23, %s25, %s16
    %p27 = scmp.ge.s32.totalorder %s26, 2
    %s28 = scalar_select %p27, 0, %s26
    %s29 = ssub.s32 %s16, %s28
    %s30 = ssub.s32 %s17, %s24
    %s31 = sor.u32 %s29, %s30
    %p32 = scmp.eq.s32.totalorder %s31, 0
    %s34 = sadd.s32 %s33, 1
    %s35 = scalar_select %p32, %s33, %s34
    %p38 = pneg %p32
    %p39 = scmp.eq.s32.totalorder %s9, 15
    %p40 = por %p38, %p39
    %p41 = scmp.ne.s32.totalorder %s33, %s36
    %p42 = scmp.eq.s32.totalorder %s9, 0
    %p43 = por %p41, %p42
    %p44 = scmp.ne.s32.totalorder %s33, %s36
    %p45 = scmp.eq.s32.totalorder %s14, 15
    %p46 = por %p44, %p45
    %p47 = scmp.ne.s32.totalorder %s36, %s37
    %p48 = scmp.eq.s32.totalorder %s14, 0
    %p49 = por %p47, %p48
    %p50 = scmp.ne.s32.totalorder %s36, %s37
    %p51 = scmp.eq.s32.totalorder %s15, 15
    %p52 = por %p50, %p51
    %p54 = scmp.ne.s32.totalorder %s37, %s53
    %p55 = scmp.eq.s32.totalorder %s15, 0
    %p56 = por %p54, %p55
    %s57 = sadd.s32 %s17, 1
    %s58 = sadd.s32 %s24, 1
    %s59 = ssub.s32 %s16, %s28
    %s60 = ssub.s32 %s57, %s58
    %s61 = sor.u32 %s59, %s60
    %p62 = scmp.eq.s32.totalorder %s61, 0
    %s64 = sadd.s32 %s63, 1
    %s65 = scalar_select %p62, %s63, %s64
    %p68 = pneg %p62
    %p69 = scmp.eq.s32.totalorder %s9, 15
    %p70 = por %p68, %p69
    %p71 = scmp.ne.s32.totalorder %s63, %s66
    %p72 = scmp.eq.s32.totalorder %s9, 0
    %p73 = por %p71, %p72
    %p74 = scmp.ne.s32.totalorder %s63, %s66
    %p75 = scmp.eq.s32.totalorder %s14, 15
    %p76 = por %p74, %p75
    %p77 = scmp.ne.s32.totalorder %s66, %s67
    %p78 = scmp.eq.s32.totalorder %s14, 0
    %p79 = por %p77, %p78
    %p80 = scmp.ne.s32.totalorder %s66, %s67
    %p81 = scmp.eq.s32.totalorder %s15, 15
    %p82 = por %p80, %p81
    %p84 = scmp.ne.s32.totalorder %s67, %s83
    %p85 = scmp.eq.s32.totalorder %s15, 0
    %p86 = por %p84, %p85
    %s88 = sadd.s32 %s87, 1
    %p91 = scmp.eq.s32.totalorder %s9, 15
    %p92 = scmp.ne.s32.totalorder %s87, %s89
    %p93 = scmp.eq.s32.totalorder %s9, 0
    %p94 = por %p92, %p93
    %p95 = scmp.ne.s32.totalorder %s87, %s89
    %p96 = scmp.eq.s32.totalorder %s14, 15
    %p97 = por %p95, %p96
    %p98 = scmp.ne.s32.totalorder %s89, %s90
    %p99 = scmp.eq.s32.totalorder %s14, 0
    %p100 = por %p98, %p99
    %p101 = scmp.ne.s32.totalorder %s89, %s90
    %p102 = scmp.eq.s32.totalorder %s15, 15
    %p103 = por %p101, %p102
    %p105 = scmp.ne.s32.totalorder %s90, %s104
    %p106 = scmp.eq.s32.totalorder %s15, 0
    %p107 = por %p105, %p106
    %s108 = ssub.s32 %s16, %s28
    %s109 = ssub.s32 %s17, %s24
    %s110 = sor.u32 %s108, %s109
    %p111 = scmp.eq.s32.totalorder %s110, 0
    %s113 = sadd.s32 %s112, 1
    %s114 = scalar_select %p111, %s112, %s113
    %p117 = pneg %p111
    %p118 = scmp.eq.s32.totalorder %s9, 15
    %p119 = por %p117, %p118
    %p120 = scmp.ne.s32.totalorder %s112, %s115
    %p121 = scmp.eq.s32.totalorder %s9, 0
    %p122 = por %p120, %p121
    %p123 = scmp.ne.s32.totalorder %s112, %s115
    %p124 = scmp.eq.s32.totalorder %s14, 15
    %p125 = por %p123, %p124
    %p126 = scmp.ne.s32.totalorder %s115, %s116
    %p127 = scmp.eq.s32.totalorder %s14, 0
    %p128 = por %p126, %p127
    %p129 = scmp.ne.s32.totalorder %s115, %s116
    %p130 = scmp.eq.s32.totalorder %s15, 15
    %p131 = por %p129, %p130
    %p133 = scmp.ne.s32.totalorder %s116, %s132
    %p134 = scmp.eq.s32.totalorder %s15, 0
    %p135 = por %p133, %p134
    %p136 = scmp.le.s32.totalorder 1, %s9
    %p137 = scmp.lt.s32.totalorder %s9, 17
    %p138 = pnand %p136, %p137
    %p139 = pneg %p138
    // Predicated region
    $region9: #{densenet_forward.13} parent=5 // pred_check
      _
    $region10: #{densenet_forward.13} parent=5 // pred_check_branch
      %141 = sbr.rel (%p138) target = $region12
    $region11: #{densenet_forward.13} parent=5 // pred_region
      %s142 = ssub.s32 %s9, 1
      // Predicated region
      $region13: #{densenet_forward.13} parent=11 // pred_check
        %p143 = pneg %p100
      $region14: #{densenet_forward.13} parent=11 // pred_check_branch
        %145 = sbr.rel (%p143) target = $region16
      $region15: #{densenet_forward.13} parent=11 // pred_region
        _
      $region16: #{densenet_forward.13} parent=11 // pred_fallthru
        _
    $region12: #{densenet_forward.13} parent=5 // pred_fallthru
      _
    %p146 = scmp.lt.s32.totalorder %s9, 16
    // Predicated region
    $region17: #{densenet_forward.13} parent=5 // pred_check
      %p147 = pneg %p146
    $region18: #{densenet_forward.13} parent=5 // pred_check_branch
      %149 = sbr.rel (%p147) target = $region20
    $region19: #{densenet_forward.13} parent=5 // pred_region
      // Predicated region
      $region21: #{densenet_forward.13} parent=19 // pred_check
        %p150 = pneg %p43
      $region22: #{densenet_forward.13} parent=19 // pred_check_branch
        %152 = sbr.rel (%p150) target = $region24
      $region23: #{densenet_forward.13} parent=19 // pred_region
        %s153 = smul.u32 2, %s17
        %p154 = scmp.lt.s32.totalorder %s16, 1
        %s155 = scalar_select %p154, %s16, 1
        %p156 = scmp.lt.s32.totalorder %s153, 17
        %s157 = scalar_select %p156, %s153, 17
        %s158 = smul.addr %s157, 3
        %s159 = smul.addr %s155, 54
        %s160 = sadd.s32 %s158, %s159
        %s161 = smul.addr %s160, 4
        %s162 = scalar_lea.vmem %s0, %s161
        %s163 = smul.u32 2, %s17
      $region24: #{densenet_forward.13} parent=19 // pred_fallthru
        _
      // Predicated region
      $region25: #{densenet_forward.13} parent=19 // pred_check
        %p164 = pneg %p73
      $region26: #{densenet_forward.13} parent=19 // pred_check_branch
        %166 = sbr.rel (%p164) target = $region28
      $region27: #{densenet_forward.13} parent=19 // pred_region
        %s167 = sadd.s32 %s17, 1
        %s168 = smul.u32 2, %s167
        %p169 = scmp.lt.s32.totalorder %s16, 1
        %s170 = scalar_select %p169, %s16, 1
        %p171 = scmp.lt.s32.totalorder %s168, 17
        %s172 = scalar_select %p171, %s168, 17
        %s173 = smul.addr %s172, 3
        %s174 = smul.addr %s170, 54
        %s175 = sadd.s32 %s173, %s174
        %s176 = smul.addr %s175, 4
        %s177 = scalar_lea.vmem %s1, %s176
        %s178 = sadd.s32 %s17, 1
        %s179 = smul.u32 2, %s178
      $region28: #{densenet_forward.13} parent=19 // pred_fallthru
        _
    $region20: #{densenet_forward.13} parent=5 // pred_fallthru
      _
    %p180 = scmp.le.s32.totalorder 1, %s9
    %p181 = scmp.lt.s32.totalorder %s9, 17
    %p182 = pnand %p180, %p181
    %p183 = pneg %p182
    // Predicated region
    $region29: #{densenet_forward.13} parent=5 // pred_check
      _
    $region30: #{densenet_forward.13} parent=5 // pred_check_branch
      %185 = sbr.rel (%p182) target = $region32
    $region31: #{densenet_forward.13} parent=5 // pred_region
      %s186 = ssub.s32 %s9, 1
      %s187 = smul.u32 2, %s19
      %p188 = scmp.lt.s32.totalorder %s18, 1
      %s189 = scalar_select %p188, %s18, 1
      %p190 = scmp.lt.s32.totalorder %s187, 17
      %s191 = scalar_select %p190, %s187, 17
      %s192 = smul.addr %s191, 3
      %s193 = smul.addr %s189, 54
      %s194 = sadd.s32 %s192, %s193
      %s195 = smul.addr %s194, 4
      %s196 = scalar_lea.vmem %s0, %s195
      %p197 = pneg %p49
      %p198 = pneg %p46
      %s199 = sadd.s32 %s19, 1
      %s200 = smul.u32 2, %s199
      %p201 = scmp.lt.s32.totalorder %s18, 1
      %s202 = scalar_select %p201, %s18, 1
      %p203 = scmp.lt.s32.totalorder %s200, 17
      %s204 = scalar_select %p203, %s200, 17
      %s205 = smul.addr %s204, 3
      %s206 = smul.addr %s202, 54
      %s207 = sadd.s32 %s205, %s206
      %s208 = smul.addr %s207, 4
      %s209 = scalar_lea.vmem %s1, %s208
      %p210 = pneg %p79
      %p211 = pneg %p76
      %p212 = pneg %p100
      %p213 = pneg %p97
      %p214 = pneg %p128
      %p215 = pneg %p125
      %p216 = scmp.lt.s32.totalorder %s18, 1
      %s217 = scalar_select %p216, %s18, 1
      %p218 = scmp.lt.s32.totalorder %s19, 7
      %s219 = scalar_select %p218, %s19, 7
      %s220 = smul.addr %s217, 8
      %s221 = sadd.s32 %s219, %s220
      %s222 = smul.addr %s221, 4
      %s223 = scalar_lea.vmem %s3, %s222
      %s224 = smul.u32 2, %s19
      %p225 = scmp.lt.s32.totalorder %s18, 1
      %s226 = scalar_select %p225, %s18, 1
      %p227 = scmp.lt.s32.totalorder %s224, 17
      %s228 = scalar_select %p227, %s224, 17
      %s229 = smul.addr %s228, 3
      %s230 = smul.addr %s226, 54
      %s231 = sadd.s32 %s229, %s230
      %s232 = smul.addr %s231, 4
      %s233 = scalar_lea.vmem %s0, %s232
      %s234 = smul.u32 2, %s19
      %s235 = sadd.s32 %s19, 1
      %s236 = smul.u32 2, %s235
      %p237 = scmp.lt.s32.totalorder %s18, 1
      %s238 = scalar_select %p237, %s18, 1
      %p239 = scmp.lt.s32.totalorder %s236, 17
      %s240 = scalar_select %p239, %s236, 17
      %s241 = smul.addr %s240, 3
      %s242 = smul.addr %s238, 54
      %s243 = sadd.s32 %s241, %s242
      %s244 = smul.addr %s243, 4
      %s245 = scalar_lea.vmem %s1, %s244
      %s246 = sadd.s32 %s19, 1
      %s247 = smul.u32 2, %s246
      %p248 = scmp.lt.s32.totalorder %s18, 1
      %s249 = scalar_select %p248, %s18, 1
      %p250 = scmp.lt.s32.totalorder %s19, 7
      %s251 = scalar_select %p250, %s19, 7
      %s252 = smul.addr %s249, 8
      %s253 = sadd.s32 %s251, %s252
      %s254 = smul.addr %s253, 4
      %s255 = scalar_lea.vmem %s3, %s254
      %v257 = vld [vmem:[%s233] sm:$0xf]
      %v258 = vld [vmem:[%s233 + $0x4] sm:$0xf]
      %v259 = vld [vmem:[%s233 + $0x8] sm:$0x1]
      %v260 = vunpack.c.l.bf16 %v257
      %v261 = vunpack.c.l.bf16 %v258
      %v262 = vunpack.c.l.bf16 %v259
      %s263 = scalar_lea.vmem %s233, 12
      %v264 = vld [vmem:[%s263] sm:$0xf]
      %v265 = vld [vmem:[%s263 + $0x4] sm:$0xf]
      %v266 = vld [vmem:[%s263 + $0x8] sm:$0x1]
      %v267 = vunpack.c.l.bf16 %v264
      %v268 = vunpack.c.l.bf16 %v265
      %v269 = vunpack.c.l.bf16 %v266
      %v270 = vld [vmem:[%s245] sm:$0xf]
      %v271 = vld [vmem:[%s245 + $0x4] sm:$0xf]
      %v272 = vld [vmem:[%s245 + $0x8] sm:$0x1]
      %v273 = vunpack.c.l.bf16 %v270
      %v274 = vunpack.c.l.bf16 %v271
      %v275 = vunpack.c.l.bf16 %v272
      %v276 = vmax.f32 %v260, %v267
      %v277 = vmax.f32 %v261, %v268
      %v278 = vmax.f32 %v262, %v269
      %v279 = vmax.f32 %v276, %v273
      %v280 = vmax.f32 %v277, %v274
      %v281 = vmax.f32 %v278, %v275
      %v282 = vpack.c.bf16 %v280, %v279
      %v283 = vpack.c.bf16 %v281, %v281
      %v284 = vld [vmem:[%s2] sm:$0xf]
      %vm285 = vcmask 146432
      %v287 = vsel %vm285, %v284, 0
      %vm289 = vcmask 1040384
      %v291 = vsel %vm289, %v283, 0
      %293 = vmatprep.subr.bf16.mxu0 0
      %294 = vmatpush1.bf16.msra.mxu0 %v282
      %295 = vmatprep.subr.bf16.mxu0 0
      %296 = vmatpush1.bf16.msra.mxu0 %v291
      %297 = vmatprep.subr.bf16.mxu0 0
      %298 = vmatpush1.bf16.msra.mxu0 0
      %299 = vmatprep.subr.bf16.mxu0 0
      %300 = vmatpush1.bf16.msra.mxu0 0
      %301 = vmatprep.subr.bf16.mxu0 0
      %302 = vmatpush1.bf16.msra.mxu0 0
      %303 = vmatprep.subr.bf16.mxu0 0
      %304 = vmatpush1.bf16.msra.mxu0 0
      %305 = vmatprep.subr.bf16.mxu0 0
      %306 = vmatpush1.bf16.msra.mxu0 0
      %307 = vmatprep.subr.bf16.mxu0 0
      %308 = vmatpush1.bf16.msra.mxu0 0
      %309 = vmatprep.subr.bf16.mxu0 0
      %310 = vmatpush1.bf16.msra.mxu0 0
      %311 = vmatprep.subr.bf16.mxu0 0
      %312 = vmatpush1.bf16.msra.mxu0 0
      %313 = vmatprep.subr.bf16.mxu0 0
      %314 = vmatpush1.bf16.msra.mxu0 0
      %315 = vmatprep.subr.bf16.mxu0 0
      %316 = vmatpush1.bf16.msra.mxu0 0
      %317 = vmatprep.subr.bf16.mxu0 0
      %318 = vmatpush1.bf16.msra.mxu0 0
      %319 = vmatprep.subr.bf16.mxu0 0
      %320 = vmatpush1.bf16.msra.mxu0 0
      %321 = vmatprep.subr.bf16.mxu0 0
      %322 = vmatpush1.bf16.msra.mxu0 0
      %323 = vmatprep.subr.bf16.mxu0 0
      %324 = vmatpush1.bf16.msra.mxu0 0
      %325 = vmatprep.mubr.bf16.mxu0 0
      %326 = vmatmul.mubr.bf16.gmra.mrb[0].mxu0 %v287
      %v327 = vpop.f32.mrb[0].mxu0
      %v328 = vadd.f32 0.0, %v327
      %v329 = vpop.f32.mrb[0].mxu0
      %v330 = vpop.f32.mrb[0].mxu0
      %v331 = vpop.f32.mrb[0].mxu0
      %332 = vdwg.mxu0
      %s333 = scalar_lea.vmem %s2, 4
      %v334 = vld [vmem:[%s333] sm:$0xf]
      %v336 = vsel %vm285, %v334, 0
      %338 = vmatprep.subr.bf16.mxu0 0
      %339 = vmatpush1.bf16.msra.mxu0 %v282
      %340 = vmatprep.subr.bf16.mxu0 0
      %341 = vmatpush1.bf16.msra.mxu0 %v291
      %342 = vmatprep.subr.bf16.mxu0 0
      %343 = vmatpush1.bf16.msra.mxu0 0
      %344 = vmatprep.subr.bf16.mxu0 0
      %345 = vmatpush1.bf16.msra.mxu0 0
      %346 = vmatprep.subr.bf16.mxu0 0
      %347 = vmatpush1.bf16.msra.mxu0 0
      %348 = vmatprep.subr.bf16.mxu0 0
      %349 = vmatpush1.bf16.msra.mxu0 0
      %350 = vmatprep.subr.bf16.mxu0 0
      %351 = vmatpush1.bf16.msra.mxu0 0
      %352 = vmatprep.subr.bf16.mxu0 0
      %353 = vmatpush1.bf16.msra.mxu0 0
      %354 = vmatprep.subr.bf16.mxu0 0
      %355 = vmatpush1.bf16.msra.mxu0 0
      %356 = vmatprep.subr.bf16.mxu0 0
      %357 = vmatpush1.bf16.msra.mxu0 0
      %358 = vmatprep.subr.bf16.mxu0 0
      %359 = vmatpush1.bf16.msra.mxu0 0
      %360 = vmatprep.subr.bf16.mxu0 0
      %361 = vmatpush1.bf16.msra.mxu0 0
      %362 = vmatprep.subr.bf16.mxu0 0
      %363 = vmatpush1.bf16.msra.mxu0 0
      %364 = vmatprep.subr.bf16.mxu0 0
      %365 = vmatpush1.bf16.msra.mxu0 0
      %366 = vmatprep.subr.bf16.mxu0 0
      %367 = vmatpush1.bf16.msra.mxu0 0
      %368 = vmatprep.subr.bf16.mxu0 0
      %369 = vmatpush1.bf16.msra.mxu0 0
      %370 = vmatprep.mubr.bf16.mxu0 0
      %371 = vmatmul.mubr.bf16.gmra.mrb[0].mxu0 %v336
      %v372 = vpop.f32.mrb[0].mxu0
      %v373 = vadd.f32 0.0, %v372
      %v374 = vpop.f32.mrb[0].mxu0
      %v375 = vpop.f32.mrb[0].mxu0
      %v376 = vpop.f32.mrb[0].mxu0
      %377 = vdwg.mxu0
      %v378 = vmax.f32 %v328, %v373
      %s379 = scalar_lea.vmem %s2, 8
      %v380 = vld [vmem:[%s379] sm:$0xf]
      %v382 = vsel %vm285, %v380, 0
      %384 = vmatprep.subr.bf16.mxu0 0
      %385 = vmatpush1.bf16.msra.mxu0 %v282
      %386 = vmatprep.subr.bf16.mxu0 0
      %387 = vmatpush1.bf16.msra.mxu0 %v291
      %388 = vmatprep.subr.bf16.mxu0 0
      %389 = vmatpush1.bf16.msra.mxu0 0
      %390 = vmatprep.subr.bf16.mxu0 0
      %391 = vmatpush1.bf16.msra.mxu0 0
      %392 = vmatprep.subr.bf16.mxu0 0
      %393 = vmatpush1.bf16.msra.mxu0 0
      %394 = vmatprep.subr.bf16.mxu0 0
      %395 = vmatpush1.bf16.msra.mxu0 0
      %396 = vmatprep.subr.bf16.mxu0 0
      %397 = vmatpush1.bf16.msra.mxu0 0
      %398 = vmatprep.subr.bf16.mxu0 0
      %399 = vmatpush1.bf16.msra.mxu0 0
      %400 = vmatprep.subr.bf16.mxu0 0
      %401 = vmatpush1.bf16.msra.mxu0 0
      %402 = vmatprep.subr.bf16.mxu0 0
      %403 = vmatpush1.bf16.msra.mxu0 0
      %404 = vmatprep.subr.bf16.mxu0 0
      %405 = vmatpush1.bf16.msra.mxu0 0
      %406 = vmatprep.subr.bf16.mxu0 0
      %407 = vmatpush1.bf16.msra.mxu0 0
      %408 = vmatprep.subr.bf16.mxu0 0
      %409 = vmatpush1.bf16.msra.mxu0 0
      %410 = vmatprep.subr.bf16.mxu0 0
      %411 = vmatpush1.bf16.msra.mxu0 0
      %412 = vmatprep.subr.bf16.mxu0 0
      %413 = vmatpush1.bf16.msra.mxu0 0
      %414 = vmatprep.subr.bf16.mxu0 0
      %415 = vmatpush1.bf16.msra.mxu0 0
      %416 = vmatprep.mubr.bf16.mxu0 0
      %417 = vmatmul.mubr.bf16.gmra.mrb[0].mxu0 %v382
      %v418 = vpop.f32.mrb[0].mxu0
      %v419 = vadd.f32 0.0, %v418
      %v420 = vpop.f32.mrb[0].mxu0
      %v421 = vpop.f32.mrb[0].mxu0
      %v422 = vpop.f32.mrb[0].mxu0
      %423 = vdwg.mxu0
      %v424 = vmax.f32 %v378, %v419
      %v425 = vpack.c.bf16 %v424, %v424
      %vm426 = vcmask 125952
      %427 = vst.msk [vmem:[%s255] sm:$0xf] %vm426, %v425
      %p428 = scmp.lt.s32.totalorder %s18, 1
      %s429 = scalar_select %p428, %s18, 1
      %p430 = scmp.lt.s32.totalorder %s19, 7
      %s431 = scalar_select %p430, %s19, 7
      %s432 = smul.addr %s429, 8
      %s433 = sadd.s32 %s431, %s432
      %s434 = smul.addr %s433, 4
      %s435 = scalar_lea.vmem %s3, %s434
      // Predicated region
      $region33: #{densenet_forward.13} parent=31 // pred_check
        %p436 = pneg %p125
      $region34: #{densenet_forward.13} parent=31 // pred_check_branch
        %438 = sbr.rel (%p436) target = $region36
      $region35: #{densenet_forward.13} parent=31 // pred_region
        _
      $region36: #{densenet_forward.13} parent=31 // pred_fallthru
        _
    $region32: #{densenet_forward.13} parent=5 // pred_fallthru
      _
    %p439 = scmp.le.s32.totalorder 2, %s9
    // Predicated region
    $region37: #{densenet_forward.13} parent=5 // pred_check
      %p440 = pneg %p439
    $region38: #{densenet_forward.13} parent=5 // pred_check_branch
      %442 = sbr.rel (%p440) target = $region40
    $region39: #{densenet_forward.13} parent=5 // pred_region
      %s443 = ssub.s32 %s9, 2
      // Predicated region
      $region41: #{densenet_forward.13} parent=39 // pred_check
        %p444 = pneg %p131
      $region42: #{densenet_forward.13} parent=39 // pred_check_branch
        %446 = sbr.rel (%p444) target = $region44
      $region43: #{densenet_forward.13} parent=39 // pred_region
        %p447 = scmp.lt.s32.totalorder %s20, 1
        %s448 = scalar_select %p447, %s20, 1
        %p449 = scmp.lt.s32.totalorder %s21, 7
        %s450 = scalar_select %p449, %s21, 7
        %s451 = smul.addr %s448, 8
        %s452 = sadd.s32 %s450, %s451
        %s453 = smul.addr %s452, 4
        %s454 = scalar_lea.vmem %s3, %s453
      $region44: #{densenet_forward.13} parent=39 // pred_fallthru
        _
    $region40: #{densenet_forward.13} parent=5 // pred_fallthru
      _
  $region6: #{densenet_forward.13} parent=0 // loop_footer
    %s13 = sadd.s32 1, %s9
  $region7: #{densenet_forward.13} parent=0 // loop_footer_branch
    %8 = sbr.rel target = $region3
  $region8: #{densenet_forward.13} parent=0 // loop_exit
    _

// kernel: densenet_forward.14
$region0: #{densenet_forward.14}
  #allocation0 [shape = 'u32[]', space=smem, size = 0x4, offset = 0x4, fixed_abs, tag = 'smem constant byte address 0x4 - core index']
  #allocation1 [shape = 'u32[144,128]{1,0:T(1,128)}', space=vmem, size = 0x12000, scoped, tag = 'internal scratch']
  %s0 = inlined_call_operand.vmem [shape: bf16[128,16], index: 0, kind: input, shape index: {}]
  %s1 = inlined_call_operand.vmem [shape: f32[1,16], index: 1, kind: input, shape index: {}]
  %s2 = inlined_call_operand.vmem [shape: f32[1,16], index: 2, kind: input, shape index: {}]
  %s3 = inlined_call_operand.vmem [shape: bf16[16,16], index: 3, kind: input, shape index: {}]
  %s4 = inlined_call_operand.vmem [shape: f32[1,16], index: 4, kind: input, shape index: {}]
  %s5 = inlined_call_operand.vmem [shape: f32[1,16], index: 5, kind: input, shape index: {}]
  %s6 = inlined_call_operand.vmem [shape: bf16[128,16], index: 6, kind: output, shape index: {}]
  %s7 = sld [smem:[#allocation0]]
  $region57: #{densenet_forward.14} parent=0
    _
  %s9 = ssub.s32 1, %s7
  %s10 = scalar_select 0, %s9, %s7
  loop: start=0, step=1, limit=4
  $region2: #{densenet_forward.14} parent=0 // loop_pre_header
    _
  $region3: #{densenet_forward.14} parent=0 // loop_header
    %s12 = sphi 0, %s16
    %p13 = scmp.ge.s32.totalorder %s12, 4
    %s22 = sphi 0, %s24
    %s25 = sphi 0, %s22
    %s26 = sphi 0, %s25
    %s42 = sphi 0, %s26
    %s46 = sphi 0, %s46
    %s48 = sphi 0, %s46
    %s49 = sphi 0, %s48
    %s63 = sphi 0, %s49
    %s67 = sphi 0, %s67
    %s69 = sphi 0, %s67
    %s70 = sphi 0, %s69
    %s84 = sphi 0, %s70
    %s88 = sphi 0, %s88
    %s90 = sphi 0, %s88
    %s91 = sphi 0, %s90
    %s105 = sphi 0, %s91
    %s109 = sphi 0, %s109
    %s111 = sphi 0, %s109
    %s112 = sphi 0, %s111
    %s126 = sphi 0, %s112
    %s130 = sphi 0, %s130
    %s132 = sphi 0, %s130
    %s133 = sphi 0, %s132
    %s147 = sphi 0, %s133
    %s153 = sphi 0, %s155
    %s156 = sphi 0, %s153
    %s157 = sphi 0, %s156
    %s173 = sphi 0, %s157
  $region4: #{densenet_forward.14} parent=0 // loop_header_branch
    %15 = sbr.rel (%p13) target = $region8
  $region5: #{densenet_forward.14} parent=0 // loop_body
    %s17 = ssub.s32 %s12, 1
    %s18 = ssub.s32 %s12, 2
    %s19 = sadd.s32 %s12, 1
    %s20 = ssub.s32 %s12, %s19
    %p21 = scmp.eq.s32.totalorder %s20, 0
    %s23 = sadd.s32 %s22, 1
    %s24 = scalar_select %p21, %s22, %s23
    %p27 = pneg %p21
    %p28 = scmp.eq.s32.totalorder %s12, 1
    %p29 = por %p27, %p28
    %p30 = scmp.ne.s32.totalorder %s22, %s25
    %p31 = scmp.eq.s32.totalorder %s12, 0
    %p32 = por %p30, %p31
    %p33 = scmp.ne.s32.totalorder %s22, %s25
    %p34 = scmp.eq.s32.totalorder %s17, 1
    %p35 = por %p33, %p34
    %p36 = scmp.ne.s32.totalorder %s25, %s26
    %p37 = scmp.eq.s32.totalorder %s17, 0
    %p38 = por %p36, %p37
    %p39 = scmp.ne.s32.totalorder %s25, %s26
    %p40 = scmp.eq.s32.totalorder %s18, 1
    %p41 = por %p39, %p40
    %p43 = scmp.ne.s32.totalorder %s26, %s42
    %p44 = scmp.eq.s32.totalorder %s18, 0
    %p45 = por %p43, %p44
    %s47 = sadd.s32 %s46, 1
    %p50 = scmp.eq.s32.totalorder %s12, 1
    %p51 = scmp.ne.s32.totalorder %s46, %s48
    %p52 = scmp.eq.s32.totalorder %s12, 0
    %p53 = por %p51, %p52
    %p54 = scmp.ne.s32.totalorder %s46, %s48
    %p55 = scmp.eq.s32.totalorder %s17, 1
    %p56 = por %p54, %p55
    %p57 = scmp.ne.s32.totalorder %s48, %s49
    %p58 = scmp.eq.s32.totalorder %s17, 0
    %p59 = por %p57, %p58
    %p60 = scmp.ne.s32.totalorder %s48, %s49
    %p61 = scmp.eq.s32.totalorder %s18, 1
    %p62 = por %p60, %p61
    %p64 = scmp.ne.s32.totalorder %s49, %s63
    %p65 = scmp.eq.s32.totalorder %s18, 0
    %p66 = por %p64, %p65
    %s68 = sadd.s32 %s67, 1
    %p71 = scmp.eq.s32.totalorder %s12, 1
    %p72 = scmp.ne.s32.totalorder %s67, %s69
    %p73 = scmp.eq.s32.totalorder %s12, 0
    %p74 = por %p72, %p73
    %p75 = scmp.ne.s32.totalorder %s67, %s69
    %p76 = scmp.eq.s32.totalorder %s17, 1
    %p77 = por %p75, %p76
    %p78 = scmp.ne.s32.totalorder %s69, %s70
    %p79 = scmp.eq.s32.totalorder %s17, 0
    %p80 = por %p78, %p79
    %p81 = scmp.ne.s32.totalorder %s69, %s70
    %p82 = scmp.eq.s32.totalorder %s18, 1
    %p83 = por %p81, %p82
    %p85 = scmp.ne.s32.totalorder %s70, %s84
    %p86 = scmp.eq.s32.totalorder %s18, 0
    %p87 = por %p85, %p86
    %s89 = sadd.s32 %s88, 1
    %p92 = scmp.eq.s32.totalorder %s12, 1
    %p93 = scmp.ne.s32.totalorder %s88, %s90
    %p94 = scmp.eq.s32.totalorder %s12, 0
    %p95 = por %p93, %p94
    %p96 = scmp.ne.s32.totalorder %s88, %s90
    %p97 = scmp.eq.s32.totalorder %s17, 1
    %p98 = por %p96, %p97
    %p99 = scmp.ne.s32.totalorder %s90, %s91
    %p100 = scmp.eq.s32.totalorder %s17, 0
    %p101 = por %p99, %p100
    %p102 = scmp.ne.s32.totalorder %s90, %s91
    %p103 = scmp.eq.s32.totalorder %s18, 1
    %p104 = por %p102, %p103
    %p106 = scmp.ne.s32.totalorder %s91, %s105
    %p107 = scmp.eq.s32.totalorder %s18, 0
    %p108 = por %p106, %p107
    %s110 = sadd.s32 %s109, 1
    %p113 = scmp.eq.s32.totalorder %s12, 1
    %p114 = scmp.ne.s32.totalorder %s109, %s111
    %p115 = scmp.eq.s32.totalorder %s12, 0
    %p116 = por %p114, %p115
    %p117 = scmp.ne.s32.totalorder %s109, %s111
    %p118 = scmp.eq.s32.totalorder %s17, 1
    %p119 = por %p117, %p118
    %p120 = scmp.ne.s32.totalorder %s111, %s112
    %p121 = scmp.eq.s32.totalorder %s17, 0
    %p122 = por %p120, %p121
    %p123 = scmp.ne.s32.totalorder %s111, %s112
    %p124 = scmp.eq.s32.totalorder %s18, 1
    %p125 = por %p123, %p124
    %p127 = scmp.ne.s32.totalorder %s112, %s126
    %p128 = scmp.eq.s32.totalorder %s18, 0
    %p129 = por %p127, %p128
    %s131 = sadd.s32 %s130, 1
    %p134 = scmp.eq.s32.totalorder %s12, 1
    %p135 = scmp.ne.s32.totalorder %s130, %s132
    %p136 = scmp.eq.s32.totalorder %s12, 0
    %p137 = por %p135, %p136
    %p138 = scmp.ne.s32.totalorder %s130, %s132
    %p139 = scmp.eq.s32.totalorder %s17, 1
    %p140 = por %p138, %p139
    %p141 = scmp.ne.s32.totalorder %s132, %s133
    %p142 = scmp.eq.s32.totalorder %s17, 0
    %p143 = por %p141, %p142
    %p144 = scmp.ne.s32.totalorder %s132, %s133
    %p145 = scmp.eq.s32.totalorder %s18, 1
    %p146 = por %p144, %p145
    %p148 = scmp.ne.s32.totalorder %s133, %s147
    %p149 = scmp.eq.s32.totalorder %s18, 0
    %p150 = por %p148, %p149
    %s151 = ssub.s32 %s12, %s19
    %p152 = scmp.eq.s32.totalorder %s151, 0
    %s154 = sadd.s32 %s153, 1
    %s155 = scalar_select %p152, %s153, %s154
    %p158 = pneg %p152
    %p159 = scmp.eq.s32.totalorder %s12, 1
    %p160 = por %p158, %p159
    %p161 = scmp.ne.s32.totalorder %s153, %s156
    %p162 = scmp.eq.s32.totalorder %s12, 0
    %p163 = por %p161, %p162
    %p164 = scmp.ne.s32.totalorder %s153, %s156
    %p165 = scmp.eq.s32.totalorder %s17, 1
    %p166 = por %p164, %p165
    %p167 = scmp.ne.s32.totalorder %s156, %s157
    %p168 = scmp.eq.s32.totalorder %s17, 0
    %p169 = por %p167, %p168
    %p170 = scmp.ne.s32.totalorder %s156, %s157
    %p171 = scmp.eq.s32.totalorder %s18, 1
    %p172 = por %p170, %p171
    %p174 = scmp.ne.s32.totalorder %s157, %s173
    %p175 = scmp.eq.s32.totalorder %s18, 0
    %p176 = por %p174, %p175
    %p177 = scmp.le.s32.totalorder 1, %s12
    %p178 = scmp.lt.s32.totalorder %s12, 3
    %p179 = pnand %p177, %p178
    %p180 = pneg %p179
    // Predicated region
    $region9: #{densenet_forward.14} parent=5 // pred_check
      _
    $region10: #{densenet_forward.14} parent=5 // pred_check_branch
      %182 = sbr.rel (%p179) target = $region12
    $region11: #{densenet_forward.14} parent=5 // pred_region
      %s183 = ssub.s32 %s12, 1
      // Predicated region
      $region13: #{densenet_forward.14} parent=11 // pred_check
        %p184 = pneg %p59
      $region14: #{densenet_forward.14} parent=11 // pred_check_branch
        %186 = sbr.rel (%p184) target = $region16
      $region15: #{densenet_forward.14} parent=11 // pred_region
        _
      $region16: #{densenet_forward.14} parent=11 // pred_fallthru
        _
      // Predicated region
      $region17: #{densenet_forward.14} parent=11 // pred_check
        %p187 = pneg %p80
      $region18: #{densenet_forward.14} parent=11 // pred_check_branch
        %189 = sbr.rel (%p187) target = $region20
      $region19: #{densenet_forward.14} parent=11 // pred_region
        _
      $region20: #{densenet_forward.14} parent=11 // pred_fallthru
        _
      // Predicated region
      $region21: #{densenet_forward.14} parent=11 // pred_check
        %p190 = pneg %p101
      $region22: #{densenet_forward.14} parent=11 // pred_check_branch
        %192 = sbr.rel (%p190) target = $region24
      $region23: #{densenet_forward.14} parent=11 // pred_region
        _
      $region24: #{densenet_forward.14} parent=11 // pred_fallthru
        _
      // Predicated region
      $region25: #{densenet_forward.14} parent=11 // pred_check
        %p193 = pneg %p122
      $region26: #{densenet_forward.14} parent=11 // pred_check_branch
        %195 = sbr.rel (%p193) target = $region28
      $region27: #{densenet_forward.14} parent=11 // pred_region
        _
      $region28: #{densenet_forward.14} parent=11 // pred_fallthru
        _
      // Predicated region
      $region29: #{densenet_forward.14} parent=11 // pred_check
        %p196 = pneg %p143
      $region30: #{densenet_forward.14} parent=11 // pred_check_branch
        %198 = sbr.rel (%p196) target = $region32
      $region31: #{densenet_forward.14} parent=11 // pred_region
        _
      $region32: #{densenet_forward.14} parent=11 // pred_fallthru
        _
    $region12: #{densenet_forward.14} parent=5 // pred_fallthru
      _
    %p199 = scmp.lt.s32.totalorder %s12, 2
    // Predicated region
    $region33: #{densenet_forward.14} parent=5 // pred_check
      %p200 = pneg %p199
    $region34: #{densenet_forward.14} parent=5 // pred_check_branch
      %202 = sbr.rel (%p200) target = $region36
    $region35: #{densenet_forward.14} parent=5 // pred_region
      // Predicated region
      $region37: #{densenet_forward.14} parent=35 // pred_check
        %p203 = pneg %p32
      $region38: #{densenet_forward.14} parent=35 // pred_check_branch
        %205 = sbr.rel (%p203) target = $region40
      $region39: #{densenet_forward.14} parent=35 // pred_region
        %s206 = smul.u32 8, %s12
        %p207 = scmp.lt.s32.totalorder %s206, 15
        %s208 = scalar_select %p207, %s206, 15
        %s209 = smul.addr %s208, 4
        %s210 = scalar_lea.vmem %s0, %s209
        %s211 = smul.u32 8, %s12
      $region40: #{densenet_forward.14} parent=35 // pred_fallthru
        _
    $region36: #{densenet_forward.14} parent=5 // pred_fallthru
      _
    %p212 = scmp.le.s32.totalorder 1, %s12
    %p213 = scmp.lt.s32.totalorder %s12, 3
    %p214 = pnand %p212, %p213
    %p215 = pneg %p214
    // Predicated region
    $region41: #{densenet_forward.14} parent=5 // pred_check
      _
    $region42: #{densenet_forward.14} parent=5 // pred_check_branch
      %217 = sbr.rel (%p214) target = $region44
    $region43: #{densenet_forward.14} parent=5 // pred_region
      %s218 = ssub.s32 %s12, 1
      %s219 = smul.u32 8, %s17
      %p220 = scmp.lt.s32.totalorder %s219, 15
      %s221 = scalar_select %p220, %s219, 15
      %s222 = smul.addr %s221, 4
      %s223 = scalar_lea.vmem %s0, %s222
      %p224 = pneg %p38
      %p225 = pneg %p35
      %p226 = pneg %p59
      %p227 = pneg %p56
      %p228 = pneg %p80
      %p229 = pneg %p77
      %p230 = pneg %p101
      %p231 = pneg %p98
      %p232 = pneg %p122
      %p233 = pneg %p119
      %p234 = pneg %p143
      %p235 = pneg %p140
      %p236 = pneg %p169
      %p237 = pneg %p166
      %s238 = smul.u32 8, %s17
      %p239 = scmp.lt.s32.totalorder %s238, 15
      %s240 = scalar_select %p239, %s238, 15
      %s241 = smul.addr %s240, 4
      %s242 = scalar_lea.vmem %s6, %s241
      %s243 = smul.u32 8, %s17
      %p244 = scmp.lt.s32.totalorder %s243, 15
      %s245 = scalar_select %p244, %s243, 15
      %s246 = smul.addr %s245, 4
      %s247 = scalar_lea.vmem %s0, %s246
      %s248 = smul.u32 8, %s17
      %s249 = smul.u32 8, %s17
      %p250 = scmp.lt.s32.totalorder %s249, 15
      %s251 = scalar_select %p250, %s249, 15
      %s252 = smul.addr %s251, 4
      %s253 = scalar_lea.vmem %s6, %s252
      %s254 = smul.u32 8, %s17
      %v256 = vld [vmem:[%s247] sm:$0xf]
      %v257 = vld [vmem:[%s247 + $0x4] sm:$0xf]
      %v258 = vld [vmem:[%s247 + $0x8] sm:$0xf]
      %v259 = vld [vmem:[%s247 + $0xc] sm:$0xf]
      %v260 = vld [vmem:[%s247 + $0x10] sm:$0xf]
      %v261 = vld [vmem:[%s247 + $0x14] sm:$0xf]
      %v262 = vld [vmem:[%s247 + $0x18] sm:$0xf]
      %v263 = vld [vmem:[%s247 + $0x1c] sm:$0xf]
      %v264 = vunpack.c.l.bf16 %v256
      %v265 = vunpack.c.l.bf16 %v257
      %v266 = vunpack.c.l.bf16 %v258
      %v267 = vunpack.c.l.bf16 %v259
      %v268 = vunpack.c.l.bf16 %v260
      %v269 = vunpack.c.l.bf16 %v261
      %v270 = vunpack.c.l.bf16 %v262
      %v271 = vunpack.c.l.bf16 %v263
      %v272 = vld [vmem:[%s1] sm:$0x1]
      %v274 = vlaneseq
      %v275 = vshrl.u32 %v274, 7
      %v276 = vsub.s32 0, %v275
      %v277 = vrot.slane %v272, %v276
      %v279 = vmul.f32 %v264, %v277
      %v280 = vmul.f32 %v265, %v277
      %v281 = vmul.f32 %v266, %v277
      %v282 = vmul.f32 %v267, %v277
      %v283 = vmul.f32 %v268, %v277
      %v284 = vmul.f32 %v269, %v277
      %v285 = vmul.f32 %v270, %v277
      %v286 = vmul.f32 %v271, %v277
      %v287 = vld [vmem:[%s2] sm:$0x1]
      %v289 = vlaneseq
      %v290 = vshrl.u32 %v289, 7
      %v291 = vsub.s32 0, %v290
      %v292 = vrot.slane %v287, %v291
      %v294 = vadd.f32 %v279, %v292
      %v295 = vadd.f32 %v280, %v292
      %v296 = vadd.f32 %v281, %v292
      %v297 = vadd.f32 %v282, %v292
      %v298 = vadd.f32 %v283, %v292
      %v299 = vadd.f32 %v284, %v292
      %v300 = vadd.f32 %v285, %v292
      %v301 = vadd.f32 %v286, %v292
      %v302 = vmax.f32 %v294, 0.0
      %v303 = vmax.f32 %v295, 0.0
      %v304 = vmax.f32 %v296, 0.0
      %v305 = vmax.f32 %v297, 0.0
      %v306 = vmax.f32 %v298, 0.0
      %v307 = vmax.f32 %v299, 0.0
      %v308 = vmax.f32 %v300, 0.0
      %v309 = vmax.f32 %v301, 0.0
      %v310 = vpack.c.bf16 %v303, %v302
      %v311 = vpack.c.bf16 %v305, %v304
      %v312 = vpack.c.bf16 %v307, %v306
      %v313 = vpack.c.bf16 %v309, %v308
      %v314 = vld [vmem:[%s3] sm:$0xf]
      %v315 = vld [vmem:[%s3 + $0x4] sm:$0xf]
      %v318 = vunpack.c.l.b16 %v314
      %v319 = vunpack.c.l.b16 %v315
      %v320 = vpack.c.b16 %v319, %v318
      %vm322 = vcmask 130048
      %v324 = vsel %vm322, %v310, 0
      %v327 = vsel %vm322, %v311, 0
      %v330 = vsel %vm322, %v312, 0
      %v333 = vsel %vm322, %v313, 0
      %335 = vmatprep.subr.bf16.mxu0 0
      %336 = vmatpush1.bf16.msra.mxu0 %v320
      %337 = vmatprep.subr.bf16.mxu0 0
      %338 = vmatpush1.bf16.msra.mxu0 0
      %339 = vmatprep.subr.bf16.mxu0 0
      %340 = vmatpush1.bf16.msra.mxu0 0
      %341 = vmatprep.subr.bf16.mxu0 0
      %342 = vmatpush1.bf16.msra.mxu0 0
      %343 = vmatprep.subr.bf16.mxu0 0
      %344 = vmatpush1.bf16.msra.mxu0 0
      %345 = vmatprep.subr.bf16.mxu0 0
      %346 = vmatpush1.bf16.msra.mxu0 0
      %347 = vmatprep.subr.bf16.mxu0 0
      %348 = vmatpush1.bf16.msra.mxu0 0
      %349 = vmatprep.subr.bf16.mxu0 0
      %350 = vmatpush1.bf16.msra.mxu0 0
      %351 = vmatprep.subr.bf16.mxu0 0
      %352 = vmatpush1.bf16.msra.mxu0 0
      %353 = vmatprep.subr.bf16.mxu0 0
      %354 = vmatpush1.bf16.msra.mxu0 0
      %355 = vmatprep.subr.bf16.mxu0 0
      %356 = vmatpush1.bf16.msra.mxu0 0
      %357 = vmatprep.subr.bf16.mxu0 0
      %358 = vmatpush1.bf16.msra.mxu0 0
      %359 = vmatprep.subr.bf16.mxu0 0
      %360 = vmatpush1.bf16.msra.mxu0 0
      %361 = vmatprep.subr.bf16.mxu0 0
      %362 = vmatpush1.bf16.msra.mxu0 0
      %363 = vmatprep.subr.bf16.mxu0 0
      %364 = vmatpush1.bf16.msra.mxu0 0
      %365 = vmatprep.subr.bf16.mxu0 0
      %366 = vmatpush1.bf16.msra.mxu0 0
      %367 = vmatprep.mubr.bf16.mxu0 0
      %368 = vmatmul.mubr.bf16.gmra.mrb[0].mxu0 %v324
      %v369 = vpop.f32.mrb[0].mxu0
      %v370 = vadd.f32 0.0, %v369
      %v371 = vpop.f32.mrb[0].mxu0
      %v372 = vpop.f32.mrb[0].mxu0
      %v373 = vadd.f32 0.0, %v372
      %v374 = vpop.f32.mrb[0].mxu0
      %375 = vmatprep.mubr.bf16.mxu0 0
      %376 = vmatmul.mubr.bf16.gmra.mrb[0].mxu0 %v327
      %v377 = vpop.f32.mrb[0].mxu0
      %v378 = vadd.f32 0.0, %v377
      %v379 = vpop.f32.mrb[0].mxu0
      %v380 = vpop.f32.mrb[0].mxu0
      %v381 = vadd.f32 0.0, %v380
      %v382 = vpop.f32.mrb[0].mxu0
      %383 = vmatprep.mubr.bf16.mxu0 0
      %384 = vmatmul.mubr.bf16.gmra.mrb[0].mxu0 %v330
      %v385 = vpop.f32.mrb[0].mxu0
      %v386 = vadd.f32 0.0, %v385
      %v387 = vpop.f32.mrb[0].mxu0
      %v388 = vpop.f32.mrb[0].mxu0
      %v389 = vadd.f32 0.0, %v388
      %v390 = vpop.f32.mrb[0].mxu0
      %391 = vmatprep.mubr.bf16.mxu0 0
      %392 = vmatmul.mubr.bf16.gmra.mrb[0].mxu0 %v333
      %v393 = vpop.f32.mrb[0].mxu0
      %v394 = vadd.f32 0.0, %v393
      %v395 = vpop.f32.mrb[0].mxu0
      %v396 = vpop.f32.mrb[0].mxu0
      %v397 = vadd.f32 0.0, %v396
      %v398 = vpop.f32.mrb[0].mxu0
      %399 = vdwg.mxu0
      %v400 = vld [vmem:[%s4] sm:$0x1]
      %v402 = vlaneseq
      %v403 = vshrl.u32 %v402, 7
      %v404 = vsub.s32 0, %v403
      %v405 = vrot.slane %v400, %v404
      %v407 = vmul.f32 %v370, %v405
      %v408 = vmul.f32 %v373, %v405
      %v409 = vmul.f32 %v378, %v405
      %v410 = vmul.f32 %v381, %v405
      %v411 = vmul.f32 %v386, %v405
      %v412 = vmul.f32 %v389, %v405
      %v413 = vmul.f32 %v394, %v405
      %v414 = vmul.f32 %v397, %v405
      %v415 = vld [vmem:[%s5] sm:$0x1]
      %v417 = vlaneseq
      %v418 = vshrl.u32 %v417, 7
      %v419 = vsub.s32 0, %v418
      %v420 = vrot.slane %v415, %v419
      %v422 = vadd.f32 %v407, %v420
      %v423 = vadd.f32 %v408, %v420
      %v424 = vadd.f32 %v409, %v420
      %v425 = vadd.f32 %v410, %v420
      %v426 = vadd.f32 %v411, %v420
      %v427 = vadd.f32 %v412, %v420
      %v428 = vadd.f32 %v413, %v420
      %v429 = vadd.f32 %v414, %v420
      %v430 = vmax.f32 %v422, 0.0
      %v431 = vmax.f32 %v423, 0.0
      %v432 = vmax.f32 %v424, 0.0
      %v433 = vmax.f32 %v425, 0.0
      %v434 = vmax.f32 %v426, 0.0
      %v435 = vmax.f32 %v427, 0.0
      %v436 = vmax.f32 %v428, 0.0
      %v437 = vmax.f32 %v429, 0.0
      %v438 = vpack.c.bf16 %v431, %v430
      %v439 = vpack.c.bf16 %v433, %v432
      %v440 = vpack.c.bf16 %v435, %v434
      %v441 = vpack.c.bf16 %v437, %v436
      %v446 = vunpack.c.l.b16 %v438
      %v447 = vunpack.c.h.b16 %v438
      %v448 = vunpack.c.l.b16 %v439
      %v449 = vunpack.c.h.b16 %v439
      %v450 = vunpack.c.l.b16 %v440
      %v451 = vunpack.c.h.b16 %v440
      %v452 = vunpack.c.l.b16 %v441
      %v453 = vunpack.c.h.b16 %v441
      %v454 = vpack.c.b16 %v446, %v446
      %v455 = vpack.c.b16 %v447, %v447
      %v456 = vpack.c.b16 %v448, %v448
      %v457 = vpack.c.b16 %v449, %v449
      %v458 = vpack.c.b16 %v450, %v450
      %v459 = vpack.c.b16 %v451, %v451
      %v460 = vpack.c.b16 %v452, %v452
      %v461 = vpack.c.b16 %v453, %v453
      %vm470 = vcmask 125952
      %471 = vst.msk [vmem:[%s253] sm:$0xf] %vm470, %v454
      %472 = vst.msk [vmem:[%s253 + $0x4] sm:$0xf] %vm470, %v455
      %473 = vst.msk [vmem:[%s253 + $0x8] sm:$0xf] %vm470, %v456
      %474 = vst.msk [vmem:[%s253 + $0xc] sm:$0xf] %vm470, %v457
      %475 = vst.msk [vmem:[%s253 + $0x10] sm:$0xf] %vm470, %v458
      %476 = vst.msk [vmem:[%s253 + $0x14] sm:$0xf] %vm470, %v459
      %477 = vst.msk [vmem:[%s253 + $0x18] sm:$0xf] %vm470, %v460
      %478 = vst.msk [vmem:[%s253 + $0x1c] sm:$0xf] %vm470, %v461
      %s479 = smul.u32 8, %s17
      %p480 = scmp.lt.s32.totalorder %s479, 15
      %s481 = scalar_select %p480, %s479, 15
      %s482 = smul.addr %s481, 4
      %s483 = scalar_lea.vmem %s6, %s482
      // Predicated region
      $region45: #{densenet_forward.14} parent=43 // pred_check
        %p484 = pneg %p166
      $region46: #{densenet_forward.14} parent=43 // pred_check_branch
        %486 = sbr.rel (%p484) target = $region48
      $region47: #{densenet_forward.14} parent=43 // pred_region
        %s487 = smul.u32 8, %s17
      $region48: #{densenet_forward.14} parent=43 // pred_fallthru
        _
    $region44: #{densenet_forward.14} parent=5 // pred_fallthru
      _
    %p488 = scmp.le.s32.totalorder 2, %s12
    // Predicated region
    $region49: #{densenet_forward.14} parent=5 // pred_check
      %p489 = pneg %p488
    $region50: #{densenet_forward.14} parent=5 // pred_check_branch
      %491 = sbr.rel (%p489) target = $region52
    $region51: #{densenet_forward.14} parent=5 // pred_region
      %s492 = ssub.s32 %s12, 2
      // Predicated region
      $region53: #{densenet_forward.14} parent=51 // pred_check
        %p493 = pneg %p172
      $region54: #{densenet_forward.14} parent=51 // pred_check_branch
        %495 = sbr.rel (%p493) target = $region56
      $region55: #{densenet_forward.14} parent=51 // pred_region
        %s496 = smul.u32 8, %s18
        %p497 = scmp.lt.s32.totalorder %s496, 15
        %s498 = scalar_select %p497, %s496, 15
        %s499 = smul.addr %s498, 4
        %s500 = scalar_lea.vmem %s6, %s499
      $region56: #{densenet_forward.14} parent=51 // pred_fallthru
        _
    $region52: #{densenet_forward.14} parent=5 // pred_fallthru
      _
  $region6: #{densenet_forward.14} parent=0 // loop_footer
    %s16 = sadd.s32 1, %s12
  $region7: #{densenet_forward.14} parent=0 // loop_footer_branch
    %11 = sbr.rel target = $region3
  $region8: #{densenet_forward.14} parent=0 // loop_exit
    _

// kernel: densenet_forward.12
$region0: #{densenet_forward.12}
  #allocation0 [shape = 'u32[]', space=smem, size = 0x4, offset = 0x4, fixed_abs, tag = 'smem constant byte address 0x4 - core index']
  #allocation1 [shape = 'u32[144,128]{1,0:T(1,128)}', space=vmem, size = 0x12000, scoped, tag = 'internal scratch']
  %s0 = inlined_call_operand.vmem [shape: bf16[512,147], index: 0, kind: input, shape index: {}]
  %s1 = inlined_call_operand.vmem [shape: f32[1,147], index: 1, kind: input, shape index: {}]
  %s2 = inlined_call_operand.vmem [shape: f32[1,147], index: 2, kind: input, shape index: {}]
  %s3 = inlined_call_operand.vmem [shape: bf16[147,16], index: 3, kind: input, shape index: {}]
  %s4 = inlined_call_operand.vmem [shape: f32[1,16], index: 4, kind: input, shape index: {}]
  %s5 = inlined_call_operand.vmem [shape: f32[1,16], index: 5, kind: input, shape index: {}]
  %s6 = inlined_call_operand.vmem [shape: bf16[512,16], index: 6, kind: output, shape index: {}]
  %s7 = sld [smem:[#allocation0]]
  $region57: #{densenet_forward.12} parent=0
    _
  %s9 = ssub.s32 1, %s7
  %s10 = scalar_select 0, %s9, %s7
  loop: start=0, step=1, limit=4
  $region2: #{densenet_forward.12} parent=0 // loop_pre_header
    _
  $region3: #{densenet_forward.12} parent=0 // loop_header
    %s12 = sphi 0, %s16
    %p13 = scmp.ge.s32.totalorder %s12, 4
    %s22 = sphi 0, %s24
    %s25 = sphi 0, %s22
    %s26 = sphi 0, %s25
    %s42 = sphi 0, %s26
    %s46 = sphi 0, %s46
    %s48 = sphi 0, %s46
    %s49 = sphi 0, %s48
    %s63 = sphi 0, %s49
    %s67 = sphi 0, %s67
    %s69 = sphi 0, %s67
    %s70 = sphi 0, %s69
    %s84 = sphi 0, %s70
    %s88 = sphi 0, %s88
    %s90 = sphi 0, %s88
    %s91 = sphi 0, %s90
    %s105 = sphi 0, %s91
    %s109 = sphi 0, %s109
    %s111 = sphi 0, %s109
    %s112 = sphi 0, %s111
    %s126 = sphi 0, %s112
    %s130 = sphi 0, %s130
    %s132 = sphi 0, %s130
    %s133 = sphi 0, %s132
    %s147 = sphi 0, %s133
    %s153 = sphi 0, %s155
    %s156 = sphi 0, %s153
    %s157 = sphi 0, %s156
    %s173 = sphi 0, %s157
  $region4: #{densenet_forward.12} parent=0 // loop_header_branch
    %15 = sbr.rel (%p13) target = $region8
  $region5: #{densenet_forward.12} parent=0 // loop_body
    %s17 = ssub.s32 %s12, 1
    %s18 = ssub.s32 %s12, 2
    %s19 = sadd.s32 %s12, 1
    %s20 = ssub.s32 %s12, %s19
    %p21 = scmp.eq.s32.totalorder %s20, 0
    %s23 = sadd.s32 %s22, 1
    %s24 = scalar_select %p21, %s22, %s23
    %p27 = pneg %p21
    %p28 = scmp.eq.s32.totalorder %s12, 1
    %p29 = por %p27, %p28
    %p30 = scmp.ne.s32.totalorder %s22, %s25
    %p31 = scmp.eq.s32.totalorder %s12, 0
    %p32 = por %p30, %p31
    %p33 = scmp.ne.s32.totalorder %s22, %s25
    %p34 = scmp.eq.s32.totalorder %s17, 1
    %p35 = por %p33, %p34
    %p36 = scmp.ne.s32.totalorder %s25, %s26
    %p37 = scmp.eq.s32.totalorder %s17, 0
    %p38 = por %p36, %p37
    %p39 = scmp.ne.s32.totalorder %s25, %s26
    %p40 = scmp.eq.s32.totalorder %s18, 1
    %p41 = por %p39, %p40
    %p43 = scmp.ne.s32.totalorder %s26, %s42
    %p44 = scmp.eq.s32.totalorder %s18, 0
    %p45 = por %p43, %p44
    %s47 = sadd.s32 %s46, 1
    %p50 = scmp.eq.s32.totalorder %s12, 1
    %p51 = scmp.ne.s32.totalorder %s46, %s48
    %p52 = scmp.eq.s32.totalorder %s12, 0
    %p53 = por %p51, %p52
    %p54 = scmp.ne.s32.totalorder %s46, %s48
    %p55 = scmp.eq.s32.totalorder %s17, 1
    %p56 = por %p54, %p55
    %p57 = scmp.ne.s32.totalorder %s48, %s49
    %p58 = scmp.eq.s32.totalorder %s17, 0
    %p59 = por %p57, %p58
    %p60 = scmp.ne.s32.totalorder %s48, %s49
    %p61 = scmp.eq.s32.totalorder %s18, 1
    %p62 = por %p60, %p61
    %p64 = scmp.ne.s32.totalorder %s49, %s63
    %p65 = scmp.eq.s32.totalorder %s18, 0
    %p66 = por %p64, %p65
    %s68 = sadd.s32 %s67, 1
    %p71 = scmp.eq.s32.totalorder %s12, 1
    %p72 = scmp.ne.s32.totalorder %s67, %s69
    %p73 = scmp.eq.s32.totalorder %s12, 0
    %p74 = por %p72, %p73
    %p75 = scmp.ne.s32.totalorder %s67, %s69
    %p76 = scmp.eq.s32.totalorder %s17, 1
    %p77 = por %p75, %p76
    %p78 = scmp.ne.s32.totalorder %s69, %s70
    %p79 = scmp.eq.s32.totalorder %s17, 0
    %p80 = por %p78, %p79
    %p81 = scmp.ne.s32.totalorder %s69, %s70
    %p82 = scmp.eq.s32.totalorder %s18, 1
    %p83 = por %p81, %p82
    %p85 = scmp.ne.s32.totalorder %s70, %s84
    %p86 = scmp.eq.s32.totalorder %s18, 0
    %p87 = por %p85, %p86
    %s89 = sadd.s32 %s88, 1
    %p92 = scmp.eq.s32.totalorder %s12, 1
    %p93 = scmp.ne.s32.totalorder %s88, %s90
    %p94 = scmp.eq.s32.totalorder %s12, 0
    %p95 = por %p93, %p94
    %p96 = scmp.ne.s32.totalorder %s88, %s90
    %p97 = scmp.eq.s32.totalorder %s17, 1
    %p98 = por %p96, %p97
    %p99 = scmp.ne.s32.totalorder %s90, %s91
    %p100 = scmp.eq.s32.totalorder %s17, 0
    %p101 = por %p99, %p100
    %p102 = scmp.ne.s32.totalorder %s90, %s91
    %p103 = scmp.eq.s32.totalorder %s18, 1
    %p104 = por %p102, %p103
    %p106 = scmp.ne.s32.totalorder %s91, %s105
    %p107 = scmp.eq.s32.totalorder %s18, 0
    %p108 = por %p106, %p107
    %s110 = sadd.s32 %s109, 1
    %p113 = scmp.eq.s32.totalorder %s12, 1
    %p114 = scmp.ne.s32.totalorder %s109, %s111
    %p115 = scmp.eq.s32.totalorder %s12, 0
    %p116 = por %p114, %p115
    %p117 = scmp.ne.s32.totalorder %s109, %s111
    %p118 = scmp.eq.s32.totalorder %s17, 1
    %p119 = por %p117, %p118
    %p120 = scmp.ne.s32.totalorder %s111, %s112
    %p121 = scmp.eq.s32.totalorder %s17, 0
    %p122 = por %p120, %p121
    %p123 = scmp.ne.s32.totalorder %s111, %s112
    %p124 = scmp.eq.s32.totalorder %s18, 1
    %p125 = por %p123, %p124
    %p127 = scmp.ne.s32.totalorder %s112, %s126
    %p128 = scmp.eq.s32.totalorder %s18, 0
    %p129 = por %p127, %p128
    %s131 = sadd.s32 %s130, 1
    %p134 = scmp.eq.s32.totalorder %s12, 1
    %p135 = scmp.ne.s32.totalorder %s130, %s132
    %p136 = scmp.eq.s32.totalorder %s12, 0
    %p137 = por %p135, %p136
    %p138 = scmp.ne.s32.totalorder %s130, %s132
    %p139 = scmp.eq.s32.totalorder %s17, 1
    %p140 = por %p138, %p139
    %p141 = scmp.ne.s32.totalorder %s132, %s133
    %p142 = scmp.eq.s32.totalorder %s17, 0
    %p143 = por %p141, %p142
    %p144 = scmp.ne.s32.totalorder %s132, %s133
    %p145 = scmp.eq.s32.totalorder %s18, 1
    %p146 = por %p144, %p145
    %p148 = scmp.ne.s32.totalorder %s133, %s147
    %p149 = scmp.eq.s32.totalorder %s18, 0
    %p150 = por %p148, %p149
    %s151 = ssub.s32 %s12, %s19
    %p152 = scmp.eq.s32.totalorder %s151, 0
    %s154 = sadd.s32 %s153, 1
    %s155 = scalar_select %p152, %s153, %s154
    %p158 = pneg %p152
    %p159 = scmp.eq.s32.totalorder %s12, 1
    %p160 = por %p158, %p159
    %p161 = scmp.ne.s32.totalorder %s153, %s156
    %p162 = scmp.eq.s32.totalorder %s12, 0
    %p163 = por %p161, %p162
    %p164 = scmp.ne.s32.totalorder %s153, %s156
    %p165 = scmp.eq.s32.totalorder %s17, 1
    %p166 = por %p164, %p165
    %p167 = scmp.ne.s32.totalorder %s156, %s157
    %p168 = scmp.eq.s32.totalorder %s17, 0
    %p169 = por %p167, %p168
    %p170 = scmp.ne.s32.totalorder %s156, %s157
    %p171 = scmp.eq.s32.totalorder %s18, 1
    %p172 = por %p170, %p171
    %p174 = scmp.ne.s32.totalorder %s157, %s173
    %p175 = scmp.eq.s32.totalorder %s18, 0
    %p176 = por %p174, %p175
    %p177 = scmp.le.s32.totalorder 1, %s12
    %p178 = scmp.lt.s32.totalorder %s12, 3
    %p179 = pnand %p177, %p178
    %p180 = pneg %p179
    // Predicated region
    $region9: #{densenet_forward.12} parent=5 // pred_check
      _
    $region10: #{densenet_forward.12} parent=5 // pred_check_branch
      %182 = sbr.rel (%p179) target = $region12
    $region11: #{densenet_forward.12} parent=5 // pred_region
      %s183 = ssub.s32 %s12, 1
      // Predicated region
      $region13: #{densenet_forward.12} parent=11 // pred_check
        %p184 = pneg %p59
      $region14: #{densenet_forward.12} parent=11 // pred_check_branch
        %186 = sbr.rel (%p184) target = $region16
      $region15: #{densenet_forward.12} parent=11 // pred_region
        _
      $region16: #{densenet_forward.12} parent=11 // pred_fallthru
        _
      // Predicated region
      $region17: #{densenet_forward.12} parent=11 // pred_check
        %p187 = pneg %p80
      $region18: #{densenet_forward.12} parent=11 // pred_check_branch
        %189 = sbr.rel (%p187) target = $region20
      $region19: #{densenet_forward.12} parent=11 // pred_region
        _
      $region20: #{densenet_forward.12} parent=11 // pred_fallthru
        _
      // Predicated region
      $region21: #{densenet_forward.12} parent=11 // pred_check
        %p190 = pneg %p101
      $region22: #{densenet_forward.12} parent=11 // pred_check_branch
        %192 = sbr.rel (%p190) target = $region24
      $region23: #{densenet_forward.12} parent=11 // pred_region
        _
      $region24: #{densenet_forward.12} parent=11 // pred_fallthru
        _
      // Predicated region
      $region25: #{densenet_forward.12} parent=11 // pred_check
        %p193 = pneg %p122
      $region26: #{densenet_forward.12} parent=11 // pred_check_branch
        %195 = sbr.rel (%p193) target = $region28
      $region27: #{densenet_forward.12} parent=11 // pred_region
        _
      $region28: #{densenet_forward.12} parent=11 // pred_fallthru
        _
      // Predicated region
      $region29: #{densenet_forward.12} parent=11 // pred_check
        %p196 = pneg %p143
      $region30: #{densenet_forward.12} parent=11 // pred_check_branch
        %198 = sbr.rel (%p196) target = $region32
      $region31: #{densenet_forward.12} parent=11 // pred_region
        _
      $region32: #{densenet_forward.12} parent=11 // pred_fallthru
        _
    $region12: #{densenet_forward.12} parent=5 // pred_fallthru
      _
    %p199 = scmp.lt.s32.totalorder %s12, 2
    // Predicated region
    $region33: #{densenet_forward.12} parent=5 // pred_check
      %p200 = pneg %p199
    $region34: #{densenet_forward.12} parent=5 // pred_check_branch
      %202 = sbr.rel (%p200) target = $region36
    $region35: #{densenet_forward.12} parent=5 // pred_region
      // Predicated region
      $region37: #{densenet_forward.12} parent=35 // pred_check
        %p203 = pneg %p32
      $region38: #{densenet_forward.12} parent=35 // pred_check_branch
        %205 = sbr.rel (%p203) target = $region40
      $region39: #{densenet_forward.12} parent=35 // pred_region
        %s206 = smul.u32 32, %s12
        %p207 = scmp.lt.s32.totalorder %s206, 63
        %s208 = scalar_select %p207, %s206, 63
        %s209 = smul.addr %s208, 2
        %s210 = smul.addr %s209, 4
        %s211 = scalar_lea.vmem %s0, %s210
        %s212 = smul.u32 32, %s12
      $region40: #{densenet_forward.12} parent=35 // pred_fallthru
        _
    $region36: #{densenet_forward.12} parent=5 // pred_fallthru
      _
    %p213 = scmp.le.s32.totalorder 1, %s12
    %p214 = scmp.lt.s32.totalorder %s12, 3
    %p215 = pnand %p213, %p214
    %p216 = pneg %p215
    // Predicated region
    $region41: #{densenet_forward.12} parent=5 // pred_check
      _
    $region42: #{densenet_forward.12} parent=5 // pred_check_branch
      %218 = sbr.rel (%p215) target = $region44
    $region43: #{densenet_forward.12} parent=5 // pred_region
      %s219 = ssub.s32 %s12, 1
      %s220 = smul.u32 32, %s17
      %p221 = scmp.lt.s32.totalorder %s220, 63
      %s222 = scalar_select %p221, %s220, 63
      %s223 = smul.addr %s222, 2
      %s224 = smul.addr %s223, 4
      %s225 = scalar_lea.vmem %s0, %s224
      %p226 = pneg %p38
      %p227 = pneg %p35
      %p228 = pneg %p59
      %p229 = pneg %p56
      %p230 = pneg %p80
      %p231 = pneg %p77
      %p232 = pneg %p101
      %p233 = pneg %p98
      %p234 = pneg %p122
      %p235 = pneg %p119
      %p236 = pneg %p143
      %p237 = pneg %p140
      %p238 = pneg %p169
      %p239 = pneg %p166
      %s240 = smul.u32 32, %s17
      %p241 = scmp.lt.s32.totalorder %s240, 63
      %s242 = scalar_select %p241, %s240, 63
      %s243 = smul.addr %s242, 4
      %s244 = scalar_lea.vmem %s6, %s243
      %s245 = smul.u32 32, %s17
      %p246 = scmp.lt.s32.totalorder %s245, 63
      %s247 = scalar_select %p246, %s245, 63
      %s248 = smul.addr %s247, 2
      %s249 = smul.addr %s248, 4
      %s250 = scalar_lea.vmem %s0, %s249
      %s251 = smul.u32 32, %s17
      %s252 = smul.u32 32, %s17
      %p253 = scmp.lt.s32.totalorder %s252, 63
      %s254 = scalar_select %p253, %s252, 63
      %s255 = smul.addr %s254, 4
      %s256 = scalar_lea.vmem %s6, %s255
      %s257 = smul.u32 32, %s17
      %v259 = vld [vmem:[%s250] sm:$0xff]
      %v260 = vld [vmem:[%s250 + $0x8] sm:$0xff]
      %v261 = vld [vmem:[%s250 + $0x10] sm:$0xff]
      %v262 = vld [vmem:[%s250 + $0x18] sm:$0xff]
      %v263 = vld [vmem:[%s250 + $0x20] sm:$0xff]
      %v264 = vld [vmem:[%s250 + $0x28] sm:$0xff]
      %v265 = vld [vmem:[%s250 + $0x30] sm:$0xff]
      %v266 = vld [vmem:[%s250 + $0x38] sm:$0xff]
      %v267 = vld [vmem:[%s250 + $0x40] sm:$0xff]
      %v268 = vld [vmem:[%s250 + $0x48] sm:$0xff]
      %v269 = vld [vmem:[%s250 + $0x50] sm:$0xff]
      %v270 = vld [vmem:[%s250 + $0x58] sm:$0xff]
      %v271 = vld [vmem:[%s250 + $0x60] sm:$0xff]
      %v272 = vld [vmem:[%s250 + $0x68] sm:$0xff]
      %v273 = vld [vmem:[%s250 + $0x70] sm:$0xff]
      %v274 = vld [vmem:[%s250 + $0x78] sm:$0xff]
      %v275 = vld [vmem:[%s250 + $0x80] sm:$0xff]
      %v276 = vld [vmem:[%s250 + $0x88] sm:$0xff]
      %v277 = vld [vmem:[%s250 + $0x90] sm:$0xff]
      %v278 = vld [vmem:[%s250 + $0x98] sm:$0xff]
      %v279 = vld [vmem:[%s250 + $0xa0] sm:$0xff]
      %v280 = vld [vmem:[%s250 + $0xa8] sm:$0xff]
      %v281 = vld [vmem:[%s250 + $0xb0] sm:$0xff]
      %v282 = vld [vmem:[%s250 + $0xb8] sm:$0xff]
      %v283 = vld [vmem:[%s250 + $0xc0] sm:$0xff]
      %v284 = vld [vmem:[%s250 + $0xc8] sm:$0xff]
      %v285 = vld [vmem:[%s250 + $0xd0] sm:$0xff]
      %v286 = vld [vmem:[%s250 + $0xd8] sm:$0xff]
      %v287 = vld [vmem:[%s250 + $0xe0] sm:$0xff]
      %v288 = vld [vmem:[%s250 + $0xe8] sm:$0xff]
      %v289 = vld [vmem:[%s250 + $0xf0] sm:$0xff]
      %v290 = vld [vmem:[%s250 + $0xf8] sm:$0xff]
      %v291 = vunpack.c.l.bf16 %v259
      %v292 = vunpack.c.h.bf16 %v259
      %v293 = vunpack.c.l.bf16 %v260
      %v294 = vunpack.c.h.bf16 %v260
      %v295 = vunpack.c.l.bf16 %v261
      %v296 = vunpack.c.h.bf16 %v261
      %v297 = vunpack.c.l.bf16 %v262
      %v298 = vunpack.c.h.bf16 %v262
      %v299 = vunpack.c.l.bf16 %v263
      %v300 = vunpack.c.h.bf16 %v263
      %v301 = vunpack.c.l.bf16 %v264
      %v302 = vunpack.c.h.bf16 %v264
      %v303 = vunpack.c.l.bf16 %v265
      %v304 = vunpack.c.h.bf16 %v265
      %v305 = vunpack.c.l.bf16 %v266
      %v306 = vunpack.c.h.bf16 %v266
      %v307 = vunpack.c.l.bf16 %v267
      %v308 = vunpack.c.h.bf16 %v267
      %v309 = vunpack.c.l.bf16 %v268
      %v310 = vunpack.c.h.bf16 %v268
      %v311 = vunpack.c.l.bf16 %v269
      %v312 = vunpack.c.h.bf16 %v269
      %v313 = vunpack.c.l.bf16 %v270
      %v314 = vunpack.c.h.bf16 %v270
      %v315 = vunpack.c.l.bf16 %v271
      %v316 = vunpack.c.h.bf16 %v271
      %v317 = vunpack.c.l.bf16 %v272
      %v318 = vunpack.c.h.bf16 %v272
      %v319 = vunpack.c.l.bf16 %v273
      %v320 = vunpack.c.h.bf16 %v273
      %v321 = vunpack.c.l.bf16 %v274
      %v322 = vunpack.c.h.bf16 %v274
      %v323 = vunpack.c.l.bf16 %v275
      %v324 = vunpack.c.h.bf16 %v275
      %v325 = vunpack.c.l.bf16 %v276
      %v326 = vunpack.c.h.bf16 %v276
      %v327 = vunpack.c.l.bf16 %v277
      %v328 = vunpack.c.h.bf16 %v277
      %v329 = vunpack.c.l.bf16 %v278
      %v330 = vunpack.c.h.bf16 %v278
      %v331 = vunpack.c.l.bf16 %v279
      %v332 = vunpack.c.h.bf16 %v279
      %v333 = vunpack.c.l.bf16 %v280
      %v334 = vunpack.c.h.bf16 %v280
      %v335 = vunpack.c.l.bf16 %v281
      %v336 = vunpack.c.h.bf16 %v281
      %v337 = vunpack.c.l.bf16 %v282
      %v338 = vunpack.c.h.bf16 %v282
      %v339 = vunpack.c.l.bf16 %v283
      %v340 = vunpack.c.h.bf16 %v283
      %v341 = vunpack.c.l.bf16 %v284
      %v342 = vunpack.c.h.bf16 %v284
      %v343 = vunpack.c.l.bf16 %v285
      %v344 = vunpack.c.h.bf16 %v285
      %v345 = vunpack.c.l.bf16 %v286
      %v346 = vunpack.c.h.bf16 %v286
      %v347 = vunpack.c.l.bf16 %v287
      %v348 = vunpack.c.h.bf16 %v287
      %v349 = vunpack.c.l.bf16 %v288
      %v350 = vunpack.c.h.bf16 %v288
      %v351 = vunpack.c.l.bf16 %v289
      %v352 = vunpack.c.h.bf16 %v289
      %v353 = vunpack.c.l.bf16 %v290
      %v354 = vunpack.c.h.bf16 %v290
      %v355 = vld [vmem:[%s1] sm:$0x3]
      %v357 = vlaneseq
      %v358 = vshrl.u32 %v357, 7
      %v359 = vsub.s32 0, %v358
      %v360 = vrot.slane %v355, %v359
      %v361 = vlaneseq
      %v362 = vshrl.u32 %v361, 7
      %v363 = vsub.s32 1, %v362
      %v364 = vrot.slane %v355, %v363
      %v367 = vmul.f32 %v291, %v360
      %v368 = vmul.f32 %v292, %v364
      %v369 = vmul.f32 %v293, %v360
      %v370 = vmul.f32 %v294, %v364
      %v371 = vmul.f32 %v295, %v360
      %v372 = vmul.f32 %v296, %v364
      %v373 = vmul.f32 %v297, %v360
      %v374 = vmul.f32 %v298, %v364
      %v375 = vmul.f32 %v299, %v360
      %v376 = vmul.f32 %v300, %v364
      %v377 = vmul.f32 %v301, %v360
      %v378 = vmul.f32 %v302, %v364
      %v379 = vmul.f32 %v303, %v360
      %v380 = vmul.f32 %v304, %v364
      %v381 = vmul.f32 %v305, %v360
      %v382 = vmul.f32 %v306, %v364
      %v383 = vmul.f32 %v307, %v360
      %v384 = vmul.f32 %v308, %v364
      %v385 = vmul.f32 %v309, %v360
      %v386 = vmul.f32 %v310, %v364
      %v387 = vmul.f32 %v311, %v360
      %v388 = vmul.f32 %v312, %v364
      %v389 = vmul.f32 %v313, %v360
      %v390 = vmul.f32 %v314, %v364
      %v391 = vmul.f32 %v315, %v360
      %v392 = vmul.f32 %v316, %v364
      %v393 = vmul.f32 %v317, %v360
      %v394 = vmul.f32 %v318, %v364
      %v395 = vmul.f32 %v319, %v360
      %v396 = vmul.f32 %v320, %v364
      %v397 = vmul.f32 %v321, %v360
      %v398 = vmul.f32 %v322, %v364
      %v399 = vmul.f32 %v323, %v360
      %v400 = vmul.f32 %v324, %v364
      %v401 = vmul.f32 %v325, %v360
      %v402 = vmul.f32 %v326, %v364
      %v403 = vmul.f32 %v327, %v360
      %v404 = vmul.f32 %v328, %v364
      %v405 = vmul.f32 %v329, %v360
      %v406 = vmul.f32 %v330, %v364
      %v407 = vmul.f32 %v331, %v360
      %v408 = vmul.f32 %v332, %v364
      %v409 = vmul.f32 %v333, %v360
      %v410 = vmul.f32 %v334, %v364
      %v411 = vmul.f32 %v335, %v360
      %v412 = vmul.f32 %v336, %v364
      %v413 = vmul.f32 %v337, %v360
      %v414 = vmul.f32 %v338, %v364
      %v415 = vmul.f32 %v339, %v360
      %v416 = vmul.f32 %v340, %v364
      %v417 = vmul.f32 %v341, %v360
      %v418 = vmul.f32 %v342, %v364
      %v419 = vmul.f32 %v343, %v360
      %v420 = vmul.f32 %v344, %v364
      %v421 = vmul.f32 %v345, %v360
      %v422 = vmul.f32 %v346, %v364
      %v423 = vmul.f32 %v347, %v360
      %v424 = vmul.f32 %v348, %v364
      %v425 = vmul.f32 %v349, %v360
      %v426 = vmul.f32 %v350, %v364
      %v427 = vmul.f32 %v351, %v360
      %v428 = vmul.f32 %v352, %v364
      %v429 = vmul.f32 %v353, %v360
      %v430 = vmul.f32 %v354, %v364
      %v431 = vld [vmem:[%s2] sm:$0x3]
      %v433 = vlaneseq
      %v434 = vshrl.u32 %v433, 7
      %v435 = vsub.s32 0, %v434
      %v436 = vrot.slane %v431, %v435
      %v437 = vlaneseq
      %v438 = vshrl.u32 %v437, 7
      %v439 = vsub.s32 1, %v438
      %v440 = vrot.slane %v431, %v439
      %v443 = vadd.f32 %v367, %v436
      %v444 = vadd.f32 %v368, %v440
      %v445 = vadd.f32 %v369, %v436
      %v446 = vadd.f32 %v370, %v440
      %v447 = vadd.f32 %v371, %v436
      %v448 = vadd.f32 %v372, %v440
      %v449 = vadd.f32 %v373, %v436
      %v450 = vadd.f32 %v374, %v440
      %v451 = vadd.f32 %v375, %v436
      %v452 = vadd.f32 %v376, %v440
      %v453 = vadd.f32 %v377, %v436
      %v454 = vadd.f32 %v378, %v440
      %v455 = vadd.f32 %v379, %v436
      %v456 = vadd.f32 %v380, %v440
      %v457 = vadd.f32 %v381, %v436
      %v458 = vadd.f32 %v382, %v440
      %v459 = vadd.f32 %v383, %v436
      %v460 = vadd.f32 %v384, %v440
      %v461 = vadd.f32 %v385, %v436
      %v462 = vadd.f32 %v386, %v440
      %v463 = vadd.f32 %v387, %v436
      %v464 = vadd.f32 %v388, %v440
      %v465 = vadd.f32 %v389, %v436
      %v466 = vadd.f32 %v390, %v440
      %v467 = vadd.f32 %v391, %v436
      %v468 = vadd.f32 %v392, %v440
      %v469 = vadd.f32 %v393, %v436
      %v470 = vadd.f32 %v394, %v440
      %v471 = vadd.f32 %v395, %v436
      %v472 = vadd.f32 %v396, %v440
      %v473 = vadd.f32 %v397, %v436
      %v474 = vadd.f32 %v398, %v440
      %v475 = vadd.f32 %v399, %v436
      %v476 = vadd.f32 %v400, %v440
      %v477 = vadd.f32 %v401, %v436
      %v478 = vadd.f32 %v402, %v440
      %v479 = vadd.f32 %v403, %v436
      %v480 = vadd.f32 %v404, %v440
      %v481 = vadd.f32 %v405, %v436
      %v482 = vadd.f32 %v406, %v440
      %v483 = vadd.f32 %v407, %v436
      %v484 = vadd.f32 %v408, %v440
      %v485 = vadd.f32 %v409, %v436
      %v486 = vadd.f32 %v410, %v440
      %v487 = vadd.f32 %v411, %v436
      %v488 = vadd.f32 %v412, %v440
      %v489 = vadd.f32 %v413, %v436
      %v490 = vadd.f32 %v414, %v440
      %v491 = vadd.f32 %v415, %v436
      %v492 = vadd.f32 %v416, %v440
      %v493 = vadd.f32 %v417, %v436
      %v494 = vadd.f32 %v418, %v440
      %v495 = vadd.f32 %v419, %v436
      %v496 = vadd.f32 %v420, %v440
      %v497 = vadd.f32 %v421, %v436
      %v498 = vadd.f32 %v422, %v440
      %v499 = vadd.f32 %v423, %v436
      %v500 = vadd.f32 %v424, %v440
      %v501 = vadd.f32 %v425, %v436
      %v502 = vadd.f32 %v426, %v440
      %v503 = vadd.f32 %v427, %v436
      %v504 = vadd.f32 %v428, %v440
      %v505 = vadd.f32 %v429, %v436
      %v506 = vadd.f32 %v430, %v440
      %v507 = vpack.c.bf16 %v445, %v443
      %v508 = vpack.c.bf16 %v446, %v444
      %v509 = vpack.c.bf16 %v449, %v447
      %v510 = vpack.c.bf16 %v450, %v448
      %v511 = vpack.c.bf16 %v453, %v451
      %v512 = vpack.c.bf16 %v454, %v452
      %v513 = vpack.c.bf16 %v457, %v455
      %v514 = vpack.c.bf16 %v458, %v456
      %v515 = vpack.c.bf16 %v461, %v459
      %v516 = vpack.c.bf16 %v462, %v460
      %v517 = vpack.c.bf16 %v465, %v463
      %v518 = vpack.c.bf16 %v466, %v464
      %v519 = vpack.c.bf16 %v469, %v467
      %v520 = vpack.c.bf16 %v470, %v468
      %v521 = vpack.c.bf16 %v473, %v471
      %v522 = vpack.c.bf16 %v474, %v472
      %v523 = vpack.c.bf16 %v477, %v475
      %v524 = vpack.c.bf16 %v478, %v476
      %v525 = vpack.c.bf16 %v481, %v479
      %v526 = vpack.c.bf16 %v482, %v480
      %v527 = vpack.c.bf16 %v485, %v483
      %v528 = vpack.c.bf16 %v486, %v484
      %v529 = vpack.c.bf16 %v489, %v487
      %v530 = vpack.c.bf16 %v490, %v488
      %v531 = vpack.c.bf16 %v493, %v491
      %v532 = vpack.c.bf16 %v494, %v492
      %v533 = vpack.c.bf16 %v497, %v495
      %v534 = vpack.c.bf16 %v498, %v496
      %v535 = vpack.c.bf16 %v501, %v499
      %v536 = vpack.c.bf16 %v502, %v500
      %v537 = vpack.c.bf16 %v505, %v503
      %v538 = vpack.c.bf16 %v506, %v504
      %v539 = vld [vmem:[%s3] sm:$0xf]
      %v540 = vld [vmem:[%s3 + $0x4] sm:$0xf]
      %v541 = vld [vmem:[%s3 + $0x8] sm:$0xf]
      %v542 = vld [vmem:[%s3 + $0xc] sm:$0xf]
      %v543 = vld [vmem:[%s3 + $0x10] sm:$0xf]
      %v544 = vld [vmem:[%s3 + $0x14] sm:$0xf]
      %v545 = vld [vmem:[%s3 + $0x18] sm:$0xf]
      %v546 = vld [vmem:[%s3 + $0x1c] sm:$0xf]
      %v547 = vld [vmem:[%s3 + $0x20] sm:$0xf]
      %v548 = vld [vmem:[%s3 + $0x24] sm:$0xf]
      %v549 = vld [vmem:[%s3 + $0x28] sm:$0xf]
      %v550 = vld [vmem:[%s3 + $0x2c] sm:$0xf]
      %v551 = vld [vmem:[%s3 + $0x30] sm:$0xf]
      %v552 = vld [vmem:[%s3 + $0x34] sm:$0xf]
      %v553 = vld [vmem:[%s3 + $0x38] sm:$0xf]
      %v554 = vld [vmem:[%s3 + $0x3c] sm:$0xf]
      %v555 = vld [vmem:[%s3 + $0x40] sm:$0xf]
      %v556 = vld [vmem:[%s3 + $0x44] sm:$0xf]
      %v557 = vld [vmem:[%s3 + $0x48] sm:$0x3]
      %v577 = vunpack.c.l.b16 %v539
      %v578 = vunpack.c.l.b16 %v540
      %v579 = vunpack.c.l.b16 %v541
      %v580 = vunpack.c.l.b16 %v542
      %v581 = vunpack.c.l.b16 %v543
      %v582 = vunpack.c.l.b16 %v544
      %v583 = vunpack.c.l.b16 %v545
      %v584 = vunpack.c.l.b16 %v546
      %v585 = vunpack.c.l.b16 %v547
      %v586 = vunpack.c.l.b16 %v548
      %v587 = vunpack.c.l.b16 %v549
      %v588 = vunpack.c.l.b16 %v550
      %v589 = vunpack.c.l.b16 %v551
      %v590 = vunpack.c.l.b16 %v552
      %v591 = vunpack.c.l.b16 %v553
      %v592 = vunpack.c.l.b16 %v554
      %v593 = vunpack.c.l.b16 %v555
      %v594 = vunpack.c.l.b16 %v556
      %v595 = vunpack.c.l.b16 %v557
      %v596 = vpack.c.b16 %v578, %v577
      %v597 = vpack.c.b16 %v580, %v579
      %v598 = vpack.c.b16 %v582, %v581
      %v599 = vpack.c.b16 %v584, %v583
      %v600 = vpack.c.b16 %v586, %v585
      %v601 = vpack.c.b16 %v588, %v587
      %v602 = vpack.c.b16 %v590, %v589
      %v603 = vpack.c.b16 %v592, %v591
      %v604 = vpack.c.b16 %v594, %v593
      %v605 = vpack.c.b16 %v595, %v595
      %vm615 = vcmask 154624
      %v617 = vsel %vm615, %v508, 0
      %v620 = vsel %vm615, %v510, 0
      %v623 = vsel %vm615, %v512, 0
      %v626 = vsel %vm615, %v514, 0
      %v629 = vsel %vm615, %v516, 0
      %v632 = vsel %vm615, %v518, 0
      %v635 = vsel %vm615, %v520, 0
      %v638 = vsel %vm615, %v522, 0
      %v641 = vsel %vm615, %v524, 0
      %v644 = vsel %vm615, %v526, 0
      %v647 = vsel %vm615, %v528, 0
      %v650 = vsel %vm615, %v530, 0
      %v653 = vsel %vm615, %v532, 0
      %v656 = vsel %vm615, %v534, 0
      %v659 = vsel %vm615, %v536, 0
      %v662 = vsel %vm615, %v538, 0
      %vm664 = vcmask 1040384
      %vm665 = vcmask 1041408
      %v666 = vsel %vm664, 4294967295, 65535
      %v667 = vsel %vm665, %v666, 0
      %v669 = vand.u32 %v605, %v667
      %671 = vmatprep.subr.bf16.mxu0 0
      %672 = vmatpush1.bf16.msra.mxu0 %v596
      %673 = vmatprep.subr.bf16.mxu0 0
      %674 = vmatpush1.bf16.msra.mxu0 %v597
      %675 = vmatprep.subr.bf16.mxu0 0
      %676 = vmatpush1.bf16.msra.mxu0 %v598
      %677 = vmatprep.subr.bf16.mxu0 0
      %678 = vmatpush1.bf16.msra.mxu0 %v599
      %679 = vmatprep.subr.bf16.mxu0 0
      %680 = vmatpush1.bf16.msra.mxu0 %v600
      %681 = vmatprep.subr.bf16.mxu0 0
      %682 = vmatpush1.bf16.msra.mxu0 %v601
      %683 = vmatprep.subr.bf16.mxu0 0
      %684 = vmatpush1.bf16.msra.mxu0 %v602
      %685 = vmatprep.subr.bf16.mxu0 0
      %686 = vmatpush1.bf16.msra.mxu0 %v603
      %687 = vmatprep.subr.bf16.mxu0 0
      %688 = vmatpush1.bf16.msra.mxu0 %v604
      %689 = vmatprep.subr.bf16.mxu0 0
      %690 = vmatpush1.bf16.msra.mxu0 %v669
      %691 = vmatprep.subr.bf16.mxu0 0
      %692 = vmatpush1.bf16.msra.mxu0 0
      %693 = vmatprep.subr.bf16.mxu0 0
      %694 = vmatpush1.bf16.msra.mxu0 0
      %695 = vmatprep.subr.bf16.mxu0 0
      %696 = vmatpush1.bf16.msra.mxu0 0
      %697 = vmatprep.subr.bf16.mxu0 0
      %698 = vmatpush1.bf16.msra.mxu0 0
      %699 = vmatprep.subr.bf16.mxu0 0
      %700 = vmatpush1.bf16.msra.mxu0 0
      %701 = vmatprep.subr.bf16.mxu0 0
      %702 = vmatpush1.bf16.msra.mxu0 0
      %703 = vmatprep.mubr.bf16.mxu0 %v617
      %704 = vmatmul.mubr.bf16.gmra.mrb[0].mxu0 %v507
      %v705 = vpop.f32.mrb[0].mxu0
      %v706 = vadd.f32 0.0, %v705
      %v707 = vpop.f32.mrb[0].mxu0
      %v708 = vpop.f32.mrb[0].mxu0
      %v709 = vadd.f32 0.0, %v708
      %v710 = vpop.f32.mrb[0].mxu0
      %711 = vmatprep.mubr.bf16.mxu0 %v620
      %712 = vmatmul.mubr.bf16.gmra.mrb[0].mxu0 %v509
      %v713 = vpop.f32.mrb[0].mxu0
      %v714 = vadd.f32 0.0, %v713
      %v715 = vpop.f32.mrb[0].mxu0
      %v716 = vpop.f32.mrb[0].mxu0
      %v717 = vadd.f32 0.0, %v716
      %v718 = vpop.f32.mrb[0].mxu0
      %719 = vmatprep.mubr.bf16.mxu0 %v623
      %720 = vmatmul.mubr.bf16.gmra.mrb[0].mxu0 %v511
      %v721 = vpop.f32.mrb[0].mxu0
      %v722 = vadd.f32 0.0, %v721
      %v723 = vpop.f32.mrb[0].mxu0
      %v724 = vpop.f32.mrb[0].mxu0
      %v725 = vadd.f32 0.0, %v724
      %v726 = vpop.f32.mrb[0].mxu0
      %727 = vmatprep.mubr.bf16.mxu0 %v626
      %728 = vmatmul.mubr.bf16.gmra.mrb[0].mxu0 %v513
      %v729 = vpop.f32.mrb[0].mxu0
      %v730 = vadd.f32 0.0, %v729
      %v731 = vpop.f32.mrb[0].mxu0
      %v732 = vpop.f32.mrb[0].mxu0
      %v733 = vadd.f32 0.0, %v732
      %v734 = vpop.f32.mrb[0].mxu0
      %735 = vmatprep.mubr.bf16.mxu0 %v629
      %736 = vmatmul.mubr.bf16.gmra.mrb[0].mxu0 %v515
      %v737 = vpop.f32.mrb[0].mxu0
      %v738 = vadd.f32 0.0, %v737
      %v739 = vpop.f32.mrb[0].mxu0
      %v740 = vpop.f32.mrb[0].mxu0
      %v741 = vadd.f32 0.0, %v740
      %v742 = vpop.f32.mrb[0].mxu0
      %743 = vmatprep.mubr.bf16.mxu0 %v632
      %744 = vmatmul.mubr.bf16.gmra.mrb[0].mxu0 %v517
      %v745 = vpop.f32.mrb[0].mxu0
      %v746 = vadd.f32 0.0, %v745
      %v747 = vpop.f32.mrb[0].mxu0
      %v748 = vpop.f32.mrb[0].mxu0
      %v749 = vadd.f32 0.0, %v748
      %v750 = vpop.f32.mrb[0].mxu0
      %751 = vmatprep.mubr.bf16.mxu0 %v635
      %752 = vmatmul.mubr.bf16.gmra.mrb[0].mxu0 %v519
      %v753 = vpop.f32.mrb[0].mxu0
      %v754 = vadd.f32 0.0, %v753
      %v755 = vpop.f32.mrb[0].mxu0
      %v756 = vpop.f32.mrb[0].mxu0
      %v757 = vadd.f32 0.0, %v756
      %v758 = vpop.f32.mrb[0].mxu0
      %759 = vmatprep.mubr.bf16.mxu0 %v638
      %760 = vmatmul.mubr.bf16.gmra.mrb[0].mxu0 %v521
      %v761 = vpop.f32.mrb[0].mxu0
      %v762 = vadd.f32 0.0, %v761
      %v763 = vpop.f32.mrb[0].mxu0
      %v764 = vpop.f32.mrb[0].mxu0
      %v765 = vadd.f32 0.0, %v764
      %v766 = vpop.f32.mrb[0].mxu0
      %767 = vmatprep.mubr.bf16.mxu0 %v641
      %768 = vmatmul.mubr.bf16.gmra.mrb[0].mxu0 %v523
      %v769 = vpop.f32.mrb[0].mxu0
      %v770 = vadd.f32 0.0, %v769
      %v771 = vpop.f32.mrb[0].mxu0
      %v772 = vpop.f32.mrb[0].mxu0
      %v773 = vadd.f32 0.0, %v772
      %v774 = vpop.f32.mrb[0].mxu0
      %775 = vmatprep.mubr.bf16.mxu0 %v644
      %776 = vmatmul.mubr.bf16.gmra.mrb[0].mxu0 %v525
      %v777 = vpop.f32.mrb[0].mxu0
      %v778 = vadd.f32 0.0, %v777
      %v779 = vpop.f32.mrb[0].mxu0
      %v780 = vpop.f32.mrb[0].mxu0
      %v781 = vadd.f32 0.0, %v780
      %v782 = vpop.f32.mrb[0].mxu0
      %783 = vmatprep.mubr.bf16.mxu0 %v647
      %784 = vmatmul.mubr.bf16.gmra.mrb[0].mxu0 %v527
      %v785 = vpop.f32.mrb[0].mxu0
      %v786 = vadd.f32 0.0, %v785
      %v787 = vpop.f32.mrb[0].mxu0
      %v788 = vpop.f32.mrb[0].mxu0
      %v789 = vadd.f32 0.0, %v788
      %v790 = vpop.f32.mrb[0].mxu0
      %791 = vmatprep.mubr.bf16.mxu0 %v650
      %792 = vmatmul.mubr.bf16.gmra.mrb[0].mxu0 %v529
      %v793 = vpop.f32.mrb[0].mxu0
      %v794 = vadd.f32 0.0, %v793
      %v795 = vpop.f32.mrb[0].mxu0
      %v796 = vpop.f32.mrb[0].mxu0
      %v797 = vadd.f32 0.0, %v796
      %v798 = vpop.f32.mrb[0].mxu0
      %799 = vmatprep.mubr.bf16.mxu0 %v653
      %800 = vmatmul.mubr.bf16.gmra.mrb[0].mxu0 %v531
      %v801 = vpop.f32.mrb[0].mxu0
      %v802 = vadd.f32 0.0, %v801
      %v803 = vpop.f32.mrb[0].mxu0
      %v804 = vpop.f32.mrb[0].mxu0
      %v805 = vadd.f32 0.0, %v804
      %v806 = vpop.f32.mrb[0].mxu0
      %807 = vmatprep.mubr.bf16.mxu0 %v656
      %808 = vmatmul.mubr.bf16.gmra.mrb[0].mxu0 %v533
      %v809 = vpop.f32.mrb[0].mxu0
      %v810 = vadd.f32 0.0, %v809
      %v811 = vpop.f32.mrb[0].mxu0
      %v812 = vpop.f32.mrb[0].mxu0
      %v813 = vadd.f32 0.0, %v812
      %v814 = vpop.f32.mrb[0].mxu0
      %815 = vmatprep.mubr.bf16.mxu0 %v659
      %816 = vmatmul.mubr.bf16.gmra.mrb[0].mxu0 %v535
      %v817 = vpop.f32.mrb[0].mxu0
      %v818 = vadd.f32 0.0, %v817
      %v819 = vpop.f32.mrb[0].mxu0
      %v820 = vpop.f32.mrb[0].mxu0
      %v821 = vadd.f32 0.0, %v820
      %v822 = vpop.f32.mrb[0].mxu0
      %823 = vmatprep.mubr.bf16.mxu0 %v662
      %824 = vmatmul.mubr.bf16.gmra.mrb[0].mxu0 %v537
      %v825 = vpop.f32.mrb[0].mxu0
      %v826 = vadd.f32 0.0, %v825
      %v827 = vpop.f32.mrb[0].mxu0
      %v828 = vpop.f32.mrb[0].mxu0
      %v829 = vadd.f32 0.0, %v828
      %v830 = vpop.f32.mrb[0].mxu0
      %831 = vdwg.mxu0
      %v832 = vld [vmem:[%s4] sm:$0x1]
      %v834 = vlaneseq
      %v835 = vshrl.u32 %v834, 7
      %v836 = vsub.s32 0, %v835
      %v837 = vrot.slane %v832, %v836
      %v839 = vmul.f32 %v706, %v837
      %v840 = vmul.f32 %v709, %v837
      %v841 = vmul.f32 %v714, %v837
      %v842 = vmul.f32 %v717, %v837
      %v843 = vmul.f32 %v722, %v837
      %v844 = vmul.f32 %v725, %v837
      %v845 = vmul.f32 %v730, %v837
      %v846 = vmul.f32 %v733, %v837
      %v847 = vmul.f32 %v738, %v837
      %v848 = vmul.f32 %v741, %v837
      %v849 = vmul.f32 %v746, %v837
      %v850 = vmul.f32 %v749, %v837
      %v851 = vmul.f32 %v754, %v837
      %v852 = vmul.f32 %v757, %v837
      %v853 = vmul.f32 %v762, %v837
      %v854 = vmul.f32 %v765, %v837
      %v855 = vmul.f32 %v770, %v837
      %v856 = vmul.f32 %v773, %v837
      %v857 = vmul.f32 %v778, %v837
      %v858 = vmul.f32 %v781, %v837
      %v859 = vmul.f32 %v786, %v837
      %v860 = vmul.f32 %v789, %v837
      %v861 = vmul.f32 %v794, %v837
      %v862 = vmul.f32 %v797, %v837
      %v863 = vmul.f32 %v802, %v837
      %v864 = vmul.f32 %v805, %v837
      %v865 = vmul.f32 %v810, %v837
      %v866 = vmul.f32 %v813, %v837
      %v867 = vmul.f32 %v818, %v837
      %v868 = vmul.f32 %v821, %v837
      %v869 = vmul.f32 %v826, %v837
      %v870 = vmul.f32 %v829, %v837
      %v871 = vld [vmem:[%s5] sm:$0x1]
      %v873 = vlaneseq
      %v874 = vshrl.u32 %v873, 7
      %v875 = vsub.s32 0, %v874
      %v876 = vrot.slane %v871, %v875
      %v878 = vadd.f32 %v839, %v876
      %v879 = vadd.f32 %v840, %v876
      %v880 = vadd.f32 %v841, %v876
      %v881 = vadd.f32 %v842, %v876
      %v882 = vadd.f32 %v843, %v876
      %v883 = vadd.f32 %v844, %v876
      %v884 = vadd.f32 %v845, %v876
      %v885 = vadd.f32 %v846, %v876
      %v886 = vadd.f32 %v847, %v876
      %v887 = vadd.f32 %v848, %v876
      %v888 = vadd.f32 %v849, %v876
      %v889 = vadd.f32 %v850, %v876
      %v890 = vadd.f32 %v851, %v876
      %v891 = vadd.f32 %v852, %v876
      %v892 = vadd.f32 %v853, %v876
      %v893 = vadd.f32 %v854, %v876
      %v894 = vadd.f32 %v855, %v876
      %v895 = vadd.f32 %v856, %v876
      %v896 = vadd.f32 %v857, %v876
      %v897 = vadd.f32 %v858, %v876
      %v898 = vadd.f32 %v859, %v876
      %v899 = vadd.f32 %v860, %v876
      %v900 = vadd.f32 %v861, %v876
      %v901 = vadd.f32 %v862, %v876
      %v902 = vadd.f32 %v863, %v876
      %v903 = vadd.f32 %v864, %v876
      %v904 = vadd.f32 %v865, %v876
      %v905 = vadd.f32 %v866, %v876
      %v906 = vadd.f32 %v867, %v876
      %v907 = vadd.f32 %v868, %v876
      %v908 = vadd.f32 %v869, %v876
      %v909 = vadd.f32 %v870, %v876
      %v910 = vmax.f32 %v878, 0.0
      %v911 = vmax.f32 %v879, 0.0
      %v912 = vmax.f32 %v880, 0.0
      %v913 = vmax.f32 %v881, 0.0
      %v914 = vmax.f32 %v882, 0.0
      %v915 = vmax.f32 %v883, 0.0
      %v916 = vmax.f32 %v884, 0.0
      %v917 = vmax.f32 %v885, 0.0
      %v918 = vmax.f32 %v886, 0.0
      %v919 = vmax.f32 %v887, 0.0
      %v920 = vmax.f32 %v888, 0.0
      %v921 = vmax.f32 %v889, 0.0
      %v922 = vmax.f32 %v890, 0.0
      %v923 = vmax.f32 %v891, 0.0
      %v924 = vmax.f32 %v892, 0.0
      %v925 = vmax.f32 %v893, 0.0
      %v926 = vmax.f32 %v894, 0.0
      %v927 = vmax.f32 %v895, 0.0
      %v928 = vmax.f32 %v896, 0.0
      %v929 = vmax.f32 %v897, 0.0
      %v930 = vmax.f32 %v898, 0.0
      %v931 = vmax.f32 %v899, 0.0
      %v932 = vmax.f32 %v900, 0.0
      %v933 = vmax.f32 %v901, 0.0
      %v934 = vmax.f32 %v902, 0.0
      %v935 = vmax.f32 %v903, 0.0
      %v936 = vmax.f32 %v904, 0.0
      %v937 = vmax.f32 %v905, 0.0
      %v938 = vmax.f32 %v906, 0.0
      %v939 = vmax.f32 %v907, 0.0
      %v940 = vmax.f32 %v908, 0.0
      %v941 = vmax.f32 %v909, 0.0
      %v942 = vpack.c.bf16 %v911, %v910
      %v943 = vpack.c.bf16 %v913, %v912
      %v944 = vpack.c.bf16 %v915, %v914
      %v945 = vpack.c.bf16 %v917, %v916
      %v946 = vpack.c.bf16 %v919, %v918
      %v947 = vpack.c.bf16 %v921, %v920
      %v948 = vpack.c.bf16 %v923, %v922
      %v949 = vpack.c.bf16 %v925, %v924
      %v950 = vpack.c.bf16 %v927, %v926
      %v951 = vpack.c.bf16 %v929, %v928
      %v952 = vpack.c.bf16 %v931, %v930
      %v953 = vpack.c.bf16 %v933, %v932
      %v954 = vpack.c.bf16 %v935, %v934
      %v955 = vpack.c.bf16 %v937, %v936
      %v956 = vpack.c.bf16 %v939, %v938
      %v957 = vpack.c.bf16 %v941, %v940
      %v974 = vunpack.c.l.b16 %v942
      %v975 = vunpack.c.h.b16 %v942
      %v976 = vunpack.c.l.b16 %v943
      %v977 = vunpack.c.h.b16 %v943
      %v978 = vunpack.c.l.b16 %v944
      %v979 = vunpack.c.h.b16 %v944
      %v980 = vunpack.c.l.b16 %v945
      %v981 = vunpack.c.h.b16 %v945
      %v982 = vunpack.c.l.b16 %v946
      %v983 = vunpack.c.h.b16 %v946
      %v984 = vunpack.c.l.b16 %v947
      %v985 = vunpack.c.h.b16 %v947
      %v986 = vunpack.c.l.b16 %v948
      %v987 = vunpack.c.h.b16 %v948
      %v988 = vunpack.c.l.b16 %v949
      %v989 = vunpack.c.h.b16 %v949
      %v990 = vunpack.c.l.b16 %v950
      %v991 = vunpack.c.h.b16 %v950
      %v992 = vunpack.c.l.b16 %v951
      %v993 = vunpack.c.h.b16 %v951
      %v994 = vunpack.c.l.b16 %v952
      %v995 = vunpack.c.h.b16 %v952
      %v996 = vunpack.c.l.b16 %v953
      %v997 = vunpack.c.h.b16 %v953
      %v998 = vunpack.c.l.b16 %v954
      %v999 = vunpack.c.h.b16 %v954
      %v1000 = vunpack.c.l.b16 %v955
      %v1001 = vunpack.c.h.b16 %v955
      %v1002 = vunpack.c.l.b16 %v956
      %v1003 = vunpack.c.h.b16 %v956
      %v1004 = vunpack.c.l.b16 %v957
      %v1005 = vunpack.c.h.b16 %v957
      %v1006 = vpack.c.b16 %v974, %v974
      %v1007 = vpack.c.b16 %v975, %v975
      %v1008 = vpack.c.b16 %v976, %v976
      %v1009 = vpack.c.b16 %v977, %v977
      %v1010 = vpack.c.b16 %v978, %v978
      %v1011 = vpack.c.b16 %v979, %v979
      %v1012 = vpack.c.b16 %v980, %v980
      %v1013 = vpack.c.b16 %v981, %v981
      %v1014 = vpack.c.b16 %v982, %v982
      %v1015 = vpack.c.b16 %v983, %v983
      %v1016 = vpack.c.b16 %v984, %v984
      %v1017 = vpack.c.b16 %v985, %v985
      %v1018 = vpack.c.b16 %v986, %v986
      %v1019 = vpack.c.b16 %v987, %v987
      %v1020 = vpack.c.b16 %v988, %v988
      %v1021 = vpack.c.b16 %v989, %v989
      %v1022 = vpack.c.b16 %v990, %v990
      %v1023 = vpack.c.b16 %v991, %v991
      %v1024 = vpack.c.b16 %v992, %v992
      %v1025 = vpack.c.b16 %v993, %v993
      %v1026 = vpack.c.b16 %v994, %v994
      %v1027 = vpack.c.b16 %v995, %v995
      %v1028 = vpack.c.b16 %v996, %v996
      %v1029 = vpack.c.b16 %v997, %v997
      %v1030 = vpack.c.b16 %v998, %v998
      %v1031 = vpack.c.b16 %v999, %v999
      %v1032 = vpack.c.b16 %v1000, %v1000
      %v1033 = vpack.c.b16 %v1001, %v1001
      %v1034 = vpack.c.b16 %v1002, %v1002
      %v1035 = vpack.c.b16 %v1003, %v1003
      %v1036 = vpack.c.b16 %v1004, %v1004
      %v1037 = vpack.c.b16 %v1005, %v1005
      %vm1070 = vcmask 125952
      %1071 = vst.msk [vmem:[%s256] sm:$0xf] %vm1070, %v1006
      %1072 = vst.msk [vmem:[%s256 + $0x4] sm:$0xf] %vm1070, %v1007
      %1073 = vst.msk [vmem:[%s256 + $0x8] sm:$0xf] %vm1070, %v1008
      %1074 = vst.msk [vmem:[%s256 + $0xc] sm:$0xf] %vm1070, %v1009
      %1075 = vst.msk [vmem:[%s256 + $0x10] sm:$0xf] %vm1070, %v1010
      %1076 = vst.msk [vmem:[%s256 + $0x14] sm:$0xf] %vm1070, %v1011
      %1077 = vst.msk [vmem:[%s256 + $0x18] sm:$0xf] %vm1070, %v1012
      %1078 = vst.msk [vmem:[%s256 + $0x1c] sm:$0xf] %vm1070, %v1013
      %1079 = vst.msk [vmem:[%s256 + $0x20] sm:$0xf] %vm1070, %v1014
      %1080 = vst.msk [vmem:[%s256 + $0x24] sm:$0xf] %vm1070, %v1015
      %1081 = vst.msk [vmem:[%s256 + $0x28] sm:$0xf] %vm1070, %v1016
      %1082 = vst.msk [vmem:[%s256 + $0x2c] sm:$0xf] %vm1070, %v1017
      %1083 = vst.msk [vmem:[%s256 + $0x30] sm:$0xf] %vm1070, %v1018
      %1084 = vst.msk [vmem:[%s256 + $0x34] sm:$0xf] %vm1070, %v1019
      %1085 = vst.msk [vmem:[%s256 + $0x38] sm:$0xf] %vm1070, %v1020
      %1086 = vst.msk [vmem:[%s256 + $0x3c] sm:$0xf] %vm1070, %v1021
      %1087 = vst.msk [vmem:[%s256 + $0x40] sm:$0xf] %vm1070, %v1022
      %1088 = vst.msk [vmem:[%s256 + $0x44] sm:$0xf] %vm1070, %v1023
      %1089 = vst.msk [vmem:[%s256 + $0x48] sm:$0xf] %vm1070, %v1024
      %1090 = vst.msk [vmem:[%s256 + $0x4c] sm:$0xf] %vm1070, %v1025
      %1091 = vst.msk [vmem:[%s256 + $0x50] sm:$0xf] %vm1070, %v1026
      %1092 = vst.msk [vmem:[%s256 + $0x54] sm:$0xf] %vm1070, %v1027
      %1093 = vst.msk [vmem:[%s256 + $0x58] sm:$0xf] %vm1070, %v1028
      %1094 = vst.msk [vmem:[%s256 + $0x5c] sm:$0xf] %vm1070, %v1029
      %1095 = vst.msk [vmem:[%s256 + $0x60] sm:$0xf] %vm1070, %v1030
      %1096 = vst.msk [vmem:[%s256 + $0x64] sm:$0xf] %vm1070, %v1031
      %1097 = vst.msk [vmem:[%s256 + $0x68] sm:$0xf] %vm1070, %v1032
      %1098 = vst.msk [vmem:[%s256 + $0x6c] sm:$0xf] %vm1070, %v1033
      %1099 = vst.msk [vmem:[%s256 + $0x70] sm:$0xf] %vm1070, %v1034
      %1100 = vst.msk [vmem:[%s256 + $0x74] sm:$0xf] %vm1070, %v1035
      %1101 = vst.msk [vmem:[%s256 + $0x78] sm:$0xf] %vm1070, %v1036
      %1102 = vst.msk [vmem:[%s256 + $0x7c] sm:$0xf] %vm1070, %v1037
      %s1103 = smul.u32 32, %s17
      %p1104 = scmp.lt.s32.totalorder %s1103, 63
      %s1105 = scalar_select %p1104, %s1103, 63
      %s1106 = smul.addr %s1105, 4
      %s1107 = scalar_lea.vmem %s6, %s1106
      // Predicated region
      $region45: #{densenet_forward.12} parent=43 // pred_check
        %p1108 = pneg %p166
      $region46: #{densenet_forward.12} parent=43 // pred_check_branch
        %1110 = sbr.rel (%p1108) target = $region48
      $region47: #{densenet_forward.12} parent=43 // pred_region
        %s1111 = smul.u32 32, %s17
      $region48: #{densenet_forward.12} parent=43 // pred_fallthru
        _
    $region44: #{densenet_forward.12} parent=5 // pred_fallthru
      _
    %p1112 = scmp.le.s32.totalorder 2, %s12
    // Predicated region
    $region49: #{densenet_forward.12} parent=5 // pred_check
      %p1113 = pneg %p1112
    $region50: #{densenet_forward.12} parent=5 // pred_check_branch
      %1115 = sbr.rel (%p1113) target = $region52
    $region51: #{densenet_forward.12} parent=5 // pred_region
      %s1116 = ssub.s32 %s12, 2
      // Predicated region
      $region53: #{densenet_forward.12} parent=51 // pred_check
        %p1117 = pneg %p172
      $region54: #{densenet_forward.12} parent=51 // pred_check_branch
        %1119 = sbr.rel (%p1117) target = $region56
      $region55: #{densenet_forward.12} parent=51 // pred_region
        %s1120 = smul.u32 32, %s18
        %p1121 = scmp.lt.s32.totalorder %s1120, 63
        %s1122 = scalar_select %p1121, %s1120, 63
        %s1123 = smul.addr %s1122, 4
        %s1124 = scalar_lea.vmem %s6, %s1123
      $region56: #{densenet_forward.12} parent=51 // pred_fallthru
        _
    $region52: #{densenet_forward.12} parent=5 // pred_fallthru
      _
  $region6: #{densenet_forward.12} parent=0 // loop_footer
    %s16 = sadd.s32 1, %s12
  $region7: #{densenet_forward.12} parent=0 // loop_footer_branch
    %11 = sbr.rel target = $region3
  $region8: #{densenet_forward.12} parent=0 // loop_exit
    _

// kernel: densenet_forward.15
$region0: #{densenet_forward.15}
  #allocation0 [shape = 'u32[]', space=smem, size = 0x4, offset = 0x4, fixed_abs, tag = 'smem constant byte address 0x4 - core index']
  #allocation1 [shape = 'u32[144,128]{1,0:T(1,128)}', space=vmem, size = 0x12000, scoped, tag = 'internal scratch']
  #allocation2 [shape = 'bf16[96,16]{1,0:T(16,128)(2,1)}', space=vmem, size = 0x6000, scoped, tag = 'scratch operand']
  %s0 = inlined_call_operand.vmem [shape: bf16[2,64,16], index: 0, kind: input, shape index: {}]
  %s1 = inlined_call_operand.vmem [shape: bf16[144,8], index: 1, kind: input, shape index: {}]
  %s2 = inlined_call_operand.vmem [shape: bf16[2,64,8], index: 2, kind: output, shape index: {}]
  %s3 = sld [smem:[#allocation0]]
  $region41: #{densenet_forward.15} parent=0
    _
  %s5 = ssub.s32 1, %s3
  %s6 = scalar_select 0, %s5, %s3
  loop: start=0, step=1, limit=4
  $region2: #{densenet_forward.15} parent=0 // loop_pre_header
    _
  $region3: #{densenet_forward.15} parent=0 // loop_header
    %s8 = sphi 0, %s12
    %p9 = scmp.ge.s32.totalorder %s8, 4
    %s18 = sphi 0, %s20
    %s21 = sphi 0, %s18
    %s22 = sphi 0, %s21
    %s38 = sphi 0, %s22
    %s42 = sphi 0, %s42
    %s44 = sphi 0, %s42
    %s45 = sphi 0, %s44
    %s59 = sphi 0, %s45
    %s65 = sphi 0, %s67
    %s68 = sphi 0, %s65
    %s69 = sphi 0, %s68
    %s85 = sphi 0, %s69
  $region4: #{densenet_forward.15} parent=0 // loop_header_branch
    %11 = sbr.rel (%p9) target = $region8
  $region5: #{densenet_forward.15} parent=0 // loop_body
    %s13 = ssub.s32 %s8, 1
    %s14 = ssub.s32 %s8, 2
    %s15 = sadd.s32 %s8, 1
    %s16 = ssub.s32 %s8, %s15
    %p17 = scmp.eq.s32.totalorder %s16, 0
    %s19 = sadd.s32 %s18, 1
    %s20 = scalar_select %p17, %s18, %s19
    %p23 = pneg %p17
    %p24 = scmp.eq.s32.totalorder %s8, 1
    %p25 = por %p23, %p24
    %p26 = scmp.ne.s32.totalorder %s18, %s21
    %p27 = scmp.eq.s32.totalorder %s8, 0
    %p28 = por %p26, %p27
    %p29 = scmp.ne.s32.totalorder %s18, %s21
    %p30 = scmp.eq.s32.totalorder %s13, 1
    %p31 = por %p29, %p30
    %p32 = scmp.ne.s32.totalorder %s21, %s22
    %p33 = scmp.eq.s32.totalorder %s13, 0
    %p34 = por %p32, %p33
    %p35 = scmp.ne.s32.totalorder %s21, %s22
    %p36 = scmp.eq.s32.totalorder %s14, 1
    %p37 = por %p35, %p36
    %p39 = scmp.ne.s32.totalorder %s22, %s38
    %p40 = scmp.eq.s32.totalorder %s14, 0
    %p41 = por %p39, %p40
    %s43 = sadd.s32 %s42, 1
    %p46 = scmp.eq.s32.totalorder %s8, 1
    %p47 = scmp.ne.s32.totalorder %s42, %s44
    %p48 = scmp.eq.s32.totalorder %s8, 0
    %p49 = por %p47, %p48
    %p50 = scmp.ne.s32.totalorder %s42, %s44
    %p51 = scmp.eq.s32.totalorder %s13, 1
    %p52 = por %p50, %p51
    %p53 = scmp.ne.s32.totalorder %s44, %s45
    %p54 = scmp.eq.s32.totalorder %s13, 0
    %p55 = por %p53, %p54
    %p56 = scmp.ne.s32.totalorder %s44, %s45
    %p57 = scmp.eq.s32.totalorder %s14, 1
    %p58 = por %p56, %p57
    %p60 = scmp.ne.s32.totalorder %s45, %s59
    %p61 = scmp.eq.s32.totalorder %s14, 0
    %p62 = por %p60, %p61
    %s63 = ssub.s32 %s8, %s15
    %p64 = scmp.eq.s32.totalorder %s63, 0
    %s66 = sadd.s32 %s65, 1
    %s67 = scalar_select %p64, %s65, %s66
    %p70 = pneg %p64
    %p71 = scmp.eq.s32.totalorder %s8, 1
    %p72 = por %p70, %p71
    %p73 = scmp.ne.s32.totalorder %s65, %s68
    %p74 = scmp.eq.s32.totalorder %s8, 0
    %p75 = por %p73, %p74
    %p76 = scmp.ne.s32.totalorder %s65, %s68
    %p77 = scmp.eq.s32.totalorder %s13, 1
    %p78 = por %p76, %p77
    %p79 = scmp.ne.s32.totalorder %s68, %s69
    %p80 = scmp.eq.s32.totalorder %s13, 0
    %p81 = por %p79, %p80
    %p82 = scmp.ne.s32.totalorder %s68, %s69
    %p83 = scmp.eq.s32.totalorder %s14, 1
    %p84 = por %p82, %p83
    %p86 = scmp.ne.s32.totalorder %s69, %s85
    %p87 = scmp.eq.s32.totalorder %s14, 0
    %p88 = por %p86, %p87
    %p89 = scmp.le.s32.totalorder 1, %s8
    %p90 = scmp.lt.s32.totalorder %s8, 3
    %p91 = pnand %p89, %p90
    %p92 = pneg %p91
    // Predicated region
    $region9: #{densenet_forward.15} parent=5 // pred_check
      _
    $region10: #{densenet_forward.15} parent=5 // pred_check_branch
      %94 = sbr.rel (%p91) target = $region12
    $region11: #{densenet_forward.15} parent=5 // pred_region
      %s95 = ssub.s32 %s8, 1
      // Predicated region
      $region13: #{densenet_forward.15} parent=11 // pred_check
        %p96 = pneg %p55
      $region14: #{densenet_forward.15} parent=11 // pred_check_branch
        %98 = sbr.rel (%p96) target = $region16
      $region15: #{densenet_forward.15} parent=11 // pred_region
        _
      $region16: #{densenet_forward.15} parent=11 // pred_fallthru
        _
    $region12: #{densenet_forward.15} parent=5 // pred_fallthru
      _
    %p99 = scmp.lt.s32.totalorder %s8, 2
    // Predicated region
    $region17: #{densenet_forward.15} parent=5 // pred_check
      %p100 = pneg %p99
    $region18: #{densenet_forward.15} parent=5 // pred_check_branch
      %102 = sbr.rel (%p100) target = $region20
    $region19: #{densenet_forward.15} parent=5 // pred_region
      // Predicated region
      $region21: #{densenet_forward.15} parent=19 // pred_check
        %p103 = pneg %p28
      $region22: #{densenet_forward.15} parent=19 // pred_check_branch
        %105 = sbr.rel (%p103) target = $region24
      $region23: #{densenet_forward.15} parent=19 // pred_region
        %p106 = scmp.lt.s32.totalorder %s8, 1
        %s107 = scalar_select %p106, %s8, 1
        %s108 = smul.addr %s107, 8
        %s109 = smul.addr %s108, 4
        %s110 = scalar_lea.vmem %s0, %s109
      $region24: #{densenet_forward.15} parent=19 // pred_fallthru
        _
    $region20: #{densenet_forward.15} parent=5 // pred_fallthru
      _
    %p111 = scmp.le.s32.totalorder 1, %s8
    %p112 = scmp.lt.s32.totalorder %s8, 3
    %p113 = pnand %p111, %p112
    %p114 = pneg %p113
    // Predicated region
    $region25: #{densenet_forward.15} parent=5 // pred_check
      _
    $region26: #{densenet_forward.15} parent=5 // pred_check_branch
      %116 = sbr.rel (%p113) target = $region28
    $region27: #{densenet_forward.15} parent=5 // pred_region
      %s117 = ssub.s32 %s8, 1
      %p118 = scmp.lt.s32.totalorder %s13, 1
      %s119 = scalar_select %p118, %s13, 1
      %s120 = smul.addr %s119, 8
      %s121 = smul.addr %s120, 4
      %s122 = scalar_lea.vmem %s0, %s121
      %p123 = pneg %p34
      %p124 = pneg %p31
      %p125 = pneg %p55
      %p126 = pneg %p52
      %p127 = pneg %p81
      %p128 = pneg %p78
      %p129 = scmp.lt.s32.totalorder %s13, 1
      %s130 = scalar_select %p129, %s13, 1
      %s131 = smul.addr %s130, 8
      %s132 = smul.addr %s131, 4
      %s133 = scalar_lea.vmem %s2, %s132
      %p134 = scmp.lt.s32.totalorder %s13, 1
      %s135 = scalar_select %p134, %s13, 1
      %s136 = smul.addr %s135, 8
      %s137 = smul.addr %s136, 4
      %s138 = scalar_lea.vmem %s0, %s137
      %p139 = scmp.lt.s32.totalorder %s13, 1
      %s140 = scalar_select %p139, %s13, 1
      %s141 = smul.addr %s140, 8
      %s142 = smul.addr %s141, 4
      %s143 = scalar_lea.vmem %s2, %s142
      %vm147 = vcmask 130048
      %148 = vst.msk [vmem:[#allocation2] sm:$0xff] %vm147, 0
      %149 = vst.msk [vmem:[#allocation2 + $0x28] sm:$0xff] %vm147, 0
      %v150 = vld [vmem:[%s138] sm:$0xf]
      %v151 = vld [vmem:[%s138 + $0x4] sm:$0xf]
      %v152 = vld [vmem:[%s138 + $0x8] sm:$0xf]
      %v153 = vld [vmem:[%s138 + $0xc] sm:$0xf]
      %v154 = vld [vmem:[%s138 + $0x10] sm:$0xf]
      %v155 = vld [vmem:[%s138 + $0x14] sm:$0xf]
      %v156 = vld [vmem:[%s138 + $0x18] sm:$0xf]
      %v157 = vld [vmem:[%s138 + $0x1c] sm:$0xf]
      %v166 = vunpack.c.l.b16 %v150
      %v167 = vunpack.c.l.b16 %v151
      %v168 = vunpack.c.l.b16 %v152
      %v169 = vunpack.c.l.b16 %v153
      %v170 = vunpack.c.l.b16 %v154
      %v171 = vunpack.c.l.b16 %v155
      %v172 = vunpack.c.l.b16 %v156
      %v173 = vunpack.c.l.b16 %v157
      %v174 = vpack.c.b16 %v167, %v166
      %v175 = vpack.c.b16 %v169, %v168
      %v176 = vpack.c.b16 %v171, %v170
      %v177 = vpack.c.b16 %v173, %v172
      %182 = vst.msk [vmem:[#allocation2 + $0x8] sm:$0xff] %vm147, %v174
      %183 = vst.msk [vmem:[#allocation2 + $0x10] sm:$0xff] %vm147, %v175
      %184 = vst.msk [vmem:[#allocation2 + $0x18] sm:$0xff] %vm147, %v176
      %185 = vst.msk [vmem:[#allocation2 + $0x20] sm:$0xff] %vm147, %v177
      %v186 = vlaneseq
      %v187 = vshrl.u32 %v186, 7
      %v188 = vadd.s32 %v187, 8
      %v189 = vadd.s32 %v187, 16
      %v190 = vadd.s32 %v187, 24
      %v191 = vadd.s32 %v187, 32
      %v192 = vadd.s32 %v187, 40
      %v193 = vadd.s32 %v187, 48
      %v194 = vadd.s32 %v187, 56
      %vm195 = vcmp.lt.s32.totalorder %v187, 0
      %v196 = vsub.s32 0, %v187
      %v197 = vsel %vm195, %v196, %v187
      %v198 = vshrl.u32 %v197, 3
      %v199 = vand.u32 %v197, 7
      %v200 = vsub.s32 0, %v199
      %v201 = vsel %vm195, %v200, %v199
      %vm202 = vcmp.lt.s32.totalorder %v188, 0
      %v203 = vsub.s32 0, %v188
      %v204 = vsel %vm202, %v203, %v188
      %v205 = vshrl.u32 %v204, 3
      %v206 = vand.u32 %v204, 7
      %v207 = vsub.s32 0, %v206
      %v208 = vsel %vm202, %v207, %v206
      %vm209 = vcmp.lt.s32.totalorder %v189, 0
      %v210 = vsub.s32 0, %v189
      %v211 = vsel %vm209, %v210, %v189
      %v212 = vshrl.u32 %v211, 3
      %v213 = vand.u32 %v211, 7
      %v214 = vsub.s32 0, %v213
      %v215 = vsel %vm209, %v214, %v213
      %vm216 = vcmp.lt.s32.totalorder %v190, 0
      %v217 = vsub.s32 0, %v190
      %v218 = vsel %vm216, %v217, %v190
      %v219 = vshrl.u32 %v218, 3
      %v220 = vand.u32 %v218, 7
      %v221 = vsub.s32 0, %v220
      %v222 = vsel %vm216, %v221, %v220
      %vm223 = vcmp.lt.s32.totalorder %v191, 0
      %v224 = vsub.s32 0, %v191
      %v225 = vsel %vm223, %v224, %v191
      %v226 = vshrl.u32 %v225, 3
      %v227 = vand.u32 %v225, 7
      %v228 = vsub.s32 0, %v227
      %v229 = vsel %vm223, %v228, %v227
      %vm230 = vcmp.lt.s32.totalorder %v192, 0
      %v231 = vsub.s32 0, %v192
      %v232 = vsel %vm230, %v231, %v192
      %v233 = vshrl.u32 %v232, 3
      %v234 = vand.u32 %v232, 7
      %v235 = vsub.s32 0, %v234
      %v236 = vsel %vm230, %v235, %v234
      %vm237 = vcmp.lt.s32.totalorder %v193, 0
      %v238 = vsub.s32 0, %v193
      %v239 = vsel %vm237, %v238, %v193
      %v240 = vshrl.u32 %v239, 3
      %v241 = vand.u32 %v239, 7
      %v242 = vsub.s32 0, %v241
      %v243 = vsel %vm237, %v242, %v241
      %vm244 = vcmp.lt.s32.totalorder %v194, 0
      %v245 = vsub.s32 0, %v194
      %v246 = vsel %vm244, %v245, %v194
      %v247 = vshrl.u32 %v246, 3
      %v248 = vand.u32 %v246, 7
      %v249 = vsub.s32 0, %v248
      %v250 = vsel %vm244, %v249, %v248
      %vm251 = vcmp.ne.s32.totalorder %v201, 0
      %vm252 = vcmp.ne.s32.totalorder %v208, 0
      %vm253 = vcmp.ne.s32.totalorder %v215, 0
      %vm254 = vcmp.ne.s32.totalorder %v222, 0
      %vm255 = vcmp.ne.s32.totalorder %v229, 0
      %vm256 = vcmp.ne.s32.totalorder %v236, 0
      %vm257 = vcmp.ne.s32.totalorder %v243, 0
      %vm258 = vcmp.ne.s32.totalorder %v250, 0
      %vm259 = vcmp.lt.s32.totalorder %v201, 0
      %vm260 = vcmp.lt.s32.totalorder %v208, 0
      %vm261 = vcmp.lt.s32.totalorder %v215, 0
      %vm262 = vcmp.lt.s32.totalorder %v222, 0
      %vm263 = vcmp.lt.s32.totalorder %v229, 0
      %vm264 = vcmp.lt.s32.totalorder %v236, 0
      %vm265 = vcmp.lt.s32.totalorder %v243, 0
      %vm266 = vcmp.lt.s32.totalorder %v250, 0
      %vm267 = vmand %vm259, %vm251
      %vm268 = vmand %vm260, %vm252
      %vm269 = vmand %vm261, %vm253
      %vm270 = vmand %vm262, %vm254
      %vm271 = vmand %vm263, %vm255
      %vm272 = vmand %vm264, %vm256
      %vm273 = vmand %vm265, %vm257
      %vm274 = vmand %vm266, %vm258
      %v275 = vadd.s32 %v201, 8
      %v276 = vadd.s32 %v208, 8
      %v277 = vadd.s32 %v215, 8
      %v278 = vadd.s32 %v222, 8
      %v279 = vadd.s32 %v229, 8
      %v280 = vadd.s32 %v236, 8
      %v281 = vadd.s32 %v243, 8
      %v282 = vadd.s32 %v250, 8
      %v283 = vsel %vm267, %v275, %v201
      %v284 = vsel %vm268, %v276, %v208
      %v285 = vsel %vm269, %v277, %v215
      %v286 = vsel %vm270, %v278, %v222
      %v287 = vsel %vm271, %v279, %v229
      %v288 = vsel %vm272, %v280, %v236
      %v289 = vsel %vm273, %v281, %v243
      %v290 = vsel %vm274, %v282, %v250
      %vm291 = vcmp.ge.s32.totalorder %v283, 1
      %vm292 = vcmp.ge.s32.totalorder %v284, 1
      %vm293 = vcmp.ge.s32.totalorder %v285, 1
      %vm294 = vcmp.ge.s32.totalorder %v286, 1
      %vm295 = vcmp.ge.s32.totalorder %v287, 1
      %vm296 = vcmp.ge.s32.totalorder %v288, 1
      %vm297 = vcmp.ge.s32.totalorder %v289, 1
      %vm298 = vcmp.ge.s32.totalorder %v290, 1
      %vm299 = vcmp.le.s32.totalorder %v283, 6
      %vm300 = vcmp.le.s32.totalorder %v284, 6
      %vm301 = vcmp.le.s32.totalorder %v285, 6
      %vm302 = vcmp.le.s32.totalorder %v286, 6
      %vm303 = vcmp.le.s32.totalorder %v287, 6
      %vm304 = vcmp.le.s32.totalorder %v288, 6
      %vm305 = vcmp.le.s32.totalorder %v289, 6
      %vm306 = vcmp.le.s32.totalorder %v290, 6
      %v307 = vld [vmem:[#allocation2] sm:$0xf8]
      %v308 = vld [vmem:[#allocation2 + $0x8] sm:$0xff]
      %v309 = vld [vmem:[#allocation2 + $0x10] sm:$0xff]
      %v310 = vld [vmem:[#allocation2 + $0x18] sm:$0xff]
      %v311 = vld [vmem:[#allocation2 + $0x20] sm:$0xf]
      %v312 = vsel %vm291, 1, 0
      %v313 = vsel %vm292, 1, 0
      %v314 = vsel %vm293, 1, 0
      %v315 = vsel %vm294, 1, 0
      %v316 = vsel %vm295, 1, 0
      %v317 = vsel %vm296, 1, 0
      %v318 = vsel %vm297, 1, 0
      %v319 = vsel %vm298, 1, 0
      %vm320 = vcmp.eq.s32.totalorder %v312, 1
      %vm321 = vcmp.eq.s32.totalorder %v313, 1
      %vm322 = vcmp.eq.s32.totalorder %v314, 1
      %vm323 = vcmp.eq.s32.totalorder %v315, 1
      %vm324 = vcmp.eq.s32.totalorder %v316, 1
      %vm325 = vcmp.eq.s32.totalorder %v317, 1
      %vm326 = vcmp.eq.s32.totalorder %v318, 1
      %vm327 = vcmp.eq.s32.totalorder %v319, 1
      %vm328 = vmpackc.low %vm320, %vm320
      %vm329 = vmpackc.low %vm321, %vm321
      %vm330 = vmpackc.low %vm322, %vm322
      %vm331 = vmpackc.low %vm323, %vm323
      %vm332 = vmpackc.low %vm324, %vm324
      %vm333 = vmpackc.low %vm325, %vm325
      %vm334 = vmpackc.low %vm326, %vm326
      %vm335 = vmpackc.low %vm327, %vm327
      %v336 = vsel %vm328, 65537, 0
      %v337 = vsel %vm329, 65537, 0
      %v338 = vsel %vm330, 65537, 0
      %v339 = vsel %vm331, 65537, 0
      %v340 = vsel %vm332, 65537, 0
      %v341 = vsel %vm333, 65537, 0
      %v342 = vsel %vm334, 65537, 0
      %v343 = vsel %vm335, 65537, 0
      %v344 = vunpack.c.l.b16 %v336
      %v345 = vunpack.c.l.b16 %v337
      %v346 = vunpack.c.l.b16 %v338
      %v347 = vunpack.c.l.b16 %v339
      %v348 = vunpack.c.l.b16 %v340
      %v349 = vunpack.c.l.b16 %v341
      %v350 = vunpack.c.l.b16 %v342
      %v351 = vunpack.c.l.b16 %v343
      %v352 = vpack.c.b16 %v345, %v344
      %v353 = vpack.c.b16 %v347, %v346
      %v354 = vpack.c.b16 %v349, %v348
      %v355 = vpack.c.b16 %v351, %v350
      %vm356 = vsmask.f32 3328
      %v358 = vshrl.u32 %v352, 16
      %v360 = vrot.slane %v358, 4
      %v361 = vshll.u32 %v352, 16
      %v363 = vrot.slane %v361, 5
      %v364 = vor.u32 %v360, %v363
      %v366 = vshrl.u32 %v353, 16
      %v368 = vrot.slane %v366, 4
      %v369 = vshll.u32 %v353, 16
      %v371 = vrot.slane %v369, 5
      %v372 = vor.u32 %v368, %v371
      %v373 = vsel %vm356, %v364, %v372
      %v375 = vshrl.u32 %v354, 16
      %v377 = vrot.slane %v375, 4
      %v378 = vshll.u32 %v354, 16
      %v380 = vrot.slane %v378, 5
      %v381 = vor.u32 %v377, %v380
      %v382 = vsel %vm356, %v372, %v381
      %v384 = vshrl.u32 %v355, 16
      %v386 = vrot.slane %v384, 4
      %v387 = vshll.u32 %v355, 16
      %v389 = vrot.slane %v387, 5
      %v390 = vor.u32 %v386, %v389
      %v391 = vsel %vm356, %v381, %v390
      %vm392 = vcmp.ne.s16.totalorder %v364, 0
      %vm393 = vcmp.ne.s16.totalorder %v373, 0
      %vm394 = vcmp.ne.s16.totalorder %v382, 0
      %vm395 = vcmp.ne.s16.totalorder %v391, 0
      %vm396 = vcmp.ne.s16.totalorder %v390, 0
      %v397 = vsel %vm392, %v307, 0
      %v398 = vsel %vm393, %v308, 0
      %v399 = vsel %vm394, %v309, 0
      %v400 = vsel %vm395, %v310, 0
      %v401 = vsel %vm396, %v311, 0
      %v402 = vld [vmem:[#allocation2] sm:$0xf0]
      %v403 = vld [vmem:[#allocation2 + $0x20] sm:$0x1f]
      %v404 = vsel %vm299, 1, 0
      %v405 = vsel %vm300, 1, 0
      %v406 = vsel %vm301, 1, 0
      %v407 = vsel %vm302, 1, 0
      %v408 = vsel %vm303, 1, 0
      %v409 = vsel %vm304, 1, 0
      %v410 = vsel %vm305, 1, 0
      %v411 = vsel %vm306, 1, 0
      %vm412 = vcmp.eq.s32.totalorder %v404, 1
      %vm413 = vcmp.eq.s32.totalorder %v405, 1
      %vm414 = vcmp.eq.s32.totalorder %v406, 1
      %vm415 = vcmp.eq.s32.totalorder %v407, 1
      %vm416 = vcmp.eq.s32.totalorder %v408, 1
      %vm417 = vcmp.eq.s32.totalorder %v409, 1
      %vm418 = vcmp.eq.s32.totalorder %v410, 1
      %vm419 = vcmp.eq.s32.totalorder %v411, 1
      %vm420 = vmpackc.low %vm412, %vm412
      %vm421 = vmpackc.low %vm413, %vm413
      %vm422 = vmpackc.low %vm414, %vm414
      %vm423 = vmpackc.low %vm415, %vm415
      %vm424 = vmpackc.low %vm416, %vm416
      %vm425 = vmpackc.low %vm417, %vm417
      %vm426 = vmpackc.low %vm418, %vm418
      %vm427 = vmpackc.low %vm419, %vm419
      %v428 = vsel %vm420, 65537, 0
      %v429 = vsel %vm421, 65537, 0
      %v430 = vsel %vm422, 65537, 0
      %v431 = vsel %vm423, 65537, 0
      %v432 = vsel %vm424, 65537, 0
      %v433 = vsel %vm425, 65537, 0
      %v434 = vsel %vm426, 65537, 0
      %v435 = vsel %vm427, 65537, 0
      %v436 = vunpack.c.l.b16 %v428
      %v437 = vunpack.c.l.b16 %v429
      %v438 = vunpack.c.l.b16 %v430
      %v439 = vunpack.c.l.b16 %v431
      %v440 = vunpack.c.l.b16 %v432
      %v441 = vunpack.c.l.b16 %v433
      %v442 = vunpack.c.l.b16 %v434
      %v443 = vunpack.c.l.b16 %v435
      %v444 = vpack.c.b16 %v437, %v436
      %v445 = vpack.c.b16 %v439, %v438
      %v446 = vpack.c.b16 %v441, %v440
      %v447 = vpack.c.b16 %v443, %v442
      %vm448 = vsmask.f32 4352
      %v450 = vshrl.u32 %v444, 16
      %v452 = vrot.slane %v450, 3
      %v453 = vshll.u32 %v444, 16
      %v455 = vrot.slane %v453, 4
      %v456 = vor.u32 %v452, %v455
      %v458 = vshrl.u32 %v445, 16
      %v460 = vrot.slane %v458, 3
      %v461 = vshll.u32 %v445, 16
      %v463 = vrot.slane %v461, 4
      %v464 = vor.u32 %v460, %v463
      %v465 = vsel %vm448, %v456, %v464
      %v467 = vshrl.u32 %v446, 16
      %v469 = vrot.slane %v467, 3
      %v470 = vshll.u32 %v446, 16
      %v472 = vrot.slane %v470, 4
      %v473 = vor.u32 %v469, %v472
      %v474 = vsel %vm448, %v464, %v473
      %v476 = vshrl.u32 %v447, 16
      %v478 = vrot.slane %v476, 3
      %v479 = vshll.u32 %v447, 16
      %v481 = vrot.slane %v479, 4
      %v482 = vor.u32 %v478, %v481
      %v483 = vsel %vm448, %v473, %v482
      %vm484 = vcmp.ne.s16.totalorder %v456, 0
      %vm485 = vcmp.ne.s16.totalorder %v465, 0
      %vm486 = vcmp.ne.s16.totalorder %v474, 0
      %vm487 = vcmp.ne.s16.totalorder %v483, 0
      %vm488 = vcmp.ne.s16.totalorder %v482, 0
      %v489 = vsel %vm484, %v402, 0
      %v490 = vsel %vm485, %v308, 0
      %v491 = vsel %vm486, %v309, 0
      %v492 = vsel %vm487, %v310, 0
      %v493 = vsel %vm488, %v403, 0
      %v494 = vld [vmem:[#allocation2] sm:$0x80]
      %v495 = vld [vmem:[#allocation2 + $0x20] sm:$0xff]
      %vm496 = vsmask.f32 7424
      %v497 = vrot.slane %v361, 1
      %v498 = vor.u32 %v358, %v497
      %v499 = vrot.slane %v369, 1
      %v500 = vsel %vm496, %v498, %v499
      %v501 = vor.u32 %v366, %v499
      %v502 = vrot.slane %v378, 1
      %v503 = vsel %vm496, %v501, %v502
      %v504 = vor.u32 %v375, %v502
      %v505 = vrot.slane %v387, 1
      %v506 = vsel %vm496, %v504, %v505
      %v507 = vor.u32 %v384, %v505
      %vm508 = vcmp.ne.s16.totalorder %v497, 0
      %vm509 = vcmp.ne.s16.totalorder %v500, 0
      %vm510 = vcmp.ne.s16.totalorder %v503, 0
      %vm511 = vcmp.ne.s16.totalorder %v506, 0
      %vm512 = vcmp.ne.s16.totalorder %v507, 0
      %v513 = vsel %vm508, %v494, 0
      %v514 = vsel %vm509, %v308, 0
      %v515 = vsel %vm510, %v309, 0
      %v516 = vsel %vm511, %v310, 0
      %v517 = vsel %vm512, %v495, 0
      %v518 = vld [vmem:[#allocation2 + $0x28] sm:$0x1]
      %vm519 = vsmask.f32 256
      %v520 = vrot.slane %v450, 7
      %v521 = vor.u32 %v520, %v453
      %v522 = vrot.slane %v458, 7
      %v523 = vor.u32 %v522, %v461
      %v524 = vsel %vm519, %v520, %v523
      %v525 = vrot.slane %v467, 7
      %v526 = vor.u32 %v525, %v470
      %v527 = vsel %vm519, %v522, %v526
      %v528 = vrot.slane %v476, 7
      %v529 = vor.u32 %v528, %v479
      %v530 = vsel %vm519, %v525, %v529
      %vm531 = vcmp.ne.s16.totalorder %v521, 0
      %vm532 = vcmp.ne.s16.totalorder %v524, 0
      %vm533 = vcmp.ne.s16.totalorder %v527, 0
      %vm534 = vcmp.ne.s16.totalorder %v530, 0
      %vm535 = vcmp.ne.s16.totalorder %v528, 0
      %v536 = vsel %vm531, %v308, 0
      %v537 = vsel %vm532, %v309, 0
      %v538 = vsel %vm533, %v310, 0
      %v539 = vsel %vm534, %v495, 0
      %v540 = vsel %vm535, %v518, 0
      %v541 = vld [vmem:[#allocation2 + $0x8] sm:$0xf8]
      %v542 = vld [vmem:[#allocation2 + $0x28] sm:$0xf]
      %v543 = vsel %vm392, %v541, 0
      %v544 = vsel %vm393, %v309, 0
      %v545 = vsel %vm394, %v310, 0
      %v546 = vsel %vm395, %v495, 0
      %v547 = vsel %vm396, %v542, 0
      %v548 = vld [vmem:[#allocation2 + $0x8] sm:$0xf0]
      %v549 = vld [vmem:[#allocation2 + $0x28] sm:$0x1f]
      %v550 = vsel %vm484, %v548, 0
      %v551 = vsel %vm485, %v309, 0
      %v552 = vsel %vm486, %v310, 0
      %v553 = vsel %vm487, %v495, 0
      %v554 = vsel %vm488, %v549, 0
      %v556 = vshrl.u32 %v402, 16
      %v558 = vshll.u32 %v402, 16
      %v560 = vrot.slane %v558, 1
      %v561 = vor.u32 %v556, %v560
      %v563 = vshll.u32 %v308, 16
      %v565 = vrot.slane %v563, 1
      %v566 = vsel %vm496, %v561, %v565
      %v567 = vshrl.u32 %v308, 16
      %v569 = vor.u32 %v567, %v565
      %v571 = vshll.u32 %v309, 16
      %v573 = vrot.slane %v571, 1
      %v574 = vsel %vm496, %v569, %v573
      %v575 = vshrl.u32 %v309, 16
      %v577 = vor.u32 %v575, %v573
      %v579 = vshll.u32 %v310, 16
      %v581 = vrot.slane %v579, 1
      %v582 = vsel %vm496, %v577, %v581
      %v583 = vshrl.u32 %v310, 16
      %v585 = vor.u32 %v583, %v581
      %v587 = vshll.u32 %v311, 16
      %v589 = vrot.slane %v587, 1
      %v590 = vsel %vm496, %v585, %v589
      %v591 = vshrl.u32 %v311, 16
      %v593 = vor.u32 %v591, %v589
      %594 = vrot.lane.b32.xlu0 %v566, 16
      %v595 = vpop.permute.xlu0 %594
      %596 = vrot.lane.b32.xlu0 %v574, 16
      %v597 = vpop.permute.xlu0 %596
      %598 = vrot.lane.b32.xlu0 %v582, 16
      %v599 = vpop.permute.xlu0 %598
      %600 = vrot.lane.b32.xlu0 %v590, 16
      %v601 = vpop.permute.xlu0 %600
      %602 = vrot.lane.b32.xlu0 %v593, 16
      %v603 = vpop.permute.xlu0 %602
      %vm609 = vcmask 1046528
      %v610 = vrot.slane %v489, 1
      %v611 = vrot.slane %v490, 1
      %v612 = vsel %vm609, %v610, %v611
      %v613 = vrot.slane %v491, 1
      %v614 = vsel %vm609, %v611, %v613
      %v615 = vrot.slane %v492, 1
      %v616 = vsel %vm609, %v613, %v615
      %v617 = vrot.slane %v493, 1
      %v618 = vsel %vm609, %v615, %v617
      %619 = vrot.lane.b32.xlu0 %v612, 32
      %v620 = vpop.permute.xlu0 %619
      %621 = vrot.lane.b32.xlu0 %v614, 32
      %v622 = vpop.permute.xlu0 %621
      %623 = vrot.lane.b32.xlu0 %v616, 32
      %v624 = vpop.permute.xlu0 %623
      %625 = vrot.lane.b32.xlu0 %v618, 32
      %v626 = vpop.permute.xlu0 %625
      %627 = vrot.lane.b32.xlu0 %v617, 32
      %v628 = vpop.permute.xlu0 %627
      %vm634 = vcmask 1043456
      %v635 = vrot.slane %v513, 4
      %v636 = vrot.slane %v514, 4
      %v637 = vsel %vm634, %v635, %v636
      %v638 = vrot.slane %v515, 4
      %v639 = vsel %vm634, %v636, %v638
      %v640 = vrot.slane %v516, 4
      %v641 = vsel %vm634, %v638, %v640
      %v642 = vrot.slane %v517, 4
      %v643 = vsel %vm634, %v640, %v642
      %644 = vrot.lane.b32.xlu0 %v637, 48
      %v645 = vpop.permute.xlu0 %644
      %646 = vrot.lane.b32.xlu0 %v639, 48
      %v647 = vpop.permute.xlu0 %646
      %648 = vrot.lane.b32.xlu0 %v641, 48
      %v649 = vpop.permute.xlu0 %648
      %650 = vrot.lane.b32.xlu0 %v643, 48
      %v651 = vpop.permute.xlu0 %650
      %652 = vrot.lane.b32.xlu0 %v642, 48
      %v653 = vpop.permute.xlu0 %652
      %v654 = vrot.slane %v567, 4
      %v655 = vrot.slane %v563, 5
      %v656 = vor.u32 %v654, %v655
      %v657 = vrot.slane %v575, 4
      %v658 = vrot.slane %v571, 5
      %v659 = vor.u32 %v657, %v658
      %v660 = vsel %vm356, %v656, %v659
      %v661 = vrot.slane %v583, 4
      %v662 = vrot.slane %v579, 5
      %v663 = vor.u32 %v661, %v662
      %v664 = vsel %vm356, %v659, %v663
      %v666 = vshrl.u32 %v495, 16
      %v668 = vrot.slane %v666, 4
      %v669 = vshll.u32 %v495, 16
      %v671 = vrot.slane %v669, 5
      %v672 = vor.u32 %v668, %v671
      %v673 = vsel %vm356, %v663, %v672
      %674 = vrot.lane.b32.xlu0 %v656, 64
      %v675 = vpop.permute.xlu0 %674
      %676 = vrot.lane.b32.xlu0 %v660, 64
      %v677 = vpop.permute.xlu0 %676
      %678 = vrot.lane.b32.xlu0 %v664, 64
      %v679 = vpop.permute.xlu0 %678
      %680 = vrot.lane.b32.xlu0 %v673, 64
      %v681 = vpop.permute.xlu0 %680
      %682 = vrot.lane.b32.xlu0 %v672, 64
      %v683 = vpop.permute.xlu0 %682
      %vm689 = vcmask 1042432
      %v690 = vrot.slane %v536, 5
      %v691 = vrot.slane %v537, 5
      %v692 = vsel %vm689, %v690, %v691
      %v693 = vrot.slane %v538, 5
      %v694 = vsel %vm689, %v691, %v693
      %v695 = vrot.slane %v539, 5
      %v696 = vsel %vm689, %v693, %v695
      %v697 = vrot.slane %v540, 5
      %v698 = vsel %vm689, %v695, %v697
      %699 = vrot.lane.b32.xlu0 %v690, 80
      %v700 = vpop.permute.xlu0 %699
      %701 = vrot.lane.b32.xlu0 %v692, 80
      %v702 = vpop.permute.xlu0 %701
      %703 = vrot.lane.b32.xlu0 %v694, 80
      %v704 = vpop.permute.xlu0 %703
      %705 = vrot.lane.b32.xlu0 %v696, 80
      %v706 = vpop.permute.xlu0 %705
      %707 = vrot.lane.b32.xlu0 %v698, 80
      %v708 = vpop.permute.xlu0 %707
      %714 = vrot.lane.b32.xlu0 %v543, 96
      %v715 = vpop.permute.xlu0 %714
      %716 = vrot.lane.b32.xlu0 %v544, 96
      %v717 = vpop.permute.xlu0 %716
      %718 = vrot.lane.b32.xlu0 %v545, 96
      %v719 = vpop.permute.xlu0 %718
      %720 = vrot.lane.b32.xlu0 %v546, 96
      %v721 = vpop.permute.xlu0 %720
      %722 = vrot.lane.b32.xlu0 %v547, 96
      %v723 = vpop.permute.xlu0 %722
      %v725 = vshrl.u32 %v548, 16
      %v727 = vshll.u32 %v548, 16
      %v729 = vrot.slane %v727, 1
      %v730 = vor.u32 %v725, %v729
      %v731 = vsel %vm496, %v730, %v573
      %v732 = vrot.slane %v669, 1
      %v733 = vsel %vm496, %v585, %v732
      %v734 = vor.u32 %v666, %v732
      %v736 = vshll.u32 %v542, 16
      %v738 = vrot.slane %v736, 1
      %v739 = vsel %vm496, %v734, %v738
      %v740 = vshrl.u32 %v542, 16
      %v742 = vor.u32 %v740, %v738
      %743 = vrot.lane.b32.xlu0 %v731, 112
      %v744 = vpop.permute.xlu0 %743
      %745 = vrot.lane.b32.xlu0 %v582, 112
      %v746 = vpop.permute.xlu0 %745
      %747 = vrot.lane.b32.xlu0 %v733, 112
      %v748 = vpop.permute.xlu0 %747
      %749 = vrot.lane.b32.xlu0 %v739, 112
      %v750 = vpop.permute.xlu0 %749
      %751 = vrot.lane.b32.xlu0 %v742, 112
      %v752 = vpop.permute.xlu0 %751
      %v758 = vrot.slane %v550, 1
      %v759 = vrot.slane %v551, 1
      %v760 = vsel %vm609, %v758, %v759
      %v761 = vrot.slane %v552, 1
      %v762 = vsel %vm609, %v759, %v761
      %v763 = vrot.slane %v553, 1
      %v764 = vsel %vm609, %v761, %v763
      %v765 = vrot.slane %v554, 1
      %v766 = vsel %vm609, %v763, %v765
      %v769 = vsel %vm147, %v397, %v595
      %v772 = vsel %vm147, %v398, %v597
      %v775 = vsel %vm147, %v399, %v599
      %v778 = vsel %vm147, %v400, %v601
      %v781 = vsel %vm147, %v401, %v603
      %vm782 = vcmask 261120
      %v784 = vsel %vm782, %v769, %v620
      %v786 = vsel %vm782, %v772, %v622
      %v788 = vsel %vm782, %v775, %v624
      %v790 = vsel %vm782, %v778, %v626
      %v792 = vsel %vm782, %v781, %v628
      %vm793 = vcmask 392192
      %v795 = vsel %vm793, %v784, %v645
      %v797 = vsel %vm793, %v786, %v647
      %v799 = vsel %vm793, %v788, %v649
      %v801 = vsel %vm793, %v790, %v651
      %v803 = vsel %vm793, %v792, %v653
      %vm804 = vcmask 523264
      %v806 = vsel %vm804, %v795, %v675
      %v808 = vsel %vm804, %v797, %v677
      %v810 = vsel %vm804, %v799, %v679
      %v812 = vsel %vm804, %v801, %v681
      %v814 = vsel %vm804, %v803, %v683
      %vm815 = vcmask 654336
      %v817 = vsel %vm815, %v806, %v700
      %v819 = vsel %vm815, %v808, %v702
      %v821 = vsel %vm815, %v810, %v704
      %v823 = vsel %vm815, %v812, %v706
      %v825 = vsel %vm815, %v814, %v708
      %vm826 = vcmask 785408
      %v828 = vsel %vm826, %v817, %v715
      %v830 = vsel %vm826, %v819, %v717
      %v832 = vsel %vm826, %v821, %v719
      %v834 = vsel %vm826, %v823, %v721
      %v836 = vsel %vm826, %v825, %v723
      %vm837 = vcmask 916480
      %v839 = vsel %vm837, %v828, %v744
      %v841 = vsel %vm837, %v830, %v746
      %v843 = vsel %vm837, %v832, %v748
      %v845 = vsel %vm837, %v834, %v750
      %v847 = vsel %vm837, %v836, %v752
      %v848 = vld [vmem:[%s1] sm:$0xf]
      %v849 = vld [vmem:[%s1 + $0x4] sm:$0xf]
      %v850 = vld [vmem:[%s1 + $0x8] sm:$0xf]
      %v851 = vld [vmem:[%s1 + $0xc] sm:$0xf]
      %v852 = vld [vmem:[%s1 + $0x10] sm:$0xf]
      %v853 = vld [vmem:[%s1 + $0x14] sm:$0xf]
      %v854 = vld [vmem:[%s1 + $0x18] sm:$0xf]
      %v855 = vld [vmem:[%s1 + $0x1c] sm:$0xf]
      %v856 = vld [vmem:[%s1 + $0x20] sm:$0xf]
      %v857 = vld [vmem:[%s1 + $0x24] sm:$0xf]
      %v858 = vld [vmem:[%s1 + $0x28] sm:$0xf]
      %v859 = vld [vmem:[%s1 + $0x2c] sm:$0xf]
      %v860 = vld [vmem:[%s1 + $0x30] sm:$0xf]
      %v861 = vld [vmem:[%s1 + $0x34] sm:$0xf]
      %v862 = vld [vmem:[%s1 + $0x38] sm:$0xf]
      %v863 = vld [vmem:[%s1 + $0x3c] sm:$0xf]
      %v864 = vld [vmem:[%s1 + $0x40] sm:$0xf]
      %v865 = vld [vmem:[%s1 + $0x44] sm:$0xf]
      %v866 = vshrl.u32 %v839, 16
      %v868 = vrot.slane %v866, 3
      %v869 = vshll.u32 %v839, 16
      %v871 = vrot.slane %v869, 4
      %v872 = vor.u32 %v868, %v871
      %v873 = vshrl.u32 %v841, 16
      %v875 = vrot.slane %v873, 3
      %v876 = vshll.u32 %v841, 16
      %v878 = vrot.slane %v876, 4
      %v879 = vor.u32 %v875, %v878
      %v880 = vsel %vm448, %v872, %v879
      %v882 = vshrl.u32 %v760, 16
      %v884 = vrot.slane %v882, 3
      %v885 = vshll.u32 %v760, 16
      %v887 = vrot.slane %v885, 4
      %v888 = vor.u32 %v884, %v887
      %v890 = vshrl.u32 %v762, 16
      %v892 = vrot.slane %v890, 3
      %v893 = vshll.u32 %v762, 16
      %v895 = vrot.slane %v893, 4
      %v896 = vor.u32 %v892, %v895
      %v897 = vsel %vm448, %v888, %v896
      %v898 = vshrl.u32 %v843, 16
      %v900 = vrot.slane %v898, 3
      %v901 = vshll.u32 %v843, 16
      %v903 = vrot.slane %v901, 4
      %v904 = vor.u32 %v900, %v903
      %v905 = vsel %vm448, %v879, %v904
      %v907 = vshrl.u32 %v764, 16
      %v909 = vrot.slane %v907, 3
      %v910 = vshll.u32 %v764, 16
      %v912 = vrot.slane %v910, 4
      %v913 = vor.u32 %v909, %v912
      %v914 = vsel %vm448, %v896, %v913
      %v915 = vshrl.u32 %v845, 16
      %v917 = vrot.slane %v915, 3
      %v918 = vshll.u32 %v845, 16
      %v920 = vrot.slane %v918, 4
      %v921 = vor.u32 %v917, %v920
      %v922 = vsel %vm448, %v904, %v921
      %v924 = vshrl.u32 %v766, 16
      %v926 = vrot.slane %v924, 3
      %v927 = vshll.u32 %v766, 16
      %v929 = vrot.slane %v927, 4
      %v930 = vor.u32 %v926, %v929
      %v931 = vsel %vm448, %v913, %v930
      %v932 = vshrl.u32 %v847, 16
      %v934 = vrot.slane %v932, 3
      %v935 = vshll.u32 %v847, 16
      %v937 = vrot.slane %v935, 4
      %v938 = vor.u32 %v934, %v937
      %v939 = vsel %vm448, %v921, %v938
      %v941 = vshrl.u32 %v765, 16
      %v943 = vrot.slane %v941, 3
      %v944 = vshll.u32 %v765, 16
      %v946 = vrot.slane %v944, 4
      %v947 = vor.u32 %v943, %v946
      %v948 = vsel %vm448, %v930, %v947
      %v971 = vunpack.c.l.b16 %v848
      %v972 = vunpack.c.l.b16 %v849
      %v973 = vunpack.c.l.b16 %v850
      %v974 = vunpack.c.l.b16 %v851
      %v975 = vunpack.c.l.b16 %v852
      %v976 = vunpack.c.l.b16 %v853
      %v977 = vunpack.c.l.b16 %v854
      %v978 = vunpack.c.l.b16 %v855
      %v979 = vunpack.c.l.b16 %v856
      %v980 = vunpack.c.l.b16 %v857
      %v981 = vunpack.c.l.b16 %v858
      %v982 = vunpack.c.l.b16 %v859
      %v983 = vunpack.c.l.b16 %v860
      %v984 = vunpack.c.l.b16 %v861
      %v985 = vunpack.c.l.b16 %v862
      %v986 = vunpack.c.l.b16 %v863
      %v987 = vunpack.c.l.b16 %v864
      %v988 = vunpack.c.l.b16 %v865
      %v989 = vpack.c.b16 %v972, %v971
      %v990 = vpack.c.b16 %v974, %v973
      %v991 = vpack.c.b16 %v976, %v975
      %v992 = vpack.c.b16 %v978, %v977
      %v993 = vpack.c.b16 %v980, %v979
      %v994 = vpack.c.b16 %v982, %v981
      %v995 = vpack.c.b16 %v984, %v983
      %v996 = vpack.c.b16 %v986, %v985
      %v997 = vpack.c.b16 %v988, %v987
      %v1008 = vsel %vm147, %v897, 0
      %v1011 = vsel %vm147, %v914, 0
      %v1014 = vsel %vm147, %v931, 0
      %v1017 = vsel %vm147, %v948, 0
      %1019 = vmatprep.subr.bf16.mxu0 0
      %1020 = vmatpush1.bf16.msra.mxu0 %v989
      %1021 = vmatprep.subr.bf16.mxu0 0
      %1022 = vmatpush1.bf16.msra.mxu0 %v990
      %1023 = vmatprep.subr.bf16.mxu0 0
      %1024 = vmatpush1.bf16.msra.mxu0 %v991
      %1025 = vmatprep.subr.bf16.mxu0 0
      %1026 = vmatpush1.bf16.msra.mxu0 %v992
      %1027 = vmatprep.subr.bf16.mxu0 0
      %1028 = vmatpush1.bf16.msra.mxu0 %v993
      %1029 = vmatprep.subr.bf16.mxu0 0
      %1030 = vmatpush1.bf16.msra.mxu0 %v994
      %1031 = vmatprep.subr.bf16.mxu0 0
      %1032 = vmatpush1.bf16.msra.mxu0 %v995
      %1033 = vmatprep.subr.bf16.mxu0 0
      %1034 = vmatpush1.bf16.msra.mxu0 %v996
      %1035 = vmatprep.subr.bf16.mxu0 0
      %1036 = vmatpush1.bf16.msra.mxu0 %v997
      %1037 = vmatprep.subr.bf16.mxu0 0
      %1038 = vmatpush1.bf16.msra.mxu0 0
      %1039 = vmatprep.subr.bf16.mxu0 0
      %1040 = vmatpush1.bf16.msra.mxu0 0
      %1041 = vmatprep.subr.bf16.mxu0 0
      %1042 = vmatpush1.bf16.msra.mxu0 0
      %1043 = vmatprep.subr.bf16.mxu0 0
      %1044 = vmatpush1.bf16.msra.mxu0 0
      %1045 = vmatprep.subr.bf16.mxu0 0
      %1046 = vmatpush1.bf16.msra.mxu0 0
      %1047 = vmatprep.subr.bf16.mxu0 0
      %1048 = vmatpush1.bf16.msra.mxu0 0
      %1049 = vmatprep.subr.bf16.mxu0 0
      %1050 = vmatpush1.bf16.msra.mxu0 0
      %1051 = vmatprep.mubr.bf16.mxu0 %v1008
      %1052 = vmatmul.mubr.bf16.gmra.mrb[0].mxu0 %v880
      %v1053 = vpop.f32.mrb[0].mxu0
      %v1054 = vadd.f32 0.0, %v1053
      %v1055 = vpop.f32.mrb[0].mxu0
      %v1056 = vpop.f32.mrb[0].mxu0
      %v1057 = vadd.f32 0.0, %v1056
      %v1058 = vpop.f32.mrb[0].mxu0
      %1059 = vmatprep.mubr.bf16.mxu0 %v1011
      %1060 = vmatmul.mubr.bf16.gmra.mrb[0].mxu0 %v905
      %v1061 = vpop.f32.mrb[0].mxu0
      %v1062 = vadd.f32 0.0, %v1061
      %v1063 = vpop.f32.mrb[0].mxu0
      %v1064 = vpop.f32.mrb[0].mxu0
      %v1065 = vadd.f32 0.0, %v1064
      %v1066 = vpop.f32.mrb[0].mxu0
      %1067 = vmatprep.mubr.bf16.mxu0 %v1014
      %1068 = vmatmul.mubr.bf16.gmra.mrb[0].mxu0 %v922
      %v1069 = vpop.f32.mrb[0].mxu0
      %v1070 = vadd.f32 0.0, %v1069
      %v1071 = vpop.f32.mrb[0].mxu0
      %v1072 = vpop.f32.mrb[0].mxu0
      %v1073 = vadd.f32 0.0, %v1072
      %v1074 = vpop.f32.mrb[0].mxu0
      %1075 = vmatprep.mubr.bf16.mxu0 %v1017
      %1076 = vmatmul.mubr.bf16.gmra.mrb[0].mxu0 %v939
      %v1077 = vpop.f32.mrb[0].mxu0
      %v1078 = vadd.f32 0.0, %v1077
      %v1079 = vpop.f32.mrb[0].mxu0
      %v1080 = vpop.f32.mrb[0].mxu0
      %v1081 = vadd.f32 0.0, %v1080
      %v1082 = vpop.f32.mrb[0].mxu0
      %1083 = vdwg.mxu0
      %v1084 = vpack.c.bf16 %v1057, %v1054
      %v1085 = vpack.c.bf16 %v1065, %v1062
      %v1086 = vpack.c.bf16 %v1073, %v1070
      %v1087 = vpack.c.bf16 %v1081, %v1078
      %v1092 = vunpack.c.l.b16 %v1084
      %v1093 = vunpack.c.h.b16 %v1084
      %v1094 = vunpack.c.l.b16 %v1085
      %v1095 = vunpack.c.h.b16 %v1085
      %v1096 = vunpack.c.l.b16 %v1086
      %v1097 = vunpack.c.h.b16 %v1086
      %v1098 = vunpack.c.l.b16 %v1087
      %v1099 = vunpack.c.h.b16 %v1087
      %v1100 = vpack.c.b16 %v1092, %v1092
      %v1101 = vpack.c.b16 %v1093, %v1093
      %v1102 = vpack.c.b16 %v1094, %v1094
      %v1103 = vpack.c.b16 %v1095, %v1095
      %v1104 = vpack.c.b16 %v1096, %v1096
      %v1105 = vpack.c.b16 %v1097, %v1097
      %v1106 = vpack.c.b16 %v1098, %v1098
      %v1107 = vpack.c.b16 %v1099, %v1099
      %vm1116 = vcmask 60416
      %1117 = vst.msk [vmem:[%s143] sm:$0xf] %vm1116, %v1100
      %1118 = vst.msk [vmem:[%s143 + $0x4] sm:$0xf] %vm1116, %v1101
      %1119 = vst.msk [vmem:[%s143 + $0x8] sm:$0xf] %vm1116, %v1102
      %1120 = vst.msk [vmem:[%s143 + $0xc] sm:$0xf] %vm1116, %v1103
      %1121 = vst.msk [vmem:[%s143 + $0x10] sm:$0xf] %vm1116, %v1104
      %1122 = vst.msk [vmem:[%s143 + $0x14] sm:$0xf] %vm1116, %v1105
      %1123 = vst.msk [vmem:[%s143 + $0x18] sm:$0xf] %vm1116, %v1106
      %1124 = vst.msk [vmem:[%s143 + $0x1c] sm:$0xf] %vm1116, %v1107
      %p1125 = scmp.lt.s32.totalorder %s13, 1
      %s1126 = scalar_select %p1125, %s13, 1
      %s1127 = smul.addr %s1126, 8
      %s1128 = smul.addr %s1127, 4
      %s1129 = scalar_lea.vmem %s2, %s1128
      // Predicated region
      $region29: #{densenet_forward.15} parent=27 // pred_check
        %p1130 = pneg %p78
      $region30: #{densenet_forward.15} parent=27 // pred_check_branch
        %1132 = sbr.rel (%p1130) target = $region32
      $region31: #{densenet_forward.15} parent=27 // pred_region
        _
      $region32: #{densenet_forward.15} parent=27 // pred_fallthru
        _
    $region28: #{densenet_forward.15} parent=5 // pred_fallthru
      _
    %p1133 = scmp.le.s32.totalorder 2, %s8
    // Predicated region
    $region33: #{densenet_forward.15} parent=5 // pred_check
      %p1134 = pneg %p1133
    $region34: #{densenet_forward.15} parent=5 // pred_check_branch
      %1136 = sbr.rel (%p1134) target = $region36
    $region35: #{densenet_forward.15} parent=5 // pred_region
      %s1137 = ssub.s32 %s8, 2
      // Predicated region
      $region37: #{densenet_forward.15} parent=35 // pred_check
        %p1138 = pneg %p84
      $region38: #{densenet_forward.15} parent=35 // pred_check_branch
        %1140 = sbr.rel (%p1138) target = $region40
      $region39: #{densenet_forward.15} parent=35 // pred_region
        %p1141 = scmp.lt.s32.totalorder %s14, 1
        %s1142 = scalar_select %p1141, %s14, 1
        %s1143 = smul.addr %s1142, 8
        %s1144 = smul.addr %s1143, 4
        %s1145 = scalar_lea.vmem %s2, %s1144
      $region40: #{densenet_forward.15} parent=35 // pred_fallthru
        _
    $region36: #{densenet_forward.15} parent=5 // pred_fallthru
      _
  $region6: #{densenet_forward.15} parent=0 // loop_footer
    %s12 = sadd.s32 1, %s8
  $region7: #{densenet_forward.15} parent=0 // loop_footer_branch
    %7 = sbr.rel target = $region3
  $region8: #{densenet_forward.15} parent=0 // loop_exit
    _

// kernel: densenet_forward.16
$region0: #{densenet_forward.16}
  #allocation0 [shape = 'u32[]', space=smem, size = 0x4, offset = 0x4, fixed_abs, tag = 'smem constant byte address 0x4 - core index']
  #allocation1 [shape = 'u32[144,128]{1,0:T(1,128)}', space=vmem, size = 0x12000, scoped, tag = 'internal scratch']
  %s0 = inlined_call_operand.vmem [shape: bf16[128,24], index: 0, kind: input, shape index: {}]
  %s1 = inlined_call_operand.vmem [shape: f32[1,24], index: 1, kind: input, shape index: {}]
  %s2 = inlined_call_operand.vmem [shape: f32[1,24], index: 2, kind: input, shape index: {}]
  %s3 = inlined_call_operand.vmem [shape: bf16[24,16], index: 3, kind: input, shape index: {}]
  %s4 = inlined_call_operand.vmem [shape: f32[1,16], index: 4, kind: input, shape index: {}]
  %s5 = inlined_call_operand.vmem [shape: f32[1,16], index: 5, kind: input, shape index: {}]
  %s6 = inlined_call_operand.vmem [shape: bf16[128,16], index: 6, kind: output, shape index: {}]
  %s7 = sld [smem:[#allocation0]]
  $region57: #{densenet_forward.16} parent=0
    _
  %s9 = ssub.s32 1, %s7
  %s10 = scalar_select 0, %s9, %s7
  loop: start=0, step=1, limit=4
  $region2: #{densenet_forward.16} parent=0 // loop_pre_header
    _
  $region3: #{densenet_forward.16} parent=0 // loop_header
    %s12 = sphi 0, %s16
    %p13 = scmp.ge.s32.totalorder %s12, 4
    %s22 = sphi 0, %s24
    %s25 = sphi 0, %s22
    %s26 = sphi 0, %s25
    %s42 = sphi 0, %s26
    %s46 = sphi 0, %s46
    %s48 = sphi 0, %s46
    %s49 = sphi 0, %s48
    %s63 = sphi 0, %s49
    %s67 = sphi 0, %s67
    %s69 = sphi 0, %s67
    %s70 = sphi 0, %s69
    %s84 = sphi 0, %s70
    %s88 = sphi 0, %s88
    %s90 = sphi 0, %s88
    %s91 = sphi 0, %s90
    %s105 = sphi 0, %s91
    %s109 = sphi 0, %s109
    %s111 = sphi 0, %s109
    %s112 = sphi 0, %s111
    %s126 = sphi 0, %s112
    %s130 = sphi 0, %s130
    %s132 = sphi 0, %s130
    %s133 = sphi 0, %s132
    %s147 = sphi 0, %s133
    %s153 = sphi 0, %s155
    %s156 = sphi 0, %s153
    %s157 = sphi 0, %s156
    %s173 = sphi 0, %s157
  $region4: #{densenet_forward.16} parent=0 // loop_header_branch
    %15 = sbr.rel (%p13) target = $region8
  $region5: #{densenet_forward.16} parent=0 // loop_body
    %s17 = ssub.s32 %s12, 1
    %s18 = ssub.s32 %s12, 2
    %s19 = sadd.s32 %s12, 1
    %s20 = ssub.s32 %s12, %s19
    %p21 = scmp.eq.s32.totalorder %s20, 0
    %s23 = sadd.s32 %s22, 1
    %s24 = scalar_select %p21, %s22, %s23
    %p27 = pneg %p21
    %p28 = scmp.eq.s32.totalorder %s12, 1
    %p29 = por %p27, %p28
    %p30 = scmp.ne.s32.totalorder %s22, %s25
    %p31 = scmp.eq.s32.totalorder %s12, 0
    %p32 = por %p30, %p31
    %p33 = scmp.ne.s32.totalorder %s22, %s25
    %p34 = scmp.eq.s32.totalorder %s17, 1
    %p35 = por %p33, %p34
    %p36 = scmp.ne.s32.totalorder %s25, %s26
    %p37 = scmp.eq.s32.totalorder %s17, 0
    %p38 = por %p36, %p37
    %p39 = scmp.ne.s32.totalorder %s25, %s26
    %p40 = scmp.eq.s32.totalorder %s18, 1
    %p41 = por %p39, %p40
    %p43 = scmp.ne.s32.totalorder %s26, %s42
    %p44 = scmp.eq.s32.totalorder %s18, 0
    %p45 = por %p43, %p44
    %s47 = sadd.s32 %s46, 1
    %p50 = scmp.eq.s32.totalorder %s12, 1
    %p51 = scmp.ne.s32.totalorder %s46, %s48
    %p52 = scmp.eq.s32.totalorder %s12, 0
    %p53 = por %p51, %p52
    %p54 = scmp.ne.s32.totalorder %s46, %s48
    %p55 = scmp.eq.s32.totalorder %s17, 1
    %p56 = por %p54, %p55
    %p57 = scmp.ne.s32.totalorder %s48, %s49
    %p58 = scmp.eq.s32.totalorder %s17, 0
    %p59 = por %p57, %p58
    %p60 = scmp.ne.s32.totalorder %s48, %s49
    %p61 = scmp.eq.s32.totalorder %s18, 1
    %p62 = por %p60, %p61
    %p64 = scmp.ne.s32.totalorder %s49, %s63
    %p65 = scmp.eq.s32.totalorder %s18, 0
    %p66 = por %p64, %p65
    %s68 = sadd.s32 %s67, 1
    %p71 = scmp.eq.s32.totalorder %s12, 1
    %p72 = scmp.ne.s32.totalorder %s67, %s69
    %p73 = scmp.eq.s32.totalorder %s12, 0
    %p74 = por %p72, %p73
    %p75 = scmp.ne.s32.totalorder %s67, %s69
    %p76 = scmp.eq.s32.totalorder %s17, 1
    %p77 = por %p75, %p76
    %p78 = scmp.ne.s32.totalorder %s69, %s70
    %p79 = scmp.eq.s32.totalorder %s17, 0
    %p80 = por %p78, %p79
    %p81 = scmp.ne.s32.totalorder %s69, %s70
    %p82 = scmp.eq.s32.totalorder %s18, 1
    %p83 = por %p81, %p82
    %p85 = scmp.ne.s32.totalorder %s70, %s84
    %p86 = scmp.eq.s32.totalorder %s18, 0
    %p87 = por %p85, %p86
    %s89 = sadd.s32 %s88, 1
    %p92 = scmp.eq.s32.totalorder %s12, 1
    %p93 = scmp.ne.s32.totalorder %s88, %s90
    %p94 = scmp.eq.s32.totalorder %s12, 0
    %p95 = por %p93, %p94
    %p96 = scmp.ne.s32.totalorder %s88, %s90
    %p97 = scmp.eq.s32.totalorder %s17, 1
    %p98 = por %p96, %p97
    %p99 = scmp.ne.s32.totalorder %s90, %s91
    %p100 = scmp.eq.s32.totalorder %s17, 0
    %p101 = por %p99, %p100
    %p102 = scmp.ne.s32.totalorder %s90, %s91
    %p103 = scmp.eq.s32.totalorder %s18, 1
    %p104 = por %p102, %p103
    %p106 = scmp.ne.s32.totalorder %s91, %s105
    %p107 = scmp.eq.s32.totalorder %s18, 0
    %p108 = por %p106, %p107
    %s110 = sadd.s32 %s109, 1
    %p113 = scmp.eq.s32.totalorder %s12, 1
    %p114 = scmp.ne.s32.totalorder %s109, %s111
    %p115 = scmp.eq.s32.totalorder %s12, 0
    %p116 = por %p114, %p115
    %p117 = scmp.ne.s32.totalorder %s109, %s111
    %p118 = scmp.eq.s32.totalorder %s17, 1
    %p119 = por %p117, %p118
    %p120 = scmp.ne.s32.totalorder %s111, %s112
    %p121 = scmp.eq.s32.totalorder %s17, 0
    %p122 = por %p120, %p121
    %p123 = scmp.ne.s32.totalorder %s111, %s112
    %p124 = scmp.eq.s32.totalorder %s18, 1
    %p125 = por %p123, %p124
    %p127 = scmp.ne.s32.totalorder %s112, %s126
    %p128 = scmp.eq.s32.totalorder %s18, 0
    %p129 = por %p127, %p128
    %s131 = sadd.s32 %s130, 1
    %p134 = scmp.eq.s32.totalorder %s12, 1
    %p135 = scmp.ne.s32.totalorder %s130, %s132
    %p136 = scmp.eq.s32.totalorder %s12, 0
    %p137 = por %p135, %p136
    %p138 = scmp.ne.s32.totalorder %s130, %s132
    %p139 = scmp.eq.s32.totalorder %s17, 1
    %p140 = por %p138, %p139
    %p141 = scmp.ne.s32.totalorder %s132, %s133
    %p142 = scmp.eq.s32.totalorder %s17, 0
    %p143 = por %p141, %p142
    %p144 = scmp.ne.s32.totalorder %s132, %s133
    %p145 = scmp.eq.s32.totalorder %s18, 1
    %p146 = por %p144, %p145
    %p148 = scmp.ne.s32.totalorder %s133, %s147
    %p149 = scmp.eq.s32.totalorder %s18, 0
    %p150 = por %p148, %p149
    %s151 = ssub.s32 %s12, %s19
    %p152 = scmp.eq.s32.totalorder %s151, 0
    %s154 = sadd.s32 %s153, 1
    %s155 = scalar_select %p152, %s153, %s154
    %p158 = pneg %p152
    %p159 = scmp.eq.s32.totalorder %s12, 1
    %p160 = por %p158, %p159
    %p161 = scmp.ne.s32.totalorder %s153, %s156
    %p162 = scmp.eq.s32.totalorder %s12, 0
    %p163 = por %p161, %p162
    %p164 = scmp.ne.s32.totalorder %s153, %s156
    %p165 = scmp.eq.s32.totalorder %s17, 1
    %p166 = por %p164, %p165
    %p167 = scmp.ne.s32.totalorder %s156, %s157
    %p168 = scmp.eq.s32.totalorder %s17, 0
    %p169 = por %p167, %p168
    %p170 = scmp.ne.s32.totalorder %s156, %s157
    %p171 = scmp.eq.s32.totalorder %s18, 1
    %p172 = por %p170, %p171
    %p174 = scmp.ne.s32.totalorder %s157, %s173
    %p175 = scmp.eq.s32.totalorder %s18, 0
    %p176 = por %p174, %p175
    %p177 = scmp.le.s32.totalorder 1, %s12
    %p178 = scmp.lt.s32.totalorder %s12, 3
    %p179 = pnand %p177, %p178
    %p180 = pneg %p179
    // Predicated region
    $region9: #{densenet_forward.16} parent=5 // pred_check
      _
    $region10: #{densenet_forward.16} parent=5 // pred_check_branch
      %182 = sbr.rel (%p179) target = $region12
    $region11: #{densenet_forward.16} parent=5 // pred_region
      %s183 = ssub.s32 %s12, 1
      // Predicated region
      $region13: #{densenet_forward.16} parent=11 // pred_check
        %p184 = pneg %p59
      $region14: #{densenet_forward.16} parent=11 // pred_check_branch
        %186 = sbr.rel (%p184) target = $region16
      $region15: #{densenet_forward.16} parent=11 // pred_region
        _
      $region16: #{densenet_forward.16} parent=11 // pred_fallthru
        _
      // Predicated region
      $region17: #{densenet_forward.16} parent=11 // pred_check
        %p187 = pneg %p80
      $region18: #{densenet_forward.16} parent=11 // pred_check_branch
        %189 = sbr.rel (%p187) target = $region20
      $region19: #{densenet_forward.16} parent=11 // pred_region
        _
      $region20: #{densenet_forward.16} parent=11 // pred_fallthru
        _
      // Predicated region
      $region21: #{densenet_forward.16} parent=11 // pred_check
        %p190 = pneg %p101
      $region22: #{densenet_forward.16} parent=11 // pred_check_branch
        %192 = sbr.rel (%p190) target = $region24
      $region23: #{densenet_forward.16} parent=11 // pred_region
        _
      $region24: #{densenet_forward.16} parent=11 // pred_fallthru
        _
      // Predicated region
      $region25: #{densenet_forward.16} parent=11 // pred_check
        %p193 = pneg %p122
      $region26: #{densenet_forward.16} parent=11 // pred_check_branch
        %195 = sbr.rel (%p193) target = $region28
      $region27: #{densenet_forward.16} parent=11 // pred_region
        _
      $region28: #{densenet_forward.16} parent=11 // pred_fallthru
        _
      // Predicated region
      $region29: #{densenet_forward.16} parent=11 // pred_check
        %p196 = pneg %p143
      $region30: #{densenet_forward.16} parent=11 // pred_check_branch
        %198 = sbr.rel (%p196) target = $region32
      $region31: #{densenet_forward.16} parent=11 // pred_region
        _
      $region32: #{densenet_forward.16} parent=11 // pred_fallthru
        _
    $region12: #{densenet_forward.16} parent=5 // pred_fallthru
      _
    %p199 = scmp.lt.s32.totalorder %s12, 2
    // Predicated region
    $region33: #{densenet_forward.16} parent=5 // pred_check
      %p200 = pneg %p199
    $region34: #{densenet_forward.16} parent=5 // pred_check_branch
      %202 = sbr.rel (%p200) target = $region36
    $region35: #{densenet_forward.16} parent=5 // pred_region
      // Predicated region
      $region37: #{densenet_forward.16} parent=35 // pred_check
        %p203 = pneg %p32
      $region38: #{densenet_forward.16} parent=35 // pred_check_branch
        %205 = sbr.rel (%p203) target = $region40
      $region39: #{densenet_forward.16} parent=35 // pred_region
        %s206 = smul.u32 8, %s12
        %p207 = scmp.lt.s32.totalorder %s206, 15
        %s208 = scalar_select %p207, %s206, 15
        %s209 = smul.addr %s208, 4
        %s210 = scalar_lea.vmem %s0, %s209
        %s211 = smul.u32 8, %s12
      $region40: #{densenet_forward.16} parent=35 // pred_fallthru
        _
    $region36: #{densenet_forward.16} parent=5 // pred_fallthru
      _
    %p212 = scmp.le.s32.totalorder 1, %s12
    %p213 = scmp.lt.s32.totalorder %s12, 3
    %p214 = pnand %p212, %p213
    %p215 = pneg %p214
    // Predicated region
    $region41: #{densenet_forward.16} parent=5 // pred_check
      _
    $region42: #{densenet_forward.16} parent=5 // pred_check_branch
      %217 = sbr.rel (%p214) target = $region44
    $region43: #{densenet_forward.16} parent=5 // pred_region
      %s218 = ssub.s32 %s12, 1
      %s219 = smul.u32 8, %s17
      %p220 = scmp.lt.s32.totalorder %s219, 15
      %s221 = scalar_select %p220, %s219, 15
      %s222 = smul.addr %s221, 4
      %s223 = scalar_lea.vmem %s0, %s222
      %p224 = pneg %p38
      %p225 = pneg %p35
      %p226 = pneg %p59
      %p227 = pneg %p56
      %p228 = pneg %p80
      %p229 = pneg %p77
      %p230 = pneg %p101
      %p231 = pneg %p98
      %p232 = pneg %p122
      %p233 = pneg %p119
      %p234 = pneg %p143
      %p235 = pneg %p140
      %p236 = pneg %p169
      %p237 = pneg %p166
      %s238 = smul.u32 8, %s17
      %p239 = scmp.lt.s32.totalorder %s238, 15
      %s240 = scalar_select %p239, %s238, 15
      %s241 = smul.addr %s240, 4
      %s242 = scalar_lea.vmem %s6, %s241
      %s243 = smul.u32 8, %s17
      %p244 = scmp.lt.s32.totalorder %s243, 15
      %s245 = scalar_select %p244, %s243, 15
      %s246 = smul.addr %s245, 4
      %s247 = scalar_lea.vmem %s0, %s246
      %s248 = smul.u32 8, %s17
      %s249 = smul.u32 8, %s17
      %p250 = scmp.lt.s32.totalorder %s249, 15
      %s251 = scalar_select %p250, %s249, 15
      %s252 = smul.addr %s251, 4
      %s253 = scalar_lea.vmem %s6, %s252
      %s254 = smul.u32 8, %s17
      %v256 = vld [vmem:[%s247] sm:$0xf]
      %v257 = vld [vmem:[%s247 + $0x4] sm:$0xf]
      %v258 = vld [vmem:[%s247 + $0x8] sm:$0xf]
      %v259 = vld [vmem:[%s247 + $0xc] sm:$0xf]
      %v260 = vld [vmem:[%s247 + $0x10] sm:$0xf]
      %v261 = vld [vmem:[%s247 + $0x14] sm:$0xf]
      %v262 = vld [vmem:[%s247 + $0x18] sm:$0xf]
      %v263 = vld [vmem:[%s247 + $0x1c] sm:$0xf]
      %v264 = vunpack.c.l.bf16 %v256
      %v265 = vunpack.c.l.bf16 %v257
      %v266 = vunpack.c.l.bf16 %v258
      %v267 = vunpack.c.l.bf16 %v259
      %v268 = vunpack.c.l.bf16 %v260
      %v269 = vunpack.c.l.bf16 %v261
      %v270 = vunpack.c.l.bf16 %v262
      %v271 = vunpack.c.l.bf16 %v263
      %v272 = vld [vmem:[%s1] sm:$0x1]
      %v274 = vlaneseq
      %v275 = vshrl.u32 %v274, 7
      %v276 = vsub.s32 0, %v275
      %v277 = vrot.slane %v272, %v276
      %v279 = vmul.f32 %v264, %v277
      %v280 = vmul.f32 %v265, %v277
      %v281 = vmul.f32 %v266, %v277
      %v282 = vmul.f32 %v267, %v277
      %v283 = vmul.f32 %v268, %v277
      %v284 = vmul.f32 %v269, %v277
      %v285 = vmul.f32 %v270, %v277
      %v286 = vmul.f32 %v271, %v277
      %v287 = vld [vmem:[%s2] sm:$0x1]
      %v289 = vlaneseq
      %v290 = vshrl.u32 %v289, 7
      %v291 = vsub.s32 0, %v290
      %v292 = vrot.slane %v287, %v291
      %v294 = vadd.f32 %v279, %v292
      %v295 = vadd.f32 %v280, %v292
      %v296 = vadd.f32 %v281, %v292
      %v297 = vadd.f32 %v282, %v292
      %v298 = vadd.f32 %v283, %v292
      %v299 = vadd.f32 %v284, %v292
      %v300 = vadd.f32 %v285, %v292
      %v301 = vadd.f32 %v286, %v292
      %v302 = vmax.f32 %v294, 0.0
      %v303 = vmax.f32 %v295, 0.0
      %v304 = vmax.f32 %v296, 0.0
      %v305 = vmax.f32 %v297, 0.0
      %v306 = vmax.f32 %v298, 0.0
      %v307 = vmax.f32 %v299, 0.0
      %v308 = vmax.f32 %v300, 0.0
      %v309 = vmax.f32 %v301, 0.0
      %v310 = vpack.c.bf16 %v303, %v302
      %v311 = vpack.c.bf16 %v305, %v304
      %v312 = vpack.c.bf16 %v307, %v306
      %v313 = vpack.c.bf16 %v309, %v308
      %v314 = vld [vmem:[%s3] sm:$0xf]
      %v315 = vld [vmem:[%s3 + $0x4] sm:$0xf]
      %v316 = vld [vmem:[%s3 + $0x8] sm:$0xf]
      %v320 = vunpack.c.l.b16 %v314
      %v321 = vunpack.c.l.b16 %v315
      %v322 = vunpack.c.l.b16 %v316
      %v323 = vpack.c.b16 %v321, %v320
      %v324 = vpack.c.b16 %v322, %v322
      %vm326 = vcmask 195584
      %v328 = vsel %vm326, %v310, 0
      %v331 = vsel %vm326, %v311, 0
      %v334 = vsel %vm326, %v312, 0
      %v337 = vsel %vm326, %v313, 0
      %vm339 = vcmask 1043456
      %v341 = vsel %vm339, %v324, 0
      %343 = vmatprep.subr.bf16.mxu0 0
      %344 = vmatpush1.bf16.msra.mxu0 %v323
      %345 = vmatprep.subr.bf16.mxu0 0
      %346 = vmatpush1.bf16.msra.mxu0 %v341
      %347 = vmatprep.subr.bf16.mxu0 0
      %348 = vmatpush1.bf16.msra.mxu0 0
      %349 = vmatprep.subr.bf16.mxu0 0
      %350 = vmatpush1.bf16.msra.mxu0 0
      %351 = vmatprep.subr.bf16.mxu0 0
      %352 = vmatpush1.bf16.msra.mxu0 0
      %353 = vmatprep.subr.bf16.mxu0 0
      %354 = vmatpush1.bf16.msra.mxu0 0
      %355 = vmatprep.subr.bf16.mxu0 0
      %356 = vmatpush1.bf16.msra.mxu0 0
      %357 = vmatprep.subr.bf16.mxu0 0
      %358 = vmatpush1.bf16.msra.mxu0 0
      %359 = vmatprep.subr.bf16.mxu0 0
      %360 = vmatpush1.bf16.msra.mxu0 0
      %361 = vmatprep.subr.bf16.mxu0 0
      %362 = vmatpush1.bf16.msra.mxu0 0
      %363 = vmatprep.subr.bf16.mxu0 0
      %364 = vmatpush1.bf16.msra.mxu0 0
      %365 = vmatprep.subr.bf16.mxu0 0
      %366 = vmatpush1.bf16.msra.mxu0 0
      %367 = vmatprep.subr.bf16.mxu0 0
      %368 = vmatpush1.bf16.msra.mxu0 0
      %369 = vmatprep.subr.bf16.mxu0 0
      %370 = vmatpush1.bf16.msra.mxu0 0
      %371 = vmatprep.subr.bf16.mxu0 0
      %372 = vmatpush1.bf16.msra.mxu0 0
      %373 = vmatprep.subr.bf16.mxu0 0
      %374 = vmatpush1.bf16.msra.mxu0 0
      %375 = vmatprep.mubr.bf16.mxu0 0
      %376 = vmatmul.mubr.bf16.gmra.mrb[0].mxu0 %v328
      %v377 = vpop.f32.mrb[0].mxu0
      %v378 = vadd.f32 0.0, %v377
      %v379 = vpop.f32.mrb[0].mxu0
      %v380 = vpop.f32.mrb[0].mxu0
      %v381 = vadd.f32 0.0, %v380
      %v382 = vpop.f32.mrb[0].mxu0
      %383 = vmatprep.mubr.bf16.mxu0 0
      %384 = vmatmul.mubr.bf16.gmra.mrb[0].mxu0 %v331
      %v385 = vpop.f32.mrb[0].mxu0
      %v386 = vadd.f32 0.0, %v385
      %v387 = vpop.f32.mrb[0].mxu0
      %v388 = vpop.f32.mrb[0].mxu0
      %v389 = vadd.f32 0.0, %v388
      %v390 = vpop.f32.mrb[0].mxu0
      %391 = vmatprep.mubr.bf16.mxu0 0
      %392 = vmatmul.mubr.bf16.gmra.mrb[0].mxu0 %v334
      %v393 = vpop.f32.mrb[0].mxu0
      %v394 = vadd.f32 0.0, %v393
      %v395 = vpop.f32.mrb[0].mxu0
      %v396 = vpop.f32.mrb[0].mxu0
      %v397 = vadd.f32 0.0, %v396
      %v398 = vpop.f32.mrb[0].mxu0
      %399 = vmatprep.mubr.bf16.mxu0 0
      %400 = vmatmul.mubr.bf16.gmra.mrb[0].mxu0 %v337
      %v401 = vpop.f32.mrb[0].mxu0
      %v402 = vadd.f32 0.0, %v401
      %v403 = vpop.f32.mrb[0].mxu0
      %v404 = vpop.f32.mrb[0].mxu0
      %v405 = vadd.f32 0.0, %v404
      %v406 = vpop.f32.mrb[0].mxu0
      %407 = vdwg.mxu0
      %v408 = vld [vmem:[%s4] sm:$0x1]
      %v410 = vlaneseq
      %v411 = vshrl.u32 %v410, 7
      %v412 = vsub.s32 0, %v411
      %v413 = vrot.slane %v408, %v412
      %v415 = vmul.f32 %v378, %v413
      %v416 = vmul.f32 %v381, %v413
      %v417 = vmul.f32 %v386, %v413
      %v418 = vmul.f32 %v389, %v413
      %v419 = vmul.f32 %v394, %v413
      %v420 = vmul.f32 %v397, %v413
      %v421 = vmul.f32 %v402, %v413
      %v422 = vmul.f32 %v405, %v413
      %v423 = vld [vmem:[%s5] sm:$0x1]
      %v425 = vlaneseq
      %v426 = vshrl.u32 %v425, 7
      %v427 = vsub.s32 0, %v426
      %v428 = vrot.slane %v423, %v427
      %v430 = vadd.f32 %v415, %v428
      %v431 = vadd.f32 %v416, %v428
      %v432 = vadd.f32 %v417, %v428
      %v433 = vadd.f32 %v418, %v428
      %v434 = vadd.f32 %v419, %v428
      %v435 = vadd.f32 %v420, %v428
      %v436 = vadd.f32 %v421, %v428
      %v437 = vadd.f32 %v422, %v428
      %v438 = vmax.f32 %v430, 0.0
      %v439 = vmax.f32 %v431, 0.0
      %v440 = vmax.f32 %v432, 0.0
      %v441 = vmax.f32 %v433, 0.0
      %v442 = vmax.f32 %v434, 0.0
      %v443 = vmax.f32 %v435, 0.0
      %v444 = vmax.f32 %v436, 0.0
      %v445 = vmax.f32 %v437, 0.0
      %v446 = vpack.c.bf16 %v439, %v438
      %v447 = vpack.c.bf16 %v441, %v440
      %v448 = vpack.c.bf16 %v443, %v442
      %v449 = vpack.c.bf16 %v445, %v444
      %v454 = vunpack.c.l.b16 %v446
      %v455 = vunpack.c.h.b16 %v446
      %v456 = vunpack.c.l.b16 %v447
      %v457 = vunpack.c.h.b16 %v447
      %v458 = vunpack.c.l.b16 %v448
      %v459 = vunpack.c.h.b16 %v448
      %v460 = vunpack.c.l.b16 %v449
      %v461 = vunpack.c.h.b16 %v449
      %v462 = vpack.c.b16 %v454, %v454
      %v463 = vpack.c.b16 %v455, %v455
      %v464 = vpack.c.b16 %v456, %v456
      %v465 = vpack.c.b16 %v457, %v457
      %v466 = vpack.c.b16 %v458, %v458
      %v467 = vpack.c.b16 %v459, %v459
      %v468 = vpack.c.b16 %v460, %v460
      %v469 = vpack.c.b16 %v461, %v461
      %vm478 = vcmask 125952
      %479 = vst.msk [vmem:[%s253] sm:$0xf] %vm478, %v462
      %480 = vst.msk [vmem:[%s253 + $0x4] sm:$0xf] %vm478, %v463
      %481 = vst.msk [vmem:[%s253 + $0x8] sm:$0xf] %vm478, %v464
      %482 = vst.msk [vmem:[%s253 + $0xc] sm:$0xf] %vm478, %v465
      %483 = vst.msk [vmem:[%s253 + $0x10] sm:$0xf] %vm478, %v466
      %484 = vst.msk [vmem:[%s253 + $0x14] sm:$0xf] %vm478, %v467
      %485 = vst.msk [vmem:[%s253 + $0x18] sm:$0xf] %vm478, %v468
      %486 = vst.msk [vmem:[%s253 + $0x1c] sm:$0xf] %vm478, %v469
      %s487 = smul.u32 8, %s17
      %p488 = scmp.lt.s32.totalorder %s487, 15
      %s489 = scalar_select %p488, %s487, 15
      %s490 = smul.addr %s489, 4
      %s491 = scalar_lea.vmem %s6, %s490
      // Predicated region
      $region45: #{densenet_forward.16} parent=43 // pred_check
        %p492 = pneg %p166
      $region46: #{densenet_forward.16} parent=43 // pred_check_branch
        %494 = sbr.rel (%p492) target = $region48
      $region47: #{densenet_forward.16} parent=43 // pred_region
        %s495 = smul.u32 8, %s17
      $region48: #{densenet_forward.16} parent=43 // pred_fallthru
        _
    $region44: #{densenet_forward.16} parent=5 // pred_fallthru
      _
    %p496 = scmp.le.s32.totalorder 2, %s12
    // Predicated region
    $region49: #{densenet_forward.16} parent=5 // pred_check
      %p497 = pneg %p496
    $region50: #{densenet_forward.16} parent=5 // pred_check_branch
      %499 = sbr.rel (%p497) target = $region52
    $region51: #{densenet_forward.16} parent=5 // pred_region
      %s500 = ssub.s32 %s12, 2
      // Predicated region
      $region53: #{densenet_forward.16} parent=51 // pred_check
        %p501 = pneg %p172
      $region54: #{densenet_forward.16} parent=51 // pred_check_branch
        %503 = sbr.rel (%p501) target = $region56
      $region55: #{densenet_forward.16} parent=51 // pred_region
        %s504 = smul.u32 8, %s18
        %p505 = scmp.lt.s32.totalorder %s504, 15
        %s506 = scalar_select %p505, %s504, 15
        %s507 = smul.addr %s506, 4
        %s508 = scalar_lea.vmem %s6, %s507
      $region56: #{densenet_forward.16} parent=51 // pred_fallthru
        _
    $region52: #{densenet_forward.16} parent=5 // pred_fallthru
      _
  $region6: #{densenet_forward.16} parent=0 // loop_footer
    %s16 = sadd.s32 1, %s12
  $region7: #{densenet_forward.16} parent=0 // loop_footer_branch
    %11 = sbr.rel target = $region3
  $region8: #{densenet_forward.16} parent=0 // loop_exit
    _

// kernel: densenet_forward.18
$region0: #{densenet_forward.18}
  #allocation0 [shape = 'u32[]', space=smem, size = 0x4, offset = 0x4, fixed_abs, tag = 'smem constant byte address 0x4 - core index']
  #allocation1 [shape = 'u32[144,128]{1,0:T(1,128)}', space=vmem, size = 0x12000, scoped, tag = 'internal scratch']
  %s0 = inlined_call_operand.vmem [shape: bf16[16,8,32], index: 0, kind: input, shape index: {}]
  %s1 = inlined_call_operand.vmem [shape: f32[1,1,32], index: 1, kind: input, shape index: {}]
  %s2 = inlined_call_operand.vmem [shape: f32[1,1,32], index: 2, kind: input, shape index: {}]
  %s3 = inlined_call_operand.vmem [shape: bf16[4,8], index: 3, kind: input, shape index: {}]
  %s4 = inlined_call_operand.vmem [shape: bf16[32,16], index: 4, kind: input, shape index: {}]
  %s5 = inlined_call_operand.vmem [shape: bf16[8,4,16], index: 5, kind: output, shape index: {}]
  %s6 = sld [smem:[#allocation0]]
  $region53: #{densenet_forward.18} parent=0
    _
  %s8 = ssub.s32 1, %s6
  %s9 = scalar_select 0, %s8, %s6
  loop: start=0, step=1, limit=10
  $region2: #{densenet_forward.18} parent=0 // loop_pre_header
    _
  $region3: #{densenet_forward.18} parent=0 // loop_header
    %s11 = sphi 0, %s15
    %p12 = scmp.ge.s32.totalorder %s11, 10
    %s21 = sphi 0, %s23
    %s24 = sphi 0, %s21
    %s25 = sphi 0, %s24
    %s41 = sphi 0, %s25
    %s45 = sphi 0, %s45
    %s47 = sphi 0, %s45
    %s48 = sphi 0, %s47
    %s62 = sphi 0, %s48
    %s66 = sphi 0, %s66
    %s68 = sphi 0, %s66
    %s69 = sphi 0, %s68
    %s83 = sphi 0, %s69
    %s87 = sphi 0, %s87
    %s89 = sphi 0, %s87
    %s90 = sphi 0, %s89
    %s104 = sphi 0, %s90
    %s108 = sphi 0, %s108
    %s110 = sphi 0, %s108
    %s111 = sphi 0, %s110
    %s125 = sphi 0, %s111
    %s131 = sphi 0, %s133
    %s134 = sphi 0, %s131
    %s135 = sphi 0, %s134
    %s151 = sphi 0, %s135
  $region4: #{densenet_forward.18} parent=0 // loop_header_branch
    %14 = sbr.rel (%p12) target = $region8
  $region5: #{densenet_forward.18} parent=0 // loop_body
    %s16 = ssub.s32 %s11, 1
    %s17 = ssub.s32 %s11, 2
    %s18 = sadd.s32 %s11, 1
    %s19 = ssub.s32 %s11, %s18
    %p20 = scmp.eq.s32.totalorder %s19, 0
    %s22 = sadd.s32 %s21, 1
    %s23 = scalar_select %p20, %s21, %s22
    %p26 = pneg %p20
    %p27 = scmp.eq.s32.totalorder %s11, 7
    %p28 = por %p26, %p27
    %p29 = scmp.ne.s32.totalorder %s21, %s24
    %p30 = scmp.eq.s32.totalorder %s11, 0
    %p31 = por %p29, %p30
    %p32 = scmp.ne.s32.totalorder %s21, %s24
    %p33 = scmp.eq.s32.totalorder %s16, 7
    %p34 = por %p32, %p33
    %p35 = scmp.ne.s32.totalorder %s24, %s25
    %p36 = scmp.eq.s32.totalorder %s16, 0
    %p37 = por %p35, %p36
    %p38 = scmp.ne.s32.totalorder %s24, %s25
    %p39 = scmp.eq.s32.totalorder %s17, 7
    %p40 = por %p38, %p39
    %p42 = scmp.ne.s32.totalorder %s25, %s41
    %p43 = scmp.eq.s32.totalorder %s17, 0
    %p44 = por %p42, %p43
    %s46 = sadd.s32 %s45, 1
    %p49 = scmp.eq.s32.totalorder %s11, 7
    %p50 = scmp.ne.s32.totalorder %s45, %s47
    %p51 = scmp.eq.s32.totalorder %s11, 0
    %p52 = por %p50, %p51
    %p53 = scmp.ne.s32.totalorder %s45, %s47
    %p54 = scmp.eq.s32.totalorder %s16, 7
    %p55 = por %p53, %p54
    %p56 = scmp.ne.s32.totalorder %s47, %s48
    %p57 = scmp.eq.s32.totalorder %s16, 0
    %p58 = por %p56, %p57
    %p59 = scmp.ne.s32.totalorder %s47, %s48
    %p60 = scmp.eq.s32.totalorder %s17, 7
    %p61 = por %p59, %p60
    %p63 = scmp.ne.s32.totalorder %s48, %s62
    %p64 = scmp.eq.s32.totalorder %s17, 0
    %p65 = por %p63, %p64
    %s67 = sadd.s32 %s66, 1
    %p70 = scmp.eq.s32.totalorder %s11, 7
    %p71 = scmp.ne.s32.totalorder %s66, %s68
    %p72 = scmp.eq.s32.totalorder %s11, 0
    %p73 = por %p71, %p72
    %p74 = scmp.ne.s32.totalorder %s66, %s68
    %p75 = scmp.eq.s32.totalorder %s16, 7
    %p76 = por %p74, %p75
    %p77 = scmp.ne.s32.totalorder %s68, %s69
    %p78 = scmp.eq.s32.totalorder %s16, 0
    %p79 = por %p77, %p78
    %p80 = scmp.ne.s32.totalorder %s68, %s69
    %p81 = scmp.eq.s32.totalorder %s17, 7
    %p82 = por %p80, %p81
    %p84 = scmp.ne.s32.totalorder %s69, %s83
    %p85 = scmp.eq.s32.totalorder %s17, 0
    %p86 = por %p84, %p85
    %s88 = sadd.s32 %s87, 1
    %p91 = scmp.eq.s32.totalorder %s11, 7
    %p92 = scmp.ne.s32.totalorder %s87, %s89
    %p93 = scmp.eq.s32.totalorder %s11, 0
    %p94 = por %p92, %p93
    %p95 = scmp.ne.s32.totalorder %s87, %s89
    %p96 = scmp.eq.s32.totalorder %s16, 7
    %p97 = por %p95, %p96
    %p98 = scmp.ne.s32.totalorder %s89, %s90
    %p99 = scmp.eq.s32.totalorder %s16, 0
    %p100 = por %p98, %p99
    %p101 = scmp.ne.s32.totalorder %s89, %s90
    %p102 = scmp.eq.s32.totalorder %s17, 7
    %p103 = por %p101, %p102
    %p105 = scmp.ne.s32.totalorder %s90, %s104
    %p106 = scmp.eq.s32.totalorder %s17, 0
    %p107 = por %p105, %p106
    %s109 = sadd.s32 %s108, 1
    %p112 = scmp.eq.s32.totalorder %s11, 7
    %p113 = scmp.ne.s32.totalorder %s108, %s110
    %p114 = scmp.eq.s32.totalorder %s11, 0
    %p115 = por %p113, %p114
    %p116 = scmp.ne.s32.totalorder %s108, %s110
    %p117 = scmp.eq.s32.totalorder %s16, 7
    %p118 = por %p116, %p117
    %p119 = scmp.ne.s32.totalorder %s110, %s111
    %p120 = scmp.eq.s32.totalorder %s16, 0
    %p121 = por %p119, %p120
    %p122 = scmp.ne.s32.totalorder %s110, %s111
    %p123 = scmp.eq.s32.totalorder %s17, 7
    %p124 = por %p122, %p123
    %p126 = scmp.ne.s32.totalorder %s111, %s125
    %p127 = scmp.eq.s32.totalorder %s17, 0
    %p128 = por %p126, %p127
    %s129 = ssub.s32 %s11, %s18
    %p130 = scmp.eq.s32.totalorder %s129, 0
    %s132 = sadd.s32 %s131, 1
    %s133 = scalar_select %p130, %s131, %s132
    %p136 = pneg %p130
    %p137 = scmp.eq.s32.totalorder %s11, 7
    %p138 = por %p136, %p137
    %p139 = scmp.ne.s32.totalorder %s131, %s134
    %p140 = scmp.eq.s32.totalorder %s11, 0
    %p141 = por %p139, %p140
    %p142 = scmp.ne.s32.totalorder %s131, %s134
    %p143 = scmp.eq.s32.totalorder %s16, 7
    %p144 = por %p142, %p143
    %p145 = scmp.ne.s32.totalorder %s134, %s135
    %p146 = scmp.eq.s32.totalorder %s16, 0
    %p147 = por %p145, %p146
    %p148 = scmp.ne.s32.totalorder %s134, %s135
    %p149 = scmp.eq.s32.totalorder %s17, 7
    %p150 = por %p148, %p149
    %p152 = scmp.ne.s32.totalorder %s135, %s151
    %p153 = scmp.eq.s32.totalorder %s17, 0
    %p154 = por %p152, %p153
    %p155 = scmp.le.s32.totalorder 1, %s11
    %p156 = scmp.lt.s32.totalorder %s11, 9
    %p157 = pnand %p155, %p156
    %p158 = pneg %p157
    // Predicated region
    $region9: #{densenet_forward.18} parent=5 // pred_check
      _
    $region10: #{densenet_forward.18} parent=5 // pred_check_branch
      %160 = sbr.rel (%p157) target = $region12
    $region11: #{densenet_forward.18} parent=5 // pred_region
      %s161 = ssub.s32 %s11, 1
      // Predicated region
      $region13: #{densenet_forward.18} parent=11 // pred_check
        %p162 = pneg %p58
      $region14: #{densenet_forward.18} parent=11 // pred_check_branch
        %164 = sbr.rel (%p162) target = $region16
      $region15: #{densenet_forward.18} parent=11 // pred_region
        _
      $region16: #{densenet_forward.18} parent=11 // pred_fallthru
        _
      // Predicated region
      $region17: #{densenet_forward.18} parent=11 // pred_check
        %p165 = pneg %p79
      $region18: #{densenet_forward.18} parent=11 // pred_check_branch
        %167 = sbr.rel (%p165) target = $region20
      $region19: #{densenet_forward.18} parent=11 // pred_region
        _
      $region20: #{densenet_forward.18} parent=11 // pred_fallthru
        _
      // Predicated region
      $region21: #{densenet_forward.18} parent=11 // pred_check
        %p168 = pneg %p100
      $region22: #{densenet_forward.18} parent=11 // pred_check_branch
        %170 = sbr.rel (%p168) target = $region24
      $region23: #{densenet_forward.18} parent=11 // pred_region
        _
      $region24: #{densenet_forward.18} parent=11 // pred_fallthru
        _
      // Predicated region
      $region25: #{densenet_forward.18} parent=11 // pred_check
        %p171 = pneg %p121
      $region26: #{densenet_forward.18} parent=11 // pred_check_branch
        %173 = sbr.rel (%p171) target = $region28
      $region27: #{densenet_forward.18} parent=11 // pred_region
        _
      $region28: #{densenet_forward.18} parent=11 // pred_fallthru
        _
    $region12: #{densenet_forward.18} parent=5 // pred_fallthru
      _
    %p174 = scmp.lt.s32.totalorder %s11, 8
    // Predicated region
    $region29: #{densenet_forward.18} parent=5 // pred_check
      %p175 = pneg %p174
    $region30: #{densenet_forward.18} parent=5 // pred_check_branch
      %177 = sbr.rel (%p175) target = $region32
    $region31: #{densenet_forward.18} parent=5 // pred_region
      // Predicated region
      $region33: #{densenet_forward.18} parent=31 // pred_check
        %p178 = pneg %p31
      $region34: #{densenet_forward.18} parent=31 // pred_check_branch
        %180 = sbr.rel (%p178) target = $region36
      $region35: #{densenet_forward.18} parent=31 // pred_region
        %s181 = smul.u32 2, %s11
        %p182 = scmp.lt.s32.totalorder %s181, 15
        %s183 = scalar_select %p182, %s181, 15
        %s184 = smul.addr %s183, 4
        %s185 = scalar_lea.vmem %s0, %s184
        %s186 = smul.u32 2, %s11
      $region36: #{densenet_forward.18} parent=31 // pred_fallthru
        _
    $region32: #{densenet_forward.18} parent=5 // pred_fallthru
      _
    %p187 = scmp.le.s32.totalorder 1, %s11
    %p188 = scmp.lt.s32.totalorder %s11, 9
    %p189 = pnand %p187, %p188
    %p190 = pneg %p189
    // Predicated region
    $region37: #{densenet_forward.18} parent=5 // pred_check
      _
    $region38: #{densenet_forward.18} parent=5 // pred_check_branch
      %192 = sbr.rel (%p189) target = $region40
    $region39: #{densenet_forward.18} parent=5 // pred_region
      %s193 = ssub.s32 %s11, 1
      %s194 = smul.u32 2, %s16
      %p195 = scmp.lt.s32.totalorder %s194, 15
      %s196 = scalar_select %p195, %s194, 15
      %s197 = smul.addr %s196, 4
      %s198 = scalar_lea.vmem %s0, %s197
      %p199 = pneg %p37
      %p200 = pneg %p34
      %p201 = pneg %p58
      %p202 = pneg %p55
      %p203 = pneg %p79
      %p204 = pneg %p76
      %p205 = pneg %p100
      %p206 = pneg %p97
      %p207 = pneg %p121
      %p208 = pneg %p118
      %p209 = pneg %p147
      %p210 = pneg %p144
      %p211 = scmp.lt.s32.totalorder %s16, 7
      %s212 = scalar_select %p211, %s16, 7
      %s213 = smul.addr %s212, 2
      %s214 = scalar_lea.vmem %s5, %s213
      %s215 = smul.u32 2, %s16
      %p216 = scmp.lt.s32.totalorder %s215, 15
      %s217 = scalar_select %p216, %s215, 15
      %s218 = smul.addr %s217, 4
      %s219 = scalar_lea.vmem %s0, %s218
      %s220 = smul.u32 2, %s16
      %p221 = scmp.lt.s32.totalorder %s16, 7
      %s222 = scalar_select %p221, %s16, 7
      %s223 = smul.addr %s222, 2
      %s224 = scalar_lea.vmem %s5, %s223
      %v226 = vld [vmem:[%s219] sm:$0xf]
      %v227 = vld [vmem:[%s219 + $0x4] sm:$0xf]
      %v228 = vunpack.c.l.bf16 %v226
      %v229 = vunpack.c.l.bf16 %v227
      %v230 = vld [vmem:[%s1] sm:$0x1]
      %v232 = vlaneseq
      %v233 = vshrl.u32 %v232, 7
      %v234 = vsub.s32 0, %v233
      %v235 = vrot.slane %v230, %v234
      %v237 = vmul.f32 %v228, %v235
      %v238 = vmul.f32 %v229, %v235
      %v239 = vld [vmem:[%s2] sm:$0x1]
      %v241 = vlaneseq
      %v242 = vshrl.u32 %v241, 7
      %v243 = vsub.s32 0, %v242
      %v244 = vrot.slane %v239, %v243
      %v246 = vadd.f32 %v237, %v244
      %v247 = vadd.f32 %v238, %v244
      %v248 = vmax.f32 %v246, 0.0
      %v249 = vmax.f32 %v247, 0.0
      %v250 = vadd.f32 %v248, %v249
      %v251 = vld [vmem:[%s3] sm:$0x3]
      %v252 = vpack.c.bf16 %v250, %v250
      %vm253 = vcmask 64512
      %v255 = vsel %vm253, %v251, 0
      %vm257 = vcmask 1043456
      %v259 = vsel %vm257, %v252, 0
      %261 = vmatprep.subr.bf16.mxu0 0
      %262 = vmatpush1.bf16.msra.mxu0 %v259
      %263 = vmatprep.subr.bf16.mxu0 0
      %264 = vmatpush1.bf16.msra.mxu0 0
      %265 = vmatprep.subr.bf16.mxu0 0
      %266 = vmatpush1.bf16.msra.mxu0 0
      %267 = vmatprep.subr.bf16.mxu0 0
      %268 = vmatpush1.bf16.msra.mxu0 0
      %269 = vmatprep.subr.bf16.mxu0 0
      %270 = vmatpush1.bf16.msra.mxu0 0
      %271 = vmatprep.subr.bf16.mxu0 0
      %272 = vmatpush1.bf16.msra.mxu0 0
      %273 = vmatprep.subr.bf16.mxu0 0
      %274 = vmatpush1.bf16.msra.mxu0 0
      %275 = vmatprep.subr.bf16.mxu0 0
      %276 = vmatpush1.bf16.msra.mxu0 0
      %277 = vmatprep.subr.bf16.mxu0 0
      %278 = vmatpush1.bf16.msra.mxu0 0
      %279 = vmatprep.subr.bf16.mxu0 0
      %280 = vmatpush1.bf16.msra.mxu0 0
      %281 = vmatprep.subr.bf16.mxu0 0
      %282 = vmatpush1.bf16.msra.mxu0 0
      %283 = vmatprep.subr.bf16.mxu0 0
      %284 = vmatpush1.bf16.msra.mxu0 0
      %285 = vmatprep.subr.bf16.mxu0 0
      %286 = vmatpush1.bf16.msra.mxu0 0
      %287 = vmatprep.subr.bf16.mxu0 0
      %288 = vmatpush1.bf16.msra.mxu0 0
      %289 = vmatprep.subr.bf16.mxu0 0
      %290 = vmatpush1.bf16.msra.mxu0 0
      %291 = vmatprep.subr.bf16.mxu0 0
      %292 = vmatpush1.bf16.msra.mxu0 0
      %293 = vmatprep.mubr.bf16.mxu0 0
      %294 = vmatmul.mubr.bf16.gmra.mrb[0].mxu0 %v255
      %v295 = vpop.f32.mrb[0].mxu0
      %v296 = vadd.f32 0.0, %v295
      %v297 = vpop.f32.mrb[0].mxu0
      %v298 = vpop.f32.mrb[0].mxu0
      %v299 = vpop.f32.mrb[0].mxu0
      %300 = vdwg.mxu0
      %v301 = vpack.c.bf16 %v296, %v296
      %v302 = vld [vmem:[%s4] sm:$0xf]
      %v303 = vld [vmem:[%s4 + $0x4] sm:$0xf]
      %v304 = vld [vmem:[%s4 + $0x8] sm:$0xf]
      %v305 = vld [vmem:[%s4 + $0xc] sm:$0xf]
      %v310 = vunpack.c.l.b16 %v302
      %v311 = vunpack.c.l.b16 %v303
      %v312 = vunpack.c.l.b16 %v304
      %v313 = vunpack.c.l.b16 %v305
      %v314 = vpack.c.b16 %v311, %v310
      %v315 = vpack.c.b16 %v313, %v312
      %vm318 = vcmask 261120
      %v320 = vsel %vm318, %v301, 0
      %322 = vmatprep.subr.bf16.mxu0 0
      %323 = vmatpush1.bf16.msra.mxu0 %v314
      %324 = vmatprep.subr.bf16.mxu0 0
      %325 = vmatpush1.bf16.msra.mxu0 %v315
      %326 = vmatprep.subr.bf16.mxu0 0
      %327 = vmatpush1.bf16.msra.mxu0 0
      %328 = vmatprep.subr.bf16.mxu0 0
      %329 = vmatpush1.bf16.msra.mxu0 0
      %330 = vmatprep.subr.bf16.mxu0 0
      %331 = vmatpush1.bf16.msra.mxu0 0
      %332 = vmatprep.subr.bf16.mxu0 0
      %333 = vmatpush1.bf16.msra.mxu0 0
      %334 = vmatprep.subr.bf16.mxu0 0
      %335 = vmatpush1.bf16.msra.mxu0 0
      %336 = vmatprep.subr.bf16.mxu0 0
      %337 = vmatpush1.bf16.msra.mxu0 0
      %338 = vmatprep.subr.bf16.mxu0 0
      %339 = vmatpush1.bf16.msra.mxu0 0
      %340 = vmatprep.subr.bf16.mxu0 0
      %341 = vmatpush1.bf16.msra.mxu0 0
      %342 = vmatprep.subr.bf16.mxu0 0
      %343 = vmatpush1.bf16.msra.mxu0 0
      %344 = vmatprep.subr.bf16.mxu0 0
      %345 = vmatpush1.bf16.msra.mxu0 0
      %346 = vmatprep.subr.bf16.mxu0 0
      %347 = vmatpush1.bf16.msra.mxu0 0
      %348 = vmatprep.subr.bf16.mxu0 0
      %349 = vmatpush1.bf16.msra.mxu0 0
      %350 = vmatprep.subr.bf16.mxu0 0
      %351 = vmatpush1.bf16.msra.mxu0 0
      %352 = vmatprep.subr.bf16.mxu0 0
      %353 = vmatpush1.bf16.msra.mxu0 0
      %354 = vmatprep.mubr.bf16.mxu0 0
      %355 = vmatmul.mubr.bf16.gmra.mrb[0].mxu0 %v320
      %v356 = vpop.f32.mrb[0].mxu0
      %v357 = vadd.f32 0.0, %v356
      %v358 = vpop.f32.mrb[0].mxu0
      %v359 = vpop.f32.mrb[0].mxu0
      %v360 = vpop.f32.mrb[0].mxu0
      %361 = vdwg.mxu0
      %v362 = vpack.c.bf16 %v357, %v357
      %vm363 = vcmask 123904
      %364 = vst.msk [vmem:[%s224] sm:$0x3] %vm363, %v362
      %p365 = scmp.lt.s32.totalorder %s16, 7
      %s366 = scalar_select %p365, %s16, 7
      %s367 = smul.addr %s366, 2
      %s368 = scalar_lea.vmem %s5, %s367
      // Predicated region
      $region41: #{densenet_forward.18} parent=39 // pred_check
        %p369 = pneg %p144
      $region42: #{densenet_forward.18} parent=39 // pred_check_branch
        %371 = sbr.rel (%p369) target = $region44
      $region43: #{densenet_forward.18} parent=39 // pred_region
        _
      $region44: #{densenet_forward.18} parent=39 // pred_fallthru
        _
    $region40: #{densenet_forward.18} parent=5 // pred_fallthru
      _
    %p372 = scmp.le.s32.totalorder 2, %s11
    // Predicated region
    $region45: #{densenet_forward.18} parent=5 // pred_check
      %p373 = pneg %p372
    $region46: #{densenet_forward.18} parent=5 // pred_check_branch
      %375 = sbr.rel (%p373) target = $region48
    $region47: #{densenet_forward.18} parent=5 // pred_region
      %s376 = ssub.s32 %s11, 2
      // Predicated region
      $region49: #{densenet_forward.18} parent=47 // pred_check
        %p377 = pneg %p150
      $region50: #{densenet_forward.18} parent=47 // pred_check_branch
        %379 = sbr.rel (%p377) target = $region52
      $region51: #{densenet_forward.18} parent=47 // pred_region
        %p380 = scmp.lt.s32.totalorder %s17, 7
        %s381 = scalar_select %p380, %s17, 7
        %s382 = smul.addr %s381, 2
        %s383 = scalar_lea.vmem %s5, %s382
      $region52: #{densenet_forward.18} parent=47 // pred_fallthru
        _
    $region48: #{densenet_forward.18} parent=5 // pred_fallthru
      _
  $region6: #{densenet_forward.18} parent=0 // loop_footer
    %s15 = sadd.s32 1, %s11
  $region7: #{densenet_forward.18} parent=0 // loop_footer_branch
    %10 = sbr.rel target = $region3
  $region8: #{densenet_forward.18} parent=0 // loop_exit
    _

// kernel: densenet_forward.19
$region0: #{densenet_forward.19}
  #allocation0 [shape = 'u32[]', space=smem, size = 0x4, offset = 0x4, fixed_abs, tag = 'smem constant byte address 0x4 - core index']
  #allocation1 [shape = 'u32[144,128]{1,0:T(1,128)}', space=vmem, size = 0x12000, scoped, tag = 'internal scratch']
  %s0 = inlined_call_operand.vmem [shape: bf16[32,16], index: 0, kind: input, shape index: {}]
  %s1 = inlined_call_operand.vmem [shape: f32[1,16], index: 1, kind: input, shape index: {}]
  %s2 = inlined_call_operand.vmem [shape: f32[1,16], index: 2, kind: input, shape index: {}]
  %s3 = inlined_call_operand.vmem [shape: bf16[16,16], index: 3, kind: input, shape index: {}]
  %s4 = inlined_call_operand.vmem [shape: f32[1,16], index: 4, kind: input, shape index: {}]
  %s5 = inlined_call_operand.vmem [shape: f32[1,16], index: 5, kind: input, shape index: {}]
  %s6 = inlined_call_operand.vmem [shape: bf16[32,16], index: 6, kind: output, shape index: {}]
  %s7 = sld [smem:[#allocation0]]
  $region57: #{densenet_forward.19} parent=0
    _
  %s9 = ssub.s32 1, %s7
  %s10 = scalar_select 0, %s9, %s7
  loop: start=0, step=1, limit=4
  $region2: #{densenet_forward.19} parent=0 // loop_pre_header
    _
  $region3: #{densenet_forward.19} parent=0 // loop_header
    %s12 = sphi 0, %s16
    %p13 = scmp.ge.s32.totalorder %s12, 4
    %s22 = sphi 0, %s24
    %s25 = sphi 0, %s22
    %s26 = sphi 0, %s25
    %s42 = sphi 0, %s26
    %s46 = sphi 0, %s46
    %s48 = sphi 0, %s46
    %s49 = sphi 0, %s48
    %s63 = sphi 0, %s49
    %s67 = sphi 0, %s67
    %s69 = sphi 0, %s67
    %s70 = sphi 0, %s69
    %s84 = sphi 0, %s70
    %s88 = sphi 0, %s88
    %s90 = sphi 0, %s88
    %s91 = sphi 0, %s90
    %s105 = sphi 0, %s91
    %s109 = sphi 0, %s109
    %s111 = sphi 0, %s109
    %s112 = sphi 0, %s111
    %s126 = sphi 0, %s112
    %s130 = sphi 0, %s130
    %s132 = sphi 0, %s130
    %s133 = sphi 0, %s132
    %s147 = sphi 0, %s133
    %s153 = sphi 0, %s155
    %s156 = sphi 0, %s153
    %s157 = sphi 0, %s156
    %s173 = sphi 0, %s157
  $region4: #{densenet_forward.19} parent=0 // loop_header_branch
    %15 = sbr.rel (%p13) target = $region8
  $region5: #{densenet_forward.19} parent=0 // loop_body
    %s17 = ssub.s32 %s12, 1
    %s18 = ssub.s32 %s12, 2
    %s19 = sadd.s32 %s12, 1
    %s20 = ssub.s32 %s12, %s19
    %p21 = scmp.eq.s32.totalorder %s20, 0
    %s23 = sadd.s32 %s22, 1
    %s24 = scalar_select %p21, %s22, %s23
    %p27 = pneg %p21
    %p28 = scmp.eq.s32.totalorder %s12, 1
    %p29 = por %p27, %p28
    %p30 = scmp.ne.s32.totalorder %s22, %s25
    %p31 = scmp.eq.s32.totalorder %s12, 0
    %p32 = por %p30, %p31
    %p33 = scmp.ne.s32.totalorder %s22, %s25
    %p34 = scmp.eq.s32.totalorder %s17, 1
    %p35 = por %p33, %p34
    %p36 = scmp.ne.s32.totalorder %s25, %s26
    %p37 = scmp.eq.s32.totalorder %s17, 0
    %p38 = por %p36, %p37
    %p39 = scmp.ne.s32.totalorder %s25, %s26
    %p40 = scmp.eq.s32.totalorder %s18, 1
    %p41 = por %p39, %p40
    %p43 = scmp.ne.s32.totalorder %s26, %s42
    %p44 = scmp.eq.s32.totalorder %s18, 0
    %p45 = por %p43, %p44
    %s47 = sadd.s32 %s46, 1
    %p50 = scmp.eq.s32.totalorder %s12, 1
    %p51 = scmp.ne.s32.totalorder %s46, %s48
    %p52 = scmp.eq.s32.totalorder %s12, 0
    %p53 = por %p51, %p52
    %p54 = scmp.ne.s32.totalorder %s46, %s48
    %p55 = scmp.eq.s32.totalorder %s17, 1
    %p56 = por %p54, %p55
    %p57 = scmp.ne.s32.totalorder %s48, %s49
    %p58 = scmp.eq.s32.totalorder %s17, 0
    %p59 = por %p57, %p58
    %p60 = scmp.ne.s32.totalorder %s48, %s49
    %p61 = scmp.eq.s32.totalorder %s18, 1
    %p62 = por %p60, %p61
    %p64 = scmp.ne.s32.totalorder %s49, %s63
    %p65 = scmp.eq.s32.totalorder %s18, 0
    %p66 = por %p64, %p65
    %s68 = sadd.s32 %s67, 1
    %p71 = scmp.eq.s32.totalorder %s12, 1
    %p72 = scmp.ne.s32.totalorder %s67, %s69
    %p73 = scmp.eq.s32.totalorder %s12, 0
    %p74 = por %p72, %p73
    %p75 = scmp.ne.s32.totalorder %s67, %s69
    %p76 = scmp.eq.s32.totalorder %s17, 1
    %p77 = por %p75, %p76
    %p78 = scmp.ne.s32.totalorder %s69, %s70
    %p79 = scmp.eq.s32.totalorder %s17, 0
    %p80 = por %p78, %p79
    %p81 = scmp.ne.s32.totalorder %s69, %s70
    %p82 = scmp.eq.s32.totalorder %s18, 1
    %p83 = por %p81, %p82
    %p85 = scmp.ne.s32.totalorder %s70, %s84
    %p86 = scmp.eq.s32.totalorder %s18, 0
    %p87 = por %p85, %p86
    %s89 = sadd.s32 %s88, 1
    %p92 = scmp.eq.s32.totalorder %s12, 1
    %p93 = scmp.ne.s32.totalorder %s88, %s90
    %p94 = scmp.eq.s32.totalorder %s12, 0
    %p95 = por %p93, %p94
    %p96 = scmp.ne.s32.totalorder %s88, %s90
    %p97 = scmp.eq.s32.totalorder %s17, 1
    %p98 = por %p96, %p97
    %p99 = scmp.ne.s32.totalorder %s90, %s91
    %p100 = scmp.eq.s32.totalorder %s17, 0
    %p101 = por %p99, %p100
    %p102 = scmp.ne.s32.totalorder %s90, %s91
    %p103 = scmp.eq.s32.totalorder %s18, 1
    %p104 = por %p102, %p103
    %p106 = scmp.ne.s32.totalorder %s91, %s105
    %p107 = scmp.eq.s32.totalorder %s18, 0
    %p108 = por %p106, %p107
    %s110 = sadd.s32 %s109, 1
    %p113 = scmp.eq.s32.totalorder %s12, 1
    %p114 = scmp.ne.s32.totalorder %s109, %s111
    %p115 = scmp.eq.s32.totalorder %s12, 0
    %p116 = por %p114, %p115
    %p117 = scmp.ne.s32.totalorder %s109, %s111
    %p118 = scmp.eq.s32.totalorder %s17, 1
    %p119 = por %p117, %p118
    %p120 = scmp.ne.s32.totalorder %s111, %s112
    %p121 = scmp.eq.s32.totalorder %s17, 0
    %p122 = por %p120, %p121
    %p123 = scmp.ne.s32.totalorder %s111, %s112
    %p124 = scmp.eq.s32.totalorder %s18, 1
    %p125 = por %p123, %p124
    %p127 = scmp.ne.s32.totalorder %s112, %s126
    %p128 = scmp.eq.s32.totalorder %s18, 0
    %p129 = por %p127, %p128
    %s131 = sadd.s32 %s130, 1
    %p134 = scmp.eq.s32.totalorder %s12, 1
    %p135 = scmp.ne.s32.totalorder %s130, %s132
    %p136 = scmp.eq.s32.totalorder %s12, 0
    %p137 = por %p135, %p136
    %p138 = scmp.ne.s32.totalorder %s130, %s132
    %p139 = scmp.eq.s32.totalorder %s17, 1
    %p140 = por %p138, %p139
    %p141 = scmp.ne.s32.totalorder %s132, %s133
    %p142 = scmp.eq.s32.totalorder %s17, 0
    %p143 = por %p141, %p142
    %p144 = scmp.ne.s32.totalorder %s132, %s133
    %p145 = scmp.eq.s32.totalorder %s18, 1
    %p146 = por %p144, %p145
    %p148 = scmp.ne.s32.totalorder %s133, %s147
    %p149 = scmp.eq.s32.totalorder %s18, 0
    %p150 = por %p148, %p149
    %s151 = ssub.s32 %s12, %s19
    %p152 = scmp.eq.s32.totalorder %s151, 0
    %s154 = sadd.s32 %s153, 1
    %s155 = scalar_select %p152, %s153, %s154
    %p158 = pneg %p152
    %p159 = scmp.eq.s32.totalorder %s12, 1
    %p160 = por %p158, %p159
    %p161 = scmp.ne.s32.totalorder %s153, %s156
    %p162 = scmp.eq.s32.totalorder %s12, 0
    %p163 = por %p161, %p162
    %p164 = scmp.ne.s32.totalorder %s153, %s156
    %p165 = scmp.eq.s32.totalorder %s17, 1
    %p166 = por %p164, %p165
    %p167 = scmp.ne.s32.totalorder %s156, %s157
    %p168 = scmp.eq.s32.totalorder %s17, 0
    %p169 = por %p167, %p168
    %p170 = scmp.ne.s32.totalorder %s156, %s157
    %p171 = scmp.eq.s32.totalorder %s18, 1
    %p172 = por %p170, %p171
    %p174 = scmp.ne.s32.totalorder %s157, %s173
    %p175 = scmp.eq.s32.totalorder %s18, 0
    %p176 = por %p174, %p175
    %p177 = scmp.le.s32.totalorder 1, %s12
    %p178 = scmp.lt.s32.totalorder %s12, 3
    %p179 = pnand %p177, %p178
    %p180 = pneg %p179
    // Predicated region
    $region9: #{densenet_forward.19} parent=5 // pred_check
      _
    $region10: #{densenet_forward.19} parent=5 // pred_check_branch
      %182 = sbr.rel (%p179) target = $region12
    $region11: #{densenet_forward.19} parent=5 // pred_region
      %s183 = ssub.s32 %s12, 1
      // Predicated region
      $region13: #{densenet_forward.19} parent=11 // pred_check
        %p184 = pneg %p59
      $region14: #{densenet_forward.19} parent=11 // pred_check_branch
        %186 = sbr.rel (%p184) target = $region16
      $region15: #{densenet_forward.19} parent=11 // pred_region
        _
      $region16: #{densenet_forward.19} parent=11 // pred_fallthru
        _
      // Predicated region
      $region17: #{densenet_forward.19} parent=11 // pred_check
        %p187 = pneg %p80
      $region18: #{densenet_forward.19} parent=11 // pred_check_branch
        %189 = sbr.rel (%p187) target = $region20
      $region19: #{densenet_forward.19} parent=11 // pred_region
        _
      $region20: #{densenet_forward.19} parent=11 // pred_fallthru
        _
      // Predicated region
      $region21: #{densenet_forward.19} parent=11 // pred_check
        %p190 = pneg %p101
      $region22: #{densenet_forward.19} parent=11 // pred_check_branch
        %192 = sbr.rel (%p190) target = $region24
      $region23: #{densenet_forward.19} parent=11 // pred_region
        _
      $region24: #{densenet_forward.19} parent=11 // pred_fallthru
        _
      // Predicated region
      $region25: #{densenet_forward.19} parent=11 // pred_check
        %p193 = pneg %p122
      $region26: #{densenet_forward.19} parent=11 // pred_check_branch
        %195 = sbr.rel (%p193) target = $region28
      $region27: #{densenet_forward.19} parent=11 // pred_region
        _
      $region28: #{densenet_forward.19} parent=11 // pred_fallthru
        _
      // Predicated region
      $region29: #{densenet_forward.19} parent=11 // pred_check
        %p196 = pneg %p143
      $region30: #{densenet_forward.19} parent=11 // pred_check_branch
        %198 = sbr.rel (%p196) target = $region32
      $region31: #{densenet_forward.19} parent=11 // pred_region
        _
      $region32: #{densenet_forward.19} parent=11 // pred_fallthru
        _
    $region12: #{densenet_forward.19} parent=5 // pred_fallthru
      _
    %p199 = scmp.lt.s32.totalorder %s12, 2
    // Predicated region
    $region33: #{densenet_forward.19} parent=5 // pred_check
      %p200 = pneg %p199
    $region34: #{densenet_forward.19} parent=5 // pred_check_branch
      %202 = sbr.rel (%p200) target = $region36
    $region35: #{densenet_forward.19} parent=5 // pred_region
      // Predicated region
      $region37: #{densenet_forward.19} parent=35 // pred_check
        %p203 = pneg %p32
      $region38: #{densenet_forward.19} parent=35 // pred_check_branch
        %205 = sbr.rel (%p203) target = $region40
      $region39: #{densenet_forward.19} parent=35 // pred_region
        %s206 = smul.u32 2, %s12
        %p207 = scmp.lt.s32.totalorder %s206, 3
        %s208 = scalar_select %p207, %s206, 3
        %s209 = smul.addr %s208, 4
        %s210 = scalar_lea.vmem %s0, %s209
        %s211 = smul.u32 2, %s12
      $region40: #{densenet_forward.19} parent=35 // pred_fallthru
        _
    $region36: #{densenet_forward.19} parent=5 // pred_fallthru
      _
    %p212 = scmp.le.s32.totalorder 1, %s12
    %p213 = scmp.lt.s32.totalorder %s12, 3
    %p214 = pnand %p212, %p213
    %p215 = pneg %p214
    // Predicated region
    $region41: #{densenet_forward.19} parent=5 // pred_check
      _
    $region42: #{densenet_forward.19} parent=5 // pred_check_branch
      %217 = sbr.rel (%p214) target = $region44
    $region43: #{densenet_forward.19} parent=5 // pred_region
      %s218 = ssub.s32 %s12, 1
      %s219 = smul.u32 2, %s17
      %p220 = scmp.lt.s32.totalorder %s219, 3
      %s221 = scalar_select %p220, %s219, 3
      %s222 = smul.addr %s221, 4
      %s223 = scalar_lea.vmem %s0, %s222
      %p224 = pneg %p38
      %p225 = pneg %p35
      %p226 = pneg %p59
      %p227 = pneg %p56
      %p228 = pneg %p80
      %p229 = pneg %p77
      %p230 = pneg %p101
      %p231 = pneg %p98
      %p232 = pneg %p122
      %p233 = pneg %p119
      %p234 = pneg %p143
      %p235 = pneg %p140
      %p236 = pneg %p169
      %p237 = pneg %p166
      %s238 = smul.u32 2, %s17
      %p239 = scmp.lt.s32.totalorder %s238, 3
      %s240 = scalar_select %p239, %s238, 3
      %s241 = smul.addr %s240, 4
      %s242 = scalar_lea.vmem %s6, %s241
      %s243 = smul.u32 2, %s17
      %p244 = scmp.lt.s32.totalorder %s243, 3
      %s245 = scalar_select %p244, %s243, 3
      %s246 = smul.addr %s245, 4
      %s247 = scalar_lea.vmem %s0, %s246
      %s248 = smul.u32 2, %s17
      %s249 = smul.u32 2, %s17
      %p250 = scmp.lt.s32.totalorder %s249, 3
      %s251 = scalar_select %p250, %s249, 3
      %s252 = smul.addr %s251, 4
      %s253 = scalar_lea.vmem %s6, %s252
      %s254 = smul.u32 2, %s17
      %v256 = vld [vmem:[%s247] sm:$0xf]
      %v257 = vld [vmem:[%s247 + $0x4] sm:$0xf]
      %v258 = vunpack.c.l.bf16 %v256
      %v259 = vunpack.c.l.bf16 %v257
      %v260 = vld [vmem:[%s1] sm:$0x1]
      %v262 = vlaneseq
      %v263 = vshrl.u32 %v262, 7
      %v264 = vsub.s32 0, %v263
      %v265 = vrot.slane %v260, %v264
      %v267 = vmul.f32 %v258, %v265
      %v268 = vmul.f32 %v259, %v265
      %v269 = vld [vmem:[%s2] sm:$0x1]
      %v271 = vlaneseq
      %v272 = vshrl.u32 %v271, 7
      %v273 = vsub.s32 0, %v272
      %v274 = vrot.slane %v269, %v273
      %v276 = vadd.f32 %v267, %v274
      %v277 = vadd.f32 %v268, %v274
      %v278 = vmax.f32 %v276, 0.0
      %v279 = vmax.f32 %v277, 0.0
      %v280 = vpack.c.bf16 %v279, %v278
      %v281 = vld [vmem:[%s3] sm:$0xf]
      %v282 = vld [vmem:[%s3 + $0x4] sm:$0xf]
      %v285 = vunpack.c.l.b16 %v281
      %v286 = vunpack.c.l.b16 %v282
      %v287 = vpack.c.b16 %v286, %v285
      %vm289 = vcmask 130048
      %v291 = vsel %vm289, %v280, 0
      %293 = vmatprep.subr.bf16.mxu0 0
      %294 = vmatpush1.bf16.msra.mxu0 %v287
      %295 = vmatprep.subr.bf16.mxu0 0
      %296 = vmatpush1.bf16.msra.mxu0 0
      %297 = vmatprep.subr.bf16.mxu0 0
      %298 = vmatpush1.bf16.msra.mxu0 0
      %299 = vmatprep.subr.bf16.mxu0 0
      %300 = vmatpush1.bf16.msra.mxu0 0
      %301 = vmatprep.subr.bf16.mxu0 0
      %302 = vmatpush1.bf16.msra.mxu0 0
      %303 = vmatprep.subr.bf16.mxu0 0
      %304 = vmatpush1.bf16.msra.mxu0 0
      %305 = vmatprep.subr.bf16.mxu0 0
      %306 = vmatpush1.bf16.msra.mxu0 0
      %307 = vmatprep.subr.bf16.mxu0 0
      %308 = vmatpush1.bf16.msra.mxu0 0
      %309 = vmatprep.subr.bf16.mxu0 0
      %310 = vmatpush1.bf16.msra.mxu0 0
      %311 = vmatprep.subr.bf16.mxu0 0
      %312 = vmatpush1.bf16.msra.mxu0 0
      %313 = vmatprep.subr.bf16.mxu0 0
      %314 = vmatpush1.bf16.msra.mxu0 0
      %315 = vmatprep.subr.bf16.mxu0 0
      %316 = vmatpush1.bf16.msra.mxu0 0
      %317 = vmatprep.subr.bf16.mxu0 0
      %318 = vmatpush1.bf16.msra.mxu0 0
      %319 = vmatprep.subr.bf16.mxu0 0
      %320 = vmatpush1.bf16.msra.mxu0 0
      %321 = vmatprep.subr.bf16.mxu0 0
      %322 = vmatpush1.bf16.msra.mxu0 0
      %323 = vmatprep.subr.bf16.mxu0 0
      %324 = vmatpush1.bf16.msra.mxu0 0
      %325 = vmatprep.mubr.bf16.mxu0 0
      %326 = vmatmul.mubr.bf16.gmra.mrb[0].mxu0 %v291
      %v327 = vpop.f32.mrb[0].mxu0
      %v328 = vadd.f32 0.0, %v327
      %v329 = vpop.f32.mrb[0].mxu0
      %v330 = vpop.f32.mrb[0].mxu0
      %v331 = vadd.f32 0.0, %v330
      %v332 = vpop.f32.mrb[0].mxu0
      %333 = vdwg.mxu0
      %v334 = vld [vmem:[%s4] sm:$0x1]
      %v336 = vlaneseq
      %v337 = vshrl.u32 %v336, 7
      %v338 = vsub.s32 0, %v337
      %v339 = vrot.slane %v334, %v338
      %v341 = vmul.f32 %v328, %v339
      %v342 = vmul.f32 %v331, %v339
      %v343 = vld [vmem:[%s5] sm:$0x1]
      %v345 = vlaneseq
      %v346 = vshrl.u32 %v345, 7
      %v347 = vsub.s32 0, %v346
      %v348 = vrot.slane %v343, %v347
      %v350 = vadd.f32 %v341, %v348
      %v351 = vadd.f32 %v342, %v348
      %v352 = vmax.f32 %v350, 0.0
      %v353 = vmax.f32 %v351, 0.0
      %v354 = vpack.c.bf16 %v353, %v352
      %v356 = vunpack.c.l.b16 %v354
      %v357 = vunpack.c.h.b16 %v354
      %v358 = vpack.c.b16 %v356, %v356
      %v359 = vpack.c.b16 %v357, %v357
      %vm362 = vcmask 125952
      %363 = vst.msk [vmem:[%s253] sm:$0xf] %vm362, %v358
      %364 = vst.msk [vmem:[%s253 + $0x4] sm:$0xf] %vm362, %v359
      %s365 = smul.u32 2, %s17
      %p366 = scmp.lt.s32.totalorder %s365, 3
      %s367 = scalar_select %p366, %s365, 3
      %s368 = smul.addr %s367, 4
      %s369 = scalar_lea.vmem %s6, %s368
      // Predicated region
      $region45: #{densenet_forward.19} parent=43 // pred_check
        %p370 = pneg %p166
      $region46: #{densenet_forward.19} parent=43 // pred_check_branch
        %372 = sbr.rel (%p370) target = $region48
      $region47: #{densenet_forward.19} parent=43 // pred_region
        %s373 = smul.u32 2, %s17
      $region48: #{densenet_forward.19} parent=43 // pred_fallthru
        _
    $region44: #{densenet_forward.19} parent=5 // pred_fallthru
      _
    %p374 = scmp.le.s32.totalorder 2, %s12
    // Predicated region
    $region49: #{densenet_forward.19} parent=5 // pred_check
      %p375 = pneg %p374
    $region50: #{densenet_forward.19} parent=5 // pred_check_branch
      %377 = sbr.rel (%p375) target = $region52
    $region51: #{densenet_forward.19} parent=5 // pred_region
      %s378 = ssub.s32 %s12, 2
      // Predicated region
      $region53: #{densenet_forward.19} parent=51 // pred_check
        %p379 = pneg %p172
      $region54: #{densenet_forward.19} parent=51 // pred_check_branch
        %381 = sbr.rel (%p379) target = $region56
      $region55: #{densenet_forward.19} parent=51 // pred_region
        %s382 = smul.u32 2, %s18
        %p383 = scmp.lt.s32.totalorder %s382, 3
        %s384 = scalar_select %p383, %s382, 3
        %s385 = smul.addr %s384, 4
        %s386 = scalar_lea.vmem %s6, %s385
      $region56: #{densenet_forward.19} parent=51 // pred_fallthru
        _
    $region52: #{densenet_forward.19} parent=5 // pred_fallthru
      _
  $region6: #{densenet_forward.19} parent=0 // loop_footer
    %s16 = sadd.s32 1, %s12
  $region7: #{densenet_forward.19} parent=0 // loop_footer_branch
    %11 = sbr.rel target = $region3
  $region8: #{densenet_forward.19} parent=0 // loop_exit
    _

// kernel: densenet_forward.21
$region0: #{densenet_forward.21}
  #allocation0 [shape = 'u32[]', space=smem, size = 0x4, offset = 0x4, fixed_abs, tag = 'smem constant byte address 0x4 - core index']
  #allocation1 [shape = 'u32[144,128]{1,0:T(1,128)}', space=vmem, size = 0x12000, scoped, tag = 'internal scratch']
  %s0 = inlined_call_operand.vmem [shape: bf16[32,24], index: 0, kind: input, shape index: {}]
  %s1 = inlined_call_operand.vmem [shape: f32[1,24], index: 1, kind: input, shape index: {}]
  %s2 = inlined_call_operand.vmem [shape: f32[1,24], index: 2, kind: input, shape index: {}]
  %s3 = inlined_call_operand.vmem [shape: bf16[24,16], index: 3, kind: input, shape index: {}]
  %s4 = inlined_call_operand.vmem [shape: f32[1,16], index: 4, kind: input, shape index: {}]
  %s5 = inlined_call_operand.vmem [shape: f32[1,16], index: 5, kind: input, shape index: {}]
  %s6 = inlined_call_operand.vmem [shape: bf16[32,16], index: 6, kind: output, shape index: {}]
  %s7 = sld [smem:[#allocation0]]
  $region57: #{densenet_forward.21} parent=0
    _
  %s9 = ssub.s32 1, %s7
  %s10 = scalar_select 0, %s9, %s7
  loop: start=0, step=1, limit=4
  $region2: #{densenet_forward.21} parent=0 // loop_pre_header
    _
  $region3: #{densenet_forward.21} parent=0 // loop_header
    %s12 = sphi 0, %s16
    %p13 = scmp.ge.s32.totalorder %s12, 4
    %s22 = sphi 0, %s24
    %s25 = sphi 0, %s22
    %s26 = sphi 0, %s25
    %s42 = sphi 0, %s26
    %s46 = sphi 0, %s46
    %s48 = sphi 0, %s46
    %s49 = sphi 0, %s48
    %s63 = sphi 0, %s49
    %s67 = sphi 0, %s67
    %s69 = sphi 0, %s67
    %s70 = sphi 0, %s69
    %s84 = sphi 0, %s70
    %s88 = sphi 0, %s88
    %s90 = sphi 0, %s88
    %s91 = sphi 0, %s90
    %s105 = sphi 0, %s91
    %s109 = sphi 0, %s109
    %s111 = sphi 0, %s109
    %s112 = sphi 0, %s111
    %s126 = sphi 0, %s112
    %s130 = sphi 0, %s130
    %s132 = sphi 0, %s130
    %s133 = sphi 0, %s132
    %s147 = sphi 0, %s133
    %s153 = sphi 0, %s155
    %s156 = sphi 0, %s153
    %s157 = sphi 0, %s156
    %s173 = sphi 0, %s157
  $region4: #{densenet_forward.21} parent=0 // loop_header_branch
    %15 = sbr.rel (%p13) target = $region8
  $region5: #{densenet_forward.21} parent=0 // loop_body
    %s17 = ssub.s32 %s12, 1
    %s18 = ssub.s32 %s12, 2
    %s19 = sadd.s32 %s12, 1
    %s20 = ssub.s32 %s12, %s19
    %p21 = scmp.eq.s32.totalorder %s20, 0
    %s23 = sadd.s32 %s22, 1
    %s24 = scalar_select %p21, %s22, %s23
    %p27 = pneg %p21
    %p28 = scmp.eq.s32.totalorder %s12, 1
    %p29 = por %p27, %p28
    %p30 = scmp.ne.s32.totalorder %s22, %s25
    %p31 = scmp.eq.s32.totalorder %s12, 0
    %p32 = por %p30, %p31
    %p33 = scmp.ne.s32.totalorder %s22, %s25
    %p34 = scmp.eq.s32.totalorder %s17, 1
    %p35 = por %p33, %p34
    %p36 = scmp.ne.s32.totalorder %s25, %s26
    %p37 = scmp.eq.s32.totalorder %s17, 0
    %p38 = por %p36, %p37
    %p39 = scmp.ne.s32.totalorder %s25, %s26
    %p40 = scmp.eq.s32.totalorder %s18, 1
    %p41 = por %p39, %p40
    %p43 = scmp.ne.s32.totalorder %s26, %s42
    %p44 = scmp.eq.s32.totalorder %s18, 0
    %p45 = por %p43, %p44
    %s47 = sadd.s32 %s46, 1
    %p50 = scmp.eq.s32.totalorder %s12, 1
    %p51 = scmp.ne.s32.totalorder %s46, %s48
    %p52 = scmp.eq.s32.totalorder %s12, 0
    %p53 = por %p51, %p52
    %p54 = scmp.ne.s32.totalorder %s46, %s48
    %p55 = scmp.eq.s32.totalorder %s17, 1
    %p56 = por %p54, %p55
    %p57 = scmp.ne.s32.totalorder %s48, %s49
    %p58 = scmp.eq.s32.totalorder %s17, 0
    %p59 = por %p57, %p58
    %p60 = scmp.ne.s32.totalorder %s48, %s49
    %p61 = scmp.eq.s32.totalorder %s18, 1
    %p62 = por %p60, %p61
    %p64 = scmp.ne.s32.totalorder %s49, %s63
    %p65 = scmp.eq.s32.totalorder %s18, 0
    %p66 = por %p64, %p65
    %s68 = sadd.s32 %s67, 1
    %p71 = scmp.eq.s32.totalorder %s12, 1
    %p72 = scmp.ne.s32.totalorder %s67, %s69
    %p73 = scmp.eq.s32.totalorder %s12, 0
    %p74 = por %p72, %p73
    %p75 = scmp.ne.s32.totalorder %s67, %s69
    %p76 = scmp.eq.s32.totalorder %s17, 1
    %p77 = por %p75, %p76
    %p78 = scmp.ne.s32.totalorder %s69, %s70
    %p79 = scmp.eq.s32.totalorder %s17, 0
    %p80 = por %p78, %p79
    %p81 = scmp.ne.s32.totalorder %s69, %s70
    %p82 = scmp.eq.s32.totalorder %s18, 1
    %p83 = por %p81, %p82
    %p85 = scmp.ne.s32.totalorder %s70, %s84
    %p86 = scmp.eq.s32.totalorder %s18, 0
    %p87 = por %p85, %p86
    %s89 = sadd.s32 %s88, 1
    %p92 = scmp.eq.s32.totalorder %s12, 1
    %p93 = scmp.ne.s32.totalorder %s88, %s90
    %p94 = scmp.eq.s32.totalorder %s12, 0
    %p95 = por %p93, %p94
    %p96 = scmp.ne.s32.totalorder %s88, %s90
    %p97 = scmp.eq.s32.totalorder %s17, 1
    %p98 = por %p96, %p97
    %p99 = scmp.ne.s32.totalorder %s90, %s91
    %p100 = scmp.eq.s32.totalorder %s17, 0
    %p101 = por %p99, %p100
    %p102 = scmp.ne.s32.totalorder %s90, %s91
    %p103 = scmp.eq.s32.totalorder %s18, 1
    %p104 = por %p102, %p103
    %p106 = scmp.ne.s32.totalorder %s91, %s105
    %p107 = scmp.eq.s32.totalorder %s18, 0
    %p108 = por %p106, %p107
    %s110 = sadd.s32 %s109, 1
    %p113 = scmp.eq.s32.totalorder %s12, 1
    %p114 = scmp.ne.s32.totalorder %s109, %s111
    %p115 = scmp.eq.s32.totalorder %s12, 0
    %p116 = por %p114, %p115
    %p117 = scmp.ne.s32.totalorder %s109, %s111
    %p118 = scmp.eq.s32.totalorder %s17, 1
    %p119 = por %p117, %p118
    %p120 = scmp.ne.s32.totalorder %s111, %s112
    %p121 = scmp.eq.s32.totalorder %s17, 0
    %p122 = por %p120, %p121
    %p123 = scmp.ne.s32.totalorder %s111, %s112
    %p124 = scmp.eq.s32.totalorder %s18, 1
    %p125 = por %p123, %p124
    %p127 = scmp.ne.s32.totalorder %s112, %s126
    %p128 = scmp.eq.s32.totalorder %s18, 0
    %p129 = por %p127, %p128
    %s131 = sadd.s32 %s130, 1
    %p134 = scmp.eq.s32.totalorder %s12, 1
    %p135 = scmp.ne.s32.totalorder %s130, %s132
    %p136 = scmp.eq.s32.totalorder %s12, 0
    %p137 = por %p135, %p136
    %p138 = scmp.ne.s32.totalorder %s130, %s132
    %p139 = scmp.eq.s32.totalorder %s17, 1
    %p140 = por %p138, %p139
    %p141 = scmp.ne.s32.totalorder %s132, %s133
    %p142 = scmp.eq.s32.totalorder %s17, 0
    %p143 = por %p141, %p142
    %p144 = scmp.ne.s32.totalorder %s132, %s133
    %p145 = scmp.eq.s32.totalorder %s18, 1
    %p146 = por %p144, %p145
    %p148 = scmp.ne.s32.totalorder %s133, %s147
    %p149 = scmp.eq.s32.totalorder %s18, 0
    %p150 = por %p148, %p149
    %s151 = ssub.s32 %s12, %s19
    %p152 = scmp.eq.s32.totalorder %s151, 0
    %s154 = sadd.s32 %s153, 1
    %s155 = scalar_select %p152, %s153, %s154
    %p158 = pneg %p152
    %p159 = scmp.eq.s32.totalorder %s12, 1
    %p160 = por %p158, %p159
    %p161 = scmp.ne.s32.totalorder %s153, %s156
    %p162 = scmp.eq.s32.totalorder %s12, 0
    %p163 = por %p161, %p162
    %p164 = scmp.ne.s32.totalorder %s153, %s156
    %p165 = scmp.eq.s32.totalorder %s17, 1
    %p166 = por %p164, %p165
    %p167 = scmp.ne.s32.totalorder %s156, %s157
    %p168 = scmp.eq.s32.totalorder %s17, 0
    %p169 = por %p167, %p168
    %p170 = scmp.ne.s32.totalorder %s156, %s157
    %p171 = scmp.eq.s32.totalorder %s18, 1
    %p172 = por %p170, %p171
    %p174 = scmp.ne.s32.totalorder %s157, %s173
    %p175 = scmp.eq.s32.totalorder %s18, 0
    %p176 = por %p174, %p175
    %p177 = scmp.le.s32.totalorder 1, %s12
    %p178 = scmp.lt.s32.totalorder %s12, 3
    %p179 = pnand %p177, %p178
    %p180 = pneg %p179
    // Predicated region
    $region9: #{densenet_forward.21} parent=5 // pred_check
      _
    $region10: #{densenet_forward.21} parent=5 // pred_check_branch
      %182 = sbr.rel (%p179) target = $region12
    $region11: #{densenet_forward.21} parent=5 // pred_region
      %s183 = ssub.s32 %s12, 1
      // Predicated region
      $region13: #{densenet_forward.21} parent=11 // pred_check
        %p184 = pneg %p59
      $region14: #{densenet_forward.21} parent=11 // pred_check_branch
        %186 = sbr.rel (%p184) target = $region16
      $region15: #{densenet_forward.21} parent=11 // pred_region
        _
      $region16: #{densenet_forward.21} parent=11 // pred_fallthru
        _
      // Predicated region
      $region17: #{densenet_forward.21} parent=11 // pred_check
        %p187 = pneg %p80
      $region18: #{densenet_forward.21} parent=11 // pred_check_branch
        %189 = sbr.rel (%p187) target = $region20
      $region19: #{densenet_forward.21} parent=11 // pred_region
        _
      $region20: #{densenet_forward.21} parent=11 // pred_fallthru
        _
      // Predicated region
      $region21: #{densenet_forward.21} parent=11 // pred_check
        %p190 = pneg %p101
      $region22: #{densenet_forward.21} parent=11 // pred_check_branch
        %192 = sbr.rel (%p190) target = $region24
      $region23: #{densenet_forward.21} parent=11 // pred_region
        _
      $region24: #{densenet_forward.21} parent=11 // pred_fallthru
        _
      // Predicated region
      $region25: #{densenet_forward.21} parent=11 // pred_check
        %p193 = pneg %p122
      $region26: #{densenet_forward.21} parent=11 // pred_check_branch
        %195 = sbr.rel (%p193) target = $region28
      $region27: #{densenet_forward.21} parent=11 // pred_region
        _
      $region28: #{densenet_forward.21} parent=11 // pred_fallthru
        _
      // Predicated region
      $region29: #{densenet_forward.21} parent=11 // pred_check
        %p196 = pneg %p143
      $region30: #{densenet_forward.21} parent=11 // pred_check_branch
        %198 = sbr.rel (%p196) target = $region32
      $region31: #{densenet_forward.21} parent=11 // pred_region
        _
      $region32: #{densenet_forward.21} parent=11 // pred_fallthru
        _
    $region12: #{densenet_forward.21} parent=5 // pred_fallthru
      _
    %p199 = scmp.lt.s32.totalorder %s12, 2
    // Predicated region
    $region33: #{densenet_forward.21} parent=5 // pred_check
      %p200 = pneg %p199
    $region34: #{densenet_forward.21} parent=5 // pred_check_branch
      %202 = sbr.rel (%p200) target = $region36
    $region35: #{densenet_forward.21} parent=5 // pred_region
      // Predicated region
      $region37: #{densenet_forward.21} parent=35 // pred_check
        %p203 = pneg %p32
      $region38: #{densenet_forward.21} parent=35 // pred_check_branch
        %205 = sbr.rel (%p203) target = $region40
      $region39: #{densenet_forward.21} parent=35 // pred_region
        %s206 = smul.u32 2, %s12
        %p207 = scmp.lt.s32.totalorder %s206, 3
        %s208 = scalar_select %p207, %s206, 3
        %s209 = smul.addr %s208, 4
        %s210 = scalar_lea.vmem %s0, %s209
        %s211 = smul.u32 2, %s12
      $region40: #{densenet_forward.21} parent=35 // pred_fallthru
        _
    $region36: #{densenet_forward.21} parent=5 // pred_fallthru
      _
    %p212 = scmp.le.s32.totalorder 1, %s12
    %p213 = scmp.lt.s32.totalorder %s12, 3
    %p214 = pnand %p212, %p213
    %p215 = pneg %p214
    // Predicated region
    $region41: #{densenet_forward.21} parent=5 // pred_check
      _
    $region42: #{densenet_forward.21} parent=5 // pred_check_branch
      %217 = sbr.rel (%p214) target = $region44
    $region43: #{densenet_forward.21} parent=5 // pred_region
      %s218 = ssub.s32 %s12, 1
      %s219 = smul.u32 2, %s17
      %p220 = scmp.lt.s32.totalorder %s219, 3
      %s221 = scalar_select %p220, %s219, 3
      %s222 = smul.addr %s221, 4
      %s223 = scalar_lea.vmem %s0, %s222
      %p224 = pneg %p38
      %p225 = pneg %p35
      %p226 = pneg %p59
      %p227 = pneg %p56
      %p228 = pneg %p80
      %p229 = pneg %p77
      %p230 = pneg %p101
      %p231 = pneg %p98
      %p232 = pneg %p122
      %p233 = pneg %p119
      %p234 = pneg %p143
      %p235 = pneg %p140
      %p236 = pneg %p169
      %p237 = pneg %p166
      %s238 = smul.u32 2, %s17
      %p239 = scmp.lt.s32.totalorder %s238, 3
      %s240 = scalar_select %p239, %s238, 3
      %s241 = smul.addr %s240, 4
      %s242 = scalar_lea.vmem %s6, %s241
      %s243 = smul.u32 2, %s17
      %p244 = scmp.lt.s32.totalorder %s243, 3
      %s245 = scalar_select %p244, %s243, 3
      %s246 = smul.addr %s245, 4
      %s247 = scalar_lea.vmem %s0, %s246
      %s248 = smul.u32 2, %s17
      %s249 = smul.u32 2, %s17
      %p250 = scmp.lt.s32.totalorder %s249, 3
      %s251 = scalar_select %p250, %s249, 3
      %s252 = smul.addr %s251, 4
      %s253 = scalar_lea.vmem %s6, %s252
      %s254 = smul.u32 2, %s17
      %v256 = vld [vmem:[%s247] sm:$0xf]
      %v257 = vld [vmem:[%s247 + $0x4] sm:$0xf]
      %v258 = vunpack.c.l.bf16 %v256
      %v259 = vunpack.c.l.bf16 %v257
      %v260 = vld [vmem:[%s1] sm:$0x1]
      %v262 = vlaneseq
      %v263 = vshrl.u32 %v262, 7
      %v264 = vsub.s32 0, %v263
      %v265 = vrot.slane %v260, %v264
      %v267 = vmul.f32 %v258, %v265
      %v268 = vmul.f32 %v259, %v265
      %v269 = vld [vmem:[%s2] sm:$0x1]
      %v271 = vlaneseq
      %v272 = vshrl.u32 %v271, 7
      %v273 = vsub.s32 0, %v272
      %v274 = vrot.slane %v269, %v273
      %v276 = vadd.f32 %v267, %v274
      %v277 = vadd.f32 %v268, %v274
      %v278 = vmax.f32 %v276, 0.0
      %v279 = vmax.f32 %v277, 0.0
      %v280 = vpack.c.bf16 %v279, %v278
      %v281 = vld [vmem:[%s3] sm:$0xf]
      %v282 = vld [vmem:[%s3 + $0x4] sm:$0xf]
      %v283 = vld [vmem:[%s3 + $0x8] sm:$0xf]
      %v287 = vunpack.c.l.b16 %v281
      %v288 = vunpack.c.l.b16 %v282
      %v289 = vunpack.c.l.b16 %v283
      %v290 = vpack.c.b16 %v288, %v287
      %v291 = vpack.c.b16 %v289, %v289
      %vm293 = vcmask 195584
      %v295 = vsel %vm293, %v280, 0
      %vm297 = vcmask 1043456
      %v299 = vsel %vm297, %v291, 0
      %301 = vmatprep.subr.bf16.mxu0 0
      %302 = vmatpush1.bf16.msra.mxu0 %v290
      %303 = vmatprep.subr.bf16.mxu0 0
      %304 = vmatpush1.bf16.msra.mxu0 %v299
      %305 = vmatprep.subr.bf16.mxu0 0
      %306 = vmatpush1.bf16.msra.mxu0 0
      %307 = vmatprep.subr.bf16.mxu0 0
      %308 = vmatpush1.bf16.msra.mxu0 0
      %309 = vmatprep.subr.bf16.mxu0 0
      %310 = vmatpush1.bf16.msra.mxu0 0
      %311 = vmatprep.subr.bf16.mxu0 0
      %312 = vmatpush1.bf16.msra.mxu0 0
      %313 = vmatprep.subr.bf16.mxu0 0
      %314 = vmatpush1.bf16.msra.mxu0 0
      %315 = vmatprep.subr.bf16.mxu0 0
      %316 = vmatpush1.bf16.msra.mxu0 0
      %317 = vmatprep.subr.bf16.mxu0 0
      %318 = vmatpush1.bf16.msra.mxu0 0
      %319 = vmatprep.subr.bf16.mxu0 0
      %320 = vmatpush1.bf16.msra.mxu0 0
      %321 = vmatprep.subr.bf16.mxu0 0
      %322 = vmatpush1.bf16.msra.mxu0 0
      %323 = vmatprep.subr.bf16.mxu0 0
      %324 = vmatpush1.bf16.msra.mxu0 0
      %325 = vmatprep.subr.bf16.mxu0 0
      %326 = vmatpush1.bf16.msra.mxu0 0
      %327 = vmatprep.subr.bf16.mxu0 0
      %328 = vmatpush1.bf16.msra.mxu0 0
      %329 = vmatprep.subr.bf16.mxu0 0
      %330 = vmatpush1.bf16.msra.mxu0 0
      %331 = vmatprep.subr.bf16.mxu0 0
      %332 = vmatpush1.bf16.msra.mxu0 0
      %333 = vmatprep.mubr.bf16.mxu0 0
      %334 = vmatmul.mubr.bf16.gmra.mrb[0].mxu0 %v295
      %v335 = vpop.f32.mrb[0].mxu0
      %v336 = vadd.f32 0.0, %v335
      %v337 = vpop.f32.mrb[0].mxu0
      %v338 = vpop.f32.mrb[0].mxu0
      %v339 = vadd.f32 0.0, %v338
      %v340 = vpop.f32.mrb[0].mxu0
      %341 = vdwg.mxu0
      %v342 = vld [vmem:[%s4] sm:$0x1]
      %v344 = vlaneseq
      %v345 = vshrl.u32 %v344, 7
      %v346 = vsub.s32 0, %v345
      %v347 = vrot.slane %v342, %v346
      %v349 = vmul.f32 %v336, %v347
      %v350 = vmul.f32 %v339, %v347
      %v351 = vld [vmem:[%s5] sm:$0x1]
      %v353 = vlaneseq
      %v354 = vshrl.u32 %v353, 7
      %v355 = vsub.s32 0, %v354
      %v356 = vrot.slane %v351, %v355
      %v358 = vadd.f32 %v349, %v356
      %v359 = vadd.f32 %v350, %v356
      %v360 = vmax.f32 %v358, 0.0
      %v361 = vmax.f32 %v359, 0.0
      %v362 = vpack.c.bf16 %v361, %v360
      %v364 = vunpack.c.l.b16 %v362
      %v365 = vunpack.c.h.b16 %v362
      %v366 = vpack.c.b16 %v364, %v364
      %v367 = vpack.c.b16 %v365, %v365
      %vm370 = vcmask 125952
      %371 = vst.msk [vmem:[%s253] sm:$0xf] %vm370, %v366
      %372 = vst.msk [vmem:[%s253 + $0x4] sm:$0xf] %vm370, %v367
      %s373 = smul.u32 2, %s17
      %p374 = scmp.lt.s32.totalorder %s373, 3
      %s375 = scalar_select %p374, %s373, 3
      %s376 = smul.addr %s375, 4
      %s377 = scalar_lea.vmem %s6, %s376
      // Predicated region
      $region45: #{densenet_forward.21} parent=43 // pred_check
        %p378 = pneg %p166
      $region46: #{densenet_forward.21} parent=43 // pred_check_branch
        %380 = sbr.rel (%p378) target = $region48
      $region47: #{densenet_forward.21} parent=43 // pred_region
        %s381 = smul.u32 2, %s17
      $region48: #{densenet_forward.21} parent=43 // pred_fallthru
        _
    $region44: #{densenet_forward.21} parent=5 // pred_fallthru
      _
    %p382 = scmp.le.s32.totalorder 2, %s12
    // Predicated region
    $region49: #{densenet_forward.21} parent=5 // pred_check
      %p383 = pneg %p382
    $region50: #{densenet_forward.21} parent=5 // pred_check_branch
      %385 = sbr.rel (%p383) target = $region52
    $region51: #{densenet_forward.21} parent=5 // pred_region
      %s386 = ssub.s32 %s12, 2
      // Predicated region
      $region53: #{densenet_forward.21} parent=51 // pred_check
        %p387 = pneg %p172
      $region54: #{densenet_forward.21} parent=51 // pred_check_branch
        %389 = sbr.rel (%p387) target = $region56
      $region55: #{densenet_forward.21} parent=51 // pred_region
        %s390 = smul.u32 2, %s18
        %p391 = scmp.lt.s32.totalorder %s390, 3
        %s392 = scalar_select %p391, %s390, 3
        %s393 = smul.addr %s392, 4
        %s394 = scalar_lea.vmem %s6, %s393
      $region56: #{densenet_forward.21} parent=51 // pred_fallthru
        _
    $region52: #{densenet_forward.21} parent=5 // pred_fallthru
      _
  $region6: #{densenet_forward.21} parent=0 // loop_footer
    %s16 = sadd.s32 1, %s12
  $region7: #{densenet_forward.21} parent=0 // loop_footer_branch
    %11 = sbr.rel target = $region3
  $region8: #{densenet_forward.21} parent=0 // loop_exit
    _

// kernel: densenet_forward.20
$region0: #{densenet_forward.20}
  #allocation0 [shape = 'u32[]', space=smem, size = 0x4, offset = 0x4, fixed_abs, tag = 'smem constant byte address 0x4 - core index']
  #allocation1 [shape = 'u32[144,128]{1,0:T(1,128)}', space=vmem, size = 0x12000, scoped, tag = 'internal scratch']
  #allocation2 [shape = 'bf16[32,16]{1,0:T(16,128)(2,1)}', space=vmem, size = 0x2000, scoped, tag = 'scratch operand']
  %s0 = inlined_call_operand.vmem [shape: bf16[2,16,16], index: 0, kind: input, shape index: {}]
  %s1 = inlined_call_operand.vmem [shape: bf16[144,8], index: 1, kind: input, shape index: {}]
  %s2 = inlined_call_operand.vmem [shape: bf16[2,16,8], index: 2, kind: output, shape index: {}]
  %s3 = sld [smem:[#allocation0]]
  $region41: #{densenet_forward.20} parent=0
    _
  %s5 = ssub.s32 1, %s3
  %s6 = scalar_select 0, %s5, %s3
  loop: start=0, step=1, limit=4
  $region2: #{densenet_forward.20} parent=0 // loop_pre_header
    _
  $region3: #{densenet_forward.20} parent=0 // loop_header
    %s8 = sphi 0, %s12
    %p9 = scmp.ge.s32.totalorder %s8, 4
    %s18 = sphi 0, %s20
    %s21 = sphi 0, %s18
    %s22 = sphi 0, %s21
    %s38 = sphi 0, %s22
    %s42 = sphi 0, %s42
    %s44 = sphi 0, %s42
    %s45 = sphi 0, %s44
    %s59 = sphi 0, %s45
    %s65 = sphi 0, %s67
    %s68 = sphi 0, %s65
    %s69 = sphi 0, %s68
    %s85 = sphi 0, %s69
  $region4: #{densenet_forward.20} parent=0 // loop_header_branch
    %11 = sbr.rel (%p9) target = $region8
  $region5: #{densenet_forward.20} parent=0 // loop_body
    %s13 = ssub.s32 %s8, 1
    %s14 = ssub.s32 %s8, 2
    %s15 = sadd.s32 %s8, 1
    %s16 = ssub.s32 %s8, %s15
    %p17 = scmp.eq.s32.totalorder %s16, 0
    %s19 = sadd.s32 %s18, 1
    %s20 = scalar_select %p17, %s18, %s19
    %p23 = pneg %p17
    %p24 = scmp.eq.s32.totalorder %s8, 1
    %p25 = por %p23, %p24
    %p26 = scmp.ne.s32.totalorder %s18, %s21
    %p27 = scmp.eq.s32.totalorder %s8, 0
    %p28 = por %p26, %p27
    %p29 = scmp.ne.s32.totalorder %s18, %s21
    %p30 = scmp.eq.s32.totalorder %s13, 1
    %p31 = por %p29, %p30
    %p32 = scmp.ne.s32.totalorder %s21, %s22
    %p33 = scmp.eq.s32.totalorder %s13, 0
    %p34 = por %p32, %p33
    %p35 = scmp.ne.s32.totalorder %s21, %s22
    %p36 = scmp.eq.s32.totalorder %s14, 1
    %p37 = por %p35, %p36
    %p39 = scmp.ne.s32.totalorder %s22, %s38
    %p40 = scmp.eq.s32.totalorder %s14, 0
    %p41 = por %p39, %p40
    %s43 = sadd.s32 %s42, 1
    %p46 = scmp.eq.s32.totalorder %s8, 1
    %p47 = scmp.ne.s32.totalorder %s42, %s44
    %p48 = scmp.eq.s32.totalorder %s8, 0
    %p49 = por %p47, %p48
    %p50 = scmp.ne.s32.totalorder %s42, %s44
    %p51 = scmp.eq.s32.totalorder %s13, 1
    %p52 = por %p50, %p51
    %p53 = scmp.ne.s32.totalorder %s44, %s45
    %p54 = scmp.eq.s32.totalorder %s13, 0
    %p55 = por %p53, %p54
    %p56 = scmp.ne.s32.totalorder %s44, %s45
    %p57 = scmp.eq.s32.totalorder %s14, 1
    %p58 = por %p56, %p57
    %p60 = scmp.ne.s32.totalorder %s45, %s59
    %p61 = scmp.eq.s32.totalorder %s14, 0
    %p62 = por %p60, %p61
    %s63 = ssub.s32 %s8, %s15
    %p64 = scmp.eq.s32.totalorder %s63, 0
    %s66 = sadd.s32 %s65, 1
    %s67 = scalar_select %p64, %s65, %s66
    %p70 = pneg %p64
    %p71 = scmp.eq.s32.totalorder %s8, 1
    %p72 = por %p70, %p71
    %p73 = scmp.ne.s32.totalorder %s65, %s68
    %p74 = scmp.eq.s32.totalorder %s8, 0
    %p75 = por %p73, %p74
    %p76 = scmp.ne.s32.totalorder %s65, %s68
    %p77 = scmp.eq.s32.totalorder %s13, 1
    %p78 = por %p76, %p77
    %p79 = scmp.ne.s32.totalorder %s68, %s69
    %p80 = scmp.eq.s32.totalorder %s13, 0
    %p81 = por %p79, %p80
    %p82 = scmp.ne.s32.totalorder %s68, %s69
    %p83 = scmp.eq.s32.totalorder %s14, 1
    %p84 = por %p82, %p83
    %p86 = scmp.ne.s32.totalorder %s69, %s85
    %p87 = scmp.eq.s32.totalorder %s14, 0
    %p88 = por %p86, %p87
    %p89 = scmp.le.s32.totalorder 1, %s8
    %p90 = scmp.lt.s32.totalorder %s8, 3
    %p91 = pnand %p89, %p90
    %p92 = pneg %p91
    // Predicated region
    $region9: #{densenet_forward.20} parent=5 // pred_check
      _
    $region10: #{densenet_forward.20} parent=5 // pred_check_branch
      %94 = sbr.rel (%p91) target = $region12
    $region11: #{densenet_forward.20} parent=5 // pred_region
      %s95 = ssub.s32 %s8, 1
      // Predicated region
      $region13: #{densenet_forward.20} parent=11 // pred_check
        %p96 = pneg %p55
      $region14: #{densenet_forward.20} parent=11 // pred_check_branch
        %98 = sbr.rel (%p96) target = $region16
      $region15: #{densenet_forward.20} parent=11 // pred_region
        _
      $region16: #{densenet_forward.20} parent=11 // pred_fallthru
        _
    $region12: #{densenet_forward.20} parent=5 // pred_fallthru
      _
    %p99 = scmp.lt.s32.totalorder %s8, 2
    // Predicated region
    $region17: #{densenet_forward.20} parent=5 // pred_check
      %p100 = pneg %p99
    $region18: #{densenet_forward.20} parent=5 // pred_check_branch
      %102 = sbr.rel (%p100) target = $region20
    $region19: #{densenet_forward.20} parent=5 // pred_region
      // Predicated region
      $region21: #{densenet_forward.20} parent=19 // pred_check
        %p103 = pneg %p28
      $region22: #{densenet_forward.20} parent=19 // pred_check_branch
        %105 = sbr.rel (%p103) target = $region24
      $region23: #{densenet_forward.20} parent=19 // pred_region
        %p106 = scmp.lt.s32.totalorder %s8, 1
        %s107 = scalar_select %p106, %s8, 1
        %s108 = smul.addr %s107, 2
        %s109 = smul.addr %s108, 4
        %s110 = scalar_lea.vmem %s0, %s109
      $region24: #{densenet_forward.20} parent=19 // pred_fallthru
        _
    $region20: #{densenet_forward.20} parent=5 // pred_fallthru
      _
    %p111 = scmp.le.s32.totalorder 1, %s8
    %p112 = scmp.lt.s32.totalorder %s8, 3
    %p113 = pnand %p111, %p112
    %p114 = pneg %p113
    // Predicated region
    $region25: #{densenet_forward.20} parent=5 // pred_check
      _
    $region26: #{densenet_forward.20} parent=5 // pred_check_branch
      %116 = sbr.rel (%p113) target = $region28
    $region27: #{densenet_forward.20} parent=5 // pred_region
      %s117 = ssub.s32 %s8, 1
      %p118 = scmp.lt.s32.totalorder %s13, 1
      %s119 = scalar_select %p118, %s13, 1
      %s120 = smul.addr %s119, 2
      %s121 = smul.addr %s120, 4
      %s122 = scalar_lea.vmem %s0, %s121
      %p123 = pneg %p34
      %p124 = pneg %p31
      %p125 = pneg %p55
      %p126 = pneg %p52
      %p127 = pneg %p81
      %p128 = pneg %p78
      %p129 = scmp.lt.s32.totalorder %s13, 1
      %s130 = scalar_select %p129, %s13, 1
      %s131 = smul.addr %s130, 2
      %s132 = smul.addr %s131, 4
      %s133 = scalar_lea.vmem %s2, %s132
      %p134 = scmp.lt.s32.totalorder %s13, 1
      %s135 = scalar_select %p134, %s13, 1
      %s136 = smul.addr %s135, 2
      %s137 = smul.addr %s136, 4
      %s138 = scalar_lea.vmem %s0, %s137
      %p139 = scmp.lt.s32.totalorder %s13, 1
      %s140 = scalar_select %p139, %s13, 1
      %s141 = smul.addr %s140, 2
      %s142 = smul.addr %s141, 4
      %s143 = scalar_lea.vmem %s2, %s142
      %vm147 = vcmask 125952
      %148 = vst.msk [vmem:[#allocation2] sm:$0xf] %vm147, 0
      %vm149 = vcmask 130052
      %150 = vst.msk [vmem:[#allocation2 + $0x8] sm:$0xf0] %vm149, 0
      %v151 = vld [vmem:[%s138] sm:$0xf]
      %v152 = vld [vmem:[%s138 + $0x4] sm:$0xf]
      %v155 = vunpack.c.l.b16 %v151
      %v156 = vunpack.c.l.b16 %v152
      %v157 = vpack.c.b16 %v155, %v155
      %v158 = vpack.c.b16 %v156, %v156
      %161 = vst.msk [vmem:[#allocation2] sm:$0xf0] %vm149, %v157
      %162 = vst.msk [vmem:[#allocation2 + $0x8] sm:$0xf] %vm147, %v158
      %v163 = vlaneseq
      %v164 = vshrl.u32 %v163, 7
      %v165 = vadd.s32 %v164, 8
      %vm166 = vcmp.lt.s32.totalorder %v164, 0
      %v167 = vsub.s32 0, %v164
      %v168 = vsel %vm166, %v167, %v164
      %v169 = vshrl.u32 %v168, 2
      %v170 = vand.u32 %v168, 3
      %v171 = vsub.s32 0, %v170
      %v172 = vsel %vm166, %v171, %v170
      %vm173 = vcmp.lt.s32.totalorder %v165, 0
      %v174 = vsub.s32 0, %v165
      %v175 = vsel %vm173, %v174, %v165
      %v176 = vshrl.u32 %v175, 2
      %v177 = vand.u32 %v175, 3
      %v178 = vsub.s32 0, %v177
      %v179 = vsel %vm173, %v178, %v177
      %vm180 = vcmp.ne.s32.totalorder %v172, 0
      %vm181 = vcmp.ne.s32.totalorder %v179, 0
      %vm182 = vcmp.lt.s32.totalorder %v172, 0
      %vm183 = vcmp.lt.s32.totalorder %v179, 0
      %vm184 = vmand %vm182, %vm180
      %vm185 = vmand %vm183, %vm181
      %v186 = vadd.s32 %v172, 4
      %v187 = vadd.s32 %v179, 4
      %v188 = vsel %vm184, %v186, %v172
      %v189 = vsel %vm185, %v187, %v179
      %vm190 = vcmp.ge.s32.totalorder %v188, 1
      %vm191 = vcmp.ge.s32.totalorder %v189, 1
      %vm192 = vcmp.le.s32.totalorder %v188, 2
      %vm193 = vcmp.le.s32.totalorder %v189, 2
      %v194 = vld [vmem:[#allocation2] sm:$0xfe]
      %v195 = vld [vmem:[#allocation2 + $0x8] sm:$0x3]
      %v196 = vsel %vm190, 1, 0
      %v197 = vsel %vm191, 1, 0
      %vm198 = vcmp.eq.s32.totalorder %v196, 1
      %vm199 = vcmp.eq.s32.totalorder %v197, 1
      %vm200 = vmpackc.low %vm198, %vm198
      %vm201 = vmpackc.low %vm199, %vm199
      %v202 = vsel %vm200, 65537, 0
      %v203 = vsel %vm201, 65537, 0
      %v204 = vunpack.c.l.b16 %v202
      %v205 = vunpack.c.l.b16 %v203
      %v206 = vpack.c.b16 %v205, %v204
      %v208 = vshrl.u32 %v206, 16
      %v210 = vrot.slane %v208, 6
      %v211 = vshll.u32 %v206, 16
      %v213 = vrot.slane %v211, 7
      %v214 = vor.u32 %v210, %v213
      %vm215 = vcmp.ne.s16.totalorder %v214, 0
      %v216 = vsel %vm215, %v194, 0
      %v217 = vsel %vm215, %v195, 0
      %v218 = vld [vmem:[#allocation2] sm:$0xfc]
      %v219 = vld [vmem:[#allocation2 + $0x8] sm:$0x7]
      %v220 = vsel %vm192, 1, 0
      %v221 = vsel %vm193, 1, 0
      %vm222 = vcmp.eq.s32.totalorder %v220, 1
      %vm223 = vcmp.eq.s32.totalorder %v221, 1
      %vm224 = vmpackc.low %vm222, %vm222
      %vm225 = vmpackc.low %vm223, %vm223
      %v226 = vsel %vm224, 65537, 0
      %v227 = vsel %vm225, 65537, 0
      %v228 = vunpack.c.l.b16 %v226
      %v229 = vunpack.c.l.b16 %v227
      %v230 = vpack.c.b16 %v229, %v228
      %v232 = vshrl.u32 %v230, 16
      %v234 = vrot.slane %v232, 5
      %v235 = vshll.u32 %v230, 16
      %v237 = vrot.slane %v235, 6
      %v238 = vor.u32 %v234, %v237
      %vm239 = vcmp.ne.s16.totalorder %v238, 0
      %v240 = vsel %vm239, %v218, 0
      %v241 = vsel %vm239, %v219, 0
      %v242 = vld [vmem:[#allocation2] sm:$0xf8]
      %v243 = vld [vmem:[#allocation2 + $0x8] sm:$0xf]
      %v244 = vrot.slane %v208, 4
      %v245 = vrot.slane %v211, 5
      %v246 = vor.u32 %v244, %v245
      %vm247 = vcmp.ne.s16.totalorder %v246, 0
      %v248 = vsel %vm247, %v242, 0
      %v249 = vsel %vm247, %v243, 0
      %v250 = vld [vmem:[#allocation2] sm:$0xf0]
      %v251 = vld [vmem:[#allocation2 + $0x8] sm:$0x1f]
      %v252 = vrot.slane %v232, 3
      %v253 = vrot.slane %v235, 4
      %v254 = vor.u32 %v252, %v253
      %vm255 = vcmp.ne.s16.totalorder %v254, 0
      %v256 = vsel %vm255, %v250, 0
      %v257 = vsel %vm255, %v251, 0
      %v258 = vld [vmem:[#allocation2] sm:$0xe0]
      %v259 = vld [vmem:[#allocation2 + $0x8] sm:$0x3f]
      %v260 = vrot.slane %v208, 2
      %v261 = vrot.slane %v211, 3
      %v262 = vor.u32 %v260, %v261
      %vm263 = vcmp.ne.s16.totalorder %v262, 0
      %v264 = vsel %vm263, %v258, 0
      %v265 = vsel %vm263, %v259, 0
      %v266 = vld [vmem:[#allocation2] sm:$0xc0]
      %v267 = vld [vmem:[#allocation2 + $0x8] sm:$0x7f]
      %v268 = vrot.slane %v232, 1
      %v269 = vrot.slane %v235, 2
      %v270 = vor.u32 %v268, %v269
      %vm271 = vcmp.ne.s16.totalorder %v270, 0
      %v272 = vsel %vm271, %v266, 0
      %v273 = vsel %vm271, %v267, 0
      %vm274 = vsmask.f32 7424
      %v276 = vshrl.u32 %v218, 16
      %v278 = vshll.u32 %v218, 16
      %v280 = vrot.slane %v278, 1
      %v281 = vor.u32 %v276, %v280
      %v283 = vshll.u32 %v195, 16
      %v285 = vrot.slane %v283, 1
      %v286 = vsel %vm274, %v281, %v285
      %v287 = vshrl.u32 %v195, 16
      %v289 = vor.u32 %v287, %v285
      %290 = vrot.lane.b32.xlu0 %v286, 16
      %v291 = vpop.permute.xlu0 %290
      %292 = vrot.lane.b32.xlu0 %v289, 16
      %v293 = vpop.permute.xlu0 %292
      %vm296 = vcmask 1046528
      %v297 = vrot.slane %v240, 1
      %v298 = vrot.slane %v241, 1
      %v299 = vsel %vm296, %v297, %v298
      %300 = vrot.lane.b32.xlu0 %v299, 32
      %v301 = vpop.permute.xlu0 %300
      %302 = vrot.lane.b32.xlu0 %v298, 32
      %v303 = vpop.permute.xlu0 %302
      %vm306 = vcmask 1045504
      %v307 = vrot.slane %v248, 2
      %v308 = vrot.slane %v249, 2
      %v309 = vsel %vm306, %v307, %v308
      %310 = vrot.lane.b32.xlu0 %v309, 48
      %v311 = vpop.permute.xlu0 %310
      %312 = vrot.lane.b32.xlu0 %v308, 48
      %v313 = vpop.permute.xlu0 %312
      %vm314 = vsmask.f32 5376
      %v316 = vshrl.u32 %v250, 16
      %v318 = vrot.slane %v316, 2
      %v319 = vshll.u32 %v250, 16
      %v321 = vrot.slane %v319, 3
      %v322 = vor.u32 %v318, %v321
      %v324 = vshrl.u32 %v243, 16
      %v326 = vrot.slane %v324, 2
      %v327 = vshll.u32 %v243, 16
      %v329 = vrot.slane %v327, 3
      %v330 = vor.u32 %v326, %v329
      %v331 = vsel %vm314, %v322, %v330
      %332 = vrot.lane.b32.xlu0 %v331, 64
      %v333 = vpop.permute.xlu0 %332
      %334 = vrot.lane.b32.xlu0 %v330, 64
      %v335 = vpop.permute.xlu0 %334
      %vm338 = vcmask 1044480
      %v339 = vrot.slane %v256, 3
      %v340 = vrot.slane %v257, 3
      %v341 = vsel %vm338, %v339, %v340
      %342 = vrot.lane.b32.xlu0 %v341, 80
      %v343 = vpop.permute.xlu0 %342
      %344 = vrot.lane.b32.xlu0 %v340, 80
      %v345 = vpop.permute.xlu0 %344
      %vm348 = vcmask 1043456
      %v349 = vrot.slane %v264, 4
      %v350 = vrot.slane %v265, 4
      %v351 = vsel %vm348, %v349, %v350
      %352 = vrot.lane.b32.xlu0 %v351, 96
      %v353 = vpop.permute.xlu0 %352
      %354 = vrot.lane.b32.xlu0 %v350, 96
      %v355 = vpop.permute.xlu0 %354
      %vm356 = vsmask.f32 3328
      %v358 = vshrl.u32 %v266, 16
      %v360 = vrot.slane %v358, 4
      %v361 = vshll.u32 %v266, 16
      %v363 = vrot.slane %v361, 5
      %v364 = vor.u32 %v360, %v363
      %v366 = vshrl.u32 %v259, 16
      %v368 = vrot.slane %v366, 4
      %v369 = vshll.u32 %v259, 16
      %v371 = vrot.slane %v369, 5
      %v372 = vor.u32 %v368, %v371
      %v373 = vsel %vm356, %v364, %v372
      %374 = vrot.lane.b32.xlu0 %v373, 112
      %v375 = vpop.permute.xlu0 %374
      %376 = vrot.lane.b32.xlu0 %v372, 112
      %v377 = vpop.permute.xlu0 %376
      %vm380 = vcmask 1042432
      %v381 = vrot.slane %v272, 5
      %v382 = vrot.slane %v273, 5
      %v383 = vsel %vm380, %v381, %v382
      %vm384 = vcmask 130048
      %v387 = vsel %vm384, %v216, %v291
      %v390 = vsel %vm384, %v217, %v293
      %vm391 = vcmask 261120
      %v393 = vsel %vm391, %v387, %v301
      %v395 = vsel %vm391, %v390, %v303
      %vm396 = vcmask 392192
      %v398 = vsel %vm396, %v393, %v311
      %v400 = vsel %vm396, %v395, %v313
      %vm401 = vcmask 523264
      %v403 = vsel %vm401, %v398, %v333
      %v405 = vsel %vm401, %v400, %v335
      %vm406 = vcmask 654336
      %v408 = vsel %vm406, %v403, %v343
      %v410 = vsel %vm406, %v405, %v345
      %vm411 = vcmask 785408
      %v413 = vsel %vm411, %v408, %v353
      %v415 = vsel %vm411, %v410, %v355
      %vm416 = vcmask 916480
      %v418 = vsel %vm416, %v413, %v375
      %v420 = vsel %vm416, %v415, %v377
      %v421 = vld [vmem:[%s1] sm:$0xf]
      %v422 = vld [vmem:[%s1 + $0x4] sm:$0xf]
      %v423 = vld [vmem:[%s1 + $0x8] sm:$0xf]
      %v424 = vld [vmem:[%s1 + $0xc] sm:$0xf]
      %v425 = vld [vmem:[%s1 + $0x10] sm:$0xf]
      %v426 = vld [vmem:[%s1 + $0x14] sm:$0xf]
      %v427 = vld [vmem:[%s1 + $0x18] sm:$0xf]
      %v428 = vld [vmem:[%s1 + $0x1c] sm:$0xf]
      %v429 = vld [vmem:[%s1 + $0x20] sm:$0xf]
      %v430 = vld [vmem:[%s1 + $0x24] sm:$0xf]
      %v431 = vld [vmem:[%s1 + $0x28] sm:$0xf]
      %v432 = vld [vmem:[%s1 + $0x2c] sm:$0xf]
      %v433 = vld [vmem:[%s1 + $0x30] sm:$0xf]
      %v434 = vld [vmem:[%s1 + $0x34] sm:$0xf]
      %v435 = vld [vmem:[%s1 + $0x38] sm:$0xf]
      %v436 = vld [vmem:[%s1 + $0x3c] sm:$0xf]
      %v437 = vld [vmem:[%s1 + $0x40] sm:$0xf]
      %v438 = vld [vmem:[%s1 + $0x44] sm:$0xf]
      %vm439 = vsmask.f32 6400
      %v440 = vshrl.u32 %v418, 16
      %v442 = vrot.slane %v440, 1
      %v443 = vshll.u32 %v418, 16
      %v445 = vrot.slane %v443, 2
      %v446 = vor.u32 %v442, %v445
      %v447 = vshrl.u32 %v420, 16
      %v449 = vrot.slane %v447, 1
      %v450 = vshll.u32 %v420, 16
      %v452 = vrot.slane %v450, 2
      %v453 = vor.u32 %v449, %v452
      %v454 = vsel %vm439, %v446, %v453
      %v456 = vshrl.u32 %v383, 16
      %v458 = vrot.slane %v456, 1
      %v459 = vshll.u32 %v383, 16
      %v461 = vrot.slane %v459, 2
      %v462 = vor.u32 %v458, %v461
      %v464 = vshrl.u32 %v382, 16
      %v466 = vrot.slane %v464, 1
      %v467 = vshll.u32 %v382, 16
      %v469 = vrot.slane %v467, 2
      %v470 = vor.u32 %v466, %v469
      %v471 = vsel %vm439, %v462, %v470
      %v491 = vunpack.c.l.b16 %v421
      %v492 = vunpack.c.l.b16 %v422
      %v493 = vunpack.c.l.b16 %v423
      %v494 = vunpack.c.l.b16 %v424
      %v495 = vunpack.c.l.b16 %v425
      %v496 = vunpack.c.l.b16 %v426
      %v497 = vunpack.c.l.b16 %v427
      %v498 = vunpack.c.l.b16 %v428
      %v499 = vunpack.c.l.b16 %v429
      %v500 = vunpack.c.l.b16 %v430
      %v501 = vunpack.c.l.b16 %v431
      %v502 = vunpack.c.l.b16 %v432
      %v503 = vunpack.c.l.b16 %v433
      %v504 = vunpack.c.l.b16 %v434
      %v505 = vunpack.c.l.b16 %v435
      %v506 = vunpack.c.l.b16 %v436
      %v507 = vunpack.c.l.b16 %v437
      %v508 = vunpack.c.l.b16 %v438
      %v509 = vpack.c.b16 %v492, %v491
      %v510 = vpack.c.b16 %v494, %v493
      %v511 = vpack.c.b16 %v496, %v495
      %v512 = vpack.c.b16 %v498, %v497
      %v513 = vpack.c.b16 %v500, %v499
      %v514 = vpack.c.b16 %v502, %v501
      %v515 = vpack.c.b16 %v504, %v503
      %v516 = vpack.c.b16 %v506, %v505
      %v517 = vpack.c.b16 %v508, %v507
      %v528 = vsel %vm384, %v471, 0
      %530 = vmatprep.subr.bf16.mxu0 0
      %531 = vmatpush1.bf16.msra.mxu0 %v509
      %532 = vmatprep.subr.bf16.mxu0 0
      %533 = vmatpush1.bf16.msra.mxu0 %v510
      %534 = vmatprep.subr.bf16.mxu0 0
      %535 = vmatpush1.bf16.msra.mxu0 %v511
      %536 = vmatprep.subr.bf16.mxu0 0
      %537 = vmatpush1.bf16.msra.mxu0 %v512
      %538 = vmatprep.subr.bf16.mxu0 0
      %539 = vmatpush1.bf16.msra.mxu0 %v513
      %540 = vmatprep.subr.bf16.mxu0 0
      %541 = vmatpush1.bf16.msra.mxu0 %v514
      %542 = vmatprep.subr.bf16.mxu0 0
      %543 = vmatpush1.bf16.msra.mxu0 %v515
      %544 = vmatprep.subr.bf16.mxu0 0
      %545 = vmatpush1.bf16.msra.mxu0 %v516
      %546 = vmatprep.subr.bf16.mxu0 0
      %547 = vmatpush1.bf16.msra.mxu0 %v517
      %548 = vmatprep.subr.bf16.mxu0 0
      %549 = vmatpush1.bf16.msra.mxu0 0
      %550 = vmatprep.subr.bf16.mxu0 0
      %551 = vmatpush1.bf16.msra.mxu0 0
      %552 = vmatprep.subr.bf16.mxu0 0
      %553 = vmatpush1.bf16.msra.mxu0 0
      %554 = vmatprep.subr.bf16.mxu0 0
      %555 = vmatpush1.bf16.msra.mxu0 0
      %556 = vmatprep.subr.bf16.mxu0 0
      %557 = vmatpush1.bf16.msra.mxu0 0
      %558 = vmatprep.subr.bf16.mxu0 0
      %559 = vmatpush1.bf16.msra.mxu0 0
      %560 = vmatprep.subr.bf16.mxu0 0
      %561 = vmatpush1.bf16.msra.mxu0 0
      %562 = vmatprep.mubr.bf16.mxu0 %v528
      %563 = vmatmul.mubr.bf16.gmra.mrb[0].mxu0 %v454
      %v564 = vpop.f32.mrb[0].mxu0
      %v565 = vadd.f32 0.0, %v564
      %v566 = vpop.f32.mrb[0].mxu0
      %v567 = vpop.f32.mrb[0].mxu0
      %v568 = vadd.f32 0.0, %v567
      %v569 = vpop.f32.mrb[0].mxu0
      %570 = vdwg.mxu0
      %v571 = vpack.c.bf16 %v568, %v565
      %v573 = vunpack.c.l.b16 %v571
      %v574 = vunpack.c.h.b16 %v571
      %v575 = vpack.c.b16 %v573, %v573
      %v576 = vpack.c.b16 %v574, %v574
      %vm579 = vcmask 60416
      %580 = vst.msk [vmem:[%s143] sm:$0xf] %vm579, %v575
      %581 = vst.msk [vmem:[%s143 + $0x4] sm:$0xf] %vm579, %v576
      %p582 = scmp.lt.s32.totalorder %s13, 1
      %s583 = scalar_select %p582, %s13, 1
      %s584 = smul.addr %s583, 2
      %s585 = smul.addr %s584, 4
      %s586 = scalar_lea.vmem %s2, %s585
      // Predicated region
      $region29: #{densenet_forward.20} parent=27 // pred_check
        %p587 = pneg %p78
      $region30: #{densenet_forward.20} parent=27 // pred_check_branch
        %589 = sbr.rel (%p587) target = $region32
      $region31: #{densenet_forward.20} parent=27 // pred_region
        _
      $region32: #{densenet_forward.20} parent=27 // pred_fallthru
        _
    $region28: #{densenet_forward.20} parent=5 // pred_fallthru
      _
    %p590 = scmp.le.s32.totalorder 2, %s8
    // Predicated region
    $region33: #{densenet_forward.20} parent=5 // pred_check
      %p591 = pneg %p590
    $region34: #{densenet_forward.20} parent=5 // pred_check_branch
      %593 = sbr.rel (%p591) target = $region36
    $region35: #{densenet_forward.20} parent=5 // pred_region
      %s594 = ssub.s32 %s8, 2
      // Predicated region
      $region37: #{densenet_forward.20} parent=35 // pred_check
        %p595 = pneg %p84
      $region38: #{densenet_forward.20} parent=35 // pred_check_branch
        %597 = sbr.rel (%p595) target = $region40
      $region39: #{densenet_forward.20} parent=35 // pred_region
        %p598 = scmp.lt.s32.totalorder %s14, 1
        %s599 = scalar_select %p598, %s14, 1
        %s600 = smul.addr %s599, 2
        %s601 = smul.addr %s600, 4
        %s602 = scalar_lea.vmem %s2, %s601
      $region40: #{densenet_forward.20} parent=35 // pred_fallthru
        _
    $region36: #{densenet_forward.20} parent=5 // pred_fallthru
      _
  $region6: #{densenet_forward.20} parent=0 // loop_footer
    %s12 = sadd.s32 1, %s8
  $region7: #{densenet_forward.20} parent=0 // loop_footer_branch
    %7 = sbr.rel target = $region3
  $region8: #{densenet_forward.20} parent=0 // loop_exit
    _

// kernel: densenet_forward.23
$region0: #{densenet_forward.23}
  #allocation0 [shape = 'u32[]', space=smem, size = 0x4, offset = 0x4, fixed_abs, tag = 'smem constant byte address 0x4 - core index']
  #allocation1 [shape = 'u32[144,128]{1,0:T(1,128)}', space=vmem, size = 0x12000, scoped, tag = 'internal scratch']
  #allocation2 [shape = 'f32[1,1]{1,0:T(1,128)S(1)}', space=vmem, size = 0x200, scoped, tag = 'scoped memory for densenet_forward.23']
  %s0 = inlined_call_operand.vmem [shape: bf16[2,16,32], index: 0, kind: input, shape index: {}]
  %s1 = inlined_call_operand.vmem [shape: f32[1,1,32], index: 1, kind: input, shape index: {}]
  %s2 = inlined_call_operand.vmem [shape: f32[1,1,32], index: 2, kind: input, shape index: {}]
  %s3 = inlined_call_operand.vmem [shape: bf16[32,512], index: 3, kind: input, shape index: {}]
  %s4 = inlined_call_operand.vmem [shape: f32[1,512], index: 4, kind: input, shape index: {}]
  %s5 = inlined_call_operand.vmem [shape: f32[1,512], index: 5, kind: input, shape index: {}]
  %s6 = inlined_call_operand.vmem [shape: f32[1,512], index: 6, kind: input, shape index: {}]
  %s7 = inlined_call_operand.vmem [shape: bf16[512,1], index: 7, kind: input, shape index: {}]
  %s8 = inlined_call_operand.<no memory space> [shape: f32[1,1], index: 8, kind: input, shape index: {}]
  %s9 = inlined_call_operand.vmem [shape: f32[2,1], index: 9, kind: output, shape index: {}]
  %s10 = sld [smem:[#allocation0]]
  $region46: #{densenet_forward.23} parent=0
    _
  %s12 = ssub.s32 1, %s10
  %s13 = scalar_select 0, %s12, %s10
  %v14 = vstv %s8
  %15 = vst [vmem:[#allocation2] sm:$0x1] %v14
  // Predicated region
  $region2: #{densenet_forward.23} parent=0 // pred_check
    _
  $region3: #{densenet_forward.23} parent=0 // pred_check_branch
    %17 = sbr.rel (0) target = $region5
  $region4: #{densenet_forward.23} parent=0 // pred_region
    _
  $region5: #{densenet_forward.23} parent=0 // pred_fallthru
    _
  // Predicated region
  $region6: #{densenet_forward.23} parent=0 // pred_check
    _
  $region7: #{densenet_forward.23} parent=0 // pred_check_branch
    %19 = sbr.rel (0) target = $region9
  $region8: #{densenet_forward.23} parent=0 // pred_region
    _
  $region9: #{densenet_forward.23} parent=0 // pred_fallthru
    _
  // Predicated region
  $region10: #{densenet_forward.23} parent=0 // pred_check
    _
  $region11: #{densenet_forward.23} parent=0 // pred_check_branch
    %21 = sbr.rel (0) target = $region13
  $region12: #{densenet_forward.23} parent=0 // pred_region
    _
  $region13: #{densenet_forward.23} parent=0 // pred_fallthru
    _
  // Predicated region
  $region14: #{densenet_forward.23} parent=0 // pred_check
    _
  $region15: #{densenet_forward.23} parent=0 // pred_check_branch
    %23 = sbr.rel (0) target = $region17
  $region16: #{densenet_forward.23} parent=0 // pred_region
    _
  $region17: #{densenet_forward.23} parent=0 // pred_fallthru
    _
  // Predicated region
  $region18: #{densenet_forward.23} parent=0 // pred_check
    _
  $region19: #{densenet_forward.23} parent=0 // pred_check_branch
    %25 = sbr.rel (0) target = $region21
  $region20: #{densenet_forward.23} parent=0 // pred_region
    _
  $region21: #{densenet_forward.23} parent=0 // pred_fallthru
    _
  // Predicated region
  $region22: #{densenet_forward.23} parent=0 // pred_check
    _
  $region23: #{densenet_forward.23} parent=0 // pred_check_branch
    %27 = sbr.rel (0) target = $region25
  $region24: #{densenet_forward.23} parent=0 // pred_region
    _
  $region25: #{densenet_forward.23} parent=0 // pred_fallthru
    _
  // Predicated region
  $region26: #{densenet_forward.23} parent=0 // pred_check
    _
  $region27: #{densenet_forward.23} parent=0 // pred_check_branch
    %29 = sbr.rel (0) target = $region29
  $region28: #{densenet_forward.23} parent=0 // pred_region
    _
  $region29: #{densenet_forward.23} parent=0 // pred_fallthru
    _
  // Predicated region
  $region30: #{densenet_forward.23} parent=0 // pred_check
    _
  $region31: #{densenet_forward.23} parent=0 // pred_check_branch
    %31 = sbr.rel (0) target = $region33
  $region32: #{densenet_forward.23} parent=0 // pred_region
    _
  $region33: #{densenet_forward.23} parent=0 // pred_fallthru
    _
  // Predicated region
  $region34: #{densenet_forward.23} parent=0 // pred_check
    _
  $region35: #{densenet_forward.23} parent=0 // pred_check_branch
    %33 = sbr.rel (0) target = $region37
  $region36: #{densenet_forward.23} parent=0 // pred_region
    _
  $region37: #{densenet_forward.23} parent=0 // pred_fallthru
    _
  %v35 = vld [vmem:[%s0] sm:$0xf]
  %v36 = vld [vmem:[%s0 + $0x4] sm:$0xf]
  %v37 = vld [vmem:[%s0 + $0x8] sm:$0xf]
  %v38 = vld [vmem:[%s0 + $0xc] sm:$0xf]
  %v39 = vunpack.c.l.bf16 %v35
  %v40 = vunpack.c.l.bf16 %v36
  %v41 = vunpack.c.l.bf16 %v37
  %v42 = vunpack.c.l.bf16 %v38
  %v43 = vld [vmem:[%s1] sm:$0x1]
  %v45 = vlaneseq
  %v46 = vshrl.u32 %v45, 7
  %v47 = vsub.s32 0, %v46
  %v48 = vrot.slane %v43, %v47
  %v50 = vmul.f32 %v39, %v48
  %v51 = vmul.f32 %v40, %v48
  %v52 = vmul.f32 %v41, %v48
  %v53 = vmul.f32 %v42, %v48
  %v54 = vld [vmem:[%s2] sm:$0x1]
  %v56 = vlaneseq
  %v57 = vshrl.u32 %v56, 7
  %v58 = vsub.s32 0, %v57
  %v59 = vrot.slane %v54, %v58
  %v61 = vadd.f32 %v50, %v59
  %v62 = vadd.f32 %v51, %v59
  %v63 = vadd.f32 %v52, %v59
  %v64 = vadd.f32 %v53, %v59
  %v65 = vmax.f32 %v61, 0.0
  %v66 = vmax.f32 %v62, 0.0
  %v67 = vmax.f32 %v63, 0.0
  %v68 = vmax.f32 %v64, 0.0
  %vm69 = vcmask 261120
  %v70 = vsel %vm69, %v65, 0.0
  %v71 = vsel %vm69, %v66, 0.0
  %v72 = vadd.f32 %v70, %v71
  %v73 = vrot.slane %v72, 4
  %v74 = vadd.f32 %v72, %v73
  %v75 = vrot.slane %v74, 2
  %v76 = vadd.f32 %v74, %v75
  %v77 = vrot.slane %v76, 1
  %v78 = vadd.f32 %v76, %v77
  %v79 = vsel %vm69, %v67, 0.0
  %v80 = vsel %vm69, %v68, 0.0
  %v81 = vadd.f32 %v79, %v80
  %v82 = vrot.slane %v81, 4
  %v83 = vadd.f32 %v81, %v82
  %v84 = vrot.slane %v83, 2
  %v85 = vadd.f32 %v83, %v84
  %v86 = vrot.slane %v85, 1
  %v87 = vadd.f32 %v85, %v86
  %v88 = vmul.f32 %v78, 0.0625
  %v89 = vmul.f32 %v87, 0.0625
  %v90 = vpack.c.bf16 %v88, %v88
  %v91 = vpack.c.bf16 %v89, %v89
  %v92 = vld [vmem:[%s3] sm:$0xff]
  %v93 = vld [vmem:[%s3 + $0x8] sm:$0xff]
  %v94 = vld [vmem:[%s3 + $0x10] sm:$0xff]
  %v95 = vld [vmem:[%s3 + $0x18] sm:$0xff]
  %v96 = vld [vmem:[%s3 + $0x20] sm:$0xff]
  %v97 = vld [vmem:[%s3 + $0x28] sm:$0xff]
  %v98 = vld [vmem:[%s3 + $0x30] sm:$0xff]
  %v99 = vld [vmem:[%s3 + $0x38] sm:$0xff]
  %v100 = vld [vmem:[%s4] sm:$0xf]
  %v102 = vlaneseq
  %v103 = vshrl.u32 %v102, 7
  %v104 = vsub.s32 0, %v103
  %v105 = vrot.slane %v100, %v104
  %v106 = vlaneseq
  %v107 = vshrl.u32 %v106, 7
  %v108 = vsub.s32 1, %v107
  %v109 = vrot.slane %v100, %v108
  %v110 = vlaneseq
  %v111 = vshrl.u32 %v110, 7
  %v112 = vsub.s32 2, %v111
  %v113 = vrot.slane %v100, %v112
  %v114 = vlaneseq
  %v115 = vshrl.u32 %v114, 7
  %v116 = vsub.s32 3, %v115
  %v117 = vrot.slane %v100, %v116
  %v124 = vunpack.c.l.b16 %v90
  %v125 = vunpack.c.l.b16 %v91
  %vm126 = vcmask 1041409
  %v127 = vsel %vm126, %v125, %v124
  %v128 = vpack.c.b16 %v127, %v127
  %v137 = vunpack.c.l.b16 %v92
  %v138 = vunpack.c.h.b16 %v92
  %v139 = vunpack.c.l.b16 %v93
  %v140 = vunpack.c.h.b16 %v93
  %v141 = vunpack.c.l.b16 %v94
  %v142 = vunpack.c.h.b16 %v94
  %v143 = vunpack.c.l.b16 %v95
  %v144 = vunpack.c.h.b16 %v95
  %v145 = vunpack.c.l.b16 %v96
  %v146 = vunpack.c.h.b16 %v96
  %v147 = vunpack.c.l.b16 %v97
  %v148 = vunpack.c.h.b16 %v97
  %v149 = vunpack.c.l.b16 %v98
  %v150 = vunpack.c.h.b16 %v98
  %v151 = vunpack.c.l.b16 %v99
  %v152 = vunpack.c.h.b16 %v99
  %v153 = vpack.c.b16 %v141, %v137
  %v154 = vpack.c.b16 %v142, %v138
  %v155 = vpack.c.b16 %v143, %v139
  %v156 = vpack.c.b16 %v144, %v140
  %v157 = vpack.c.b16 %v149, %v145
  %v158 = vpack.c.b16 %v150, %v146
  %v159 = vpack.c.b16 %v151, %v147
  %v160 = vpack.c.b16 %v152, %v148
  %v170 = vsel %vm69, %v128, 0
  %172 = vmatprep.subr.bf16.mxu0 %v154
  %173 = vmatpush1.bf16.msra.mxu0 %v153
  %174 = vmatprep.subr.bf16.mxu0 %v158
  %175 = vmatpush1.bf16.msra.mxu0 %v157
  %176 = vmatprep.subr.bf16.mxu0 0
  %177 = vmatpush1.bf16.msra.mxu0 0
  %178 = vmatprep.subr.bf16.mxu0 0
  %179 = vmatpush1.bf16.msra.mxu0 0
  %180 = vmatprep.subr.bf16.mxu0 0
  %181 = vmatpush1.bf16.msra.mxu0 0
  %182 = vmatprep.subr.bf16.mxu0 0
  %183 = vmatpush1.bf16.msra.mxu0 0
  %184 = vmatprep.subr.bf16.mxu0 0
  %185 = vmatpush1.bf16.msra.mxu0 0
  %186 = vmatprep.subr.bf16.mxu0 0
  %187 = vmatpush1.bf16.msra.mxu0 0
  %188 = vmatprep.subr.bf16.mxu0 0
  %189 = vmatpush1.bf16.msra.mxu0 0
  %190 = vmatprep.subr.bf16.mxu0 0
  %191 = vmatpush1.bf16.msra.mxu0 0
  %192 = vmatprep.subr.bf16.mxu0 0
  %193 = vmatpush1.bf16.msra.mxu0 0
  %194 = vmatprep.subr.bf16.mxu0 0
  %195 = vmatpush1.bf16.msra.mxu0 0
  %196 = vmatprep.subr.bf16.mxu0 0
  %197 = vmatpush1.bf16.msra.mxu0 0
  %198 = vmatprep.subr.bf16.mxu0 0
  %199 = vmatpush1.bf16.msra.mxu0 0
  %200 = vmatprep.subr.bf16.mxu0 0
  %201 = vmatpush1.bf16.msra.mxu0 0
  %202 = vmatprep.subr.bf16.mxu0 0
  %203 = vmatpush1.bf16.msra.mxu0 0
  %204 = vmatprep.mubr.bf16.mxu0 0
  %205 = vmatmul.mubr.bf16.gmra.mrb[0].mxu0 %v170
  %v206 = vpop.f32.mrb[0].mxu0
  %v207 = vadd.f32 %v105, %v206
  %v208 = vpop.f32.mrb[0].mxu0
  %v209 = vadd.f32 %v109, %v208
  %v210 = vpop.f32.mrb[0].mxu0
  %v211 = vpop.f32.mrb[0].mxu0
  %212 = vdwg.mxu0
  %213 = vmatprep.subr.bf16.mxu0 %v156
  %214 = vmatpush1.bf16.msra.mxu0 %v155
  %215 = vmatprep.subr.bf16.mxu0 %v160
  %216 = vmatpush1.bf16.msra.mxu0 %v159
  %217 = vmatprep.subr.bf16.mxu0 0
  %218 = vmatpush1.bf16.msra.mxu0 0
  %219 = vmatprep.subr.bf16.mxu0 0
  %220 = vmatpush1.bf16.msra.mxu0 0
  %221 = vmatprep.subr.bf16.mxu0 0
  %222 = vmatpush1.bf16.msra.mxu0 0
  %223 = vmatprep.subr.bf16.mxu0 0
  %224 = vmatpush1.bf16.msra.mxu0 0
  %225 = vmatprep.subr.bf16.mxu0 0
  %226 = vmatpush1.bf16.msra.mxu0 0
  %227 = vmatprep.subr.bf16.mxu0 0
  %228 = vmatpush1.bf16.msra.mxu0 0
  %229 = vmatprep.subr.bf16.mxu0 0
  %230 = vmatpush1.bf16.msra.mxu0 0
  %231 = vmatprep.subr.bf16.mxu0 0
  %232 = vmatpush1.bf16.msra.mxu0 0
  %233 = vmatprep.subr.bf16.mxu0 0
  %234 = vmatpush1.bf16.msra.mxu0 0
  %235 = vmatprep.subr.bf16.mxu0 0
  %236 = vmatpush1.bf16.msra.mxu0 0
  %237 = vmatprep.subr.bf16.mxu0 0
  %238 = vmatpush1.bf16.msra.mxu0 0
  %239 = vmatprep.subr.bf16.mxu0 0
  %240 = vmatpush1.bf16.msra.mxu0 0
  %241 = vmatprep.subr.bf16.mxu0 0
  %242 = vmatpush1.bf16.msra.mxu0 0
  %243 = vmatprep.subr.bf16.mxu0 0
  %244 = vmatpush1.bf16.msra.mxu0 0
  %245 = vmatprep.mubr.bf16.mxu0 0
  %246 = vmatmul.mubr.bf16.gmra.mrb[0].mxu0 %v170
  %v247 = vpop.f32.mrb[0].mxu0
  %v248 = vadd.f32 %v113, %v247
  %v249 = vpop.f32.mrb[0].mxu0
  %v250 = vadd.f32 %v117, %v249
  %v251 = vpop.f32.mrb[0].mxu0
  %v252 = vpop.f32.mrb[0].mxu0
  %253 = vdwg.mxu0
  %v254 = vmax.f32 %v207, 0.0
  %v255 = vmax.f32 %v209, 0.0
  %v256 = vmax.f32 %v248, 0.0
  %v257 = vmax.f32 %v250, 0.0
  %v258 = vld [vmem:[%s5] sm:$0xf]
  %v260 = vlaneseq
  %v261 = vshrl.u32 %v260, 7
  %v262 = vsub.s32 0, %v261
  %v263 = vrot.slane %v258, %v262
  %v264 = vlaneseq
  %v265 = vshrl.u32 %v264, 7
  %v266 = vsub.s32 1, %v265
  %v267 = vrot.slane %v258, %v266
  %v268 = vlaneseq
  %v269 = vshrl.u32 %v268, 7
  %v270 = vsub.s32 2, %v269
  %v271 = vrot.slane %v258, %v270
  %v272 = vlaneseq
  %v273 = vshrl.u32 %v272, 7
  %v274 = vsub.s32 3, %v273
  %v275 = vrot.slane %v258, %v274
  %v280 = vmul.f32 %v254, %v263
  %v281 = vmul.f32 %v255, %v267
  %v282 = vmul.f32 %v256, %v271
  %v283 = vmul.f32 %v257, %v275
  %v284 = vld [vmem:[%s6] sm:$0xf]
  %v286 = vlaneseq
  %v287 = vshrl.u32 %v286, 7
  %v288 = vsub.s32 0, %v287
  %v289 = vrot.slane %v284, %v288
  %v290 = vlaneseq
  %v291 = vshrl.u32 %v290, 7
  %v292 = vsub.s32 1, %v291
  %v293 = vrot.slane %v284, %v292
  %v294 = vlaneseq
  %v295 = vshrl.u32 %v294, 7
  %v296 = vsub.s32 2, %v295
  %v297 = vrot.slane %v284, %v296
  %v298 = vlaneseq
  %v299 = vshrl.u32 %v298, 7
  %v300 = vsub.s32 3, %v299
  %v301 = vrot.slane %v284, %v300
  %v306 = vadd.f32 %v280, %v289
  %v307 = vadd.f32 %v281, %v293
  %v308 = vadd.f32 %v282, %v297
  %v309 = vadd.f32 %v283, %v301
  %v310 = vpack.c.bf16 %v306, %v306
  %v311 = vpack.c.bf16 %v307, %v307
  %v312 = vpack.c.bf16 %v308, %v308
  %v313 = vpack.c.bf16 %v309, %v309
  %v314 = vld [vmem:[%s7] sm:$0xf]
  %v315 = vld [vmem:[%s7 + $0x4] sm:$0xf]
  %v316 = vld [vmem:[%s7 + $0x8] sm:$0xf]
  %v317 = vld [vmem:[%s7 + $0xc] sm:$0xf]
  %v318 = vld [vmem:[%s7 + $0x10] sm:$0xf]
  %v319 = vld [vmem:[%s7 + $0x14] sm:$0xf]
  %v320 = vld [vmem:[%s7 + $0x18] sm:$0xf]
  %v321 = vld [vmem:[%s7 + $0x1c] sm:$0xf]
  %v322 = vld [vmem:[%s7 + $0x20] sm:$0xf]
  %v323 = vld [vmem:[%s7 + $0x24] sm:$0xf]
  %v324 = vld [vmem:[%s7 + $0x28] sm:$0xf]
  %v325 = vld [vmem:[%s7 + $0x2c] sm:$0xf]
  %v326 = vld [vmem:[%s7 + $0x30] sm:$0xf]
  %v327 = vld [vmem:[%s7 + $0x34] sm:$0xf]
  %v328 = vld [vmem:[%s7 + $0x38] sm:$0xf]
  %v329 = vld [vmem:[%s7 + $0x3c] sm:$0xf]
  %v330 = vld [vmem:[%s7 + $0x40] sm:$0xf]
  %v331 = vld [vmem:[%s7 + $0x44] sm:$0xf]
  %v332 = vld [vmem:[%s7 + $0x48] sm:$0xf]
  %v333 = vld [vmem:[%s7 + $0x4c] sm:$0xf]
  %v334 = vld [vmem:[%s7 + $0x50] sm:$0xf]
  %v335 = vld [vmem:[%s7 + $0x54] sm:$0xf]
  %v336 = vld [vmem:[%s7 + $0x58] sm:$0xf]
  %v337 = vld [vmem:[%s7 + $0x5c] sm:$0xf]
  %v338 = vld [vmem:[%s7 + $0x60] sm:$0xf]
  %v339 = vld [vmem:[%s7 + $0x64] sm:$0xf]
  %v340 = vld [vmem:[%s7 + $0x68] sm:$0xf]
  %v341 = vld [vmem:[%s7 + $0x6c] sm:$0xf]
  %v342 = vld [vmem:[%s7 + $0x70] sm:$0xf]
  %v343 = vld [vmem:[%s7 + $0x74] sm:$0xf]
  %v344 = vld [vmem:[%s7 + $0x78] sm:$0xf]
  %v345 = vld [vmem:[%s7 + $0x7c] sm:$0xf]
  %v346 = vld [vmem:[%s7 + $0x80] sm:$0xf]
  %v347 = vld [vmem:[%s7 + $0x84] sm:$0xf]
  %v348 = vld [vmem:[%s7 + $0x88] sm:$0xf]
  %v349 = vld [vmem:[%s7 + $0x8c] sm:$0xf]
  %v350 = vld [vmem:[%s7 + $0x90] sm:$0xf]
  %v351 = vld [vmem:[%s7 + $0x94] sm:$0xf]
  %v352 = vld [vmem:[%s7 + $0x98] sm:$0xf]
  %v353 = vld [vmem:[%s7 + $0x9c] sm:$0xf]
  %v354 = vld [vmem:[%s7 + $0xa0] sm:$0xf]
  %v355 = vld [vmem:[%s7 + $0xa4] sm:$0xf]
  %v356 = vld [vmem:[%s7 + $0xa8] sm:$0xf]
  %v357 = vld [vmem:[%s7 + $0xac] sm:$0xf]
  %v358 = vld [vmem:[%s7 + $0xb0] sm:$0xf]
  %v359 = vld [vmem:[%s7 + $0xb4] sm:$0xf]
  %v360 = vld [vmem:[%s7 + $0xb8] sm:$0xf]
  %v361 = vld [vmem:[%s7 + $0xbc] sm:$0xf]
  %v362 = vld [vmem:[%s7 + $0xc0] sm:$0xf]
  %v363 = vld [vmem:[%s7 + $0xc4] sm:$0xf]
  %v364 = vld [vmem:[%s7 + $0xc8] sm:$0xf]
  %v365 = vld [vmem:[%s7 + $0xcc] sm:$0xf]
  %v366 = vld [vmem:[%s7 + $0xd0] sm:$0xf]
  %v367 = vld [vmem:[%s7 + $0xd4] sm:$0xf]
  %v368 = vld [vmem:[%s7 + $0xd8] sm:$0xf]
  %v369 = vld [vmem:[%s7 + $0xdc] sm:$0xf]
  %v370 = vld [vmem:[%s7 + $0xe0] sm:$0xf]
  %v371 = vld [vmem:[%s7 + $0xe4] sm:$0xf]
  %v372 = vld [vmem:[%s7 + $0xe8] sm:$0xf]
  %v373 = vld [vmem:[%s7 + $0xec] sm:$0xf]
  %v374 = vld [vmem:[%s7 + $0xf0] sm:$0xf]
  %v375 = vld [vmem:[%s7 + $0xf4] sm:$0xf]
  %v376 = vld [vmem:[%s7 + $0xf8] sm:$0xf]
  %v377 = vld [vmem:[%s7 + $0xfc] sm:$0xf]
  %v378 = vld [vmem:[#allocation2] sm:$0x1]
  %v380 = vlaneseq
  %v381 = vshrl.u32 %v380, 7
  %v382 = vsub.s32 0, %v381
  %v383 = vrot.slane %v378, %v382
  %v449 = vunpack.c.l.b16 %v314
  %v450 = vunpack.c.l.b16 %v315
  %v451 = vunpack.c.l.b16 %v316
  %v452 = vunpack.c.l.b16 %v317
  %v453 = vunpack.c.l.b16 %v318
  %v454 = vunpack.c.l.b16 %v319
  %v455 = vunpack.c.l.b16 %v320
  %v456 = vunpack.c.l.b16 %v321
  %v457 = vunpack.c.l.b16 %v322
  %v458 = vunpack.c.l.b16 %v323
  %v459 = vunpack.c.l.b16 %v324
  %v460 = vunpack.c.l.b16 %v325
  %v461 = vunpack.c.l.b16 %v326
  %v462 = vunpack.c.l.b16 %v327
  %v463 = vunpack.c.l.b16 %v328
  %v464 = vunpack.c.l.b16 %v329
  %v465 = vunpack.c.l.b16 %v330
  %v466 = vunpack.c.l.b16 %v331
  %v467 = vunpack.c.l.b16 %v332
  %v468 = vunpack.c.l.b16 %v333
  %v469 = vunpack.c.l.b16 %v334
  %v470 = vunpack.c.l.b16 %v335
  %v471 = vunpack.c.l.b16 %v336
  %v472 = vunpack.c.l.b16 %v337
  %v473 = vunpack.c.l.b16 %v338
  %v474 = vunpack.c.l.b16 %v339
  %v475 = vunpack.c.l.b16 %v340
  %v476 = vunpack.c.l.b16 %v341
  %v477 = vunpack.c.l.b16 %v342
  %v478 = vunpack.c.l.b16 %v343
  %v479 = vunpack.c.l.b16 %v344
  %v480 = vunpack.c.l.b16 %v345
  %v481 = vunpack.c.l.b16 %v346
  %v482 = vunpack.c.l.b16 %v347
  %v483 = vunpack.c.l.b16 %v348
  %v484 = vunpack.c.l.b16 %v349
  %v485 = vunpack.c.l.b16 %v350
  %v486 = vunpack.c.l.b16 %v351
  %v487 = vunpack.c.l.b16 %v352
  %v488 = vunpack.c.l.b16 %v353
  %v489 = vunpack.c.l.b16 %v354
  %v490 = vunpack.c.l.b16 %v355
  %v491 = vunpack.c.l.b16 %v356
  %v492 = vunpack.c.l.b16 %v357
  %v493 = vunpack.c.l.b16 %v358
  %v494 = vunpack.c.l.b16 %v359
  %v495 = vunpack.c.l.b16 %v360
  %v496 = vunpack.c.l.b16 %v361
  %v497 = vunpack.c.l.b16 %v362
  %v498 = vunpack.c.l.b16 %v363
  %v499 = vunpack.c.l.b16 %v364
  %v500 = vunpack.c.l.b16 %v365
  %v501 = vunpack.c.l.b16 %v366
  %v502 = vunpack.c.l.b16 %v367
  %v503 = vunpack.c.l.b16 %v368
  %v504 = vunpack.c.l.b16 %v369
  %v505 = vunpack.c.l.b16 %v370
  %v506 = vunpack.c.l.b16 %v371
  %v507 = vunpack.c.l.b16 %v372
  %v508 = vunpack.c.l.b16 %v373
  %v509 = vunpack.c.l.b16 %v374
  %v510 = vunpack.c.l.b16 %v375
  %v511 = vunpack.c.l.b16 %v376
  %v512 = vunpack.c.l.b16 %v377
  %v513 = vpack.c.b16 %v450, %v449
  %v514 = vpack.c.b16 %v452, %v451
  %v515 = vpack.c.b16 %v454, %v453
  %v516 = vpack.c.b16 %v456, %v455
  %v517 = vpack.c.b16 %v458, %v457
  %v518 = vpack.c.b16 %v460, %v459
  %v519 = vpack.c.b16 %v462, %v461
  %v520 = vpack.c.b16 %v464, %v463
  %v521 = vpack.c.b16 %v466, %v465
  %v522 = vpack.c.b16 %v468, %v467
  %v523 = vpack.c.b16 %v470, %v469
  %v524 = vpack.c.b16 %v472, %v471
  %v525 = vpack.c.b16 %v474, %v473
  %v526 = vpack.c.b16 %v476, %v475
  %v527 = vpack.c.b16 %v478, %v477
  %v528 = vpack.c.b16 %v480, %v479
  %v529 = vpack.c.b16 %v482, %v481
  %v530 = vpack.c.b16 %v484, %v483
  %v531 = vpack.c.b16 %v486, %v485
  %v532 = vpack.c.b16 %v488, %v487
  %v533 = vpack.c.b16 %v490, %v489
  %v534 = vpack.c.b16 %v492, %v491
  %v535 = vpack.c.b16 %v494, %v493
  %v536 = vpack.c.b16 %v496, %v495
  %v537 = vpack.c.b16 %v498, %v497
  %v538 = vpack.c.b16 %v500, %v499
  %v539 = vpack.c.b16 %v502, %v501
  %v540 = vpack.c.b16 %v504, %v503
  %v541 = vpack.c.b16 %v506, %v505
  %v542 = vpack.c.b16 %v508, %v507
  %v543 = vpack.c.b16 %v510, %v509
  %v544 = vpack.c.b16 %v512, %v511
  %577 = vmatprep.subr.bf16.mxu0 0
  %578 = vmatpush1.bf16.msra.mxu0 %v513
  %579 = vmatprep.subr.bf16.mxu0 0
  %580 = vmatpush1.bf16.msra.mxu0 %v514
  %581 = vmatprep.subr.bf16.mxu0 0
  %582 = vmatpush1.bf16.msra.mxu0 %v515
  %583 = vmatprep.subr.bf16.mxu0 0
  %584 = vmatpush1.bf16.msra.mxu0 %v516
  %585 = vmatprep.subr.bf16.mxu0 0
  %586 = vmatpush1.bf16.msra.mxu0 %v517
  %587 = vmatprep.subr.bf16.mxu0 0
  %588 = vmatpush1.bf16.msra.mxu0 %v518
  %589 = vmatprep.subr.bf16.mxu0 0
  %590 = vmatpush1.bf16.msra.mxu0 %v519
  %591 = vmatprep.subr.bf16.mxu0 0
  %592 = vmatpush1.bf16.msra.mxu0 %v520
  %593 = vmatprep.subr.bf16.mxu0 0
  %594 = vmatpush1.bf16.msra.mxu0 %v521
  %595 = vmatprep.subr.bf16.mxu0 0
  %596 = vmatpush1.bf16.msra.mxu0 %v522
  %597 = vmatprep.subr.bf16.mxu0 0
  %598 = vmatpush1.bf16.msra.mxu0 %v523
  %599 = vmatprep.subr.bf16.mxu0 0
  %600 = vmatpush1.bf16.msra.mxu0 %v524
  %601 = vmatprep.subr.bf16.mxu0 0
  %602 = vmatpush1.bf16.msra.mxu0 %v525
  %603 = vmatprep.subr.bf16.mxu0 0
  %604 = vmatpush1.bf16.msra.mxu0 %v526
  %605 = vmatprep.subr.bf16.mxu0 0
  %606 = vmatpush1.bf16.msra.mxu0 %v527
  %607 = vmatprep.subr.bf16.mxu0 0
  %608 = vmatpush1.bf16.msra.mxu0 %v528
  %609 = vmatprep.mubr.bf16.mxu0 %v311
  %610 = vmatmul.mubr.bf16.gmra.mrb[0].mxu0 %v310
  %v611 = vpop.f32.mrb[0].mxu0
  %v612 = vadd.f32 %v383, %v611
  %v613 = vpop.f32.mrb[0].mxu0
  %v614 = vpop.f32.mrb[0].mxu0
  %v615 = vpop.f32.mrb[0].mxu0
  %616 = vdwg.mxu0
  %617 = vmatprep.subr.bf16.mxu0 0
  %618 = vmatpush1.bf16.msra.mxu0 %v529
  %619 = vmatprep.subr.bf16.mxu0 0
  %620 = vmatpush1.bf16.msra.mxu0 %v530
  %621 = vmatprep.subr.bf16.mxu0 0
  %622 = vmatpush1.bf16.msra.mxu0 %v531
  %623 = vmatprep.subr.bf16.mxu0 0
  %624 = vmatpush1.bf16.msra.mxu0 %v532
  %625 = vmatprep.subr.bf16.mxu0 0
  %626 = vmatpush1.bf16.msra.mxu0 %v533
  %627 = vmatprep.subr.bf16.mxu0 0
  %628 = vmatpush1.bf16.msra.mxu0 %v534
  %629 = vmatprep.subr.bf16.mxu0 0
  %630 = vmatpush1.bf16.msra.mxu0 %v535
  %631 = vmatprep.subr.bf16.mxu0 0
  %632 = vmatpush1.bf16.msra.mxu0 %v536
  %633 = vmatprep.subr.bf16.mxu0 0
  %634 = vmatpush1.bf16.msra.mxu0 %v537
  %635 = vmatprep.subr.bf16.mxu0 0
  %636 = vmatpush1.bf16.msra.mxu0 %v538
  %637 = vmatprep.subr.bf16.mxu0 0
  %638 = vmatpush1.bf16.msra.mxu0 %v539
  %639 = vmatprep.subr.bf16.mxu0 0
  %640 = vmatpush1.bf16.msra.mxu0 %v540
  %641 = vmatprep.subr.bf16.mxu0 0
  %642 = vmatpush1.bf16.msra.mxu0 %v541
  %643 = vmatprep.subr.bf16.mxu0 0
  %644 = vmatpush1.bf16.msra.mxu0 %v542
  %645 = vmatprep.subr.bf16.mxu0 0
  %646 = vmatpush1.bf16.msra.mxu0 %v543
  %647 = vmatprep.subr.bf16.mxu0 0
  %648 = vmatpush1.bf16.msra.mxu0 %v544
  %649 = vmatprep.mubr.bf16.mxu0 %v313
  %650 = vmatmul.mubr.bf16.gmra.mrb[0].mxu0 %v312
  %v651 = vpop.f32.mrb[0].mxu0
  %v652 = vadd.f32 %v612, %v651
  %v653 = vpop.f32.mrb[0].mxu0
  %v654 = vpop.f32.mrb[0].mxu0
  %v655 = vpop.f32.mrb[0].mxu0
  %656 = vdwg.mxu0
  %vm657 = vcmask 1024
  %658 = vst.msk [vmem:[%s9] sm:$0x3] %vm657, %v652
  // Predicated region
  $region38: #{densenet_forward.23} parent=0 // pred_check
    _
  $region39: #{densenet_forward.23} parent=0 // pred_check_branch
    %660 = sbr.rel (0) target = $region41
  $region40: #{densenet_forward.23} parent=0 // pred_region
    _
  $region41: #{densenet_forward.23} parent=0 // pred_fallthru
    _
  // Predicated region
  $region42: #{densenet_forward.23} parent=0 // pred_check
    _
  $region43: #{densenet_forward.23} parent=0 // pred_check_branch
    %662 = sbr.rel (0) target = $region45
  $region44: #{densenet_forward.23} parent=0 // pred_region
    _
  $region45: #{densenet_forward.23} parent=0 // pred_fallthru
    _

</llo_original>
